<compile_context>
chip_gen: v7x
topology: tpu7x:2x2x1
jax: 0.10.0
libtpu: 0.0.40
codegen_flags: <defaults>
</compile_context>

<pallas_src>
import numpy as np
import jax
import jax.numpy as jnp
from jax.experimental import pallas as pl
from jax.experimental.pallas import tpu as pltpu

EPS = 1e-5
DILATIONS = (6, 12, 18)
VMEM_LIMIT = 48 * 1024 * 1024   # <= v7x 64 MiB physical; ample for v5e/v6e tiles


def _pick_row_tile(HW, target=512):
    """Largest row tile that divides HW, is a multiple of 8 and <= target."""
    for cand in range(min(HW, target), 7, -1):
        if HW % cand == 0 and cand % 8 == 0:
            return cand
    return HW   # fallback (see TODO above)


# --------------------------- pass 1: branch convolutions ----------------------------
def _make_branch_kernel(H, W, Cin, Cout, S_max, col_of):
    HW = H * W

    def kernel(x_ref, mk_ref, w1_ref, w3_ref, ybr_ref, st_ref):
        # x_ref: (P, Cin) zero-padded flat image slab; mk_ref: (HW, n_masks) f32 masks
        mk = mk_ref[...]
        x_img = x_ref[pl.ds(S_max, HW), :]                       # un-padded rows

        ys = []
        # branch 0: 1x1 conv
        ys.append(jnp.dot(x_img, w1_ref[0], preferred_element_type=jnp.float32))

        # branches 1..3: dilated 3x3 convs.  Each tap is a full-length shifted slice of
        # the padded slab (no partial-range RMW stores); h-out-of-image reads zeros
        # from the padding, w wrap-around is removed by masking the matmul OUTPUT.
        for bi, d in enumerate(DILATIONS):
            acc = None
            for ky in range(3):
                dy = (ky - 1) * d
                if abs(dy) >= H:
                    continue                                     # statically all-zero
                for kx in range(3):
                    dx = (kx - 1) * d
                    if abs(dx) >= W:
                        continue                                 # statically all-zero
                    s = dy * W + dx
                    tap = jnp.dot(x_ref[pl.ds(S_max + s, HW), :],
                                  w3_ref[bi, ky * 3 + kx],
                                  preferred_element_type=jnp.float32)
                    if dx != 0:
                        c = col_of[dx]
                        tap = tap * mk[:, c:c + 1]               # mask (rows, Cout) out
                    acc = tap if acc is None else acc + tap      # value accumulation
            ys.append(acc)

        # one lane-dense store of the 4 spatial branches' pre-BN outputs
        ybr_ref[...] = jnp.concatenate(ys, axis=1)

        # branch 4: global average pool -> 1x1 conv (kept f32: BN over only N samples
        # is ill-conditioned, bf16 here measurably hurts accuracy)
        gp = jnp.mean(x_img.astype(jnp.float32), axis=0, keepdims=True)     # (1, Cin)
        y4 = jnp.dot(gp, w1_ref[1].astype(jnp.float32),
                     preferred_element_type=jnp.float32)                    # (1, Cout)

        # fused one-pass partial BN statistics for this image (sum / sum-of-squares)
        rows = [jnp.sum(y, axis=0, keepdims=True) for y in ys]
        rows += [jnp.sum(y * y, axis=0, keepdims=True) for y in ys]
        rows.append(y4)
        st_ref[...] = jnp.concatenate(rows, axis=0)                         # (9, Cout)

    return kernel


# ------------------ pass 2: BN+ReLU, concat conv, partial mix stats -----------------
def _make_mix_kernel(compute_dtype):
    def kernel(ybr_ref, ss_ref, z4_ref, wcs_ref, wci_ref, mix_ref, mst_ref):
        ss = ss_ref[...]                                                    # (2, 4*Cout)
        y = jnp.maximum(ybr_ref[...] * ss[0:1, :] + ss[1:2, :], 0.0)        # BN + ReLU
        mix = jnp.dot(y.astype(compute_dtype), wcs_ref[...],
                      preferred_element_type=jnp.float32)                   # (T, Cout)
        zc = jnp.dot(z4_ref[...], wci_ref[...],
                     preferred_element_type=jnp.float32)                    # (1, Cout)
        mix = mix + zc        # exact "bilinear" 1x1 -> HxW upsample == broadcast add
        mix_ref[...] = mix
        mst_ref[...] = jnp.concatenate(
            [jnp.sum(mix, axis=0, keepdims=True),
             jnp.sum(mix * mix, axis=0, keepdims=True)], axis=0)            # partials
    return kernel


# ------------------- pass 3: concat BN/ReLU + classifier (lane-dense) ---------------
def _make_head_kernel(compute_dtype):
    def kernel(mix_ref, ss_ref, wf_ref, bf_ref, out_ref):
        ss = ss_ref[...]
        h = jnp.maximum(mix_ref[...] * ss[0:1, :] + ss[1:2, :], 0.0)
        out_ref[...] = (jnp.dot(h.astype(compute_dtype), wf_ref[...],
                                preferred_element_type=jnp.float32) + bf_ref[...])
    return kernel


def aspp_pallas(x_nchw, p, compute_dtype=jnp.bfloat16):
    """ASPP forward. x_nchw: (N, Cin, H, W) f32 -> (N, num_classes, H, W) f32."""
    N, Cin, H, W = x_nchw.shape
    Cout = p["w1"].shape[0]
    NC = p["wf"].shape[0]
    HW, NHW = H * W, N * H * W
    NC_pad = ((NC + 127) // 128) * 128
    S_max = max(DILATIONS) * (W + 1)          # largest |dy*W + dx| over all taps
    P = HW + 2 * S_max

    cparams = pltpu.CompilerParams(dimension_semantics=("parallel",),
                                   vmem_limit_bytes=VMEM_LIMIT)

    # ---- layout glue: NCHW -> NHWC -> per-image zero-padded flat slabs --------------
    x_flat = jnp.transpose(x_nchw, (0, 2, 3, 1)).astype(jnp.float32).reshape(N, HW, Cin)
    x_pad = (jnp.zeros((N, P, Cin), compute_dtype)
             .at[:, S_max:S_max + HW, :].set(x_flat.astype(compute_dtype)))

    # per-offset w-validity masks; h-validity is handled exactly by the zero padding
    wcoord = np.arange(HW, dtype=np.int64) % W
    cols, col_of = [], {}
    for d in DILATIONS:
        for dx in (-d, d):
            col_of[dx] = len(cols)
            cols.append(((wcoord >= -dx) & (wcoord < W - dx)).astype(np.float32))
    masks = jnp.asarray(np.stack(cols, axis=1))                              # (HW, 6)

    # ---- weights -> matmul layout (compute_dtype operands, f32 accumulation) --------
    w1_stack = jnp.stack([p["w1"][:, :, 0, 0].T,
                          p["w5"][:, :, 0, 0].T]).astype(compute_dtype)      # (2,Cin,Cout)
    w3 = jnp.stack([jnp.transpose(p[k], (2, 3, 1, 0)).reshape(9, Cin, Cout)
                    for k in ("w3a", "w3b", "w3c")]).astype(compute_dtype)   # (3,9,Cin,Cout)
    wc_full = p["wc"][:, :, 0, 0].T                                          # (5*Cout, Cout)
    wc_sp = wc_full[:4 * Cout].astype(compute_dtype)                         # (4*Cout, Cout)
    wc_img = wc_full[4 * Cout:].astype(jnp.float32)                          # (Cout, Cout)
    wf = (jnp.zeros((Cout, NC_pad), jnp.float32)
          .at[:, :NC].set(p["wf"][:, :, 0, 0].T).astype(compute_dtype))
    bf = jnp.zeros((1, NC_pad), jnp.float32).at[:, :NC].set(p["bf"].reshape(1, NC))
    # NOTE: conv biases b1/b3*/b5/bc are dropped: in training-mode BatchNorm they
    # cancel exactly against the batch-mean subtraction.  Only bf (classifier) is kept.

    # ---- pass 1 (grid over images, "parallel"): branch convs + partial BN stats -----
    ybr, st = pl.pallas_call(
        _make_branch_kernel(H, W, Cin, Cout, S_max, col_of),
        grid=(N,),
        in_specs=[
            pl.BlockSpec((None, P, Cin), lambda n: (n, 0, 0)),
            pl.BlockSpec((HW, masks.shape[1]), lambda n: (0, 0)),
            pl.BlockSpec((2, Cin, Cout), lambda n: (0, 0, 0)),
            pl.BlockSpec((3, 9, Cin, Cout), lambda n: (0, 0, 0, 0)),
        ],
        out_specs=[
            pl.BlockSpec((HW, 4 * Cout), lambda n: (n, 0)),
            pl.BlockSpec((None, 9, Cout), lambda n: (n, 0, 0)),
        ],
        out_shape=(jax.ShapeDtypeStruct((NHW, 4 * Cout), jnp.float32),
                   jax.ShapeDtypeStruct((N, 9, Cout), jnp.float32)),
        compiler_params=cparams,
    )(x_pad, masks, w1_stack, w3)

    # ---- tiny parameter-sized stat combines (wrapper glue, O(Cout) work only) --------
    # TODO(synk): at production scale use a compensated / two-pass variance combine.
    inv_sp = 1.0 / float(NHW)
    mean_b = jnp.sum(st[:, 0:4, :], axis=0) * inv_sp                         # (4, Cout)
    var_b = jnp.maximum(jnp.sum(st[:, 4:8, :], axis=0) * inv_sp - mean_b ** 2, 0.0)
    gam_sp = jnp.stack([p["g1"], p["g3a"], p["g3b"], p["g3c"]])
    bet_sp = jnp.stack([p["be1"], p["be3a"], p["be3b"], p["be3c"]])
    scale_sp = gam_sp * jax.lax.rsqrt(var_b + EPS)
    shift_sp = bet_sp - mean_b * scale_sp
    ss_sp = jnp.stack([scale_sp.reshape(-1), shift_sp.reshape(-1)])          # (2, 4*Cout)

    y4 = st[:, 8, :]                                                         # (N, Cout)
    m4 = jnp.mean(y4, axis=0, keepdims=True)
    v4 = jnp.maximum(jnp.mean(y4 * y4, axis=0, keepdims=True) - m4 ** 2, 0.0)
    scale4 = p["g5"].reshape(1, -1) * jax.lax.rsqrt(v4 + EPS)
    z4 = jnp.maximum(y4 * scale4 + (p["be5"].reshape(1, -1) - m4 * scale4), 0.0)
    z4 = z4.reshape(N, 1, Cout)                                              # stays f32

    # ---- pass 2 (row-tiled, "parallel"): BN+ReLU, concat conv, partial mix stats ----
    T = _pick_row_tile(HW)
    n_tiles = NHW // T
    mix, mst = pl.pallas_call(
        _make_mix_kernel(compute_dtype),
        grid=(n_tiles,),
        in_specs=[
            pl.BlockSpec((T, 4 * Cout), lambda i: (i, 0)),
            pl.BlockSpec((2, 4 * Cout), lambda i: (0, 0)),
            pl.BlockSpec((None, 1, Cout), lambda i: (i * T // HW, 0, 0)),
            pl.BlockSpec((4 * Cout, Cout), lambda i: (0, 0)),
            pl.BlockSpec((Cout, Cout), lambda i: (0, 0)),
        ],
        out_specs=[
            pl.BlockSpec((T, Cout), lambda i: (i, 0)),
            pl.BlockSpec((None, 2, Cout), lambda i: (i, 0, 0)),
        ],
        out_shape=(jax.ShapeDtypeStruct((NHW, Cout), jnp.float32),
                   jax.ShapeDtypeStruct((n_tiles, 2, Cout), jnp.float32)),
        compiler_params=cparams,
    )(ybr, ss_sp, z4, wc_sp, wc_img)

    mean_m = jnp.sum(mst[:, 0, :], axis=0) * inv_sp                          # (Cout,)
    var_m = jnp.maximum(jnp.sum(mst[:, 1, :], axis=0) * inv_sp - mean_m ** 2, 0.0)
    scale_m = p["gc"] * jax.lax.rsqrt(var_m + EPS)
    ss_m = jnp.stack([scale_m, p["bec"] - mean_m * scale_m])                 # (2, Cout)

    # ---- pass 3 (row-tiled, "parallel"): concat BN/ReLU + classifier ----------------
    out2d = pl.pallas_call(
        _make_head_kernel(compute_dtype),
        grid=(n_tiles,),
        in_specs=[
            pl.BlockSpec((T, Cout), lambda i: (i, 0)),
            pl.BlockSpec((2, Cout), lambda i: (0, 0)),
            pl.BlockSpec((Cout, NC_pad), lambda i: (0, 0)),
            pl.BlockSpec((1, NC_pad), lambda i: (0, 0)),
        ],
        out_specs=pl.BlockSpec((T, NC_pad), lambda i: (i, 0)),
        out_shape=jax.ShapeDtypeStruct((NHW, NC_pad), jnp.float32),
        compiler_params=cparams,
    )(mix, ss_m, wf, bf)

    out = out2d[:, :NC].reshape(N, H, W, NC)
    return jnp.transpose(out, (0, 3, 1, 2))


# ---------------------- pure-JAX reference (for verification) -----------------------
def aspp_reference(x, p):
    def conv(xx, w, bias, d=1, pad=0):
        y = jax.lax.conv_general_dilated(
            xx, w, window_strides=(1, 1), padding=[(pad, pad), (pad, pad)],
            rhs_dilation=(d, d), dimension_numbers=("NCHW", "OIHW", "NCHW"))
        return y + bias.reshape(1, -1, 1, 1)

    def bn(y, gamma, beta):
        m = jnp.mean(y, axis=(0, 2, 3), keepdims=True)
        v = jnp.mean((y - m) ** 2, axis=(0, 2, 3), keepdims=True)
        return (y - m) / jnp.sqrt(v + EPS) * gamma.reshape(1, -1, 1, 1) + beta.reshape(1, -1, 1, 1)

    relu = jax.nn.relu
    N, _, H, W = x.shape
    Cout = p["w1"].shape[0]
    o1 = relu(bn(conv(x, p["w1"], p["b1"]), p["g1"], p["be1"]))
    o2 = relu(bn(conv(x, p["w3a"], p["b3a"], 6, 6), p["g3a"], p["be3a"]))
    o3 = relu(bn(conv(x, p["w3b"], p["b3b"], 12, 12), p["g3b"], p["be3b"]))
    o4 = relu(bn(conv(x, p["w3c"], p["b3c"], 18, 18), p["g3c"], p["be3c"]))
    img = jnp.mean(x, axis=(2, 3), keepdims=True)
    img = relu(bn(conv(img, p["w5"], p["b5"]), p["g5"], p["be5"]))
    img = jnp.broadcast_to(img, (N, Cout, H, W))          # bilinear 1x1 -> HxW upsample
    cat = jnp.concatenate([o1, o2, o3, o4, img], axis=1)
    out = relu(bn(conv(cat, p["wc"], p["bc"]), p["gc"], p["bec"]))
    return conv(out, p["wf"], p["bf"])


def init_params(key, Cin, Cout, NC):
    ks = jax.random.split(key, 26)
    n = lambda k, s, sc=0.1: (jax.random.normal(k, s) * sc).astype(jnp.float32)
    return {
        "w1": n(ks[0], (Cout, Cin, 1, 1)), "b1": n(ks[1], (Cout,)),
        "w3a": n(ks[2], (Cout, Cin, 3, 3)), "b3a": n(ks[3], (Cout,)),
        "w3b": n(ks[4], (Cout, Cin, 3, 3)), "b3b": n(ks[5], (Cout,)),
        "w3c": n(ks[6], (Cout, Cin, 3, 3)), "b3c": n(ks[7], (Cout,)),
        "w5": n(ks[8], (Cout, Cin, 1, 1)), "b5": n(ks[9], (Cout,)),
        "wc": n(ks[10], (Cout, 5 * Cout, 1, 1)), "bc": n(ks[11], (Cout,)),
        "wf": n(ks[12], (NC, Cout, 1, 1)), "bf": n(ks[13], (NC,)),
        "g1": 1.0 + n(ks[14], (Cout,)), "be1": n(ks[15], (Cout,)),
        "g3a": 1.0 + n(ks[16], (Cout,)), "be3a": n(ks[17], (Cout,)),
        "g3b": 1.0 + n(ks[18], (Cout,)), "be3b": n(ks[19], (Cout,)),
        "g3c": 1.0 + n(ks[20], (Cout,)), "be3c": n(ks[21], (Cout,)),
        "g5": 1.0 + n(ks[22], (Cout,)), "be5": n(ks[23], (Cout,)),
        "gc": 1.0 + n(ks[24], (Cout,)), "bec": n(ks[25], (Cout,)),
    }


if __name__ == "__main__":
    N, Cin, Cout, NC, H, W = 2, 4, 8, 3, 16, 16

    key = jax.random.PRNGKey(0)
    kx, kp = jax.random.split(key)
    x = jax.random.normal(kx, (N, Cin, H, W), dtype=jnp.float32)
    params = init_params(kp, Cin, Cout, NC)

    ref = jax.block_until_ready(aspp_reference(x, params))

    # f32 compute: directly comparable with the f32 reference (tight tolerance)
    out_f32 = jax.block_until_ready(aspp_pallas(x, params, compute_dtype=jnp.float32))
    assert out_f32.shape == (N, NC, H, W), out_f32.shape
    np.testing.assert_allclose(np.asarray(out_f32), np.asarray(ref), rtol=5e-3, atol=5e-3)

    # bf16 compute (default / production config): looser tolerance for bf16 operands
    # through two training-mode BatchNorm normalizations.
    out = jax.block_until_ready(aspp_pallas(x, params))
    assert out.shape == (N, NC, H, W), out.shape
    np.testing.assert_allclose(np.asarray(out), np.asarray(ref), rtol=3e-2, atol=3e-2)

    print("KERNEL_OK")
</pallas_src>

<mosaic_0001>
module attributes {stable_mosaic.version = 11 : i64} {
  func.func @kernel(%arg0: i32, %arg1: memref<1x868x4xf32, #tpu.memory_space<vmem>>, %arg2: memref<256x6xf32, #tpu.memory_space<vmem>>, %arg3: memref<2x4x8xf32, #tpu.memory_space<vmem>>, %arg4: memref<3x9x4x8xf32, #tpu.memory_space<vmem>>, %arg5: memref<256x32xf32, #tpu.memory_space<vmem>>, %arg6: memref<1x9x8xf32, #tpu.memory_space<vmem>>) attributes {dimension_semantics = [#tpu.dimension_semantics<parallel>], iteration_bounds = array<i64: 2>, scalar_prefetch = 0 : i64, scratch_operands = 0 : i64, tpu.core_type = #tpu.core_type<tc>, window_params = [{transform_indices = @transform_0, window_bounds = array<i64: 1, 868, 4>}, {pipeline_mode = #tpu.pipeline_mode<synchronous>, transform_indices = @transform_1, window_bounds = array<i64: 256, 6>}, {pipeline_mode = #tpu.pipeline_mode<synchronous>, transform_indices = @transform_2, window_bounds = array<i64: 2, 4, 8>}, {pipeline_mode = #tpu.pipeline_mode<synchronous>, transform_indices = @transform_3, window_bounds = array<i64: 3, 9, 4, 8>}, {transform_indices = @transform_4, window_bounds = array<i64: 256, 32>}, {transform_indices = @transform_5, window_bounds = array<i64: 1, 9, 8>}]} {
    %c0 = arith.constant 0 : index
    %c0_0 = arith.constant 0 : index
    %0 = vector.load %arg2[%c0, %c0_0] : memref<256x6xf32, #tpu.memory_space<vmem>>, vector<256x6xf32>
    %c0_1 = arith.constant 0 : index
    %c306 = arith.constant 306 : index
    %c0_2 = arith.constant 0 : index
    %1 = vector.load %arg1[%c0_1, %c306, %c0_2] : memref<1x868x4xf32, #tpu.memory_space<vmem>>, vector<1x256x4xf32>
    %2 = vector.shape_cast %1 : vector<1x256x4xf32> to vector<256x4xf32>
    %c0_3 = arith.constant 0 : index
    %c0_4 = arith.constant 0 : index
    %c0_5 = arith.constant 0 : index
    %3 = vector.load %arg3[%c0_3, %c0_4, %c0_5] : memref<2x4x8xf32, #tpu.memory_space<vmem>>, vector<1x4x8xf32>
    %4 = vector.shape_cast %3 : vector<1x4x8xf32> to vector<4x8xf32>
    %cst = arith.constant dense<0.000000e+00> : vector<256x8xf32>
    %5 = tpu.matmul %2, %4, %cst {dimension_numbers = #tpu.dot_dimension_numbers<[1], [0], [0], [1], [0, 0, 1, 1], [], []>} : vector<256x4xf32>, vector<4x8xf32>, vector<256x8xf32> -> vector<256x8xf32>
    %c0_6 = arith.constant 0 : index
    %c204 = arith.constant 204 : index
    %c0_7 = arith.constant 0 : index
    %6 = vector.load %arg1[%c0_6, %c204, %c0_7] : memref<1x868x4xf32, #tpu.memory_space<vmem>>, vector<1x256x4xf32>
    %7 = vector.shape_cast %6 : vector<1x256x4xf32> to vector<256x4xf32>
    %c0_8 = arith.constant 0 : index
    %c0_9 = arith.constant 0 : index
    %c0_10 = arith.constant 0 : index
    %c0_11 = arith.constant 0 : index
    %8 = vector.load %arg4[%c0_8, %c0_9, %c0_10, %c0_11] : memref<3x9x4x8xf32, #tpu.memory_space<vmem>>, vector<1x1x4x8xf32>
    %9 = vector.shape_cast %8 : vector<1x1x4x8xf32> to vector<4x8xf32>
    %cst_12 = arith.constant dense<0.000000e+00> : vector<256x8xf32>
    %10 = tpu.matmul %7, %9, %cst_12 {dimension_numbers = #tpu.dot_dimension_numbers<[1], [0], [0], [1], [0, 0, 1, 1], [], []>} : vector<256x4xf32>, vector<4x8xf32>, vector<256x8xf32> -> vector<256x8xf32>
    %11 = vector.extract_strided_slice %0 {offsets = [0, 0], sizes = [256, 1], strides = [1, 1]} : vector<256x6xf32> to vector<256x1xf32>
    %12 = vector.broadcast %11 : vector<256x1xf32> to vector<256x8xf32>
    %13 = arith.mulf %10, %12 : vector<256x8xf32>
    %c0_13 = arith.constant 0 : index
    %c210 = arith.constant 210 : index
    %c0_14 = arith.constant 0 : index
    %14 = vector.load %arg1[%c0_13, %c210, %c0_14] : memref<1x868x4xf32, #tpu.memory_space<vmem>>, vector<1x256x4xf32>
    %15 = vector.shape_cast %14 : vector<1x256x4xf32> to vector<256x4xf32>
    %c0_15 = arith.constant 0 : index
    %c1 = arith.constant 1 : index
    %c0_16 = arith.constant 0 : index
    %c0_17 = arith.constant 0 : index
    %16 = vector.load %arg4[%c0_15, %c1, %c0_16, %c0_17] : memref<3x9x4x8xf32, #tpu.memory_space<vmem>>, vector<1x1x4x8xf32>
    %17 = vector.shape_cast %16 : vector<1x1x4x8xf32> to vector<4x8xf32>
    %cst_18 = arith.constant dense<0.000000e+00> : vector<256x8xf32>
    %18 = tpu.matmul %15, %17, %cst_18 {dimension_numbers = #tpu.dot_dimension_numbers<[1], [0], [0], [1], [0, 0, 1, 1], [], []>} : vector<256x4xf32>, vector<4x8xf32>, vector<256x8xf32> -> vector<256x8xf32>
    %19 = arith.addf %13, %18 : vector<256x8xf32>
    %c0_19 = arith.constant 0 : index
    %c216 = arith.constant 216 : index
    %c0_20 = arith.constant 0 : index
    %20 = vector.load %arg1[%c0_19, %c216, %c0_20] : memref<1x868x4xf32, #tpu.memory_space<vmem>>, vector<1x256x4xf32>
    %21 = vector.shape_cast %20 : vector<1x256x4xf32> to vector<256x4xf32>
    %c0_21 = arith.constant 0 : index
    %c2 = arith.constant 2 : index
    %c0_22 = arith.constant 0 : index
    %c0_23 = arith.constant 0 : index
    %22 = vector.load %arg4[%c0_21, %c2, %c0_22, %c0_23] : memref<3x9x4x8xf32, #tpu.memory_space<vmem>>, vector<1x1x4x8xf32>
    %23 = vector.shape_cast %22 : vector<1x1x4x8xf32> to vector<4x8xf32>
    %cst_24 = arith.constant dense<0.000000e+00> : vector<256x8xf32>
    %24 = tpu.matmul %21, %23, %cst_24 {dimension_numbers = #tpu.dot_dimension_numbers<[1], [0], [0], [1], [0, 0, 1, 1], [], []>} : vector<256x4xf32>, vector<4x8xf32>, vector<256x8xf32> -> vector<256x8xf32>
    %25 = vector.extract_strided_slice %0 {offsets = [0, 1], sizes = [256, 1], strides = [1, 1]} : vector<256x6xf32> to vector<256x1xf32>
    %26 = vector.broadcast %25 : vector<256x1xf32> to vector<256x8xf32>
    %27 = arith.mulf %24, %26 : vector<256x8xf32>
    %28 = arith.addf %19, %27 : vector<256x8xf32>
    %c0_25 = arith.constant 0 : index
    %c300 = arith.constant 300 : index
    %c0_26 = arith.constant 0 : index
    %29 = vector.load %arg1[%c0_25, %c300, %c0_26] : memref<1x868x4xf32, #tpu.memory_space<vmem>>, vector<1x256x4xf32>
    %30 = vector.shape_cast %29 : vector<1x256x4xf32> to vector<256x4xf32>
    %c0_27 = arith.constant 0 : index
    %c3 = arith.constant 3 : index
    %c0_28 = arith.constant 0 : index
    %c0_29 = arith.constant 0 : index
    %31 = vector.load %arg4[%c0_27, %c3, %c0_28, %c0_29] : memref<3x9x4x8xf32, #tpu.memory_space<vmem>>, vector<1x1x4x8xf32>
    %32 = vector.shape_cast %31 : vector<1x1x4x8xf32> to vector<4x8xf32>
    %cst_30 = arith.constant dense<0.000000e+00> : vector<256x8xf32>
    %33 = tpu.matmul %30, %32, %cst_30 {dimension_numbers = #tpu.dot_dimension_numbers<[1], [0], [0], [1], [0, 0, 1, 1], [], []>} : vector<256x4xf32>, vector<4x8xf32>, vector<256x8xf32> -> vector<256x8xf32>
    %34 = vector.extract_strided_slice %0 {offsets = [0, 0], sizes = [256, 1], strides = [1, 1]} : vector<256x6xf32> to vector<256x1xf32>
    %35 = vector.broadcast %34 : vector<256x1xf32> to vector<256x8xf32>
    %36 = arith.mulf %33, %35 : vector<256x8xf32>
    %37 = arith.addf %28, %36 : vector<256x8xf32>
    %c0_31 = arith.constant 0 : index
    %c306_32 = arith.constant 306 : index
    %c0_33 = arith.constant 0 : index
    %38 = vector.load %arg1[%c0_31, %c306_32, %c0_33] : memref<1x868x4xf32, #tpu.memory_space<vmem>>, vector<1x256x4xf32>
    %39 = vector.shape_cast %38 : vector<1x256x4xf32> to vector<256x4xf32>
    %c0_34 = arith.constant 0 : index
    %c4 = arith.constant 4 : index
    %c0_35 = arith.constant 0 : index
    %c0_36 = arith.constant 0 : index
    %40 = vector.load %arg4[%c0_34, %c4, %c0_35, %c0_36] : memref<3x9x4x8xf32, #tpu.memory_space<vmem>>, vector<1x1x4x8xf32>
    %41 = vector.shape_cast %40 : vector<1x1x4x8xf32> to vector<4x8xf32>
    %cst_37 = arith.constant dense<0.000000e+00> : vector<256x8xf32>
    %42 = tpu.matmul %39, %41, %cst_37 {dimension_numbers = #tpu.dot_dimension_numbers<[1], [0], [0], [1], [0, 0, 1, 1], [], []>} : vector<256x4xf32>, vector<4x8xf32>, vector<256x8xf32> -> vector<256x8xf32>
    %43 = arith.addf %37, %42 : vector<256x8xf32>
    %c0_38 = arith.constant 0 : index
    %c312 = arith.constant 312 : index
    %c0_39 = arith.constant 0 : index
    %44 = vector.load %arg1[%c0_38, %c312, %c0_39] : memref<1x868x4xf32, #tpu.memory_space<vmem>>, vector<1x256x4xf32>
    %45 = vector.shape_cast %44 : vector<1x256x4xf32> to vector<256x4xf32>
    %c0_40 = arith.constant 0 : index
    %c5 = arith.constant 5 : index
    %c0_41 = arith.constant 0 : index
    %c0_42 = arith.constant 0 : index
    %46 = vector.load %arg4[%c0_40, %c5, %c0_41, %c0_42] : memref<3x9x4x8xf32, #tpu.memory_space<vmem>>, vector<1x1x4x8xf32>
    %47 = vector.shape_cast %46 : vector<1x1x4x8xf32> to vector<4x8xf32>
    %cst_43 = arith.constant dense<0.000000e+00> : vector<256x8xf32>
    %48 = tpu.matmul %45, %47, %cst_43 {dimension_numbers = #tpu.dot_dimension_numbers<[1], [0], [0], [1], [0, 0, 1, 1], [], []>} : vector<256x4xf32>, vector<4x8xf32>, vector<256x8xf32> -> vector<256x8xf32>
    %49 = vector.extract_strided_slice %0 {offsets = [0, 1], sizes = [256, 1], strides = [1, 1]} : vector<256x6xf32> to vector<256x1xf32>
    %50 = vector.broadcast %49 : vector<256x1xf32> to vector<256x8xf32>
    %51 = arith.mulf %48, %50 : vector<256x8xf32>
    %52 = arith.addf %43, %51 : vector<256x8xf32>
    %c0_44 = arith.constant 0 : index
    %c396 = arith.constant 396 : index
    %c0_45 = arith.constant 0 : index
    %53 = vector.load %arg1[%c0_44, %c396, %c0_45] : memref<1x868x4xf32, #tpu.memory_space<vmem>>, vector<1x256x4xf32>
    %54 = vector.shape_cast %53 : vector<1x256x4xf32> to vector<256x4xf32>
    %c0_46 = arith.constant 0 : index
    %c6 = arith.constant 6 : index
    %c0_47 = arith.constant 0 : index
    %c0_48 = arith.constant 0 : index
    %55 = vector.load %arg4[%c0_46, %c6, %c0_47, %c0_48] : memref<3x9x4x8xf32, #tpu.memory_space<vmem>>, vector<1x1x4x8xf32>
    %56 = vector.shape_cast %55 : vector<1x1x4x8xf32> to vector<4x8xf32>
    %cst_49 = arith.constant dense<0.000000e+00> : vector<256x8xf32>
    %57 = tpu.matmul %54, %56, %cst_49 {dimension_numbers = #tpu.dot_dimension_numbers<[1], [0], [0], [1], [0, 0, 1, 1], [], []>} : vector<256x4xf32>, vector<4x8xf32>, vector<256x8xf32> -> vector<256x8xf32>
    %58 = vector.extract_strided_slice %0 {offsets = [0, 0], sizes = [256, 1], strides = [1, 1]} : vector<256x6xf32> to vector<256x1xf32>
    %59 = vector.broadcast %58 : vector<256x1xf32> to vector<256x8xf32>
    %60 = arith.mulf %57, %59 : vector<256x8xf32>
    %61 = arith.addf %52, %60 : vector<256x8xf32>
    %c0_50 = arith.constant 0 : index
    %c402 = arith.constant 402 : index
    %c0_51 = arith.constant 0 : index
    %62 = vector.load %arg1[%c0_50, %c402, %c0_51] : memref<1x868x4xf32, #tpu.memory_space<vmem>>, vector<1x256x4xf32>
    %63 = vector.shape_cast %62 : vector<1x256x4xf32> to vector<256x4xf32>
    %c0_52 = arith.constant 0 : index
    %c7 = arith.constant 7 : index
    %c0_53 = arith.constant 0 : index
    %c0_54 = arith.constant 0 : index
    %64 = vector.load %arg4[%c0_52, %c7, %c0_53, %c0_54] : memref<3x9x4x8xf32, #tpu.memory_space<vmem>>, vector<1x1x4x8xf32>
    %65 = vector.shape_cast %64 : vector<1x1x4x8xf32> to vector<4x8xf32>
    %cst_55 = arith.constant dense<0.000000e+00> : vector<256x8xf32>
    %66 = tpu.matmul %63, %65, %cst_55 {dimension_numbers = #tpu.dot_dimension_numbers<[1], [0], [0], [1], [0, 0, 1, 1], [], []>} : vector<256x4xf32>, vector<4x8xf32>, vector<256x8xf32> -> vector<256x8xf32>
    %67 = arith.addf %61, %66 : vector<256x8xf32>
    %c0_56 = arith.constant 0 : index
    %c408 = arith.constant 408 : index
    %c0_57 = arith.constant 0 : index
    %68 = vector.load %arg1[%c0_56, %c408, %c0_57] : memref<1x868x4xf32, #tpu.memory_space<vmem>>, vector<1x256x4xf32>
    %69 = vector.shape_cast %68 : vector<1x256x4xf32> to vector<256x4xf32>
    %c0_58 = arith.constant 0 : index
    %c8 = arith.constant 8 : index
    %c0_59 = arith.constant 0 : index
    %c0_60 = arith.constant 0 : index
    %70 = vector.load %arg4[%c0_58, %c8, %c0_59, %c0_60] : memref<3x9x4x8xf32, #tpu.memory_space<vmem>>, vector<1x1x4x8xf32>
    %71 = vector.shape_cast %70 : vector<1x1x4x8xf32> to vector<4x8xf32>
    %cst_61 = arith.constant dense<0.000000e+00> : vector<256x8xf32>
    %72 = tpu.matmul %69, %71, %cst_61 {dimension_numbers = #tpu.dot_dimension_numbers<[1], [0], [0], [1], [0, 0, 1, 1], [], []>} : vector<256x4xf32>, vector<4x8xf32>, vector<256x8xf32> -> vector<256x8xf32>
    %73 = vector.extract_strided_slice %0 {offsets = [0, 1], sizes = [256, 1], strides = [1, 1]} : vector<256x6xf32> to vector<256x1xf32>
    %74 = vector.broadcast %73 : vector<256x1xf32> to vector<256x8xf32>
    %75 = arith.mulf %72, %74 : vector<256x8xf32>
    %76 = arith.addf %67, %75 : vector<256x8xf32>
    %c0_62 = arith.constant 0 : index
    %c102 = arith.constant 102 : index
    %c0_63 = arith.constant 0 : index
    %77 = vector.load %arg1[%c0_62, %c102, %c0_63] : memref<1x868x4xf32, #tpu.memory_space<vmem>>, vector<1x256x4xf32>
    %78 = vector.shape_cast %77 : vector<1x256x4xf32> to vector<256x4xf32>
    %c1_64 = arith.constant 1 : index
    %c0_65 = arith.constant 0 : index
    %c0_66 = arith.constant 0 : index
    %c0_67 = arith.constant 0 : index
    %79 = vector.load %arg4[%c1_64, %c0_65, %c0_66, %c0_67] : memref<3x9x4x8xf32, #tpu.memory_space<vmem>>, vector<1x1x4x8xf32>
    %80 = vector.shape_cast %79 : vector<1x1x4x8xf32> to vector<4x8xf32>
    %cst_68 = arith.constant dense<0.000000e+00> : vector<256x8xf32>
    %81 = tpu.matmul %78, %80, %cst_68 {dimension_numbers = #tpu.dot_dimension_numbers<[1], [0], [0], [1], [0, 0, 1, 1], [], []>} : vector<256x4xf32>, vector<4x8xf32>, vector<256x8xf32> -> vector<256x8xf32>
    %82 = vector.extract_strided_slice %0 {offsets = [0, 2], sizes = [256, 1], strides = [1, 1]} : vector<256x6xf32> to vector<256x1xf32>
    %83 = vector.broadcast %82 : vector<256x1xf32> to vector<256x8xf32>
    %84 = arith.mulf %81, %83 : vector<256x8xf32>
    %c0_69 = arith.constant 0 : index
    %c114 = arith.constant 114 : index
    %c0_70 = arith.constant 0 : index
    %85 = vector.load %arg1[%c0_69, %c114, %c0_70] : memref<1x868x4xf32, #tpu.memory_space<vmem>>, vector<1x256x4xf32>
    %86 = vector.shape_cast %85 : vector<1x256x4xf32> to vector<256x4xf32>
    %c1_71 = arith.constant 1 : index
    %c1_72 = arith.constant 1 : index
    %c0_73 = arith.constant 0 : index
    %c0_74 = arith.constant 0 : index
    %87 = vector.load %arg4[%c1_71, %c1_72, %c0_73, %c0_74] : memref<3x9x4x8xf32, #tpu.memory_space<vmem>>, vector<1x1x4x8xf32>
    %88 = vector.shape_cast %87 : vector<1x1x4x8xf32> to vector<4x8xf32>
    %cst_75 = arith.constant dense<0.000000e+00> : vector<256x8xf32>
    %89 = tpu.matmul %86, %88, %cst_75 {dimension_numbers = #tpu.dot_dimension_numbers<[1], [0], [0], [1], [0, 0, 1, 1], [], []>} : vector<256x4xf32>, vector<4x8xf32>, vector<256x8xf32> -> vector<256x8xf32>
    %90 = arith.addf %84, %89 : vector<256x8xf32>
    %c0_76 = arith.constant 0 : index
    %c126 = arith.constant 126 : index
    %c0_77 = arith.constant 0 : index
    %91 = vector.load %arg1[%c0_76, %c126, %c0_77] : memref<1x868x4xf32, #tpu.memory_space<vmem>>, vector<1x256x4xf32>
    %92 = vector.shape_cast %91 : vector<1x256x4xf32> to vector<256x4xf32>
    %c1_78 = arith.constant 1 : index
    %c2_79 = arith.constant 2 : index
    %c0_80 = arith.constant 0 : index
    %c0_81 = arith.constant 0 : index
    %93 = vector.load %arg4[%c1_78, %c2_79, %c0_80, %c0_81] : memref<3x9x4x8xf32, #tpu.memory_space<vmem>>, vector<1x1x4x8xf32>
    %94 = vector.shape_cast %93 : vector<1x1x4x8xf32> to vector<4x8xf32>
    %cst_82 = arith.constant dense<0.000000e+00> : vector<256x8xf32>
    %95 = tpu.matmul %92, %94, %cst_82 {dimension_numbers = #tpu.dot_dimension_numbers<[1], [0], [0], [1], [0, 0, 1, 1], [], []>} : vector<256x4xf32>, vector<4x8xf32>, vector<256x8xf32> -> vector<256x8xf32>
    %96 = vector.extract_strided_slice %0 {offsets = [0, 3], sizes = [256, 1], strides = [1, 1]} : vector<256x6xf32> to vector<256x1xf32>
    %97 = vector.broadcast %96 : vector<256x1xf32> to vector<256x8xf32>
    %98 = arith.mulf %95, %97 : vector<256x8xf32>
    %99 = arith.addf %90, %98 : vector<256x8xf32>
    %c0_83 = arith.constant 0 : index
    %c294 = arith.constant 294 : index
    %c0_84 = arith.constant 0 : index
    %100 = vector.load %arg1[%c0_83, %c294, %c0_84] : memref<1x868x4xf32, #tpu.memory_space<vmem>>, vector<1x256x4xf32>
    %101 = vector.shape_cast %100 : vector<1x256x4xf32> to vector<256x4xf32>
    %c1_85 = arith.constant 1 : index
    %c3_86 = arith.constant 3 : index
    %c0_87 = arith.constant 0 : index
    %c0_88 = arith.constant 0 : index
    %102 = vector.load %arg4[%c1_85, %c3_86, %c0_87, %c0_88] : memref<3x9x4x8xf32, #tpu.memory_space<vmem>>, vector<1x1x4x8xf32>
    %103 = vector.shape_cast %102 : vector<1x1x4x8xf32> to vector<4x8xf32>
    %cst_89 = arith.constant dense<0.000000e+00> : vector<256x8xf32>
    %104 = tpu.matmul %101, %103, %cst_89 {dimension_numbers = #tpu.dot_dimension_numbers<[1], [0], [0], [1], [0, 0, 1, 1], [], []>} : vector<256x4xf32>, vector<4x8xf32>, vector<256x8xf32> -> vector<256x8xf32>
    %105 = vector.extract_strided_slice %0 {offsets = [0, 2], sizes = [256, 1], strides = [1, 1]} : vector<256x6xf32> to vector<256x1xf32>
    %106 = vector.broadcast %105 : vector<256x1xf32> to vector<256x8xf32>
    %107 = arith.mulf %104, %106 : vector<256x8xf32>
    %108 = arith.addf %99, %107 : vector<256x8xf32>
    %c0_90 = arith.constant 0 : index
    %c306_91 = arith.constant 306 : index
    %c0_92 = arith.constant 0 : index
    %109 = vector.load %arg1[%c0_90, %c306_91, %c0_92] : memref<1x868x4xf32, #tpu.memory_space<vmem>>, vector<1x256x4xf32>
    %110 = vector.shape_cast %109 : vector<1x256x4xf32> to vector<256x4xf32>
    %c1_93 = arith.constant 1 : index
    %c4_94 = arith.constant 4 : index
    %c0_95 = arith.constant 0 : index
    %c0_96 = arith.constant 0 : index
    %111 = vector.load %arg4[%c1_93, %c4_94, %c0_95, %c0_96] : memref<3x9x4x8xf32, #tpu.memory_space<vmem>>, vector<1x1x4x8xf32>
    %112 = vector.shape_cast %111 : vector<1x1x4x8xf32> to vector<4x8xf32>
    %cst_97 = arith.constant dense<0.000000e+00> : vector<256x8xf32>
    %113 = tpu.matmul %110, %112, %cst_97 {dimension_numbers = #tpu.dot_dimension_numbers<[1], [0], [0], [1], [0, 0, 1, 1], [], []>} : vector<256x4xf32>, vector<4x8xf32>, vector<256x8xf32> -> vector<256x8xf32>
    %114 = arith.addf %108, %113 : vector<256x8xf32>
    %c0_98 = arith.constant 0 : index
    %c318 = arith.constant 318 : index
    %c0_99 = arith.constant 0 : index
    %115 = vector.load %arg1[%c0_98, %c318, %c0_99] : memref<1x868x4xf32, #tpu.memory_space<vmem>>, vector<1x256x4xf32>
    %116 = vector.shape_cast %115 : vector<1x256x4xf32> to vector<256x4xf32>
    %c1_100 = arith.constant 1 : index
    %c5_101 = arith.constant 5 : index
    %c0_102 = arith.constant 0 : index
    %c0_103 = arith.constant 0 : index
    %117 = vector.load %arg4[%c1_100, %c5_101, %c0_102, %c0_103] : memref<3x9x4x8xf32, #tpu.memory_space<vmem>>, vector<1x1x4x8xf32>
    %118 = vector.shape_cast %117 : vector<1x1x4x8xf32> to vector<4x8xf32>
    %cst_104 = arith.constant dense<0.000000e+00> : vector<256x8xf32>
    %119 = tpu.matmul %116, %118, %cst_104 {dimension_numbers = #tpu.dot_dimension_numbers<[1], [0], [0], [1], [0, 0, 1, 1], [], []>} : vector<256x4xf32>, vector<4x8xf32>, vector<256x8xf32> -> vector<256x8xf32>
    %120 = vector.extract_strided_slice %0 {offsets = [0, 3], sizes = [256, 1], strides = [1, 1]} : vector<256x6xf32> to vector<256x1xf32>
    %121 = vector.broadcast %120 : vector<256x1xf32> to vector<256x8xf32>
    %122 = arith.mulf %119, %121 : vector<256x8xf32>
    %123 = arith.addf %114, %122 : vector<256x8xf32>
    %c0_105 = arith.constant 0 : index
    %c486 = arith.constant 486 : index
    %c0_106 = arith.constant 0 : index
    %124 = vector.load %arg1[%c0_105, %c486, %c0_106] : memref<1x868x4xf32, #tpu.memory_space<vmem>>, vector<1x256x4xf32>
    %125 = vector.shape_cast %124 : vector<1x256x4xf32> to vector<256x4xf32>
    %c1_107 = arith.constant 1 : index
    %c6_108 = arith.constant 6 : index
    %c0_109 = arith.constant 0 : index
    %c0_110 = arith.constant 0 : index
    %126 = vector.load %arg4[%c1_107, %c6_108, %c0_109, %c0_110] : memref<3x9x4x8xf32, #tpu.memory_space<vmem>>, vector<1x1x4x8xf32>
    %127 = vector.shape_cast %126 : vector<1x1x4x8xf32> to vector<4x8xf32>
    %cst_111 = arith.constant dense<0.000000e+00> : vector<256x8xf32>
    %128 = tpu.matmul %125, %127, %cst_111 {dimension_numbers = #tpu.dot_dimension_numbers<[1], [0], [0], [1], [0, 0, 1, 1], [], []>} : vector<256x4xf32>, vector<4x8xf32>, vector<256x8xf32> -> vector<256x8xf32>
    %129 = vector.extract_strided_slice %0 {offsets = [0, 2], sizes = [256, 1], strides = [1, 1]} : vector<256x6xf32> to vector<256x1xf32>
    %130 = vector.broadcast %129 : vector<256x1xf32> to vector<256x8xf32>
    %131 = arith.mulf %128, %130 : vector<256x8xf32>
    %132 = arith.addf %123, %131 : vector<256x8xf32>
    %c0_112 = arith.constant 0 : index
    %c498 = arith.constant 498 : index
    %c0_113 = arith.constant 0 : index
    %133 = vector.load %arg1[%c0_112, %c498, %c0_113] : memref<1x868x4xf32, #tpu.memory_space<vmem>>, vector<1x256x4xf32>
    %134 = vector.shape_cast %133 : vector<1x256x4xf32> to vector<256x4xf32>
    %c1_114 = arith.constant 1 : index
    %c7_115 = arith.constant 7 : index
    %c0_116 = arith.constant 0 : index
    %c0_117 = arith.constant 0 : index
    %135 = vector.load %arg4[%c1_114, %c7_115, %c0_116, %c0_117] : memref<3x9x4x8xf32, #tpu.memory_space<vmem>>, vector<1x1x4x8xf32>
    %136 = vector.shape_cast %135 : vector<1x1x4x8xf32> to vector<4x8xf32>
    %cst_118 = arith.constant dense<0.000000e+00> : vector<256x8xf32>
    %137 = tpu.matmul %134, %136, %cst_118 {dimension_numbers = #tpu.dot_dimension_numbers<[1], [0], [0], [1], [0, 0, 1, 1], [], []>} : vector<256x4xf32>, vector<4x8xf32>, vector<256x8xf32> -> vector<256x8xf32>
    %138 = arith.addf %132, %137 : vector<256x8xf32>
    %c0_119 = arith.constant 0 : index
    %c510 = arith.constant 510 : index
    %c0_120 = arith.constant 0 : index
    %139 = vector.load %arg1[%c0_119, %c510, %c0_120] : memref<1x868x4xf32, #tpu.memory_space<vmem>>, vector<1x256x4xf32>
    %140 = vector.shape_cast %139 : vector<1x256x4xf32> to vector<256x4xf32>
    %c1_121 = arith.constant 1 : index
    %c8_122 = arith.constant 8 : index
    %c0_123 = arith.constant 0 : index
    %c0_124 = arith.constant 0 : index
    %141 = vector.load %arg4[%c1_121, %c8_122, %c0_123, %c0_124] : memref<3x9x4x8xf32, #tpu.memory_space<vmem>>, vector<1x1x4x8xf32>
    %142 = vector.shape_cast %141 : vector<1x1x4x8xf32> to vector<4x8xf32>
    %cst_125 = arith.constant dense<0.000000e+00> : vector<256x8xf32>
    %143 = tpu.matmul %140, %142, %cst_125 {dimension_numbers = #tpu.dot_dimension_numbers<[1], [0], [0], [1], [0, 0, 1, 1], [], []>} : vector<256x4xf32>, vector<4x8xf32>, vector<256x8xf32> -> vector<256x8xf32>
    %144 = vector.extract_strided_slice %0 {offsets = [0, 3], sizes = [256, 1], strides = [1, 1]} : vector<256x6xf32> to vector<256x1xf32>
    %145 = vector.broadcast %144 : vector<256x1xf32> to vector<256x8xf32>
    %146 = arith.mulf %143, %145 : vector<256x8xf32>
    %147 = arith.addf %138, %146 : vector<256x8xf32>
    %c0_126 = arith.constant 0 : index
    %c306_127 = arith.constant 306 : index
    %c0_128 = arith.constant 0 : index
    %148 = vector.load %arg1[%c0_126, %c306_127, %c0_128] : memref<1x868x4xf32, #tpu.memory_space<vmem>>, vector<1x256x4xf32>
    %149 = vector.shape_cast %148 : vector<1x256x4xf32> to vector<256x4xf32>
    %c2_129 = arith.constant 2 : index
    %c4_130 = arith.constant 4 : index
    %c0_131 = arith.constant 0 : index
    %c0_132 = arith.constant 0 : index
    %150 = vector.load %arg4[%c2_129, %c4_130, %c0_131, %c0_132] : memref<3x9x4x8xf32, #tpu.memory_space<vmem>>, vector<1x1x4x8xf32>
    %151 = vector.shape_cast %150 : vector<1x1x4x8xf32> to vector<4x8xf32>
    %cst_133 = arith.constant dense<0.000000e+00> : vector<256x8xf32>
    %152 = tpu.matmul %149, %151, %cst_133 {dimension_numbers = #tpu.dot_dimension_numbers<[1], [0], [0], [1], [0, 0, 1, 1], [], []>} : vector<256x4xf32>, vector<4x8xf32>, vector<256x8xf32> -> vector<256x8xf32>
    %153 = tpu.concatenate %5, %76, %147, %152 in 1 : vector<256x8xf32>, vector<256x8xf32>, vector<256x8xf32>, vector<256x8xf32> -> vector<256x32xf32>
    %c0_134 = arith.constant 0 : index
    %c0_135 = arith.constant 0 : index
    %154 = vector.load %arg5[%c0_134, %c0_135] : memref<256x32xf32, #tpu.memory_space<vmem>>, vector<256x32xf32>
    tpu.vector_store %arg5[%c0_134, %c0_135], %153 {strides = array<i32>} : memref<256x32xf32, #tpu.memory_space<vmem>>, vector<256x32xf32>,
    %cst_136 = arith.constant dense<0.000000e+00> : vector<4xf32>
    %155 = vector.multi_reduction <add>, %2, %cst_136 [0] : vector<256x4xf32> to vector<4xf32>
    %156 = vector.shape_cast %155 : vector<4xf32> to vector<1x4xf32>
    %cst_137 = arith.constant 2.560000e+02 : f32
    %157 = vector.broadcast %cst_137 : f32 to vector<1x4xf32>
    %158 = arith.divf %156, %157 : vector<1x4xf32>
    %c1_138 = arith.constant 1 : index
    %c0_139 = arith.constant 0 : index
    %c0_140 = arith.constant 0 : index
    %159 = vector.load %arg3[%c1_138, %c0_139, %c0_140] : memref<2x4x8xf32, #tpu.memory_space<vmem>>, vector<1x4x8xf32>
    %160 = vector.shape_cast %159 : vector<1x4x8xf32> to vector<4x8xf32>
    %cst_141 = arith.constant dense<0.000000e+00> : vector<1x8xf32>
    %161 = tpu.matmul %158, %160, %cst_141 {dimension_numbers = #tpu.dot_dimension_numbers<[1], [0], [0], [1], [0, 0, 1, 1], [], []>} : vector<1x4xf32>, vector<4x8xf32>, vector<1x8xf32> -> vector<1x8xf32>
    %cst_142 = arith.constant dense<0.000000e+00> : vector<8xf32>
    %162 = vector.multi_reduction <add>, %5, %cst_142 [0] : vector<256x8xf32> to vector<8xf32>
    %163 = vector.shape_cast %162 : vector<8xf32> to vector<1x8xf32>
    %cst_143 = arith.constant dense<0.000000e+00> : vector<8xf32>
    %164 = vector.multi_reduction <add>, %76, %cst_143 [0] : vector<256x8xf32> to vector<8xf32>
    %165 = vector.shape_cast %164 : vector<8xf32> to vector<1x8xf32>
    %cst_144 = arith.constant dense<0.000000e+00> : vector<8xf32>
    %166 = vector.multi_reduction <add>, %147, %cst_144 [0] : vector<256x8xf32> to vector<8xf32>
    %167 = vector.shape_cast %166 : vector<8xf32> to vector<1x8xf32>
    %cst_145 = arith.constant dense<0.000000e+00> : vector<8xf32>
    %168 = vector.multi_reduction <add>, %152, %cst_145 [0] : vector<256x8xf32> to vector<8xf32>
    %169 = vector.shape_cast %168 : vector<8xf32> to vector<1x8xf32>
    %170 = arith.mulf %5, %5 : vector<256x8xf32>
    %cst_146 = arith.constant dense<0.000000e+00> : vector<8xf32>
    %171 = vector.multi_reduction <add>, %170, %cst_146 [0] : vector<256x8xf32> to vector<8xf32>
    %172 = vector.shape_cast %171 : vector<8xf32> to vector<1x8xf32>
    %173 = arith.mulf %76, %76 : vector<256x8xf32>
    %cst_147 = arith.constant dense<0.000000e+00> : vector<8xf32>
    %174 = vector.multi_reduction <add>, %173, %cst_147 [0] : vector<256x8xf32> to vector<8xf32>
    %175 = vector.shape_cast %174 : vector<8xf32> to vector<1x8xf32>
    %176 = arith.mulf %147, %147 : vector<256x8xf32>
    %cst_148 = arith.constant dense<0.000000e+00> : vector<8xf32>
    %177 = vector.multi_reduction <add>, %176, %cst_148 [0] : vector<256x8xf32> to vector<8xf32>
    %178 = vector.shape_cast %177 : vector<8xf32> to vector<1x8xf32>
    %179 = arith.mulf %152, %152 : vector<256x8xf32>
    %cst_149 = arith.constant dense<0.000000e+00> : vector<8xf32>
    %180 = vector.multi_reduction <add>, %179, %cst_149 [0] : vector<256x8xf32> to vector<8xf32>
    %181 = vector.shape_cast %180 : vector<8xf32> to vector<1x8xf32>
    %182 = tpu.concatenate %163, %165, %167, %169, %172, %175, %178, %181, %161 in 0 : vector<1x8xf32>, vector<1x8xf32>, vector<1x8xf32>, vector<1x8xf32>, vector<1x8xf32>, vector<1x8xf32>, vector<1x8xf32>, vector<1x8xf32>, vector<1x8xf32> -> vector<9x8xf32>
    %c0_150 = arith.constant 0 : index
    %c0_151 = arith.constant 0 : index
    %c0_152 = arith.constant 0 : index
    %183 = vector.load %arg6[%c0_150, %c0_151, %c0_152] : memref<1x9x8xf32, #tpu.memory_space<vmem>>, vector<1x9x8xf32>
    %184 = vector.shape_cast %183 : vector<1x9x8xf32> to vector<9x8xf32>
    %185 = vector.shape_cast %182 : vector<9x8xf32> to vector<1x9x8xf32>
    tpu.vector_store %arg6[%c0_150, %c0_151, %c0_152], %185 {strides = array<i32>} : memref<1x9x8xf32, #tpu.memory_space<vmem>>, vector<1x9x8xf32>,
    return
  }
  func.func @transform_0(%arg0: i32) -> (i32, i32, i32) {
    %c0_i32 = arith.constant 0 : i32
    %c0_i32_0 = arith.constant 0 : i32
    %c0_i32_1 = arith.constant 0 : i32
    return %arg0, %c0_i32, %c0_i32_0 : i32, i32, i32
  }
  func.func @transform_1(%arg0: i32) -> (i32, i32) {
    %c0_i32 = arith.constant 0 : i32
    %c0_i32_0 = arith.constant 0 : i32
    %c0_i32_1 = arith.constant 0 : i32
    return %c0_i32, %c0_i32_0 : i32, i32
  }
  func.func @transform_2(%arg0: i32) -> (i32, i32, i32) {
    %c0_i32 = arith.constant 0 : i32
    %c0_i32_0 = arith.constant 0 : i32
    %c0_i32_1 = arith.constant 0 : i32
    %c0_i32_2 = arith.constant 0 : i32
    return %c0_i32, %c0_i32_0, %c0_i32_1 : i32, i32, i32
  }
  func.func @transform_3(%arg0: i32) -> (i32, i32, i32, i32) {
    %c0_i32 = arith.constant 0 : i32
    %c0_i32_0 = arith.constant 0 : i32
    %c0_i32_1 = arith.constant 0 : i32
    %c0_i32_2 = arith.constant 0 : i32
    %c0_i32_3 = arith.constant 0 : i32
    return %c0_i32, %c0_i32_0, %c0_i32_1, %c0_i32_2 : i32, i32, i32, i32
  }
  func.func @transform_4(%arg0: i32) -> (i32, i32) {
    %c0_i32 = arith.constant 0 : i32
    %c0_i32_0 = arith.constant 0 : i32
    return %arg0, %c0_i32 : i32, i32
  }
  func.func @transform_5(%arg0: i32) -> (i32, i32, i32) {
    %c0_i32 = arith.constant 0 : i32
    %c0_i32_0 = arith.constant 0 : i32
    %c0_i32_1 = arith.constant 0 : i32
    return %arg0, %c0_i32, %c0_i32_0 : i32, i32, i32
  }
}

</mosaic_0001>

<llo_original>
// kernel: tpu_custom_call.1
$region0: #{tpu_custom_call.1}
  #allocation0 [shape = 'u32[]', space=smem, size = 0x4, offset = 0x4, fixed_abs, tag = 'smem constant byte address 0x4 - core index']
  #allocation1 [shape = 'u32[144,128]{1,0:T(1,128)}', space=vmem, size = 0x12000, scoped, tag = 'internal scratch']
  %s0 = inlined_call_operand.vmem [shape: f32[2,868,4], index: 0, kind: input, shape index: {}]
  %s1 = inlined_call_operand.vmem [shape: f32[256,6], index: 1, kind: input, shape index: {}]
  %s2 = inlined_call_operand.vmem [shape: f32[2,4,8], index: 2, kind: input, shape index: {}]
  %s3 = inlined_call_operand.vmem [shape: f32[3,9,4,8], index: 3, kind: input, shape index: {}]
  %s4 = inlined_call_operand.vmem [shape: f32[512,32], index: 4, kind: output, shape index: {0}]
  %s5 = inlined_call_operand.vmem [shape: f32[2,9,8], index: 5, kind: output, shape index: {1}]
  %6 = xla_tuple %s4, %s5
  %s7 = sld [smem:[#allocation0]]
  $region57: #{tpu_custom_call.1} parent=0
    _
  %s9 = ssub.s32 1, %s7
  %s10 = scalar_select 0, %s9, %s7
  loop: start=0, step=1, limit=4
  $region2: #{tpu_custom_call.1} parent=0 // loop_pre_header
    _
  $region3: #{tpu_custom_call.1} parent=0 // loop_header
    %s12 = sphi 0, %s16
    %p13 = scmp.ge.s32.totalorder %s12, 4
    %s22 = sphi 0, %s24
    %s25 = sphi 0, %s22
    %s26 = sphi 0, %s25
    %s42 = sphi 0, %s26
    %s46 = sphi 0, %s46
    %s48 = sphi 0, %s46
    %s49 = sphi 0, %s48
    %s63 = sphi 0, %s49
    %s67 = sphi 0, %s67
    %s69 = sphi 0, %s67
    %s70 = sphi 0, %s69
    %s84 = sphi 0, %s70
    %s88 = sphi 0, %s88
    %s90 = sphi 0, %s88
    %s91 = sphi 0, %s90
    %s105 = sphi 0, %s91
    %s111 = sphi 0, %s113
    %s114 = sphi 0, %s111
    %s115 = sphi 0, %s114
    %s131 = sphi 0, %s115
    %s137 = sphi 0, %s139
    %s140 = sphi 0, %s137
    %s141 = sphi 0, %s140
    %s157 = sphi 0, %s141
  $region4: #{tpu_custom_call.1} parent=0 // loop_header_branch
    %15 = sbr.rel (%p13) target = $region8
  $region5: #{tpu_custom_call.1} parent=0 // loop_body
    %s17 = ssub.s32 %s12, 1
    %s18 = ssub.s32 %s12, 2
    %s19 = sadd.s32 %s12, 1
    %s20 = ssub.s32 %s12, %s19
    %p21 = scmp.eq.s32.totalorder %s20, 0
    %s23 = sadd.s32 %s22, 1
    %s24 = scalar_select %p21, %s22, %s23
    %p27 = pneg %p21
    %p28 = scmp.eq.s32.totalorder %s12, 1
    %p29 = por %p27, %p28
    %p30 = scmp.ne.s32.totalorder %s22, %s25
    %p31 = scmp.eq.s32.totalorder %s12, 0
    %p32 = por %p30, %p31
    %p33 = scmp.ne.s32.totalorder %s22, %s25
    %p34 = scmp.eq.s32.totalorder %s17, 1
    %p35 = por %p33, %p34
    %p36 = scmp.ne.s32.totalorder %s25, %s26
    %p37 = scmp.eq.s32.totalorder %s17, 0
    %p38 = por %p36, %p37
    %p39 = scmp.ne.s32.totalorder %s25, %s26
    %p40 = scmp.eq.s32.totalorder %s18, 1
    %p41 = por %p39, %p40
    %p43 = scmp.ne.s32.totalorder %s26, %s42
    %p44 = scmp.eq.s32.totalorder %s18, 0
    %p45 = por %p43, %p44
    %s47 = sadd.s32 %s46, 1
    %p50 = scmp.eq.s32.totalorder %s12, 1
    %p51 = scmp.ne.s32.totalorder %s46, %s48
    %p52 = scmp.eq.s32.totalorder %s12, 0
    %p53 = por %p51, %p52
    %p54 = scmp.ne.s32.totalorder %s46, %s48
    %p55 = scmp.eq.s32.totalorder %s17, 1
    %p56 = por %p54, %p55
    %p57 = scmp.ne.s32.totalorder %s48, %s49
    %p58 = scmp.eq.s32.totalorder %s17, 0
    %p59 = por %p57, %p58
    %p60 = scmp.ne.s32.totalorder %s48, %s49
    %p61 = scmp.eq.s32.totalorder %s18, 1
    %p62 = por %p60, %p61
    %p64 = scmp.ne.s32.totalorder %s49, %s63
    %p65 = scmp.eq.s32.totalorder %s18, 0
    %p66 = por %p64, %p65
    %s68 = sadd.s32 %s67, 1
    %p71 = scmp.eq.s32.totalorder %s12, 1
    %p72 = scmp.ne.s32.totalorder %s67, %s69
    %p73 = scmp.eq.s32.totalorder %s12, 0
    %p74 = por %p72, %p73
    %p75 = scmp.ne.s32.totalorder %s67, %s69
    %p76 = scmp.eq.s32.totalorder %s17, 1
    %p77 = por %p75, %p76
    %p78 = scmp.ne.s32.totalorder %s69, %s70
    %p79 = scmp.eq.s32.totalorder %s17, 0
    %p80 = por %p78, %p79
    %p81 = scmp.ne.s32.totalorder %s69, %s70
    %p82 = scmp.eq.s32.totalorder %s18, 1
    %p83 = por %p81, %p82
    %p85 = scmp.ne.s32.totalorder %s70, %s84
    %p86 = scmp.eq.s32.totalorder %s18, 0
    %p87 = por %p85, %p86
    %s89 = sadd.s32 %s88, 1
    %p92 = scmp.eq.s32.totalorder %s12, 1
    %p93 = scmp.ne.s32.totalorder %s88, %s90
    %p94 = scmp.eq.s32.totalorder %s12, 0
    %p95 = por %p93, %p94
    %p96 = scmp.ne.s32.totalorder %s88, %s90
    %p97 = scmp.eq.s32.totalorder %s17, 1
    %p98 = por %p96, %p97
    %p99 = scmp.ne.s32.totalorder %s90, %s91
    %p100 = scmp.eq.s32.totalorder %s17, 0
    %p101 = por %p99, %p100
    %p102 = scmp.ne.s32.totalorder %s90, %s91
    %p103 = scmp.eq.s32.totalorder %s18, 1
    %p104 = por %p102, %p103
    %p106 = scmp.ne.s32.totalorder %s91, %s105
    %p107 = scmp.eq.s32.totalorder %s18, 0
    %p108 = por %p106, %p107
    %s109 = ssub.s32 %s12, %s19
    %p110 = scmp.eq.s32.totalorder %s109, 0
    %s112 = sadd.s32 %s111, 1
    %s113 = scalar_select %p110, %s111, %s112
    %p116 = pneg %p110
    %p117 = scmp.eq.s32.totalorder %s12, 1
    %p118 = por %p116, %p117
    %p119 = scmp.ne.s32.totalorder %s111, %s114
    %p120 = scmp.eq.s32.totalorder %s12, 0
    %p121 = por %p119, %p120
    %p122 = scmp.ne.s32.totalorder %s111, %s114
    %p123 = scmp.eq.s32.totalorder %s17, 1
    %p124 = por %p122, %p123
    %p125 = scmp.ne.s32.totalorder %s114, %s115
    %p126 = scmp.eq.s32.totalorder %s17, 0
    %p127 = por %p125, %p126
    %p128 = scmp.ne.s32.totalorder %s114, %s115
    %p129 = scmp.eq.s32.totalorder %s18, 1
    %p130 = por %p128, %p129
    %p132 = scmp.ne.s32.totalorder %s115, %s131
    %p133 = scmp.eq.s32.totalorder %s18, 0
    %p134 = por %p132, %p133
    %s135 = ssub.s32 %s12, %s19
    %p136 = scmp.eq.s32.totalorder %s135, 0
    %s138 = sadd.s32 %s137, 1
    %s139 = scalar_select %p136, %s137, %s138
    %p142 = pneg %p136
    %p143 = scmp.eq.s32.totalorder %s12, 1
    %p144 = por %p142, %p143
    %p145 = scmp.ne.s32.totalorder %s137, %s140
    %p146 = scmp.eq.s32.totalorder %s12, 0
    %p147 = por %p145, %p146
    %p148 = scmp.ne.s32.totalorder %s137, %s140
    %p149 = scmp.eq.s32.totalorder %s17, 1
    %p150 = por %p148, %p149
    %p151 = scmp.ne.s32.totalorder %s140, %s141
    %p152 = scmp.eq.s32.totalorder %s17, 0
    %p153 = por %p151, %p152
    %p154 = scmp.ne.s32.totalorder %s140, %s141
    %p155 = scmp.eq.s32.totalorder %s18, 1
    %p156 = por %p154, %p155
    %p158 = scmp.ne.s32.totalorder %s141, %s157
    %p159 = scmp.eq.s32.totalorder %s18, 0
    %p160 = por %p158, %p159
    %p161 = scmp.le.s32.totalorder 1, %s12
    %p162 = scmp.lt.s32.totalorder %s12, 3
    %p163 = pnand %p161, %p162
    %p164 = pneg %p163
    // Predicated region
    $region9: #{tpu_custom_call.1} parent=5 // pred_check
      _
    $region10: #{tpu_custom_call.1} parent=5 // pred_check_branch
      %166 = sbr.rel (%p163) target = $region12
    $region11: #{tpu_custom_call.1} parent=5 // pred_region
      %s167 = ssub.s32 %s12, 1
      // Predicated region
      $region13: #{tpu_custom_call.1} parent=11 // pred_check
        %p168 = pneg %p59
      $region14: #{tpu_custom_call.1} parent=11 // pred_check_branch
        %170 = sbr.rel (%p168) target = $region16
      $region15: #{tpu_custom_call.1} parent=11 // pred_region
        _
      $region16: #{tpu_custom_call.1} parent=11 // pred_fallthru
        _
      // Predicated region
      $region17: #{tpu_custom_call.1} parent=11 // pred_check
        %p171 = pneg %p80
      $region18: #{tpu_custom_call.1} parent=11 // pred_check_branch
        %173 = sbr.rel (%p171) target = $region20
      $region19: #{tpu_custom_call.1} parent=11 // pred_region
        _
      $region20: #{tpu_custom_call.1} parent=11 // pred_fallthru
        _
      // Predicated region
      $region21: #{tpu_custom_call.1} parent=11 // pred_check
        %p174 = pneg %p101
      $region22: #{tpu_custom_call.1} parent=11 // pred_check_branch
        %176 = sbr.rel (%p174) target = $region24
      $region23: #{tpu_custom_call.1} parent=11 // pred_region
        _
      $region24: #{tpu_custom_call.1} parent=11 // pred_fallthru
        _
    $region12: #{tpu_custom_call.1} parent=5 // pred_fallthru
      _
    %p177 = scmp.lt.s32.totalorder %s12, 2
    // Predicated region
    $region25: #{tpu_custom_call.1} parent=5 // pred_check
      %p178 = pneg %p177
    $region26: #{tpu_custom_call.1} parent=5 // pred_check_branch
      %180 = sbr.rel (%p178) target = $region28
    $region27: #{tpu_custom_call.1} parent=5 // pred_region
      // Predicated region
      $region29: #{tpu_custom_call.1} parent=27 // pred_check
        %p181 = pneg %p32
      $region30: #{tpu_custom_call.1} parent=27 // pred_check_branch
        %183 = sbr.rel (%p181) target = $region32
      $region31: #{tpu_custom_call.1} parent=27 // pred_region
        %p184 = scmp.lt.s32.totalorder %s12, 1
        %s185 = scalar_select %p184, %s12, 1
        %s186 = smul.addr %s185, 109
        %s187 = smul.addr %s186, 8
        %s188 = scalar_lea.vmem %s0, %s187
      $region32: #{tpu_custom_call.1} parent=27 // pred_fallthru
        _
    $region28: #{tpu_custom_call.1} parent=5 // pred_fallthru
      _
    %p189 = scmp.le.s32.totalorder 1, %s12
    %p190 = scmp.lt.s32.totalorder %s12, 3
    %p191 = pnand %p189, %p190
    %p192 = pneg %p191
    // Predicated region
    $region33: #{tpu_custom_call.1} parent=5 // pred_check
      _
    $region34: #{tpu_custom_call.1} parent=5 // pred_check_branch
      %194 = sbr.rel (%p191) target = $region36
    $region35: #{tpu_custom_call.1} parent=5 // pred_region
      %s195 = ssub.s32 %s12, 1
      %p196 = scmp.lt.s32.totalorder %s17, 1
      %s197 = scalar_select %p196, %s17, 1
      %s198 = smul.addr %s197, 109
      %s199 = smul.addr %s198, 8
      %s200 = scalar_lea.vmem %s0, %s199
      %p201 = pneg %p38
      %p202 = pneg %p35
      %p203 = pneg %p59
      %p204 = pneg %p56
      %p205 = pneg %p80
      %p206 = pneg %p77
      %p207 = pneg %p101
      %p208 = pneg %p98
      %p209 = pneg %p127
      %p210 = pneg %p124
      %s211 = smul.u32 32, %s17
      %p212 = scmp.lt.s32.totalorder %s211, 63
      %s213 = scalar_select %p212, %s211, 63
      %s214 = smul.addr %s213, 8
      %s215 = scalar_lea.vmem %s4, %s214
      %p216 = pneg %p153
      %p217 = pneg %p150
      %p218 = scmp.lt.s32.totalorder %s17, 1
      %s219 = scalar_select %p218, %s17, 1
      %s220 = smul.addr %s219, 2
      %s221 = smul.addr %s220, 8
      %s222 = scalar_lea.vmem %s5, %s221
      %p223 = scmp.lt.s32.totalorder %s17, 1
      %s224 = scalar_select %p223, %s17, 1
      %s225 = smul.addr %s224, 109
      %s226 = smul.addr %s225, 8
      %s227 = scalar_lea.vmem %s0, %s226
      %s228 = smul.u32 32, %s17
      %p229 = scmp.lt.s32.totalorder %s228, 63
      %s230 = scalar_select %p229, %s228, 63
      %s231 = smul.addr %s230, 8
      %s232 = scalar_lea.vmem %s4, %s231
      %s233 = smul.u32 32, %s17
      %p234 = scmp.lt.s32.totalorder %s17, 1
      %s235 = scalar_select %p234, %s17, 1
      %s236 = smul.addr %s235, 2
      %s237 = smul.addr %s236, 8
      %s238 = scalar_lea.vmem %s5, %s237
      %v239 = vld [vmem:[%s1] sm:$0xff]
      %v240 = vld [vmem:[%s1 + $0x8] sm:$0xff]
      %v241 = vld [vmem:[%s1 + $0x10] sm:$0xff]
      %v242 = vld [vmem:[%s1 + $0x18] sm:$0xff]
      %v243 = vld [vmem:[%s1 + $0x20] sm:$0xff]
      %v244 = vld [vmem:[%s1 + $0x28] sm:$0xff]
      %v245 = vld [vmem:[%s1 + $0x30] sm:$0xff]
      %v246 = vld [vmem:[%s1 + $0x38] sm:$0xff]
      %v247 = vld [vmem:[%s1 + $0x40] sm:$0xff]
      %v248 = vld [vmem:[%s1 + $0x48] sm:$0xff]
      %v249 = vld [vmem:[%s1 + $0x50] sm:$0xff]
      %v250 = vld [vmem:[%s1 + $0x58] sm:$0xff]
      %v251 = vld [vmem:[%s1 + $0x60] sm:$0xff]
      %v252 = vld [vmem:[%s1 + $0x68] sm:$0xff]
      %v253 = vld [vmem:[%s1 + $0x70] sm:$0xff]
      %v254 = vld [vmem:[%s1 + $0x78] sm:$0xff]
      %v255 = vld [vmem:[%s1 + $0x80] sm:$0xff]
      %v256 = vld [vmem:[%s1 + $0x88] sm:$0xff]
      %v257 = vld [vmem:[%s1 + $0x90] sm:$0xff]
      %v258 = vld [vmem:[%s1 + $0x98] sm:$0xff]
      %v259 = vld [vmem:[%s1 + $0xa0] sm:$0xff]
      %v260 = vld [vmem:[%s1 + $0xa8] sm:$0xff]
      %v261 = vld [vmem:[%s1 + $0xb0] sm:$0xff]
      %v262 = vld [vmem:[%s1 + $0xb8] sm:$0xff]
      %v263 = vld [vmem:[%s1 + $0xc0] sm:$0xff]
      %v264 = vld [vmem:[%s1 + $0xc8] sm:$0xff]
      %v265 = vld [vmem:[%s1 + $0xd0] sm:$0xff]
      %v266 = vld [vmem:[%s1 + $0xd8] sm:$0xff]
      %v267 = vld [vmem:[%s1 + $0xe0] sm:$0xff]
      %v268 = vld [vmem:[%s1 + $0xe8] sm:$0xff]
      %v269 = vld [vmem:[%s1 + $0xf0] sm:$0xff]
      %v270 = vld [vmem:[%s1 + $0xf8] sm:$0xff]
      %v271 = vld [vmem:[%s227 + $0x132] sm:$0xff]
      %v272 = vld [vmem:[%s227 + $0x13a] sm:$0xff]
      %v273 = vld [vmem:[%s227 + $0x142] sm:$0xff]
      %v274 = vld [vmem:[%s227 + $0x14a] sm:$0xff]
      %v275 = vld [vmem:[%s227 + $0x152] sm:$0xff]
      %v276 = vld [vmem:[%s227 + $0x15a] sm:$0xff]
      %v277 = vld [vmem:[%s227 + $0x162] sm:$0xff]
      %v278 = vld [vmem:[%s227 + $0x16a] sm:$0xff]
      %v279 = vld [vmem:[%s227 + $0x172] sm:$0xff]
      %v280 = vld [vmem:[%s227 + $0x17a] sm:$0xff]
      %v281 = vld [vmem:[%s227 + $0x182] sm:$0xff]
      %v282 = vld [vmem:[%s227 + $0x18a] sm:$0xff]
      %v283 = vld [vmem:[%s227 + $0x192] sm:$0xff]
      %v284 = vld [vmem:[%s227 + $0x19a] sm:$0xff]
      %v285 = vld [vmem:[%s227 + $0x1a2] sm:$0xff]
      %v286 = vld [vmem:[%s227 + $0x1aa] sm:$0xff]
      %v287 = vld [vmem:[%s227 + $0x1b2] sm:$0xff]
      %v288 = vld [vmem:[%s227 + $0x1ba] sm:$0xff]
      %v289 = vld [vmem:[%s227 + $0x1c2] sm:$0xff]
      %v290 = vld [vmem:[%s227 + $0x1ca] sm:$0xff]
      %v291 = vld [vmem:[%s227 + $0x1d2] sm:$0xff]
      %v292 = vld [vmem:[%s227 + $0x1da] sm:$0xff]
      %v293 = vld [vmem:[%s227 + $0x1e2] sm:$0xff]
      %v294 = vld [vmem:[%s227 + $0x1ea] sm:$0xff]
      %v295 = vld [vmem:[%s227 + $0x1f2] sm:$0xff]
      %v296 = vld [vmem:[%s227 + $0x1fa] sm:$0xff]
      %v297 = vld [vmem:[%s227 + $0x202] sm:$0xff]
      %v298 = vld [vmem:[%s227 + $0x20a] sm:$0xff]
      %v299 = vld [vmem:[%s227 + $0x212] sm:$0xff]
      %v300 = vld [vmem:[%s227 + $0x21a] sm:$0xff]
      %v301 = vld [vmem:[%s227 + $0x222] sm:$0xff]
      %v302 = vld [vmem:[%s227 + $0x22a] sm:$0xff]
      %v303 = vld [vmem:[%s2] sm:$0xf]
      %vm304 = vcmask 31744
      %v306 = vsel %vm304, %v271, 0
      %v309 = vsel %vm304, %v272, 0
      %v312 = vsel %vm304, %v273, 0
      %v315 = vsel %vm304, %v274, 0
      %v318 = vsel %vm304, %v275, 0
      %v321 = vsel %vm304, %v276, 0
      %v324 = vsel %vm304, %v277, 0
      %v327 = vsel %vm304, %v278, 0
      %v330 = vsel %vm304, %v279, 0
      %v333 = vsel %vm304, %v280, 0
      %v336 = vsel %vm304, %v281, 0
      %v339 = vsel %vm304, %v282, 0
      %v342 = vsel %vm304, %v283, 0
      %v345 = vsel %vm304, %v284, 0
      %v348 = vsel %vm304, %v285, 0
      %v351 = vsel %vm304, %v286, 0
      %v354 = vsel %vm304, %v287, 0
      %v357 = vsel %vm304, %v288, 0
      %v360 = vsel %vm304, %v289, 0
      %v363 = vsel %vm304, %v290, 0
      %v366 = vsel %vm304, %v291, 0
      %v369 = vsel %vm304, %v292, 0
      %v372 = vsel %vm304, %v293, 0
      %v375 = vsel %vm304, %v294, 0
      %v378 = vsel %vm304, %v295, 0
      %v381 = vsel %vm304, %v296, 0
      %v384 = vsel %vm304, %v297, 0
      %v387 = vsel %vm304, %v298, 0
      %v390 = vsel %vm304, %v299, 0
      %v393 = vsel %vm304, %v300, 0
      %v396 = vsel %vm304, %v301, 0
      %v399 = vsel %vm304, %v302, 0
      %vm401 = vcmask 1043456
      %v403 = vsel %vm401, %v303, 0
      %405 = vmatprep.subr.mxu0 0.0
      %406 = vmatpush1.msra.mxu0 %v403
      %407 = vmatprep.subr.mxu0 0.0
      %408 = vmatpush1.msra.mxu0 0.0
      %409 = vmatprep.subr.mxu0 0.0
      %410 = vmatpush1.msra.mxu0 0.0
      %411 = vmatprep.subr.mxu0 0.0
      %412 = vmatpush1.msra.mxu0 0.0
      %413 = vmatprep.subr.mxu0 0.0
      %414 = vmatpush1.msra.mxu0 0.0
      %415 = vmatprep.subr.mxu0 0.0
      %416 = vmatpush1.msra.mxu0 0.0
      %417 = vmatprep.subr.mxu0 0.0
      %418 = vmatpush1.msra.mxu0 0.0
      %419 = vmatprep.subr.mxu0 0.0
      %420 = vmatpush1.msra.mxu0 0.0
      %421 = vmatprep.subr.mxu0 0.0
      %422 = vmatpush1.msra.mxu0 0.0
      %423 = vmatprep.subr.mxu0 0.0
      %424 = vmatpush1.msra.mxu0 0.0
      %425 = vmatprep.subr.mxu0 0.0
      %426 = vmatpush1.msra.mxu0 0.0
      %427 = vmatprep.subr.mxu0 0.0
      %428 = vmatpush1.msra.mxu0 0.0
      %429 = vmatprep.subr.mxu0 0.0
      %430 = vmatpush1.msra.mxu0 0.0
      %431 = vmatprep.subr.mxu0 0.0
      %432 = vmatpush1.msra.mxu0 0.0
      %433 = vmatprep.subr.mxu0 0.0
      %434 = vmatpush1.msra.mxu0 0.0
      %435 = vmatprep.subr.mxu0 0.0
      %436 = vmatpush1.msra.mxu0 0.0
      %437 = vmatprep.subr.mxu0 0.0
      %438 = vmatpush1.msra.mxu0 0.0
      %439 = vmatprep.subr.mxu0 0.0
      %440 = vmatpush1.msra.mxu0 0.0
      %441 = vmatprep.subr.mxu0 0.0
      %442 = vmatpush1.msra.mxu0 0.0
      %443 = vmatprep.subr.mxu0 0.0
      %444 = vmatpush1.msra.mxu0 0.0
      %445 = vmatprep.subr.mxu0 0.0
      %446 = vmatpush1.msra.mxu0 0.0
      %447 = vmatprep.subr.mxu0 0.0
      %448 = vmatpush1.msra.mxu0 0.0
      %449 = vmatprep.subr.mxu0 0.0
      %450 = vmatpush1.msra.mxu0 0.0
      %451 = vmatprep.subr.mxu0 0.0
      %452 = vmatpush1.msra.mxu0 0.0
      %453 = vmatprep.subr.mxu0 0.0
      %454 = vmatpush1.msra.mxu0 0.0
      %455 = vmatprep.subr.mxu0 0.0
      %456 = vmatpush1.msra.mxu0 0.0
      %457 = vmatprep.subr.mxu0 0.0
      %458 = vmatpush1.msra.mxu0 0.0
      %459 = vmatprep.subr.mxu0 0.0
      %460 = vmatpush1.msra.mxu0 0.0
      %461 = vmatprep.subr.mxu0 0.0
      %462 = vmatpush1.msra.mxu0 0.0
      %463 = vmatprep.subr.mxu0 0.0
      %464 = vmatpush1.msra.mxu0 0.0
      %465 = vmatprep.subr.mxu0 0.0
      %466 = vmatpush1.msra.mxu0 0.0
      %467 = vmatprep.subr.mxu0 0.0
      %468 = vmatpush1.msra.mxu0 0.0
      %469 = vmatprep.mubr.f32.mxu0 0.0
      %470 = vmatmul.mubr.f32.gmra.mrb[0].mxu0 %v306
      %v471 = vpop.f32.mrb[0].mxu0
      %v472 = vadd.f32 0.0, %v471
      %v473 = vpop.f32.mrb[0].mxu0
      %474 = vmatprep.mubr.f32.mxu0 0.0
      %475 = vmatmul.mubr.f32.gmra.mrb[0].mxu0 %v309
      %v476 = vpop.f32.mrb[0].mxu0
      %v477 = vadd.f32 0.0, %v476
      %v478 = vpop.f32.mrb[0].mxu0
      %479 = vmatprep.mubr.f32.mxu0 0.0
      %480 = vmatmul.mubr.f32.gmra.mrb[0].mxu0 %v312
      %v481 = vpop.f32.mrb[0].mxu0
      %v482 = vadd.f32 0.0, %v481
      %v483 = vpop.f32.mrb[0].mxu0
      %484 = vmatprep.mubr.f32.mxu0 0.0
      %485 = vmatmul.mubr.f32.gmra.mrb[0].mxu0 %v315
      %v486 = vpop.f32.mrb[0].mxu0
      %v487 = vadd.f32 0.0, %v486
      %v488 = vpop.f32.mrb[0].mxu0
      %489 = vmatprep.mubr.f32.mxu0 0.0
      %490 = vmatmul.mubr.f32.gmra.mrb[0].mxu0 %v318
      %v491 = vpop.f32.mrb[0].mxu0
      %v492 = vadd.f32 0.0, %v491
      %v493 = vpop.f32.mrb[0].mxu0
      %494 = vmatprep.mubr.f32.mxu0 0.0
      %495 = vmatmul.mubr.f32.gmra.mrb[0].mxu0 %v321
      %v496 = vpop.f32.mrb[0].mxu0
      %v497 = vadd.f32 0.0, %v496
      %v498 = vpop.f32.mrb[0].mxu0
      %499 = vmatprep.mubr.f32.mxu0 0.0
      %500 = vmatmul.mubr.f32.gmra.mrb[0].mxu0 %v324
      %v501 = vpop.f32.mrb[0].mxu0
      %v502 = vadd.f32 0.0, %v501
      %v503 = vpop.f32.mrb[0].mxu0
      %504 = vmatprep.mubr.f32.mxu0 0.0
      %505 = vmatmul.mubr.f32.gmra.mrb[0].mxu0 %v327
      %v506 = vpop.f32.mrb[0].mxu0
      %v507 = vadd.f32 0.0, %v506
      %v508 = vpop.f32.mrb[0].mxu0
      %509 = vmatprep.mubr.f32.mxu0 0.0
      %510 = vmatmul.mubr.f32.gmra.mrb[0].mxu0 %v330
      %v511 = vpop.f32.mrb[0].mxu0
      %v512 = vadd.f32 0.0, %v511
      %v513 = vpop.f32.mrb[0].mxu0
      %514 = vmatprep.mubr.f32.mxu0 0.0
      %515 = vmatmul.mubr.f32.gmra.mrb[0].mxu0 %v333
      %v516 = vpop.f32.mrb[0].mxu0
      %v517 = vadd.f32 0.0, %v516
      %v518 = vpop.f32.mrb[0].mxu0
      %519 = vmatprep.mubr.f32.mxu0 0.0
      %520 = vmatmul.mubr.f32.gmra.mrb[0].mxu0 %v336
      %v521 = vpop.f32.mrb[0].mxu0
      %v522 = vadd.f32 0.0, %v521
      %v523 = vpop.f32.mrb[0].mxu0
      %524 = vmatprep.mubr.f32.mxu0 0.0
      %525 = vmatmul.mubr.f32.gmra.mrb[0].mxu0 %v339
      %v526 = vpop.f32.mrb[0].mxu0
      %v527 = vadd.f32 0.0, %v526
      %v528 = vpop.f32.mrb[0].mxu0
      %529 = vmatprep.mubr.f32.mxu0 0.0
      %530 = vmatmul.mubr.f32.gmra.mrb[0].mxu0 %v342
      %v531 = vpop.f32.mrb[0].mxu0
      %v532 = vadd.f32 0.0, %v531
      %v533 = vpop.f32.mrb[0].mxu0
      %534 = vmatprep.mubr.f32.mxu0 0.0
      %535 = vmatmul.mubr.f32.gmra.mrb[0].mxu0 %v345
      %v536 = vpop.f32.mrb[0].mxu0
      %v537 = vadd.f32 0.0, %v536
      %v538 = vpop.f32.mrb[0].mxu0
      %539 = vmatprep.mubr.f32.mxu0 0.0
      %540 = vmatmul.mubr.f32.gmra.mrb[0].mxu0 %v348
      %v541 = vpop.f32.mrb[0].mxu0
      %v542 = vadd.f32 0.0, %v541
      %v543 = vpop.f32.mrb[0].mxu0
      %544 = vmatprep.mubr.f32.mxu0 0.0
      %545 = vmatmul.mubr.f32.gmra.mrb[0].mxu0 %v351
      %v546 = vpop.f32.mrb[0].mxu0
      %v547 = vadd.f32 0.0, %v546
      %v548 = vpop.f32.mrb[0].mxu0
      %549 = vmatprep.mubr.f32.mxu0 0.0
      %550 = vmatmul.mubr.f32.gmra.mrb[0].mxu0 %v354
      %v551 = vpop.f32.mrb[0].mxu0
      %v552 = vadd.f32 0.0, %v551
      %v553 = vpop.f32.mrb[0].mxu0
      %554 = vmatprep.mubr.f32.mxu0 0.0
      %555 = vmatmul.mubr.f32.gmra.mrb[0].mxu0 %v357
      %v556 = vpop.f32.mrb[0].mxu0
      %v557 = vadd.f32 0.0, %v556
      %v558 = vpop.f32.mrb[0].mxu0
      %559 = vmatprep.mubr.f32.mxu0 0.0
      %560 = vmatmul.mubr.f32.gmra.mrb[0].mxu0 %v360
      %v561 = vpop.f32.mrb[0].mxu0
      %v562 = vadd.f32 0.0, %v561
      %v563 = vpop.f32.mrb[0].mxu0
      %564 = vmatprep.mubr.f32.mxu0 0.0
      %565 = vmatmul.mubr.f32.gmra.mrb[0].mxu0 %v363
      %v566 = vpop.f32.mrb[0].mxu0
      %v567 = vadd.f32 0.0, %v566
      %v568 = vpop.f32.mrb[0].mxu0
      %569 = vmatprep.mubr.f32.mxu0 0.0
      %570 = vmatmul.mubr.f32.gmra.mrb[0].mxu0 %v366
      %v571 = vpop.f32.mrb[0].mxu0
      %v572 = vadd.f32 0.0, %v571
      %v573 = vpop.f32.mrb[0].mxu0
      %574 = vmatprep.mubr.f32.mxu0 0.0
      %575 = vmatmul.mubr.f32.gmra.mrb[0].mxu0 %v369
      %v576 = vpop.f32.mrb[0].mxu0
      %v577 = vadd.f32 0.0, %v576
      %v578 = vpop.f32.mrb[0].mxu0
      %579 = vmatprep.mubr.f32.mxu0 0.0
      %580 = vmatmul.mubr.f32.gmra.mrb[0].mxu0 %v372
      %v581 = vpop.f32.mrb[0].mxu0
      %v582 = vadd.f32 0.0, %v581
      %v583 = vpop.f32.mrb[0].mxu0
      %584 = vmatprep.mubr.f32.mxu0 0.0
      %585 = vmatmul.mubr.f32.gmra.mrb[0].mxu0 %v375
      %v586 = vpop.f32.mrb[0].mxu0
      %v587 = vadd.f32 0.0, %v586
      %v588 = vpop.f32.mrb[0].mxu0
      %589 = vmatprep.mubr.f32.mxu0 0.0
      %590 = vmatmul.mubr.f32.gmra.mrb[0].mxu0 %v378
      %v591 = vpop.f32.mrb[0].mxu0
      %v592 = vadd.f32 0.0, %v591
      %v593 = vpop.f32.mrb[0].mxu0
      %594 = vmatprep.mubr.f32.mxu0 0.0
      %595 = vmatmul.mubr.f32.gmra.mrb[0].mxu0 %v381
      %v596 = vpop.f32.mrb[0].mxu0
      %v597 = vadd.f32 0.0, %v596
      %v598 = vpop.f32.mrb[0].mxu0
      %599 = vmatprep.mubr.f32.mxu0 0.0
      %600 = vmatmul.mubr.f32.gmra.mrb[0].mxu0 %v384
      %v601 = vpop.f32.mrb[0].mxu0
      %v602 = vadd.f32 0.0, %v601
      %v603 = vpop.f32.mrb[0].mxu0
      %604 = vmatprep.mubr.f32.mxu0 0.0
      %605 = vmatmul.mubr.f32.gmra.mrb[0].mxu0 %v387
      %v606 = vpop.f32.mrb[0].mxu0
      %v607 = vadd.f32 0.0, %v606
      %v608 = vpop.f32.mrb[0].mxu0
      %609 = vmatprep.mubr.f32.mxu0 0.0
      %610 = vmatmul.mubr.f32.gmra.mrb[0].mxu0 %v390
      %v611 = vpop.f32.mrb[0].mxu0
      %v612 = vadd.f32 0.0, %v611
      %v613 = vpop.f32.mrb[0].mxu0
      %614 = vmatprep.mubr.f32.mxu0 0.0
      %615 = vmatmul.mubr.f32.gmra.mrb[0].mxu0 %v393
      %v616 = vpop.f32.mrb[0].mxu0
      %v617 = vadd.f32 0.0, %v616
      %v618 = vpop.f32.mrb[0].mxu0
      %619 = vmatprep.mubr.f32.mxu0 0.0
      %620 = vmatmul.mubr.f32.gmra.mrb[0].mxu0 %v396
      %v621 = vpop.f32.mrb[0].mxu0
      %v622 = vadd.f32 0.0, %v621
      %v623 = vpop.f32.mrb[0].mxu0
      %624 = vmatprep.mubr.f32.mxu0 0.0
      %625 = vmatmul.mubr.f32.gmra.mrb[0].mxu0 %v399
      %v626 = vpop.f32.mrb[0].mxu0
      %v627 = vadd.f32 0.0, %v626
      %v628 = vpop.f32.mrb[0].mxu0
      %629 = vdwg.mxu0
      %v630 = vld [vmem:[%s227 + $0xcc] sm:$0xff]
      %v631 = vld [vmem:[%s227 + $0xd4] sm:$0xff]
      %v632 = vld [vmem:[%s227 + $0xdc] sm:$0xff]
      %v633 = vld [vmem:[%s227 + $0xe4] sm:$0xff]
      %v634 = vld [vmem:[%s227 + $0xec] sm:$0xff]
      %v635 = vld [vmem:[%s227 + $0xf4] sm:$0xff]
      %v636 = vld [vmem:[%s227 + $0xfc] sm:$0xff]
      %v637 = vld [vmem:[%s227 + $0x104] sm:$0xff]
      %v638 = vld [vmem:[%s227 + $0x10c] sm:$0xff]
      %v639 = vld [vmem:[%s227 + $0x114] sm:$0xff]
      %v640 = vld [vmem:[%s227 + $0x11c] sm:$0xff]
      %v641 = vld [vmem:[%s227 + $0x124] sm:$0xff]
      %v642 = vld [vmem:[%s227 + $0x12c] sm:$0xff]
      %v643 = vld [vmem:[%s227 + $0x134] sm:$0xff]
      %v644 = vld [vmem:[%s227 + $0x13c] sm:$0xff]
      %v645 = vld [vmem:[%s227 + $0x144] sm:$0xff]
      %v646 = vld [vmem:[%s227 + $0x14c] sm:$0xff]
      %v647 = vld [vmem:[%s227 + $0x154] sm:$0xff]
      %v648 = vld [vmem:[%s227 + $0x15c] sm:$0xff]
      %v649 = vld [vmem:[%s227 + $0x164] sm:$0xff]
      %v650 = vld [vmem:[%s227 + $0x16c] sm:$0xff]
      %v651 = vld [vmem:[%s227 + $0x174] sm:$0xff]
      %v652 = vld [vmem:[%s227 + $0x17c] sm:$0xff]
      %v653 = vld [vmem:[%s227 + $0x184] sm:$0xff]
      %v654 = vld [vmem:[%s227 + $0x18c] sm:$0xff]
      %v655 = vld [vmem:[%s227 + $0x194] sm:$0xff]
      %v656 = vld [vmem:[%s227 + $0x19c] sm:$0xff]
      %v657 = vld [vmem:[%s227 + $0x1a4] sm:$0xff]
      %v658 = vld [vmem:[%s227 + $0x1ac] sm:$0xff]
      %v659 = vld [vmem:[%s227 + $0x1b4] sm:$0xff]
      %v660 = vld [vmem:[%s227 + $0x1bc] sm:$0xff]
      %v661 = vld [vmem:[%s227 + $0x1c4] sm:$0xff]
      %v662 = vld [vmem:[%s3] sm:$0xf]
      %v664 = vsel %vm304, %v630, 0
      %v667 = vsel %vm304, %v631, 0
      %v670 = vsel %vm304, %v632, 0
      %v673 = vsel %vm304, %v633, 0
      %v676 = vsel %vm304, %v634, 0
      %v679 = vsel %vm304, %v635, 0
      %v682 = vsel %vm304, %v636, 0
      %v685 = vsel %vm304, %v637, 0
      %v688 = vsel %vm304, %v638, 0
      %v691 = vsel %vm304, %v639, 0
      %v694 = vsel %vm304, %v640, 0
      %v697 = vsel %vm304, %v641, 0
      %v700 = vsel %vm304, %v642, 0
      %v703 = vsel %vm304, %v643, 0
      %v706 = vsel %vm304, %v644, 0
      %v709 = vsel %vm304, %v645, 0
      %v712 = vsel %vm304, %v646, 0
      %v715 = vsel %vm304, %v647, 0
      %v718 = vsel %vm304, %v648, 0
      %v721 = vsel %vm304, %v649, 0
      %v724 = vsel %vm304, %v650, 0
      %v727 = vsel %vm304, %v651, 0
      %v730 = vsel %vm304, %v652, 0
      %v733 = vsel %vm304, %v653, 0
      %v736 = vsel %vm304, %v654, 0
      %v739 = vsel %vm304, %v655, 0
      %v742 = vsel %vm304, %v656, 0
      %v745 = vsel %vm304, %v657, 0
      %v748 = vsel %vm304, %v658, 0
      %v751 = vsel %vm304, %v659, 0
      %v754 = vsel %vm304, %v660, 0
      %v757 = vsel %vm304, %v661, 0
      %v760 = vsel %vm401, %v662, 0
      %762 = vmatprep.subr.mxu0 0.0
      %763 = vmatpush1.msra.mxu0 %v760
      %764 = vmatprep.subr.mxu0 0.0
      %765 = vmatpush1.msra.mxu0 0.0
      %766 = vmatprep.subr.mxu0 0.0
      %767 = vmatpush1.msra.mxu0 0.0
      %768 = vmatprep.subr.mxu0 0.0
      %769 = vmatpush1.msra.mxu0 0.0
      %770 = vmatprep.subr.mxu0 0.0
      %771 = vmatpush1.msra.mxu0 0.0
      %772 = vmatprep.subr.mxu0 0.0
      %773 = vmatpush1.msra.mxu0 0.0
      %774 = vmatprep.subr.mxu0 0.0
      %775 = vmatpush1.msra.mxu0 0.0
      %776 = vmatprep.subr.mxu0 0.0
      %777 = vmatpush1.msra.mxu0 0.0
      %778 = vmatprep.subr.mxu0 0.0
      %779 = vmatpush1.msra.mxu0 0.0
      %780 = vmatprep.subr.mxu0 0.0
      %781 = vmatpush1.msra.mxu0 0.0
      %782 = vmatprep.subr.mxu0 0.0
      %783 = vmatpush1.msra.mxu0 0.0
      %784 = vmatprep.subr.mxu0 0.0
      %785 = vmatpush1.msra.mxu0 0.0
      %786 = vmatprep.subr.mxu0 0.0
      %787 = vmatpush1.msra.mxu0 0.0
      %788 = vmatprep.subr.mxu0 0.0
      %789 = vmatpush1.msra.mxu0 0.0
      %790 = vmatprep.subr.mxu0 0.0
      %791 = vmatpush1.msra.mxu0 0.0
      %792 = vmatprep.subr.mxu0 0.0
      %793 = vmatpush1.msra.mxu0 0.0
      %794 = vmatprep.subr.mxu0 0.0
      %795 = vmatpush1.msra.mxu0 0.0
      %796 = vmatprep.subr.mxu0 0.0
      %797 = vmatpush1.msra.mxu0 0.0
      %798 = vmatprep.subr.mxu0 0.0
      %799 = vmatpush1.msra.mxu0 0.0
      %800 = vmatprep.subr.mxu0 0.0
      %801 = vmatpush1.msra.mxu0 0.0
      %802 = vmatprep.subr.mxu0 0.0
      %803 = vmatpush1.msra.mxu0 0.0
      %804 = vmatprep.subr.mxu0 0.0
      %805 = vmatpush1.msra.mxu0 0.0
      %806 = vmatprep.subr.mxu0 0.0
      %807 = vmatpush1.msra.mxu0 0.0
      %808 = vmatprep.subr.mxu0 0.0
      %809 = vmatpush1.msra.mxu0 0.0
      %810 = vmatprep.subr.mxu0 0.0
      %811 = vmatpush1.msra.mxu0 0.0
      %812 = vmatprep.subr.mxu0 0.0
      %813 = vmatpush1.msra.mxu0 0.0
      %814 = vmatprep.subr.mxu0 0.0
      %815 = vmatpush1.msra.mxu0 0.0
      %816 = vmatprep.subr.mxu0 0.0
      %817 = vmatpush1.msra.mxu0 0.0
      %818 = vmatprep.subr.mxu0 0.0
      %819 = vmatpush1.msra.mxu0 0.0
      %820 = vmatprep.subr.mxu0 0.0
      %821 = vmatpush1.msra.mxu0 0.0
      %822 = vmatprep.subr.mxu0 0.0
      %823 = vmatpush1.msra.mxu0 0.0
      %824 = vmatprep.subr.mxu0 0.0
      %825 = vmatpush1.msra.mxu0 0.0
      %826 = vmatprep.mubr.f32.mxu0 0.0
      %827 = vmatmul.mubr.f32.gmra.mrb[0].mxu0 %v664
      %v828 = vpop.f32.mrb[0].mxu0
      %v829 = vadd.f32 0.0, %v828
      %v830 = vpop.f32.mrb[0].mxu0
      %831 = vmatprep.mubr.f32.mxu0 0.0
      %832 = vmatmul.mubr.f32.gmra.mrb[0].mxu0 %v667
      %v833 = vpop.f32.mrb[0].mxu0
      %v834 = vadd.f32 0.0, %v833
      %v835 = vpop.f32.mrb[0].mxu0
      %836 = vmatprep.mubr.f32.mxu0 0.0
      %837 = vmatmul.mubr.f32.gmra.mrb[0].mxu0 %v670
      %v838 = vpop.f32.mrb[0].mxu0
      %v839 = vadd.f32 0.0, %v838
      %v840 = vpop.f32.mrb[0].mxu0
      %841 = vmatprep.mubr.f32.mxu0 0.0
      %842 = vmatmul.mubr.f32.gmra.mrb[0].mxu0 %v673
      %v843 = vpop.f32.mrb[0].mxu0
      %v844 = vadd.f32 0.0, %v843
      %v845 = vpop.f32.mrb[0].mxu0
      %846 = vmatprep.mubr.f32.mxu0 0.0
      %847 = vmatmul.mubr.f32.gmra.mrb[0].mxu0 %v676
      %v848 = vpop.f32.mrb[0].mxu0
      %v849 = vadd.f32 0.0, %v848
      %v850 = vpop.f32.mrb[0].mxu0
      %851 = vmatprep.mubr.f32.mxu0 0.0
      %852 = vmatmul.mubr.f32.gmra.mrb[0].mxu0 %v679
      %v853 = vpop.f32.mrb[0].mxu0
      %v854 = vadd.f32 0.0, %v853
      %v855 = vpop.f32.mrb[0].mxu0
      %856 = vmatprep.mubr.f32.mxu0 0.0
      %857 = vmatmul.mubr.f32.gmra.mrb[0].mxu0 %v682
      %v858 = vpop.f32.mrb[0].mxu0
      %v859 = vadd.f32 0.0, %v858
      %v860 = vpop.f32.mrb[0].mxu0
      %861 = vmatprep.mubr.f32.mxu0 0.0
      %862 = vmatmul.mubr.f32.gmra.mrb[0].mxu0 %v685
      %v863 = vpop.f32.mrb[0].mxu0
      %v864 = vadd.f32 0.0, %v863
      %v865 = vpop.f32.mrb[0].mxu0
      %866 = vmatprep.mubr.f32.mxu0 0.0
      %867 = vmatmul.mubr.f32.gmra.mrb[0].mxu0 %v688
      %v868 = vpop.f32.mrb[0].mxu0
      %v869 = vadd.f32 0.0, %v868
      %v870 = vpop.f32.mrb[0].mxu0
      %871 = vmatprep.mubr.f32.mxu0 0.0
      %872 = vmatmul.mubr.f32.gmra.mrb[0].mxu0 %v691
      %v873 = vpop.f32.mrb[0].mxu0
      %v874 = vadd.f32 0.0, %v873
      %v875 = vpop.f32.mrb[0].mxu0
      %876 = vmatprep.mubr.f32.mxu0 0.0
      %877 = vmatmul.mubr.f32.gmra.mrb[0].mxu0 %v694
      %v878 = vpop.f32.mrb[0].mxu0
      %v879 = vadd.f32 0.0, %v878
      %v880 = vpop.f32.mrb[0].mxu0
      %881 = vmatprep.mubr.f32.mxu0 0.0
      %882 = vmatmul.mubr.f32.gmra.mrb[0].mxu0 %v697
      %v883 = vpop.f32.mrb[0].mxu0
      %v884 = vadd.f32 0.0, %v883
      %v885 = vpop.f32.mrb[0].mxu0
      %886 = vmatprep.mubr.f32.mxu0 0.0
      %887 = vmatmul.mubr.f32.gmra.mrb[0].mxu0 %v700
      %v888 = vpop.f32.mrb[0].mxu0
      %v889 = vadd.f32 0.0, %v888
      %v890 = vpop.f32.mrb[0].mxu0
      %891 = vmatprep.mubr.f32.mxu0 0.0
      %892 = vmatmul.mubr.f32.gmra.mrb[0].mxu0 %v703
      %v893 = vpop.f32.mrb[0].mxu0
      %v894 = vadd.f32 0.0, %v893
      %v895 = vpop.f32.mrb[0].mxu0
      %896 = vmatprep.mubr.f32.mxu0 0.0
      %897 = vmatmul.mubr.f32.gmra.mrb[0].mxu0 %v706
      %v898 = vpop.f32.mrb[0].mxu0
      %v899 = vadd.f32 0.0, %v898
      %v900 = vpop.f32.mrb[0].mxu0
      %901 = vmatprep.mubr.f32.mxu0 0.0
      %902 = vmatmul.mubr.f32.gmra.mrb[0].mxu0 %v709
      %v903 = vpop.f32.mrb[0].mxu0
      %v904 = vadd.f32 0.0, %v903
      %v905 = vpop.f32.mrb[0].mxu0
      %906 = vmatprep.mubr.f32.mxu0 0.0
      %907 = vmatmul.mubr.f32.gmra.mrb[0].mxu0 %v712
      %v908 = vpop.f32.mrb[0].mxu0
      %v909 = vadd.f32 0.0, %v908
      %v910 = vpop.f32.mrb[0].mxu0
      %911 = vmatprep.mubr.f32.mxu0 0.0
      %912 = vmatmul.mubr.f32.gmra.mrb[0].mxu0 %v715
      %v913 = vpop.f32.mrb[0].mxu0
      %v914 = vadd.f32 0.0, %v913
      %v915 = vpop.f32.mrb[0].mxu0
      %916 = vmatprep.mubr.f32.mxu0 0.0
      %917 = vmatmul.mubr.f32.gmra.mrb[0].mxu0 %v718
      %v918 = vpop.f32.mrb[0].mxu0
      %v919 = vadd.f32 0.0, %v918
      %v920 = vpop.f32.mrb[0].mxu0
      %921 = vmatprep.mubr.f32.mxu0 0.0
      %922 = vmatmul.mubr.f32.gmra.mrb[0].mxu0 %v721
      %v923 = vpop.f32.mrb[0].mxu0
      %v924 = vadd.f32 0.0, %v923
      %v925 = vpop.f32.mrb[0].mxu0
      %926 = vmatprep.mubr.f32.mxu0 0.0
      %927 = vmatmul.mubr.f32.gmra.mrb[0].mxu0 %v724
      %v928 = vpop.f32.mrb[0].mxu0
      %v929 = vadd.f32 0.0, %v928
      %v930 = vpop.f32.mrb[0].mxu0
      %931 = vmatprep.mubr.f32.mxu0 0.0
      %932 = vmatmul.mubr.f32.gmra.mrb[0].mxu0 %v727
      %v933 = vpop.f32.mrb[0].mxu0
      %v934 = vadd.f32 0.0, %v933
      %v935 = vpop.f32.mrb[0].mxu0
      %936 = vmatprep.mubr.f32.mxu0 0.0
      %937 = vmatmul.mubr.f32.gmra.mrb[0].mxu0 %v730
      %v938 = vpop.f32.mrb[0].mxu0
      %v939 = vadd.f32 0.0, %v938
      %v940 = vpop.f32.mrb[0].mxu0
      %941 = vmatprep.mubr.f32.mxu0 0.0
      %942 = vmatmul.mubr.f32.gmra.mrb[0].mxu0 %v733
      %v943 = vpop.f32.mrb[0].mxu0
      %v944 = vadd.f32 0.0, %v943
      %v945 = vpop.f32.mrb[0].mxu0
      %946 = vmatprep.mubr.f32.mxu0 0.0
      %947 = vmatmul.mubr.f32.gmra.mrb[0].mxu0 %v736
      %v948 = vpop.f32.mrb[0].mxu0
      %v949 = vadd.f32 0.0, %v948
      %v950 = vpop.f32.mrb[0].mxu0
      %951 = vmatprep.mubr.f32.mxu0 0.0
      %952 = vmatmul.mubr.f32.gmra.mrb[0].mxu0 %v739
      %v953 = vpop.f32.mrb[0].mxu0
      %v954 = vadd.f32 0.0, %v953
      %v955 = vpop.f32.mrb[0].mxu0
      %956 = vmatprep.mubr.f32.mxu0 0.0
      %957 = vmatmul.mubr.f32.gmra.mrb[0].mxu0 %v742
      %v958 = vpop.f32.mrb[0].mxu0
      %v959 = vadd.f32 0.0, %v958
      %v960 = vpop.f32.mrb[0].mxu0
      %961 = vmatprep.mubr.f32.mxu0 0.0
      %962 = vmatmul.mubr.f32.gmra.mrb[0].mxu0 %v745
      %v963 = vpop.f32.mrb[0].mxu0
      %v964 = vadd.f32 0.0, %v963
      %v965 = vpop.f32.mrb[0].mxu0
      %966 = vmatprep.mubr.f32.mxu0 0.0
      %967 = vmatmul.mubr.f32.gmra.mrb[0].mxu0 %v748
      %v968 = vpop.f32.mrb[0].mxu0
      %v969 = vadd.f32 0.0, %v968
      %v970 = vpop.f32.mrb[0].mxu0
      %971 = vmatprep.mubr.f32.mxu0 0.0
      %972 = vmatmul.mubr.f32.gmra.mrb[0].mxu0 %v751
      %v973 = vpop.f32.mrb[0].mxu0
      %v974 = vadd.f32 0.0, %v973
      %v975 = vpop.f32.mrb[0].mxu0
      %976 = vmatprep.mubr.f32.mxu0 0.0
      %977 = vmatmul.mubr.f32.gmra.mrb[0].mxu0 %v754
      %v978 = vpop.f32.mrb[0].mxu0
      %v979 = vadd.f32 0.0, %v978
      %v980 = vpop.f32.mrb[0].mxu0
      %981 = vmatprep.mubr.f32.mxu0 0.0
      %982 = vmatmul.mubr.f32.gmra.mrb[0].mxu0 %v757
      %v983 = vpop.f32.mrb[0].mxu0
      %v984 = vadd.f32 0.0, %v983
      %v985 = vpop.f32.mrb[0].mxu0
      %986 = vdwg.mxu0
      %988 = vset.pattern.permute.xlu0 0
      %989 = vperm.xlu0 %988, %v239
      %v990 = vpop.permute.xlu0 %989
      %993 = vset.pattern.permute.xlu0 0
      %994 = vperm.xlu0 %993, %v240
      %v995 = vpop.permute.xlu0 %994
      %998 = vset.pattern.permute.xlu0 0
      %999 = vperm.xlu0 %998, %v241
      %v1000 = vpop.permute.xlu0 %999
      %1003 = vset.pattern.permute.xlu0 0
      %1004 = vperm.xlu0 %1003, %v242
      %v1005 = vpop.permute.xlu0 %1004
      %1008 = vset.pattern.permute.xlu0 0
      %1009 = vperm.xlu0 %1008, %v243
      %v1010 = vpop.permute.xlu0 %1009
      %1013 = vset.pattern.permute.xlu0 0
      %1014 = vperm.xlu0 %1013, %v244
      %v1015 = vpop.permute.xlu0 %1014
      %1018 = vset.pattern.permute.xlu0 0
      %1019 = vperm.xlu0 %1018, %v245
      %v1020 = vpop.permute.xlu0 %1019
      %1023 = vset.pattern.permute.xlu0 0
      %1024 = vperm.xlu0 %1023, %v246
      %v1025 = vpop.permute.xlu0 %1024
      %1028 = vset.pattern.permute.xlu0 0
      %1029 = vperm.xlu0 %1028, %v247
      %v1030 = vpop.permute.xlu0 %1029
      %1033 = vset.pattern.permute.xlu0 0
      %1034 = vperm.xlu0 %1033, %v248
      %v1035 = vpop.permute.xlu0 %1034
      %1038 = vset.pattern.permute.xlu0 0
      %1039 = vperm.xlu0 %1038, %v249
      %v1040 = vpop.permute.xlu0 %1039
      %1043 = vset.pattern.permute.xlu0 0
      %1044 = vperm.xlu0 %1043, %v250
      %v1045 = vpop.permute.xlu0 %1044
      %1048 = vset.pattern.permute.xlu0 0
      %1049 = vperm.xlu0 %1048, %v251
      %v1050 = vpop.permute.xlu0 %1049
      %1053 = vset.pattern.permute.xlu0 0
      %1054 = vperm.xlu0 %1053, %v252
      %v1055 = vpop.permute.xlu0 %1054
      %1058 = vset.pattern.permute.xlu0 0
      %1059 = vperm.xlu0 %1058, %v253
      %v1060 = vpop.permute.xlu0 %1059
      %1063 = vset.pattern.permute.xlu0 0
      %1064 = vperm.xlu0 %1063, %v254
      %v1065 = vpop.permute.xlu0 %1064
      %1068 = vset.pattern.permute.xlu0 0
      %1069 = vperm.xlu0 %1068, %v255
      %v1070 = vpop.permute.xlu0 %1069
      %1073 = vset.pattern.permute.xlu0 0
      %1074 = vperm.xlu0 %1073, %v256
      %v1075 = vpop.permute.xlu0 %1074
      %1078 = vset.pattern.permute.xlu0 0
      %1079 = vperm.xlu0 %1078, %v257
      %v1080 = vpop.permute.xlu0 %1079
      %1083 = vset.pattern.permute.xlu0 0
      %1084 = vperm.xlu0 %1083, %v258
      %v1085 = vpop.permute.xlu0 %1084
      %1088 = vset.pattern.permute.xlu0 0
      %1089 = vperm.xlu0 %1088, %v259
      %v1090 = vpop.permute.xlu0 %1089
      %1093 = vset.pattern.permute.xlu0 0
      %1094 = vperm.xlu0 %1093, %v260
      %v1095 = vpop.permute.xlu0 %1094
      %1098 = vset.pattern.permute.xlu0 0
      %1099 = vperm.xlu0 %1098, %v261
      %v1100 = vpop.permute.xlu0 %1099
      %1103 = vset.pattern.permute.xlu0 0
      %1104 = vperm.xlu0 %1103, %v262
      %v1105 = vpop.permute.xlu0 %1104
      %1108 = vset.pattern.permute.xlu0 0
      %1109 = vperm.xlu0 %1108, %v263
      %v1110 = vpop.permute.xlu0 %1109
      %1113 = vset.pattern.permute.xlu0 0
      %1114 = vperm.xlu0 %1113, %v264
      %v1115 = vpop.permute.xlu0 %1114
      %1118 = vset.pattern.permute.xlu0 0
      %1119 = vperm.xlu0 %1118, %v265
      %v1120 = vpop.permute.xlu0 %1119
      %1123 = vset.pattern.permute.xlu0 0
      %1124 = vperm.xlu0 %1123, %v266
      %v1125 = vpop.permute.xlu0 %1124
      %1128 = vset.pattern.permute.xlu0 0
      %1129 = vperm.xlu0 %1128, %v267
      %v1130 = vpop.permute.xlu0 %1129
      %1133 = vset.pattern.permute.xlu0 0
      %1134 = vperm.xlu0 %1133, %v268
      %v1135 = vpop.permute.xlu0 %1134
      %1138 = vset.pattern.permute.xlu0 0
      %1139 = vperm.xlu0 %1138, %v269
      %v1140 = vpop.permute.xlu0 %1139
      %1143 = vset.pattern.permute.xlu0 0
      %1144 = vperm.xlu0 %1143, %v270
      %v1145 = vpop.permute.xlu0 %1144
      %v1147 = vmul.f32 %v829, %v990
      %v1148 = vmul.f32 %v834, %v995
      %v1149 = vmul.f32 %v839, %v1000
      %v1150 = vmul.f32 %v844, %v1005
      %v1151 = vmul.f32 %v849, %v1010
      %v1152 = vmul.f32 %v854, %v1015
      %v1153 = vmul.f32 %v859, %v1020
      %v1154 = vmul.f32 %v864, %v1025
      %v1155 = vmul.f32 %v869, %v1030
      %v1156 = vmul.f32 %v874, %v1035
      %v1157 = vmul.f32 %v879, %v1040
      %v1158 = vmul.f32 %v884, %v1045
      %v1159 = vmul.f32 %v889, %v1050
      %v1160 = vmul.f32 %v894, %v1055
      %v1161 = vmul.f32 %v899, %v1060
      %v1162 = vmul.f32 %v904, %v1065
      %v1163 = vmul.f32 %v909, %v1070
      %v1164 = vmul.f32 %v914, %v1075
      %v1165 = vmul.f32 %v919, %v1080
      %v1166 = vmul.f32 %v924, %v1085
      %v1167 = vmul.f32 %v929, %v1090
      %v1168 = vmul.f32 %v934, %v1095
      %v1169 = vmul.f32 %v939, %v1100
      %v1170 = vmul.f32 %v944, %v1105
      %v1171 = vmul.f32 %v949, %v1110
      %v1172 = vmul.f32 %v954, %v1115
      %v1173 = vmul.f32 %v959, %v1120
      %v1174 = vmul.f32 %v964, %v1125
      %v1175 = vmul.f32 %v969, %v1130
      %v1176 = vmul.f32 %v974, %v1135
      %v1177 = vmul.f32 %v979, %v1140
      %v1178 = vmul.f32 %v984, %v1145
      %v1179 = vld [vmem:[%s227 + $0xd2] sm:$0xff]
      %v1180 = vld [vmem:[%s227 + $0xda] sm:$0xff]
      %v1181 = vld [vmem:[%s227 + $0xe2] sm:$0xff]
      %v1182 = vld [vmem:[%s227 + $0xea] sm:$0xff]
      %v1183 = vld [vmem:[%s227 + $0xf2] sm:$0xff]
      %v1184 = vld [vmem:[%s227 + $0xfa] sm:$0xff]
      %v1185 = vld [vmem:[%s227 + $0x102] sm:$0xff]
      %v1186 = vld [vmem:[%s227 + $0x10a] sm:$0xff]
      %v1187 = vld [vmem:[%s227 + $0x112] sm:$0xff]
      %v1188 = vld [vmem:[%s227 + $0x11a] sm:$0xff]
      %v1189 = vld [vmem:[%s227 + $0x122] sm:$0xff]
      %v1190 = vld [vmem:[%s227 + $0x12a] sm:$0xff]
      %v1191 = vld [vmem:[%s227 + $0x132] sm:$0xff]
      %v1192 = vld [vmem:[%s227 + $0x13a] sm:$0xff]
      %v1193 = vld [vmem:[%s227 + $0x142] sm:$0xff]
      %v1194 = vld [vmem:[%s227 + $0x14a] sm:$0xff]
      %v1195 = vld [vmem:[%s227 + $0x152] sm:$0xff]
      %v1196 = vld [vmem:[%s227 + $0x15a] sm:$0xff]
      %v1197 = vld [vmem:[%s227 + $0x162] sm:$0xff]
      %v1198 = vld [vmem:[%s227 + $0x16a] sm:$0xff]
      %v1199 = vld [vmem:[%s227 + $0x172] sm:$0xff]
      %v1200 = vld [vmem:[%s227 + $0x17a] sm:$0xff]
      %v1201 = vld [vmem:[%s227 + $0x182] sm:$0xff]
      %v1202 = vld [vmem:[%s227 + $0x18a] sm:$0xff]
      %v1203 = vld [vmem:[%s227 + $0x192] sm:$0xff]
      %v1204 = vld [vmem:[%s227 + $0x19a] sm:$0xff]
      %v1205 = vld [vmem:[%s227 + $0x1a2] sm:$0xff]
      %v1206 = vld [vmem:[%s227 + $0x1aa] sm:$0xff]
      %v1207 = vld [vmem:[%s227 + $0x1b2] sm:$0xff]
      %v1208 = vld [vmem:[%s227 + $0x1ba] sm:$0xff]
      %v1209 = vld [vmem:[%s227 + $0x1c2] sm:$0xff]
      %v1210 = vld [vmem:[%s227 + $0x1ca] sm:$0xff]
      %s1211 = scalar_lea.vmem %s3, 4
      %v1212 = vld [vmem:[%s1211] sm:$0xf]
      %v1214 = vsel %vm304, %v1179, 0
      %v1217 = vsel %vm304, %v1180, 0
      %v1220 = vsel %vm304, %v1181, 0
      %v1223 = vsel %vm304, %v1182, 0
      %v1226 = vsel %vm304, %v1183, 0
      %v1229 = vsel %vm304, %v1184, 0
      %v1232 = vsel %vm304, %v1185, 0
      %v1235 = vsel %vm304, %v1186, 0
      %v1238 = vsel %vm304, %v1187, 0
      %v1241 = vsel %vm304, %v1188, 0
      %v1244 = vsel %vm304, %v1189, 0
      %v1247 = vsel %vm304, %v1190, 0
      %v1250 = vsel %vm304, %v1191, 0
      %v1253 = vsel %vm304, %v1192, 0
      %v1256 = vsel %vm304, %v1193, 0
      %v1259 = vsel %vm304, %v1194, 0
      %v1262 = vsel %vm304, %v1195, 0
      %v1265 = vsel %vm304, %v1196, 0
      %v1268 = vsel %vm304, %v1197, 0
      %v1271 = vsel %vm304, %v1198, 0
      %v1274 = vsel %vm304, %v1199, 0
      %v1277 = vsel %vm304, %v1200, 0
      %v1280 = vsel %vm304, %v1201, 0
      %v1283 = vsel %vm304, %v1202, 0
      %v1286 = vsel %vm304, %v1203, 0
      %v1289 = vsel %vm304, %v1204, 0
      %v1292 = vsel %vm304, %v1205, 0
      %v1295 = vsel %vm304, %v1206, 0
      %v1298 = vsel %vm304, %v1207, 0
      %v1301 = vsel %vm304, %v1208, 0
      %v1304 = vsel %vm304, %v1209, 0
      %v1307 = vsel %vm304, %v1210, 0
      %v1310 = vsel %vm401, %v1212, 0
      %1312 = vmatprep.subr.mxu0 0.0
      %1313 = vmatpush1.msra.mxu0 %v1310
      %1314 = vmatprep.subr.mxu0 0.0
      %1315 = vmatpush1.msra.mxu0 0.0
      %1316 = vmatprep.subr.mxu0 0.0
      %1317 = vmatpush1.msra.mxu0 0.0
      %1318 = vmatprep.subr.mxu0 0.0
      %1319 = vmatpush1.msra.mxu0 0.0
      %1320 = vmatprep.subr.mxu0 0.0
      %1321 = vmatpush1.msra.mxu0 0.0
      %1322 = vmatprep.subr.mxu0 0.0
      %1323 = vmatpush1.msra.mxu0 0.0
      %1324 = vmatprep.subr.mxu0 0.0
      %1325 = vmatpush1.msra.mxu0 0.0
      %1326 = vmatprep.subr.mxu0 0.0
      %1327 = vmatpush1.msra.mxu0 0.0
      %1328 = vmatprep.subr.mxu0 0.0
      %1329 = vmatpush1.msra.mxu0 0.0
      %1330 = vmatprep.subr.mxu0 0.0
      %1331 = vmatpush1.msra.mxu0 0.0
      %1332 = vmatprep.subr.mxu0 0.0
      %1333 = vmatpush1.msra.mxu0 0.0
      %1334 = vmatprep.subr.mxu0 0.0
      %1335 = vmatpush1.msra.mxu0 0.0
      %1336 = vmatprep.subr.mxu0 0.0
      %1337 = vmatpush1.msra.mxu0 0.0
      %1338 = vmatprep.subr.mxu0 0.0
      %1339 = vmatpush1.msra.mxu0 0.0
      %1340 = vmatprep.subr.mxu0 0.0
      %1341 = vmatpush1.msra.mxu0 0.0
      %1342 = vmatprep.subr.mxu0 0.0
      %1343 = vmatpush1.msra.mxu0 0.0
      %1344 = vmatprep.subr.mxu0 0.0
      %1345 = vmatpush1.msra.mxu0 0.0
      %1346 = vmatprep.subr.mxu0 0.0
      %1347 = vmatpush1.msra.mxu0 0.0
      %1348 = vmatprep.subr.mxu0 0.0
      %1349 = vmatpush1.msra.mxu0 0.0
      %1350 = vmatprep.subr.mxu0 0.0
      %1351 = vmatpush1.msra.mxu0 0.0
      %1352 = vmatprep.subr.mxu0 0.0
      %1353 = vmatpush1.msra.mxu0 0.0
      %1354 = vmatprep.subr.mxu0 0.0
      %1355 = vmatpush1.msra.mxu0 0.0
      %1356 = vmatprep.subr.mxu0 0.0
      %1357 = vmatpush1.msra.mxu0 0.0
      %1358 = vmatprep.subr.mxu0 0.0
      %1359 = vmatpush1.msra.mxu0 0.0
      %1360 = vmatprep.subr.mxu0 0.0
      %1361 = vmatpush1.msra.mxu0 0.0
      %1362 = vmatprep.subr.mxu0 0.0
      %1363 = vmatpush1.msra.mxu0 0.0
      %1364 = vmatprep.subr.mxu0 0.0
      %1365 = vmatpush1.msra.mxu0 0.0
      %1366 = vmatprep.subr.mxu0 0.0
      %1367 = vmatpush1.msra.mxu0 0.0
      %1368 = vmatprep.subr.mxu0 0.0
      %1369 = vmatpush1.msra.mxu0 0.0
      %1370 = vmatprep.subr.mxu0 0.0
      %1371 = vmatpush1.msra.mxu0 0.0
      %1372 = vmatprep.subr.mxu0 0.0
      %1373 = vmatpush1.msra.mxu0 0.0
      %1374 = vmatprep.subr.mxu0 0.0
      %1375 = vmatpush1.msra.mxu0 0.0
      %1376 = vmatprep.mubr.f32.mxu0 0.0
      %1377 = vmatmul.mubr.f32.gmra.mrb[0].mxu0 %v1214
      %v1378 = vpop.f32.mrb[0].mxu0
      %v1379 = vadd.f32 0.0, %v1378
      %v1380 = vpop.f32.mrb[0].mxu0
      %1381 = vmatprep.mubr.f32.mxu0 0.0
      %1382 = vmatmul.mubr.f32.gmra.mrb[0].mxu0 %v1217
      %v1383 = vpop.f32.mrb[0].mxu0
      %v1384 = vadd.f32 0.0, %v1383
      %v1385 = vpop.f32.mrb[0].mxu0
      %1386 = vmatprep.mubr.f32.mxu0 0.0
      %1387 = vmatmul.mubr.f32.gmra.mrb[0].mxu0 %v1220
      %v1388 = vpop.f32.mrb[0].mxu0
      %v1389 = vadd.f32 0.0, %v1388
      %v1390 = vpop.f32.mrb[0].mxu0
      %1391 = vmatprep.mubr.f32.mxu0 0.0
      %1392 = vmatmul.mubr.f32.gmra.mrb[0].mxu0 %v1223
      %v1393 = vpop.f32.mrb[0].mxu0
      %v1394 = vadd.f32 0.0, %v1393
      %v1395 = vpop.f32.mrb[0].mxu0
      %1396 = vmatprep.mubr.f32.mxu0 0.0
      %1397 = vmatmul.mubr.f32.gmra.mrb[0].mxu0 %v1226
      %v1398 = vpop.f32.mrb[0].mxu0
      %v1399 = vadd.f32 0.0, %v1398
      %v1400 = vpop.f32.mrb[0].mxu0
      %1401 = vmatprep.mubr.f32.mxu0 0.0
      %1402 = vmatmul.mubr.f32.gmra.mrb[0].mxu0 %v1229
      %v1403 = vpop.f32.mrb[0].mxu0
      %v1404 = vadd.f32 0.0, %v1403
      %v1405 = vpop.f32.mrb[0].mxu0
      %1406 = vmatprep.mubr.f32.mxu0 0.0
      %1407 = vmatmul.mubr.f32.gmra.mrb[0].mxu0 %v1232
      %v1408 = vpop.f32.mrb[0].mxu0
      %v1409 = vadd.f32 0.0, %v1408
      %v1410 = vpop.f32.mrb[0].mxu0
      %1411 = vmatprep.mubr.f32.mxu0 0.0
      %1412 = vmatmul.mubr.f32.gmra.mrb[0].mxu0 %v1235
      %v1413 = vpop.f32.mrb[0].mxu0
      %v1414 = vadd.f32 0.0, %v1413
      %v1415 = vpop.f32.mrb[0].mxu0
      %1416 = vmatprep.mubr.f32.mxu0 0.0
      %1417 = vmatmul.mubr.f32.gmra.mrb[0].mxu0 %v1238
      %v1418 = vpop.f32.mrb[0].mxu0
      %v1419 = vadd.f32 0.0, %v1418
      %v1420 = vpop.f32.mrb[0].mxu0
      %1421 = vmatprep.mubr.f32.mxu0 0.0
      %1422 = vmatmul.mubr.f32.gmra.mrb[0].mxu0 %v1241
      %v1423 = vpop.f32.mrb[0].mxu0
      %v1424 = vadd.f32 0.0, %v1423
      %v1425 = vpop.f32.mrb[0].mxu0
      %1426 = vmatprep.mubr.f32.mxu0 0.0
      %1427 = vmatmul.mubr.f32.gmra.mrb[0].mxu0 %v1244
      %v1428 = vpop.f32.mrb[0].mxu0
      %v1429 = vadd.f32 0.0, %v1428
      %v1430 = vpop.f32.mrb[0].mxu0
      %1431 = vmatprep.mubr.f32.mxu0 0.0
      %1432 = vmatmul.mubr.f32.gmra.mrb[0].mxu0 %v1247
      %v1433 = vpop.f32.mrb[0].mxu0
      %v1434 = vadd.f32 0.0, %v1433
      %v1435 = vpop.f32.mrb[0].mxu0
      %1436 = vmatprep.mubr.f32.mxu0 0.0
      %1437 = vmatmul.mubr.f32.gmra.mrb[0].mxu0 %v1250
      %v1438 = vpop.f32.mrb[0].mxu0
      %v1439 = vadd.f32 0.0, %v1438
      %v1440 = vpop.f32.mrb[0].mxu0
      %1441 = vmatprep.mubr.f32.mxu0 0.0
      %1442 = vmatmul.mubr.f32.gmra.mrb[0].mxu0 %v1253
      %v1443 = vpop.f32.mrb[0].mxu0
      %v1444 = vadd.f32 0.0, %v1443
      %v1445 = vpop.f32.mrb[0].mxu0
      %1446 = vmatprep.mubr.f32.mxu0 0.0
      %1447 = vmatmul.mubr.f32.gmra.mrb[0].mxu0 %v1256
      %v1448 = vpop.f32.mrb[0].mxu0
      %v1449 = vadd.f32 0.0, %v1448
      %v1450 = vpop.f32.mrb[0].mxu0
      %1451 = vmatprep.mubr.f32.mxu0 0.0
      %1452 = vmatmul.mubr.f32.gmra.mrb[0].mxu0 %v1259
      %v1453 = vpop.f32.mrb[0].mxu0
      %v1454 = vadd.f32 0.0, %v1453
      %v1455 = vpop.f32.mrb[0].mxu0
      %1456 = vmatprep.mubr.f32.mxu0 0.0
      %1457 = vmatmul.mubr.f32.gmra.mrb[0].mxu0 %v1262
      %v1458 = vpop.f32.mrb[0].mxu0
      %v1459 = vadd.f32 0.0, %v1458
      %v1460 = vpop.f32.mrb[0].mxu0
      %1461 = vmatprep.mubr.f32.mxu0 0.0
      %1462 = vmatmul.mubr.f32.gmra.mrb[0].mxu0 %v1265
      %v1463 = vpop.f32.mrb[0].mxu0
      %v1464 = vadd.f32 0.0, %v1463
      %v1465 = vpop.f32.mrb[0].mxu0
      %1466 = vmatprep.mubr.f32.mxu0 0.0
      %1467 = vmatmul.mubr.f32.gmra.mrb[0].mxu0 %v1268
      %v1468 = vpop.f32.mrb[0].mxu0
      %v1469 = vadd.f32 0.0, %v1468
      %v1470 = vpop.f32.mrb[0].mxu0
      %1471 = vmatprep.mubr.f32.mxu0 0.0
      %1472 = vmatmul.mubr.f32.gmra.mrb[0].mxu0 %v1271
      %v1473 = vpop.f32.mrb[0].mxu0
      %v1474 = vadd.f32 0.0, %v1473
      %v1475 = vpop.f32.mrb[0].mxu0
      %1476 = vmatprep.mubr.f32.mxu0 0.0
      %1477 = vmatmul.mubr.f32.gmra.mrb[0].mxu0 %v1274
      %v1478 = vpop.f32.mrb[0].mxu0
      %v1479 = vadd.f32 0.0, %v1478
      %v1480 = vpop.f32.mrb[0].mxu0
      %1481 = vmatprep.mubr.f32.mxu0 0.0
      %1482 = vmatmul.mubr.f32.gmra.mrb[0].mxu0 %v1277
      %v1483 = vpop.f32.mrb[0].mxu0
      %v1484 = vadd.f32 0.0, %v1483
      %v1485 = vpop.f32.mrb[0].mxu0
      %1486 = vmatprep.mubr.f32.mxu0 0.0
      %1487 = vmatmul.mubr.f32.gmra.mrb[0].mxu0 %v1280
      %v1488 = vpop.f32.mrb[0].mxu0
      %v1489 = vadd.f32 0.0, %v1488
      %v1490 = vpop.f32.mrb[0].mxu0
      %1491 = vmatprep.mubr.f32.mxu0 0.0
      %1492 = vmatmul.mubr.f32.gmra.mrb[0].mxu0 %v1283
      %v1493 = vpop.f32.mrb[0].mxu0
      %v1494 = vadd.f32 0.0, %v1493
      %v1495 = vpop.f32.mrb[0].mxu0
      %1496 = vmatprep.mubr.f32.mxu0 0.0
      %1497 = vmatmul.mubr.f32.gmra.mrb[0].mxu0 %v1286
      %v1498 = vpop.f32.mrb[0].mxu0
      %v1499 = vadd.f32 0.0, %v1498
      %v1500 = vpop.f32.mrb[0].mxu0
      %1501 = vmatprep.mubr.f32.mxu0 0.0
      %1502 = vmatmul.mubr.f32.gmra.mrb[0].mxu0 %v1289
      %v1503 = vpop.f32.mrb[0].mxu0
      %v1504 = vadd.f32 0.0, %v1503
      %v1505 = vpop.f32.mrb[0].mxu0
      %1506 = vmatprep.mubr.f32.mxu0 0.0
      %1507 = vmatmul.mubr.f32.gmra.mrb[0].mxu0 %v1292
      %v1508 = vpop.f32.mrb[0].mxu0
      %v1509 = vadd.f32 0.0, %v1508
      %v1510 = vpop.f32.mrb[0].mxu0
      %1511 = vmatprep.mubr.f32.mxu0 0.0
      %1512 = vmatmul.mubr.f32.gmra.mrb[0].mxu0 %v1295
      %v1513 = vpop.f32.mrb[0].mxu0
      %v1514 = vadd.f32 0.0, %v1513
      %v1515 = vpop.f32.mrb[0].mxu0
      %1516 = vmatprep.mubr.f32.mxu0 0.0
      %1517 = vmatmul.mubr.f32.gmra.mrb[0].mxu0 %v1298
      %v1518 = vpop.f32.mrb[0].mxu0
      %v1519 = vadd.f32 0.0, %v1518
      %v1520 = vpop.f32.mrb[0].mxu0
      %1521 = vmatprep.mubr.f32.mxu0 0.0
      %1522 = vmatmul.mubr.f32.gmra.mrb[0].mxu0 %v1301
      %v1523 = vpop.f32.mrb[0].mxu0
      %v1524 = vadd.f32 0.0, %v1523
      %v1525 = vpop.f32.mrb[0].mxu0
      %1526 = vmatprep.mubr.f32.mxu0 0.0
      %1527 = vmatmul.mubr.f32.gmra.mrb[0].mxu0 %v1304
      %v1528 = vpop.f32.mrb[0].mxu0
      %v1529 = vadd.f32 0.0, %v1528
      %v1530 = vpop.f32.mrb[0].mxu0
      %1531 = vmatprep.mubr.f32.mxu0 0.0
      %1532 = vmatmul.mubr.f32.gmra.mrb[0].mxu0 %v1307
      %v1533 = vpop.f32.mrb[0].mxu0
      %v1534 = vadd.f32 0.0, %v1533
      %v1535 = vpop.f32.mrb[0].mxu0
      %1536 = vdwg.mxu0
      %v1537 = vadd.f32 %v1147, %v1379
      %v1538 = vadd.f32 %v1148, %v1384
      %v1539 = vadd.f32 %v1149, %v1389
      %v1540 = vadd.f32 %v1150, %v1394
      %v1541 = vadd.f32 %v1151, %v1399
      %v1542 = vadd.f32 %v1152, %v1404
      %v1543 = vadd.f32 %v1153, %v1409
      %v1544 = vadd.f32 %v1154, %v1414
      %v1545 = vadd.f32 %v1155, %v1419
      %v1546 = vadd.f32 %v1156, %v1424
      %v1547 = vadd.f32 %v1157, %v1429
      %v1548 = vadd.f32 %v1158, %v1434
      %v1549 = vadd.f32 %v1159, %v1439
      %v1550 = vadd.f32 %v1160, %v1444
      %v1551 = vadd.f32 %v1161, %v1449
      %v1552 = vadd.f32 %v1162, %v1454
      %v1553 = vadd.f32 %v1163, %v1459
      %v1554 = vadd.f32 %v1164, %v1464
      %v1555 = vadd.f32 %v1165, %v1469
      %v1556 = vadd.f32 %v1166, %v1474
      %v1557 = vadd.f32 %v1167, %v1479
      %v1558 = vadd.f32 %v1168, %v1484
      %v1559 = vadd.f32 %v1169, %v1489
      %v1560 = vadd.f32 %v1170, %v1494
      %v1561 = vadd.f32 %v1171, %v1499
      %v1562 = vadd.f32 %v1172, %v1504
      %v1563 = vadd.f32 %v1173, %v1509
      %v1564 = vadd.f32 %v1174, %v1514
      %v1565 = vadd.f32 %v1175, %v1519
      %v1566 = vadd.f32 %v1176, %v1524
      %v1567 = vadd.f32 %v1177, %v1529
      %v1568 = vadd.f32 %v1178, %v1534
      %v1569 = vld [vmem:[%s227 + $0xd8] sm:$0xff]
      %v1570 = vld [vmem:[%s227 + $0xe0] sm:$0xff]
      %v1571 = vld [vmem:[%s227 + $0xe8] sm:$0xff]
      %v1572 = vld [vmem:[%s227 + $0xf0] sm:$0xff]
      %v1573 = vld [vmem:[%s227 + $0xf8] sm:$0xff]
      %v1574 = vld [vmem:[%s227 + $0x100] sm:$0xff]
      %v1575 = vld [vmem:[%s227 + $0x108] sm:$0xff]
      %v1576 = vld [vmem:[%s227 + $0x110] sm:$0xff]
      %v1577 = vld [vmem:[%s227 + $0x118] sm:$0xff]
      %v1578 = vld [vmem:[%s227 + $0x120] sm:$0xff]
      %v1579 = vld [vmem:[%s227 + $0x128] sm:$0xff]
      %v1580 = vld [vmem:[%s227 + $0x130] sm:$0xff]
      %v1581 = vld [vmem:[%s227 + $0x138] sm:$0xff]
      %v1582 = vld [vmem:[%s227 + $0x140] sm:$0xff]
      %v1583 = vld [vmem:[%s227 + $0x148] sm:$0xff]
      %v1584 = vld [vmem:[%s227 + $0x150] sm:$0xff]
      %v1585 = vld [vmem:[%s227 + $0x158] sm:$0xff]
      %v1586 = vld [vmem:[%s227 + $0x160] sm:$0xff]
      %v1587 = vld [vmem:[%s227 + $0x168] sm:$0xff]
      %v1588 = vld [vmem:[%s227 + $0x170] sm:$0xff]
      %v1589 = vld [vmem:[%s227 + $0x178] sm:$0xff]
      %v1590 = vld [vmem:[%s227 + $0x180] sm:$0xff]
      %v1591 = vld [vmem:[%s227 + $0x188] sm:$0xff]
      %v1592 = vld [vmem:[%s227 + $0x190] sm:$0xff]
      %v1593 = vld [vmem:[%s227 + $0x198] sm:$0xff]
      %v1594 = vld [vmem:[%s227 + $0x1a0] sm:$0xff]
      %v1595 = vld [vmem:[%s227 + $0x1a8] sm:$0xff]
      %v1596 = vld [vmem:[%s227 + $0x1b0] sm:$0xff]
      %v1597 = vld [vmem:[%s227 + $0x1b8] sm:$0xff]
      %v1598 = vld [vmem:[%s227 + $0x1c0] sm:$0xff]
      %v1599 = vld [vmem:[%s227 + $0x1c8] sm:$0xff]
      %v1600 = vld [vmem:[%s227 + $0x1d0] sm:$0xff]
      %s1601 = scalar_lea.vmem %s3, 8
      %v1602 = vld [vmem:[%s1601] sm:$0xf]
      %v1604 = vsel %vm304, %v1569, 0
      %v1607 = vsel %vm304, %v1570, 0
      %v1610 = vsel %vm304, %v1571, 0
      %v1613 = vsel %vm304, %v1572, 0
      %v1616 = vsel %vm304, %v1573, 0
      %v1619 = vsel %vm304, %v1574, 0
      %v1622 = vsel %vm304, %v1575, 0
      %v1625 = vsel %vm304, %v1576, 0
      %v1628 = vsel %vm304, %v1577, 0
      %v1631 = vsel %vm304, %v1578, 0
      %v1634 = vsel %vm304, %v1579, 0
      %v1637 = vsel %vm304, %v1580, 0
      %v1640 = vsel %vm304, %v1581, 0
      %v1643 = vsel %vm304, %v1582, 0
      %v1646 = vsel %vm304, %v1583, 0
      %v1649 = vsel %vm304, %v1584, 0
      %v1652 = vsel %vm304, %v1585, 0
      %v1655 = vsel %vm304, %v1586, 0
      %v1658 = vsel %vm304, %v1587, 0
      %v1661 = vsel %vm304, %v1588, 0
      %v1664 = vsel %vm304, %v1589, 0
      %v1667 = vsel %vm304, %v1590, 0
      %v1670 = vsel %vm304, %v1591, 0
      %v1673 = vsel %vm304, %v1592, 0
      %v1676 = vsel %vm304, %v1593, 0
      %v1679 = vsel %vm304, %v1594, 0
      %v1682 = vsel %vm304, %v1595, 0
      %v1685 = vsel %vm304, %v1596, 0
      %v1688 = vsel %vm304, %v1597, 0
      %v1691 = vsel %vm304, %v1598, 0
      %v1694 = vsel %vm304, %v1599, 0
      %v1697 = vsel %vm304, %v1600, 0
      %v1700 = vsel %vm401, %v1602, 0
      %1702 = vmatprep.subr.mxu0 0.0
      %1703 = vmatpush1.msra.mxu0 %v1700
      %1704 = vmatprep.subr.mxu0 0.0
      %1705 = vmatpush1.msra.mxu0 0.0
      %1706 = vmatprep.subr.mxu0 0.0
      %1707 = vmatpush1.msra.mxu0 0.0
      %1708 = vmatprep.subr.mxu0 0.0
      %1709 = vmatpush1.msra.mxu0 0.0
      %1710 = vmatprep.subr.mxu0 0.0
      %1711 = vmatpush1.msra.mxu0 0.0
      %1712 = vmatprep.subr.mxu0 0.0
      %1713 = vmatpush1.msra.mxu0 0.0
      %1714 = vmatprep.subr.mxu0 0.0
      %1715 = vmatpush1.msra.mxu0 0.0
      %1716 = vmatprep.subr.mxu0 0.0
      %1717 = vmatpush1.msra.mxu0 0.0
      %1718 = vmatprep.subr.mxu0 0.0
      %1719 = vmatpush1.msra.mxu0 0.0
      %1720 = vmatprep.subr.mxu0 0.0
      %1721 = vmatpush1.msra.mxu0 0.0
      %1722 = vmatprep.subr.mxu0 0.0
      %1723 = vmatpush1.msra.mxu0 0.0
      %1724 = vmatprep.subr.mxu0 0.0
      %1725 = vmatpush1.msra.mxu0 0.0
      %1726 = vmatprep.subr.mxu0 0.0
      %1727 = vmatpush1.msra.mxu0 0.0
      %1728 = vmatprep.subr.mxu0 0.0
      %1729 = vmatpush1.msra.mxu0 0.0
      %1730 = vmatprep.subr.mxu0 0.0
      %1731 = vmatpush1.msra.mxu0 0.0
      %1732 = vmatprep.subr.mxu0 0.0
      %1733 = vmatpush1.msra.mxu0 0.0
      %1734 = vmatprep.subr.mxu0 0.0
      %1735 = vmatpush1.msra.mxu0 0.0
      %1736 = vmatprep.subr.mxu0 0.0
      %1737 = vmatpush1.msra.mxu0 0.0
      %1738 = vmatprep.subr.mxu0 0.0
      %1739 = vmatpush1.msra.mxu0 0.0
      %1740 = vmatprep.subr.mxu0 0.0
      %1741 = vmatpush1.msra.mxu0 0.0
      %1742 = vmatprep.subr.mxu0 0.0
      %1743 = vmatpush1.msra.mxu0 0.0
      %1744 = vmatprep.subr.mxu0 0.0
      %1745 = vmatpush1.msra.mxu0 0.0
      %1746 = vmatprep.subr.mxu0 0.0
      %1747 = vmatpush1.msra.mxu0 0.0
      %1748 = vmatprep.subr.mxu0 0.0
      %1749 = vmatpush1.msra.mxu0 0.0
      %1750 = vmatprep.subr.mxu0 0.0
      %1751 = vmatpush1.msra.mxu0 0.0
      %1752 = vmatprep.subr.mxu0 0.0
      %1753 = vmatpush1.msra.mxu0 0.0
      %1754 = vmatprep.subr.mxu0 0.0
      %1755 = vmatpush1.msra.mxu0 0.0
      %1756 = vmatprep.subr.mxu0 0.0
      %1757 = vmatpush1.msra.mxu0 0.0
      %1758 = vmatprep.subr.mxu0 0.0
      %1759 = vmatpush1.msra.mxu0 0.0
      %1760 = vmatprep.subr.mxu0 0.0
      %1761 = vmatpush1.msra.mxu0 0.0
      %1762 = vmatprep.subr.mxu0 0.0
      %1763 = vmatpush1.msra.mxu0 0.0
      %1764 = vmatprep.subr.mxu0 0.0
      %1765 = vmatpush1.msra.mxu0 0.0
      %1766 = vmatprep.mubr.f32.mxu0 0.0
      %1767 = vmatmul.mubr.f32.gmra.mrb[0].mxu0 %v1604
      %v1768 = vpop.f32.mrb[0].mxu0
      %v1769 = vadd.f32 0.0, %v1768
      %v1770 = vpop.f32.mrb[0].mxu0
      %1771 = vmatprep.mubr.f32.mxu0 0.0
      %1772 = vmatmul.mubr.f32.gmra.mrb[0].mxu0 %v1607
      %v1773 = vpop.f32.mrb[0].mxu0
      %v1774 = vadd.f32 0.0, %v1773
      %v1775 = vpop.f32.mrb[0].mxu0
      %1776 = vmatprep.mubr.f32.mxu0 0.0
      %1777 = vmatmul.mubr.f32.gmra.mrb[0].mxu0 %v1610
      %v1778 = vpop.f32.mrb[0].mxu0
      %v1779 = vadd.f32 0.0, %v1778
      %v1780 = vpop.f32.mrb[0].mxu0
      %1781 = vmatprep.mubr.f32.mxu0 0.0
      %1782 = vmatmul.mubr.f32.gmra.mrb[0].mxu0 %v1613
      %v1783 = vpop.f32.mrb[0].mxu0
      %v1784 = vadd.f32 0.0, %v1783
      %v1785 = vpop.f32.mrb[0].mxu0
      %1786 = vmatprep.mubr.f32.mxu0 0.0
      %1787 = vmatmul.mubr.f32.gmra.mrb[0].mxu0 %v1616
      %v1788 = vpop.f32.mrb[0].mxu0
      %v1789 = vadd.f32 0.0, %v1788
      %v1790 = vpop.f32.mrb[0].mxu0
      %1791 = vmatprep.mubr.f32.mxu0 0.0
      %1792 = vmatmul.mubr.f32.gmra.mrb[0].mxu0 %v1619
      %v1793 = vpop.f32.mrb[0].mxu0
      %v1794 = vadd.f32 0.0, %v1793
      %v1795 = vpop.f32.mrb[0].mxu0
      %1796 = vmatprep.mubr.f32.mxu0 0.0
      %1797 = vmatmul.mubr.f32.gmra.mrb[0].mxu0 %v1622
      %v1798 = vpop.f32.mrb[0].mxu0
      %v1799 = vadd.f32 0.0, %v1798
      %v1800 = vpop.f32.mrb[0].mxu0
      %1801 = vmatprep.mubr.f32.mxu0 0.0
      %1802 = vmatmul.mubr.f32.gmra.mrb[0].mxu0 %v1625
      %v1803 = vpop.f32.mrb[0].mxu0
      %v1804 = vadd.f32 0.0, %v1803
      %v1805 = vpop.f32.mrb[0].mxu0
      %1806 = vmatprep.mubr.f32.mxu0 0.0
      %1807 = vmatmul.mubr.f32.gmra.mrb[0].mxu0 %v1628
      %v1808 = vpop.f32.mrb[0].mxu0
      %v1809 = vadd.f32 0.0, %v1808
      %v1810 = vpop.f32.mrb[0].mxu0
      %1811 = vmatprep.mubr.f32.mxu0 0.0
      %1812 = vmatmul.mubr.f32.gmra.mrb[0].mxu0 %v1631
      %v1813 = vpop.f32.mrb[0].mxu0
      %v1814 = vadd.f32 0.0, %v1813
      %v1815 = vpop.f32.mrb[0].mxu0
      %1816 = vmatprep.mubr.f32.mxu0 0.0
      %1817 = vmatmul.mubr.f32.gmra.mrb[0].mxu0 %v1634
      %v1818 = vpop.f32.mrb[0].mxu0
      %v1819 = vadd.f32 0.0, %v1818
      %v1820 = vpop.f32.mrb[0].mxu0
      %1821 = vmatprep.mubr.f32.mxu0 0.0
      %1822 = vmatmul.mubr.f32.gmra.mrb[0].mxu0 %v1637
      %v1823 = vpop.f32.mrb[0].mxu0
      %v1824 = vadd.f32 0.0, %v1823
      %v1825 = vpop.f32.mrb[0].mxu0
      %1826 = vmatprep.mubr.f32.mxu0 0.0
      %1827 = vmatmul.mubr.f32.gmra.mrb[0].mxu0 %v1640
      %v1828 = vpop.f32.mrb[0].mxu0
      %v1829 = vadd.f32 0.0, %v1828
      %v1830 = vpop.f32.mrb[0].mxu0
      %1831 = vmatprep.mubr.f32.mxu0 0.0
      %1832 = vmatmul.mubr.f32.gmra.mrb[0].mxu0 %v1643
      %v1833 = vpop.f32.mrb[0].mxu0
      %v1834 = vadd.f32 0.0, %v1833
      %v1835 = vpop.f32.mrb[0].mxu0
      %1836 = vmatprep.mubr.f32.mxu0 0.0
      %1837 = vmatmul.mubr.f32.gmra.mrb[0].mxu0 %v1646
      %v1838 = vpop.f32.mrb[0].mxu0
      %v1839 = vadd.f32 0.0, %v1838
      %v1840 = vpop.f32.mrb[0].mxu0
      %1841 = vmatprep.mubr.f32.mxu0 0.0
      %1842 = vmatmul.mubr.f32.gmra.mrb[0].mxu0 %v1649
      %v1843 = vpop.f32.mrb[0].mxu0
      %v1844 = vadd.f32 0.0, %v1843
      %v1845 = vpop.f32.mrb[0].mxu0
      %1846 = vmatprep.mubr.f32.mxu0 0.0
      %1847 = vmatmul.mubr.f32.gmra.mrb[0].mxu0 %v1652
      %v1848 = vpop.f32.mrb[0].mxu0
      %v1849 = vadd.f32 0.0, %v1848
      %v1850 = vpop.f32.mrb[0].mxu0
      %1851 = vmatprep.mubr.f32.mxu0 0.0
      %1852 = vmatmul.mubr.f32.gmra.mrb[0].mxu0 %v1655
      %v1853 = vpop.f32.mrb[0].mxu0
      %v1854 = vadd.f32 0.0, %v1853
      %v1855 = vpop.f32.mrb[0].mxu0
      %1856 = vmatprep.mubr.f32.mxu0 0.0
      %1857 = vmatmul.mubr.f32.gmra.mrb[0].mxu0 %v1658
      %v1858 = vpop.f32.mrb[0].mxu0
      %v1859 = vadd.f32 0.0, %v1858
      %v1860 = vpop.f32.mrb[0].mxu0
      %1861 = vmatprep.mubr.f32.mxu0 0.0
      %1862 = vmatmul.mubr.f32.gmra.mrb[0].mxu0 %v1661
      %v1863 = vpop.f32.mrb[0].mxu0
      %v1864 = vadd.f32 0.0, %v1863
      %v1865 = vpop.f32.mrb[0].mxu0
      %1866 = vmatprep.mubr.f32.mxu0 0.0
      %1867 = vmatmul.mubr.f32.gmra.mrb[0].mxu0 %v1664
      %v1868 = vpop.f32.mrb[0].mxu0
      %v1869 = vadd.f32 0.0, %v1868
      %v1870 = vpop.f32.mrb[0].mxu0
      %1871 = vmatprep.mubr.f32.mxu0 0.0
      %1872 = vmatmul.mubr.f32.gmra.mrb[0].mxu0 %v1667
      %v1873 = vpop.f32.mrb[0].mxu0
      %v1874 = vadd.f32 0.0, %v1873
      %v1875 = vpop.f32.mrb[0].mxu0
      %1876 = vmatprep.mubr.f32.mxu0 0.0
      %1877 = vmatmul.mubr.f32.gmra.mrb[0].mxu0 %v1670
      %v1878 = vpop.f32.mrb[0].mxu0
      %v1879 = vadd.f32 0.0, %v1878
      %v1880 = vpop.f32.mrb[0].mxu0
      %1881 = vmatprep.mubr.f32.mxu0 0.0
      %1882 = vmatmul.mubr.f32.gmra.mrb[0].mxu0 %v1673
      %v1883 = vpop.f32.mrb[0].mxu0
      %v1884 = vadd.f32 0.0, %v1883
      %v1885 = vpop.f32.mrb[0].mxu0
      %1886 = vmatprep.mubr.f32.mxu0 0.0
      %1887 = vmatmul.mubr.f32.gmra.mrb[0].mxu0 %v1676
      %v1888 = vpop.f32.mrb[0].mxu0
      %v1889 = vadd.f32 0.0, %v1888
      %v1890 = vpop.f32.mrb[0].mxu0
      %1891 = vmatprep.mubr.f32.mxu0 0.0
      %1892 = vmatmul.mubr.f32.gmra.mrb[0].mxu0 %v1679
      %v1893 = vpop.f32.mrb[0].mxu0
      %v1894 = vadd.f32 0.0, %v1893
      %v1895 = vpop.f32.mrb[0].mxu0
      %1896 = vmatprep.mubr.f32.mxu0 0.0
      %1897 = vmatmul.mubr.f32.gmra.mrb[0].mxu0 %v1682
      %v1898 = vpop.f32.mrb[0].mxu0
      %v1899 = vadd.f32 0.0, %v1898
      %v1900 = vpop.f32.mrb[0].mxu0
      %1901 = vmatprep.mubr.f32.mxu0 0.0
      %1902 = vmatmul.mubr.f32.gmra.mrb[0].mxu0 %v1685
      %v1903 = vpop.f32.mrb[0].mxu0
      %v1904 = vadd.f32 0.0, %v1903
      %v1905 = vpop.f32.mrb[0].mxu0
      %1906 = vmatprep.mubr.f32.mxu0 0.0
      %1907 = vmatmul.mubr.f32.gmra.mrb[0].mxu0 %v1688
      %v1908 = vpop.f32.mrb[0].mxu0
      %v1909 = vadd.f32 0.0, %v1908
      %v1910 = vpop.f32.mrb[0].mxu0
      %1911 = vmatprep.mubr.f32.mxu0 0.0
      %1912 = vmatmul.mubr.f32.gmra.mrb[0].mxu0 %v1691
      %v1913 = vpop.f32.mrb[0].mxu0
      %v1914 = vadd.f32 0.0, %v1913
      %v1915 = vpop.f32.mrb[0].mxu0
      %1916 = vmatprep.mubr.f32.mxu0 0.0
      %1917 = vmatmul.mubr.f32.gmra.mrb[0].mxu0 %v1694
      %v1918 = vpop.f32.mrb[0].mxu0
      %v1919 = vadd.f32 0.0, %v1918
      %v1920 = vpop.f32.mrb[0].mxu0
      %1921 = vmatprep.mubr.f32.mxu0 0.0
      %1922 = vmatmul.mubr.f32.gmra.mrb[0].mxu0 %v1697
      %v1923 = vpop.f32.mrb[0].mxu0
      %v1924 = vadd.f32 0.0, %v1923
      %v1925 = vpop.f32.mrb[0].mxu0
      %1926 = vdwg.mxu0
      %1927 = vset.pattern.permute.xlu0 1
      %1928 = vperm.xlu0 %1927, %v239
      %v1929 = vpop.permute.xlu0 %1928
      %1931 = vset.pattern.permute.xlu0 1
      %1932 = vperm.xlu0 %1931, %v240
      %v1933 = vpop.permute.xlu0 %1932
      %1935 = vset.pattern.permute.xlu0 1
      %1936 = vperm.xlu0 %1935, %v241
      %v1937 = vpop.permute.xlu0 %1936
      %1939 = vset.pattern.permute.xlu0 1
      %1940 = vperm.xlu0 %1939, %v242
      %v1941 = vpop.permute.xlu0 %1940
      %1943 = vset.pattern.permute.xlu0 1
      %1944 = vperm.xlu0 %1943, %v243
      %v1945 = vpop.permute.xlu0 %1944
      %1947 = vset.pattern.permute.xlu0 1
      %1948 = vperm.xlu0 %1947, %v244
      %v1949 = vpop.permute.xlu0 %1948
      %1951 = vset.pattern.permute.xlu0 1
      %1952 = vperm.xlu0 %1951, %v245
      %v1953 = vpop.permute.xlu0 %1952
      %1955 = vset.pattern.permute.xlu0 1
      %1956 = vperm.xlu0 %1955, %v246
      %v1957 = vpop.permute.xlu0 %1956
      %1959 = vset.pattern.permute.xlu0 1
      %1960 = vperm.xlu0 %1959, %v247
      %v1961 = vpop.permute.xlu0 %1960
      %1963 = vset.pattern.permute.xlu0 1
      %1964 = vperm.xlu0 %1963, %v248
      %v1965 = vpop.permute.xlu0 %1964
      %1967 = vset.pattern.permute.xlu0 1
      %1968 = vperm.xlu0 %1967, %v249
      %v1969 = vpop.permute.xlu0 %1968
      %1971 = vset.pattern.permute.xlu0 1
      %1972 = vperm.xlu0 %1971, %v250
      %v1973 = vpop.permute.xlu0 %1972
      %1975 = vset.pattern.permute.xlu0 1
      %1976 = vperm.xlu0 %1975, %v251
      %v1977 = vpop.permute.xlu0 %1976
      %1979 = vset.pattern.permute.xlu0 1
      %1980 = vperm.xlu0 %1979, %v252
      %v1981 = vpop.permute.xlu0 %1980
      %1983 = vset.pattern.permute.xlu0 1
      %1984 = vperm.xlu0 %1983, %v253
      %v1985 = vpop.permute.xlu0 %1984
      %1987 = vset.pattern.permute.xlu0 1
      %1988 = vperm.xlu0 %1987, %v254
      %v1989 = vpop.permute.xlu0 %1988
      %1991 = vset.pattern.permute.xlu0 1
      %1992 = vperm.xlu0 %1991, %v255
      %v1993 = vpop.permute.xlu0 %1992
      %1995 = vset.pattern.permute.xlu0 1
      %1996 = vperm.xlu0 %1995, %v256
      %v1997 = vpop.permute.xlu0 %1996
      %1999 = vset.pattern.permute.xlu0 1
      %2000 = vperm.xlu0 %1999, %v257
      %v2001 = vpop.permute.xlu0 %2000
      %2003 = vset.pattern.permute.xlu0 1
      %2004 = vperm.xlu0 %2003, %v258
      %v2005 = vpop.permute.xlu0 %2004
      %2007 = vset.pattern.permute.xlu0 1
      %2008 = vperm.xlu0 %2007, %v259
      %v2009 = vpop.permute.xlu0 %2008
      %2011 = vset.pattern.permute.xlu0 1
      %2012 = vperm.xlu0 %2011, %v260
      %v2013 = vpop.permute.xlu0 %2012
      %2015 = vset.pattern.permute.xlu0 1
      %2016 = vperm.xlu0 %2015, %v261
      %v2017 = vpop.permute.xlu0 %2016
      %2019 = vset.pattern.permute.xlu0 1
      %2020 = vperm.xlu0 %2019, %v262
      %v2021 = vpop.permute.xlu0 %2020
      %2023 = vset.pattern.permute.xlu0 1
      %2024 = vperm.xlu0 %2023, %v263
      %v2025 = vpop.permute.xlu0 %2024
      %2027 = vset.pattern.permute.xlu0 1
      %2028 = vperm.xlu0 %2027, %v264
      %v2029 = vpop.permute.xlu0 %2028
      %2031 = vset.pattern.permute.xlu0 1
      %2032 = vperm.xlu0 %2031, %v265
      %v2033 = vpop.permute.xlu0 %2032
      %2035 = vset.pattern.permute.xlu0 1
      %2036 = vperm.xlu0 %2035, %v266
      %v2037 = vpop.permute.xlu0 %2036
      %2039 = vset.pattern.permute.xlu0 1
      %2040 = vperm.xlu0 %2039, %v267
      %v2041 = vpop.permute.xlu0 %2040
      %2043 = vset.pattern.permute.xlu0 1
      %2044 = vperm.xlu0 %2043, %v268
      %v2045 = vpop.permute.xlu0 %2044
      %2047 = vset.pattern.permute.xlu0 1
      %2048 = vperm.xlu0 %2047, %v269
      %v2049 = vpop.permute.xlu0 %2048
      %2051 = vset.pattern.permute.xlu0 1
      %2052 = vperm.xlu0 %2051, %v270
      %v2053 = vpop.permute.xlu0 %2052
      %v2055 = vmul.f32 %v1769, %v1929
      %v2056 = vmul.f32 %v1774, %v1933
      %v2057 = vmul.f32 %v1779, %v1937
      %v2058 = vmul.f32 %v1784, %v1941
      %v2059 = vmul.f32 %v1789, %v1945
      %v2060 = vmul.f32 %v1794, %v1949
      %v2061 = vmul.f32 %v1799, %v1953
      %v2062 = vmul.f32 %v1804, %v1957
      %v2063 = vmul.f32 %v1809, %v1961
      %v2064 = vmul.f32 %v1814, %v1965
      %v2065 = vmul.f32 %v1819, %v1969
      %v2066 = vmul.f32 %v1824, %v1973
      %v2067 = vmul.f32 %v1829, %v1977
      %v2068 = vmul.f32 %v1834, %v1981
      %v2069 = vmul.f32 %v1839, %v1985
      %v2070 = vmul.f32 %v1844, %v1989
      %v2071 = vmul.f32 %v1849, %v1993
      %v2072 = vmul.f32 %v1854, %v1997
      %v2073 = vmul.f32 %v1859, %v2001
      %v2074 = vmul.f32 %v1864, %v2005
      %v2075 = vmul.f32 %v1869, %v2009
      %v2076 = vmul.f32 %v1874, %v2013
      %v2077 = vmul.f32 %v1879, %v2017
      %v2078 = vmul.f32 %v1884, %v2021
      %v2079 = vmul.f32 %v1889, %v2025
      %v2080 = vmul.f32 %v1894, %v2029
      %v2081 = vmul.f32 %v1899, %v2033
      %v2082 = vmul.f32 %v1904, %v2037
      %v2083 = vmul.f32 %v1909, %v2041
      %v2084 = vmul.f32 %v1914, %v2045
      %v2085 = vmul.f32 %v1919, %v2049
      %v2086 = vmul.f32 %v1924, %v2053
      %v2087 = vadd.f32 %v1537, %v2055
      %v2088 = vadd.f32 %v1538, %v2056
      %v2089 = vadd.f32 %v1539, %v2057
      %v2090 = vadd.f32 %v1540, %v2058
      %v2091 = vadd.f32 %v1541, %v2059
      %v2092 = vadd.f32 %v1542, %v2060
      %v2093 = vadd.f32 %v1543, %v2061
      %v2094 = vadd.f32 %v1544, %v2062
      %v2095 = vadd.f32 %v1545, %v2063
      %v2096 = vadd.f32 %v1546, %v2064
      %v2097 = vadd.f32 %v1547, %v2065
      %v2098 = vadd.f32 %v1548, %v2066
      %v2099 = vadd.f32 %v1549, %v2067
      %v2100 = vadd.f32 %v1550, %v2068
      %v2101 = vadd.f32 %v1551, %v2069
      %v2102 = vadd.f32 %v1552, %v2070
      %v2103 = vadd.f32 %v1553, %v2071
      %v2104 = vadd.f32 %v1554, %v2072
      %v2105 = vadd.f32 %v1555, %v2073
      %v2106 = vadd.f32 %v1556, %v2074
      %v2107 = vadd.f32 %v1557, %v2075
      %v2108 = vadd.f32 %v1558, %v2076
      %v2109 = vadd.f32 %v1559, %v2077
      %v2110 = vadd.f32 %v1560, %v2078
      %v2111 = vadd.f32 %v1561, %v2079
      %v2112 = vadd.f32 %v1562, %v2080
      %v2113 = vadd.f32 %v1563, %v2081
      %v2114 = vadd.f32 %v1564, %v2082
      %v2115 = vadd.f32 %v1565, %v2083
      %v2116 = vadd.f32 %v1566, %v2084
      %v2117 = vadd.f32 %v1567, %v2085
      %v2118 = vadd.f32 %v1568, %v2086
      %v2119 = vld [vmem:[%s227 + $0x12c] sm:$0xff]
      %v2120 = vld [vmem:[%s227 + $0x134] sm:$0xff]
      %v2121 = vld [vmem:[%s227 + $0x13c] sm:$0xff]
      %v2122 = vld [vmem:[%s227 + $0x144] sm:$0xff]
      %v2123 = vld [vmem:[%s227 + $0x14c] sm:$0xff]
      %v2124 = vld [vmem:[%s227 + $0x154] sm:$0xff]
      %v2125 = vld [vmem:[%s227 + $0x15c] sm:$0xff]
      %v2126 = vld [vmem:[%s227 + $0x164] sm:$0xff]
      %v2127 = vld [vmem:[%s227 + $0x16c] sm:$0xff]
      %v2128 = vld [vmem:[%s227 + $0x174] sm:$0xff]
      %v2129 = vld [vmem:[%s227 + $0x17c] sm:$0xff]
      %v2130 = vld [vmem:[%s227 + $0x184] sm:$0xff]
      %v2131 = vld [vmem:[%s227 + $0x18c] sm:$0xff]
      %v2132 = vld [vmem:[%s227 + $0x194] sm:$0xff]
      %v2133 = vld [vmem:[%s227 + $0x19c] sm:$0xff]
      %v2134 = vld [vmem:[%s227 + $0x1a4] sm:$0xff]
      %v2135 = vld [vmem:[%s227 + $0x1ac] sm:$0xff]
      %v2136 = vld [vmem:[%s227 + $0x1b4] sm:$0xff]
      %v2137 = vld [vmem:[%s227 + $0x1bc] sm:$0xff]
      %v2138 = vld [vmem:[%s227 + $0x1c4] sm:$0xff]
      %v2139 = vld [vmem:[%s227 + $0x1cc] sm:$0xff]
      %v2140 = vld [vmem:[%s227 + $0x1d4] sm:$0xff]
      %v2141 = vld [vmem:[%s227 + $0x1dc] sm:$0xff]
      %v2142 = vld [vmem:[%s227 + $0x1e4] sm:$0xff]
      %v2143 = vld [vmem:[%s227 + $0x1ec] sm:$0xff]
      %v2144 = vld [vmem:[%s227 + $0x1f4] sm:$0xff]
      %v2145 = vld [vmem:[%s227 + $0x1fc] sm:$0xff]
      %v2146 = vld [vmem:[%s227 + $0x204] sm:$0xff]
      %v2147 = vld [vmem:[%s227 + $0x20c] sm:$0xff]
      %v2148 = vld [vmem:[%s227 + $0x214] sm:$0xff]
      %v2149 = vld [vmem:[%s227 + $0x21c] sm:$0xff]
      %v2150 = vld [vmem:[%s227 + $0x224] sm:$0xff]
      %s2151 = scalar_lea.vmem %s3, 12
      %v2152 = vld [vmem:[%s2151] sm:$0xf]
      %v2154 = vsel %vm304, %v2119, 0
      %v2157 = vsel %vm304, %v2120, 0
      %v2160 = vsel %vm304, %v2121, 0
      %v2163 = vsel %vm304, %v2122, 0
      %v2166 = vsel %vm304, %v2123, 0
      %v2169 = vsel %vm304, %v2124, 0
      %v2172 = vsel %vm304, %v2125, 0
      %v2175 = vsel %vm304, %v2126, 0
      %v2178 = vsel %vm304, %v2127, 0
      %v2181 = vsel %vm304, %v2128, 0
      %v2184 = vsel %vm304, %v2129, 0
      %v2187 = vsel %vm304, %v2130, 0
      %v2190 = vsel %vm304, %v2131, 0
      %v2193 = vsel %vm304, %v2132, 0
      %v2196 = vsel %vm304, %v2133, 0
      %v2199 = vsel %vm304, %v2134, 0
      %v2202 = vsel %vm304, %v2135, 0
      %v2205 = vsel %vm304, %v2136, 0
      %v2208 = vsel %vm304, %v2137, 0
      %v2211 = vsel %vm304, %v2138, 0
      %v2214 = vsel %vm304, %v2139, 0
      %v2217 = vsel %vm304, %v2140, 0
      %v2220 = vsel %vm304, %v2141, 0
      %v2223 = vsel %vm304, %v2142, 0
      %v2226 = vsel %vm304, %v2143, 0
      %v2229 = vsel %vm304, %v2144, 0
      %v2232 = vsel %vm304, %v2145, 0
      %v2235 = vsel %vm304, %v2146, 0
      %v2238 = vsel %vm304, %v2147, 0
      %v2241 = vsel %vm304, %v2148, 0
      %v2244 = vsel %vm304, %v2149, 0
      %v2247 = vsel %vm304, %v2150, 0
      %v2250 = vsel %vm401, %v2152, 0
      %2252 = vmatprep.subr.mxu0 0.0
      %2253 = vmatpush1.msra.mxu0 %v2250
      %2254 = vmatprep.subr.mxu0 0.0
      %2255 = vmatpush1.msra.mxu0 0.0
      %2256 = vmatprep.subr.mxu0 0.0
      %2257 = vmatpush1.msra.mxu0 0.0
      %2258 = vmatprep.subr.mxu0 0.0
      %2259 = vmatpush1.msra.mxu0 0.0
      %2260 = vmatprep.subr.mxu0 0.0
      %2261 = vmatpush1.msra.mxu0 0.0
      %2262 = vmatprep.subr.mxu0 0.0
      %2263 = vmatpush1.msra.mxu0 0.0
      %2264 = vmatprep.subr.mxu0 0.0
      %2265 = vmatpush1.msra.mxu0 0.0
      %2266 = vmatprep.subr.mxu0 0.0
      %2267 = vmatpush1.msra.mxu0 0.0
      %2268 = vmatprep.subr.mxu0 0.0
      %2269 = vmatpush1.msra.mxu0 0.0
      %2270 = vmatprep.subr.mxu0 0.0
      %2271 = vmatpush1.msra.mxu0 0.0
      %2272 = vmatprep.subr.mxu0 0.0
      %2273 = vmatpush1.msra.mxu0 0.0
      %2274 = vmatprep.subr.mxu0 0.0
      %2275 = vmatpush1.msra.mxu0 0.0
      %2276 = vmatprep.subr.mxu0 0.0
      %2277 = vmatpush1.msra.mxu0 0.0
      %2278 = vmatprep.subr.mxu0 0.0
      %2279 = vmatpush1.msra.mxu0 0.0
      %2280 = vmatprep.subr.mxu0 0.0
      %2281 = vmatpush1.msra.mxu0 0.0
      %2282 = vmatprep.subr.mxu0 0.0
      %2283 = vmatpush1.msra.mxu0 0.0
      %2284 = vmatprep.subr.mxu0 0.0
      %2285 = vmatpush1.msra.mxu0 0.0
      %2286 = vmatprep.subr.mxu0 0.0
      %2287 = vmatpush1.msra.mxu0 0.0
      %2288 = vmatprep.subr.mxu0 0.0
      %2289 = vmatpush1.msra.mxu0 0.0
      %2290 = vmatprep.subr.mxu0 0.0
      %2291 = vmatpush1.msra.mxu0 0.0
      %2292 = vmatprep.subr.mxu0 0.0
      %2293 = vmatpush1.msra.mxu0 0.0
      %2294 = vmatprep.subr.mxu0 0.0
      %2295 = vmatpush1.msra.mxu0 0.0
      %2296 = vmatprep.subr.mxu0 0.0
      %2297 = vmatpush1.msra.mxu0 0.0
      %2298 = vmatprep.subr.mxu0 0.0
      %2299 = vmatpush1.msra.mxu0 0.0
      %2300 = vmatprep.subr.mxu0 0.0
      %2301 = vmatpush1.msra.mxu0 0.0
      %2302 = vmatprep.subr.mxu0 0.0
      %2303 = vmatpush1.msra.mxu0 0.0
      %2304 = vmatprep.subr.mxu0 0.0
      %2305 = vmatpush1.msra.mxu0 0.0
      %2306 = vmatprep.subr.mxu0 0.0
      %2307 = vmatpush1.msra.mxu0 0.0
      %2308 = vmatprep.subr.mxu0 0.0
      %2309 = vmatpush1.msra.mxu0 0.0
      %2310 = vmatprep.subr.mxu0 0.0
      %2311 = vmatpush1.msra.mxu0 0.0
      %2312 = vmatprep.subr.mxu0 0.0
      %2313 = vmatpush1.msra.mxu0 0.0
      %2314 = vmatprep.subr.mxu0 0.0
      %2315 = vmatpush1.msra.mxu0 0.0
      %2316 = vmatprep.mubr.f32.mxu0 0.0
      %2317 = vmatmul.mubr.f32.gmra.mrb[0].mxu0 %v2154
      %v2318 = vpop.f32.mrb[0].mxu0
      %v2319 = vadd.f32 0.0, %v2318
      %v2320 = vpop.f32.mrb[0].mxu0
      %2321 = vmatprep.mubr.f32.mxu0 0.0
      %2322 = vmatmul.mubr.f32.gmra.mrb[0].mxu0 %v2157
      %v2323 = vpop.f32.mrb[0].mxu0
      %v2324 = vadd.f32 0.0, %v2323
      %v2325 = vpop.f32.mrb[0].mxu0
      %2326 = vmatprep.mubr.f32.mxu0 0.0
      %2327 = vmatmul.mubr.f32.gmra.mrb[0].mxu0 %v2160
      %v2328 = vpop.f32.mrb[0].mxu0
      %v2329 = vadd.f32 0.0, %v2328
      %v2330 = vpop.f32.mrb[0].mxu0
      %2331 = vmatprep.mubr.f32.mxu0 0.0
      %2332 = vmatmul.mubr.f32.gmra.mrb[0].mxu0 %v2163
      %v2333 = vpop.f32.mrb[0].mxu0
      %v2334 = vadd.f32 0.0, %v2333
      %v2335 = vpop.f32.mrb[0].mxu0
      %2336 = vmatprep.mubr.f32.mxu0 0.0
      %2337 = vmatmul.mubr.f32.gmra.mrb[0].mxu0 %v2166
      %v2338 = vpop.f32.mrb[0].mxu0
      %v2339 = vadd.f32 0.0, %v2338
      %v2340 = vpop.f32.mrb[0].mxu0
      %2341 = vmatprep.mubr.f32.mxu0 0.0
      %2342 = vmatmul.mubr.f32.gmra.mrb[0].mxu0 %v2169
      %v2343 = vpop.f32.mrb[0].mxu0
      %v2344 = vadd.f32 0.0, %v2343
      %v2345 = vpop.f32.mrb[0].mxu0
      %2346 = vmatprep.mubr.f32.mxu0 0.0
      %2347 = vmatmul.mubr.f32.gmra.mrb[0].mxu0 %v2172
      %v2348 = vpop.f32.mrb[0].mxu0
      %v2349 = vadd.f32 0.0, %v2348
      %v2350 = vpop.f32.mrb[0].mxu0
      %2351 = vmatprep.mubr.f32.mxu0 0.0
      %2352 = vmatmul.mubr.f32.gmra.mrb[0].mxu0 %v2175
      %v2353 = vpop.f32.mrb[0].mxu0
      %v2354 = vadd.f32 0.0, %v2353
      %v2355 = vpop.f32.mrb[0].mxu0
      %2356 = vmatprep.mubr.f32.mxu0 0.0
      %2357 = vmatmul.mubr.f32.gmra.mrb[0].mxu0 %v2178
      %v2358 = vpop.f32.mrb[0].mxu0
      %v2359 = vadd.f32 0.0, %v2358
      %v2360 = vpop.f32.mrb[0].mxu0
      %2361 = vmatprep.mubr.f32.mxu0 0.0
      %2362 = vmatmul.mubr.f32.gmra.mrb[0].mxu0 %v2181
      %v2363 = vpop.f32.mrb[0].mxu0
      %v2364 = vadd.f32 0.0, %v2363
      %v2365 = vpop.f32.mrb[0].mxu0
      %2366 = vmatprep.mubr.f32.mxu0 0.0
      %2367 = vmatmul.mubr.f32.gmra.mrb[0].mxu0 %v2184
      %v2368 = vpop.f32.mrb[0].mxu0
      %v2369 = vadd.f32 0.0, %v2368
      %v2370 = vpop.f32.mrb[0].mxu0
      %2371 = vmatprep.mubr.f32.mxu0 0.0
      %2372 = vmatmul.mubr.f32.gmra.mrb[0].mxu0 %v2187
      %v2373 = vpop.f32.mrb[0].mxu0
      %v2374 = vadd.f32 0.0, %v2373
      %v2375 = vpop.f32.mrb[0].mxu0
      %2376 = vmatprep.mubr.f32.mxu0 0.0
      %2377 = vmatmul.mubr.f32.gmra.mrb[0].mxu0 %v2190
      %v2378 = vpop.f32.mrb[0].mxu0
      %v2379 = vadd.f32 0.0, %v2378
      %v2380 = vpop.f32.mrb[0].mxu0
      %2381 = vmatprep.mubr.f32.mxu0 0.0
      %2382 = vmatmul.mubr.f32.gmra.mrb[0].mxu0 %v2193
      %v2383 = vpop.f32.mrb[0].mxu0
      %v2384 = vadd.f32 0.0, %v2383
      %v2385 = vpop.f32.mrb[0].mxu0
      %2386 = vmatprep.mubr.f32.mxu0 0.0
      %2387 = vmatmul.mubr.f32.gmra.mrb[0].mxu0 %v2196
      %v2388 = vpop.f32.mrb[0].mxu0
      %v2389 = vadd.f32 0.0, %v2388
      %v2390 = vpop.f32.mrb[0].mxu0
      %2391 = vmatprep.mubr.f32.mxu0 0.0
      %2392 = vmatmul.mubr.f32.gmra.mrb[0].mxu0 %v2199
      %v2393 = vpop.f32.mrb[0].mxu0
      %v2394 = vadd.f32 0.0, %v2393
      %v2395 = vpop.f32.mrb[0].mxu0
      %2396 = vmatprep.mubr.f32.mxu0 0.0
      %2397 = vmatmul.mubr.f32.gmra.mrb[0].mxu0 %v2202
      %v2398 = vpop.f32.mrb[0].mxu0
      %v2399 = vadd.f32 0.0, %v2398
      %v2400 = vpop.f32.mrb[0].mxu0
      %2401 = vmatprep.mubr.f32.mxu0 0.0
      %2402 = vmatmul.mubr.f32.gmra.mrb[0].mxu0 %v2205
      %v2403 = vpop.f32.mrb[0].mxu0
      %v2404 = vadd.f32 0.0, %v2403
      %v2405 = vpop.f32.mrb[0].mxu0
      %2406 = vmatprep.mubr.f32.mxu0 0.0
      %2407 = vmatmul.mubr.f32.gmra.mrb[0].mxu0 %v2208
      %v2408 = vpop.f32.mrb[0].mxu0
      %v2409 = vadd.f32 0.0, %v2408
      %v2410 = vpop.f32.mrb[0].mxu0
      %2411 = vmatprep.mubr.f32.mxu0 0.0
      %2412 = vmatmul.mubr.f32.gmra.mrb[0].mxu0 %v2211
      %v2413 = vpop.f32.mrb[0].mxu0
      %v2414 = vadd.f32 0.0, %v2413
      %v2415 = vpop.f32.mrb[0].mxu0
      %2416 = vmatprep.mubr.f32.mxu0 0.0
      %2417 = vmatmul.mubr.f32.gmra.mrb[0].mxu0 %v2214
      %v2418 = vpop.f32.mrb[0].mxu0
      %v2419 = vadd.f32 0.0, %v2418
      %v2420 = vpop.f32.mrb[0].mxu0
      %2421 = vmatprep.mubr.f32.mxu0 0.0
      %2422 = vmatmul.mubr.f32.gmra.mrb[0].mxu0 %v2217
      %v2423 = vpop.f32.mrb[0].mxu0
      %v2424 = vadd.f32 0.0, %v2423
      %v2425 = vpop.f32.mrb[0].mxu0
      %2426 = vmatprep.mubr.f32.mxu0 0.0
      %2427 = vmatmul.mubr.f32.gmra.mrb[0].mxu0 %v2220
      %v2428 = vpop.f32.mrb[0].mxu0
      %v2429 = vadd.f32 0.0, %v2428
      %v2430 = vpop.f32.mrb[0].mxu0
      %2431 = vmatprep.mubr.f32.mxu0 0.0
      %2432 = vmatmul.mubr.f32.gmra.mrb[0].mxu0 %v2223
      %v2433 = vpop.f32.mrb[0].mxu0
      %v2434 = vadd.f32 0.0, %v2433
      %v2435 = vpop.f32.mrb[0].mxu0
      %2436 = vmatprep.mubr.f32.mxu0 0.0
      %2437 = vmatmul.mubr.f32.gmra.mrb[0].mxu0 %v2226
      %v2438 = vpop.f32.mrb[0].mxu0
      %v2439 = vadd.f32 0.0, %v2438
      %v2440 = vpop.f32.mrb[0].mxu0
      %2441 = vmatprep.mubr.f32.mxu0 0.0
      %2442 = vmatmul.mubr.f32.gmra.mrb[0].mxu0 %v2229
      %v2443 = vpop.f32.mrb[0].mxu0
      %v2444 = vadd.f32 0.0, %v2443
      %v2445 = vpop.f32.mrb[0].mxu0
      %2446 = vmatprep.mubr.f32.mxu0 0.0
      %2447 = vmatmul.mubr.f32.gmra.mrb[0].mxu0 %v2232
      %v2448 = vpop.f32.mrb[0].mxu0
      %v2449 = vadd.f32 0.0, %v2448
      %v2450 = vpop.f32.mrb[0].mxu0
      %2451 = vmatprep.mubr.f32.mxu0 0.0
      %2452 = vmatmul.mubr.f32.gmra.mrb[0].mxu0 %v2235
      %v2453 = vpop.f32.mrb[0].mxu0
      %v2454 = vadd.f32 0.0, %v2453
      %v2455 = vpop.f32.mrb[0].mxu0
      %2456 = vmatprep.mubr.f32.mxu0 0.0
      %2457 = vmatmul.mubr.f32.gmra.mrb[0].mxu0 %v2238
      %v2458 = vpop.f32.mrb[0].mxu0
      %v2459 = vadd.f32 0.0, %v2458
      %v2460 = vpop.f32.mrb[0].mxu0
      %2461 = vmatprep.mubr.f32.mxu0 0.0
      %2462 = vmatmul.mubr.f32.gmra.mrb[0].mxu0 %v2241
      %v2463 = vpop.f32.mrb[0].mxu0
      %v2464 = vadd.f32 0.0, %v2463
      %v2465 = vpop.f32.mrb[0].mxu0
      %2466 = vmatprep.mubr.f32.mxu0 0.0
      %2467 = vmatmul.mubr.f32.gmra.mrb[0].mxu0 %v2244
      %v2468 = vpop.f32.mrb[0].mxu0
      %v2469 = vadd.f32 0.0, %v2468
      %v2470 = vpop.f32.mrb[0].mxu0
      %2471 = vmatprep.mubr.f32.mxu0 0.0
      %2472 = vmatmul.mubr.f32.gmra.mrb[0].mxu0 %v2247
      %v2473 = vpop.f32.mrb[0].mxu0
      %v2474 = vadd.f32 0.0, %v2473
      %v2475 = vpop.f32.mrb[0].mxu0
      %2476 = vdwg.mxu0
      %v2477 = vmul.f32 %v2319, %v990
      %v2478 = vmul.f32 %v2324, %v995
      %v2479 = vmul.f32 %v2329, %v1000
      %v2480 = vmul.f32 %v2334, %v1005
      %v2481 = vmul.f32 %v2339, %v1010
      %v2482 = vmul.f32 %v2344, %v1015
      %v2483 = vmul.f32 %v2349, %v1020
      %v2484 = vmul.f32 %v2354, %v1025
      %v2485 = vmul.f32 %v2359, %v1030
      %v2486 = vmul.f32 %v2364, %v1035
      %v2487 = vmul.f32 %v2369, %v1040
      %v2488 = vmul.f32 %v2374, %v1045
      %v2489 = vmul.f32 %v2379, %v1050
      %v2490 = vmul.f32 %v2384, %v1055
      %v2491 = vmul.f32 %v2389, %v1060
      %v2492 = vmul.f32 %v2394, %v1065
      %v2493 = vmul.f32 %v2399, %v1070
      %v2494 = vmul.f32 %v2404, %v1075
      %v2495 = vmul.f32 %v2409, %v1080
      %v2496 = vmul.f32 %v2414, %v1085
      %v2497 = vmul.f32 %v2419, %v1090
      %v2498 = vmul.f32 %v2424, %v1095
      %v2499 = vmul.f32 %v2429, %v1100
      %v2500 = vmul.f32 %v2434, %v1105
      %v2501 = vmul.f32 %v2439, %v1110
      %v2502 = vmul.f32 %v2444, %v1115
      %v2503 = vmul.f32 %v2449, %v1120
      %v2504 = vmul.f32 %v2454, %v1125
      %v2505 = vmul.f32 %v2459, %v1130
      %v2506 = vmul.f32 %v2464, %v1135
      %v2507 = vmul.f32 %v2469, %v1140
      %v2508 = vmul.f32 %v2474, %v1145
      %v2509 = vadd.f32 %v2087, %v2477
      %v2510 = vadd.f32 %v2088, %v2478
      %v2511 = vadd.f32 %v2089, %v2479
      %v2512 = vadd.f32 %v2090, %v2480
      %v2513 = vadd.f32 %v2091, %v2481
      %v2514 = vadd.f32 %v2092, %v2482
      %v2515 = vadd.f32 %v2093, %v2483
      %v2516 = vadd.f32 %v2094, %v2484
      %v2517 = vadd.f32 %v2095, %v2485
      %v2518 = vadd.f32 %v2096, %v2486
      %v2519 = vadd.f32 %v2097, %v2487
      %v2520 = vadd.f32 %v2098, %v2488
      %v2521 = vadd.f32 %v2099, %v2489
      %v2522 = vadd.f32 %v2100, %v2490
      %v2523 = vadd.f32 %v2101, %v2491
      %v2524 = vadd.f32 %v2102, %v2492
      %v2525 = vadd.f32 %v2103, %v2493
      %v2526 = vadd.f32 %v2104, %v2494
      %v2527 = vadd.f32 %v2105, %v2495
      %v2528 = vadd.f32 %v2106, %v2496
      %v2529 = vadd.f32 %v2107, %v2497
      %v2530 = vadd.f32 %v2108, %v2498
      %v2531 = vadd.f32 %v2109, %v2499
      %v2532 = vadd.f32 %v2110, %v2500
      %v2533 = vadd.f32 %v2111, %v2501
      %v2534 = vadd.f32 %v2112, %v2502
      %v2535 = vadd.f32 %v2113, %v2503
      %v2536 = vadd.f32 %v2114, %v2504
      %v2537 = vadd.f32 %v2115, %v2505
      %v2538 = vadd.f32 %v2116, %v2506
      %v2539 = vadd.f32 %v2117, %v2507
      %v2540 = vadd.f32 %v2118, %v2508
      %s2541 = scalar_lea.vmem %s3, 16
      %v2542 = vld [vmem:[%s2541] sm:$0xf]
      %v2544 = vsel %vm401, %v2542, 0
      %2546 = vmatprep.subr.mxu0 0.0
      %2547 = vmatpush1.msra.mxu0 %v2544
      %2548 = vmatprep.subr.mxu0 0.0
      %2549 = vmatpush1.msra.mxu0 0.0
      %2550 = vmatprep.subr.mxu0 0.0
      %2551 = vmatpush1.msra.mxu0 0.0
      %2552 = vmatprep.subr.mxu0 0.0
      %2553 = vmatpush1.msra.mxu0 0.0
      %2554 = vmatprep.subr.mxu0 0.0
      %2555 = vmatpush1.msra.mxu0 0.0
      %2556 = vmatprep.subr.mxu0 0.0
      %2557 = vmatpush1.msra.mxu0 0.0
      %2558 = vmatprep.subr.mxu0 0.0
      %2559 = vmatpush1.msra.mxu0 0.0
      %2560 = vmatprep.subr.mxu0 0.0
      %2561 = vmatpush1.msra.mxu0 0.0
      %2562 = vmatprep.subr.mxu0 0.0
      %2563 = vmatpush1.msra.mxu0 0.0
      %2564 = vmatprep.subr.mxu0 0.0
      %2565 = vmatpush1.msra.mxu0 0.0
      %2566 = vmatprep.subr.mxu0 0.0
      %2567 = vmatpush1.msra.mxu0 0.0
      %2568 = vmatprep.subr.mxu0 0.0
      %2569 = vmatpush1.msra.mxu0 0.0
      %2570 = vmatprep.subr.mxu0 0.0
      %2571 = vmatpush1.msra.mxu0 0.0
      %2572 = vmatprep.subr.mxu0 0.0
      %2573 = vmatpush1.msra.mxu0 0.0
      %2574 = vmatprep.subr.mxu0 0.0
      %2575 = vmatpush1.msra.mxu0 0.0
      %2576 = vmatprep.subr.mxu0 0.0
      %2577 = vmatpush1.msra.mxu0 0.0
      %2578 = vmatprep.subr.mxu0 0.0
      %2579 = vmatpush1.msra.mxu0 0.0
      %2580 = vmatprep.subr.mxu0 0.0
      %2581 = vmatpush1.msra.mxu0 0.0
      %2582 = vmatprep.subr.mxu0 0.0
      %2583 = vmatpush1.msra.mxu0 0.0
      %2584 = vmatprep.subr.mxu0 0.0
      %2585 = vmatpush1.msra.mxu0 0.0
      %2586 = vmatprep.subr.mxu0 0.0
      %2587 = vmatpush1.msra.mxu0 0.0
      %2588 = vmatprep.subr.mxu0 0.0
      %2589 = vmatpush1.msra.mxu0 0.0
      %2590 = vmatprep.subr.mxu0 0.0
      %2591 = vmatpush1.msra.mxu0 0.0
      %2592 = vmatprep.subr.mxu0 0.0
      %2593 = vmatpush1.msra.mxu0 0.0
      %2594 = vmatprep.subr.mxu0 0.0
      %2595 = vmatpush1.msra.mxu0 0.0
      %2596 = vmatprep.subr.mxu0 0.0
      %2597 = vmatpush1.msra.mxu0 0.0
      %2598 = vmatprep.subr.mxu0 0.0
      %2599 = vmatpush1.msra.mxu0 0.0
      %2600 = vmatprep.subr.mxu0 0.0
      %2601 = vmatpush1.msra.mxu0 0.0
      %2602 = vmatprep.subr.mxu0 0.0
      %2603 = vmatpush1.msra.mxu0 0.0
      %2604 = vmatprep.subr.mxu0 0.0
      %2605 = vmatpush1.msra.mxu0 0.0
      %2606 = vmatprep.subr.mxu0 0.0
      %2607 = vmatpush1.msra.mxu0 0.0
      %2608 = vmatprep.subr.mxu0 0.0
      %2609 = vmatpush1.msra.mxu0 0.0
      %2610 = vmatprep.mubr.f32.mxu0 0.0
      %2611 = vmatmul.mubr.f32.gmra.mrb[0].mxu0 %v306
      %v2612 = vpop.f32.mrb[0].mxu0
      %v2613 = vadd.f32 0.0, %v2612
      %v2614 = vpop.f32.mrb[0].mxu0
      %2615 = vmatprep.mubr.f32.mxu0 0.0
      %2616 = vmatmul.mubr.f32.gmra.mrb[0].mxu0 %v309
      %v2617 = vpop.f32.mrb[0].mxu0
      %v2618 = vadd.f32 0.0, %v2617
      %v2619 = vpop.f32.mrb[0].mxu0
      %2620 = vmatprep.mubr.f32.mxu0 0.0
      %2621 = vmatmul.mubr.f32.gmra.mrb[0].mxu0 %v312
      %v2622 = vpop.f32.mrb[0].mxu0
      %v2623 = vadd.f32 0.0, %v2622
      %v2624 = vpop.f32.mrb[0].mxu0
      %2625 = vmatprep.mubr.f32.mxu0 0.0
      %2626 = vmatmul.mubr.f32.gmra.mrb[0].mxu0 %v315
      %v2627 = vpop.f32.mrb[0].mxu0
      %v2628 = vadd.f32 0.0, %v2627
      %v2629 = vpop.f32.mrb[0].mxu0
      %2630 = vmatprep.mubr.f32.mxu0 0.0
      %2631 = vmatmul.mubr.f32.gmra.mrb[0].mxu0 %v318
      %v2632 = vpop.f32.mrb[0].mxu0
      %v2633 = vadd.f32 0.0, %v2632
      %v2634 = vpop.f32.mrb[0].mxu0
      %2635 = vmatprep.mubr.f32.mxu0 0.0
      %2636 = vmatmul.mubr.f32.gmra.mrb[0].mxu0 %v321
      %v2637 = vpop.f32.mrb[0].mxu0
      %v2638 = vadd.f32 0.0, %v2637
      %v2639 = vpop.f32.mrb[0].mxu0
      %2640 = vmatprep.mubr.f32.mxu0 0.0
      %2641 = vmatmul.mubr.f32.gmra.mrb[0].mxu0 %v324
      %v2642 = vpop.f32.mrb[0].mxu0
      %v2643 = vadd.f32 0.0, %v2642
      %v2644 = vpop.f32.mrb[0].mxu0
      %2645 = vmatprep.mubr.f32.mxu0 0.0
      %2646 = vmatmul.mubr.f32.gmra.mrb[0].mxu0 %v327
      %v2647 = vpop.f32.mrb[0].mxu0
      %v2648 = vadd.f32 0.0, %v2647
      %v2649 = vpop.f32.mrb[0].mxu0
      %2650 = vmatprep.mubr.f32.mxu0 0.0
      %2651 = vmatmul.mubr.f32.gmra.mrb[0].mxu0 %v330
      %v2652 = vpop.f32.mrb[0].mxu0
      %v2653 = vadd.f32 0.0, %v2652
      %v2654 = vpop.f32.mrb[0].mxu0
      %2655 = vmatprep.mubr.f32.mxu0 0.0
      %2656 = vmatmul.mubr.f32.gmra.mrb[0].mxu0 %v333
      %v2657 = vpop.f32.mrb[0].mxu0
      %v2658 = vadd.f32 0.0, %v2657
      %v2659 = vpop.f32.mrb[0].mxu0
      %2660 = vmatprep.mubr.f32.mxu0 0.0
      %2661 = vmatmul.mubr.f32.gmra.mrb[0].mxu0 %v336
      %v2662 = vpop.f32.mrb[0].mxu0
      %v2663 = vadd.f32 0.0, %v2662
      %v2664 = vpop.f32.mrb[0].mxu0
      %2665 = vmatprep.mubr.f32.mxu0 0.0
      %2666 = vmatmul.mubr.f32.gmra.mrb[0].mxu0 %v339
      %v2667 = vpop.f32.mrb[0].mxu0
      %v2668 = vadd.f32 0.0, %v2667
      %v2669 = vpop.f32.mrb[0].mxu0
      %2670 = vmatprep.mubr.f32.mxu0 0.0
      %2671 = vmatmul.mubr.f32.gmra.mrb[0].mxu0 %v342
      %v2672 = vpop.f32.mrb[0].mxu0
      %v2673 = vadd.f32 0.0, %v2672
      %v2674 = vpop.f32.mrb[0].mxu0
      %2675 = vmatprep.mubr.f32.mxu0 0.0
      %2676 = vmatmul.mubr.f32.gmra.mrb[0].mxu0 %v345
      %v2677 = vpop.f32.mrb[0].mxu0
      %v2678 = vadd.f32 0.0, %v2677
      %v2679 = vpop.f32.mrb[0].mxu0
      %2680 = vmatprep.mubr.f32.mxu0 0.0
      %2681 = vmatmul.mubr.f32.gmra.mrb[0].mxu0 %v348
      %v2682 = vpop.f32.mrb[0].mxu0
      %v2683 = vadd.f32 0.0, %v2682
      %v2684 = vpop.f32.mrb[0].mxu0
      %2685 = vmatprep.mubr.f32.mxu0 0.0
      %2686 = vmatmul.mubr.f32.gmra.mrb[0].mxu0 %v351
      %v2687 = vpop.f32.mrb[0].mxu0
      %v2688 = vadd.f32 0.0, %v2687
      %v2689 = vpop.f32.mrb[0].mxu0
      %2690 = vmatprep.mubr.f32.mxu0 0.0
      %2691 = vmatmul.mubr.f32.gmra.mrb[0].mxu0 %v354
      %v2692 = vpop.f32.mrb[0].mxu0
      %v2693 = vadd.f32 0.0, %v2692
      %v2694 = vpop.f32.mrb[0].mxu0
      %2695 = vmatprep.mubr.f32.mxu0 0.0
      %2696 = vmatmul.mubr.f32.gmra.mrb[0].mxu0 %v357
      %v2697 = vpop.f32.mrb[0].mxu0
      %v2698 = vadd.f32 0.0, %v2697
      %v2699 = vpop.f32.mrb[0].mxu0
      %2700 = vmatprep.mubr.f32.mxu0 0.0
      %2701 = vmatmul.mubr.f32.gmra.mrb[0].mxu0 %v360
      %v2702 = vpop.f32.mrb[0].mxu0
      %v2703 = vadd.f32 0.0, %v2702
      %v2704 = vpop.f32.mrb[0].mxu0
      %2705 = vmatprep.mubr.f32.mxu0 0.0
      %2706 = vmatmul.mubr.f32.gmra.mrb[0].mxu0 %v363
      %v2707 = vpop.f32.mrb[0].mxu0
      %v2708 = vadd.f32 0.0, %v2707
      %v2709 = vpop.f32.mrb[0].mxu0
      %2710 = vmatprep.mubr.f32.mxu0 0.0
      %2711 = vmatmul.mubr.f32.gmra.mrb[0].mxu0 %v366
      %v2712 = vpop.f32.mrb[0].mxu0
      %v2713 = vadd.f32 0.0, %v2712
      %v2714 = vpop.f32.mrb[0].mxu0
      %2715 = vmatprep.mubr.f32.mxu0 0.0
      %2716 = vmatmul.mubr.f32.gmra.mrb[0].mxu0 %v369
      %v2717 = vpop.f32.mrb[0].mxu0
      %v2718 = vadd.f32 0.0, %v2717
      %v2719 = vpop.f32.mrb[0].mxu0
      %2720 = vmatprep.mubr.f32.mxu0 0.0
      %2721 = vmatmul.mubr.f32.gmra.mrb[0].mxu0 %v372
      %v2722 = vpop.f32.mrb[0].mxu0
      %v2723 = vadd.f32 0.0, %v2722
      %v2724 = vpop.f32.mrb[0].mxu0
      %2725 = vmatprep.mubr.f32.mxu0 0.0
      %2726 = vmatmul.mubr.f32.gmra.mrb[0].mxu0 %v375
      %v2727 = vpop.f32.mrb[0].mxu0
      %v2728 = vadd.f32 0.0, %v2727
      %v2729 = vpop.f32.mrb[0].mxu0
      %2730 = vmatprep.mubr.f32.mxu0 0.0
      %2731 = vmatmul.mubr.f32.gmra.mrb[0].mxu0 %v378
      %v2732 = vpop.f32.mrb[0].mxu0
      %v2733 = vadd.f32 0.0, %v2732
      %v2734 = vpop.f32.mrb[0].mxu0
      %2735 = vmatprep.mubr.f32.mxu0 0.0
      %2736 = vmatmul.mubr.f32.gmra.mrb[0].mxu0 %v381
      %v2737 = vpop.f32.mrb[0].mxu0
      %v2738 = vadd.f32 0.0, %v2737
      %v2739 = vpop.f32.mrb[0].mxu0
      %2740 = vmatprep.mubr.f32.mxu0 0.0
      %2741 = vmatmul.mubr.f32.gmra.mrb[0].mxu0 %v384
      %v2742 = vpop.f32.mrb[0].mxu0
      %v2743 = vadd.f32 0.0, %v2742
      %v2744 = vpop.f32.mrb[0].mxu0
      %2745 = vmatprep.mubr.f32.mxu0 0.0
      %2746 = vmatmul.mubr.f32.gmra.mrb[0].mxu0 %v387
      %v2747 = vpop.f32.mrb[0].mxu0
      %v2748 = vadd.f32 0.0, %v2747
      %v2749 = vpop.f32.mrb[0].mxu0
      %2750 = vmatprep.mubr.f32.mxu0 0.0
      %2751 = vmatmul.mubr.f32.gmra.mrb[0].mxu0 %v390
      %v2752 = vpop.f32.mrb[0].mxu0
      %v2753 = vadd.f32 0.0, %v2752
      %v2754 = vpop.f32.mrb[0].mxu0
      %2755 = vmatprep.mubr.f32.mxu0 0.0
      %2756 = vmatmul.mubr.f32.gmra.mrb[0].mxu0 %v393
      %v2757 = vpop.f32.mrb[0].mxu0
      %v2758 = vadd.f32 0.0, %v2757
      %v2759 = vpop.f32.mrb[0].mxu0
      %2760 = vmatprep.mubr.f32.mxu0 0.0
      %2761 = vmatmul.mubr.f32.gmra.mrb[0].mxu0 %v396
      %v2762 = vpop.f32.mrb[0].mxu0
      %v2763 = vadd.f32 0.0, %v2762
      %v2764 = vpop.f32.mrb[0].mxu0
      %2765 = vmatprep.mubr.f32.mxu0 0.0
      %2766 = vmatmul.mubr.f32.gmra.mrb[0].mxu0 %v399
      %v2767 = vpop.f32.mrb[0].mxu0
      %v2768 = vadd.f32 0.0, %v2767
      %v2769 = vpop.f32.mrb[0].mxu0
      %2770 = vdwg.mxu0
      %v2771 = vadd.f32 %v2509, %v2613
      %v2772 = vadd.f32 %v2510, %v2618
      %v2773 = vadd.f32 %v2511, %v2623
      %v2774 = vadd.f32 %v2512, %v2628
      %v2775 = vadd.f32 %v2513, %v2633
      %v2776 = vadd.f32 %v2514, %v2638
      %v2777 = vadd.f32 %v2515, %v2643
      %v2778 = vadd.f32 %v2516, %v2648
      %v2779 = vadd.f32 %v2517, %v2653
      %v2780 = vadd.f32 %v2518, %v2658
      %v2781 = vadd.f32 %v2519, %v2663
      %v2782 = vadd.f32 %v2520, %v2668
      %v2783 = vadd.f32 %v2521, %v2673
      %v2784 = vadd.f32 %v2522, %v2678
      %v2785 = vadd.f32 %v2523, %v2683
      %v2786 = vadd.f32 %v2524, %v2688
      %v2787 = vadd.f32 %v2525, %v2693
      %v2788 = vadd.f32 %v2526, %v2698
      %v2789 = vadd.f32 %v2527, %v2703
      %v2790 = vadd.f32 %v2528, %v2708
      %v2791 = vadd.f32 %v2529, %v2713
      %v2792 = vadd.f32 %v2530, %v2718
      %v2793 = vadd.f32 %v2531, %v2723
      %v2794 = vadd.f32 %v2532, %v2728
      %v2795 = vadd.f32 %v2533, %v2733
      %v2796 = vadd.f32 %v2534, %v2738
      %v2797 = vadd.f32 %v2535, %v2743
      %v2798 = vadd.f32 %v2536, %v2748
      %v2799 = vadd.f32 %v2537, %v2753
      %v2800 = vadd.f32 %v2538, %v2758
      %v2801 = vadd.f32 %v2539, %v2763
      %v2802 = vadd.f32 %v2540, %v2768
      %v2803 = vld [vmem:[%s227 + $0x138] sm:$0xff]
      %v2804 = vld [vmem:[%s227 + $0x140] sm:$0xff]
      %v2805 = vld [vmem:[%s227 + $0x148] sm:$0xff]
      %v2806 = vld [vmem:[%s227 + $0x150] sm:$0xff]
      %v2807 = vld [vmem:[%s227 + $0x158] sm:$0xff]
      %v2808 = vld [vmem:[%s227 + $0x160] sm:$0xff]
      %v2809 = vld [vmem:[%s227 + $0x168] sm:$0xff]
      %v2810 = vld [vmem:[%s227 + $0x170] sm:$0xff]
      %v2811 = vld [vmem:[%s227 + $0x178] sm:$0xff]
      %v2812 = vld [vmem:[%s227 + $0x180] sm:$0xff]
      %v2813 = vld [vmem:[%s227 + $0x188] sm:$0xff]
      %v2814 = vld [vmem:[%s227 + $0x190] sm:$0xff]
      %v2815 = vld [vmem:[%s227 + $0x198] sm:$0xff]
      %v2816 = vld [vmem:[%s227 + $0x1a0] sm:$0xff]
      %v2817 = vld [vmem:[%s227 + $0x1a8] sm:$0xff]
      %v2818 = vld [vmem:[%s227 + $0x1b0] sm:$0xff]
      %v2819 = vld [vmem:[%s227 + $0x1b8] sm:$0xff]
      %v2820 = vld [vmem:[%s227 + $0x1c0] sm:$0xff]
      %v2821 = vld [vmem:[%s227 + $0x1c8] sm:$0xff]
      %v2822 = vld [vmem:[%s227 + $0x1d0] sm:$0xff]
      %v2823 = vld [vmem:[%s227 + $0x1d8] sm:$0xff]
      %v2824 = vld [vmem:[%s227 + $0x1e0] sm:$0xff]
      %v2825 = vld [vmem:[%s227 + $0x1e8] sm:$0xff]
      %v2826 = vld [vmem:[%s227 + $0x1f0] sm:$0xff]
      %v2827 = vld [vmem:[%s227 + $0x1f8] sm:$0xff]
      %v2828 = vld [vmem:[%s227 + $0x200] sm:$0xff]
      %v2829 = vld [vmem:[%s227 + $0x208] sm:$0xff]
      %v2830 = vld [vmem:[%s227 + $0x210] sm:$0xff]
      %v2831 = vld [vmem:[%s227 + $0x218] sm:$0xff]
      %v2832 = vld [vmem:[%s227 + $0x220] sm:$0xff]
      %v2833 = vld [vmem:[%s227 + $0x228] sm:$0xff]
      %v2834 = vld [vmem:[%s227 + $0x230] sm:$0xff]
      %s2835 = scalar_lea.vmem %s3, 20
      %v2836 = vld [vmem:[%s2835] sm:$0xf]
      %v2838 = vsel %vm304, %v2803, 0
      %v2841 = vsel %vm304, %v2804, 0
      %v2844 = vsel %vm304, %v2805, 0
      %v2847 = vsel %vm304, %v2806, 0
      %v2850 = vsel %vm304, %v2807, 0
      %v2853 = vsel %vm304, %v2808, 0
      %v2856 = vsel %vm304, %v2809, 0
      %v2859 = vsel %vm304, %v2810, 0
      %v2862 = vsel %vm304, %v2811, 0
      %v2865 = vsel %vm304, %v2812, 0
      %v2868 = vsel %vm304, %v2813, 0
      %v2871 = vsel %vm304, %v2814, 0
      %v2874 = vsel %vm304, %v2815, 0
      %v2877 = vsel %vm304, %v2816, 0
      %v2880 = vsel %vm304, %v2817, 0
      %v2883 = vsel %vm304, %v2818, 0
      %v2886 = vsel %vm304, %v2819, 0
      %v2889 = vsel %vm304, %v2820, 0
      %v2892 = vsel %vm304, %v2821, 0
      %v2895 = vsel %vm304, %v2822, 0
      %v2898 = vsel %vm304, %v2823, 0
      %v2901 = vsel %vm304, %v2824, 0
      %v2904 = vsel %vm304, %v2825, 0
      %v2907 = vsel %vm304, %v2826, 0
      %v2910 = vsel %vm304, %v2827, 0
      %v2913 = vsel %vm304, %v2828, 0
      %v2916 = vsel %vm304, %v2829, 0
      %v2919 = vsel %vm304, %v2830, 0
      %v2922 = vsel %vm304, %v2831, 0
      %v2925 = vsel %vm304, %v2832, 0
      %v2928 = vsel %vm304, %v2833, 0
      %v2931 = vsel %vm304, %v2834, 0
      %v2934 = vsel %vm401, %v2836, 0
      %2936 = vmatprep.subr.mxu0 0.0
      %2937 = vmatpush1.msra.mxu0 %v2934
      %2938 = vmatprep.subr.mxu0 0.0
      %2939 = vmatpush1.msra.mxu0 0.0
      %2940 = vmatprep.subr.mxu0 0.0
      %2941 = vmatpush1.msra.mxu0 0.0
      %2942 = vmatprep.subr.mxu0 0.0
      %2943 = vmatpush1.msra.mxu0 0.0
      %2944 = vmatprep.subr.mxu0 0.0
      %2945 = vmatpush1.msra.mxu0 0.0
      %2946 = vmatprep.subr.mxu0 0.0
      %2947 = vmatpush1.msra.mxu0 0.0
      %2948 = vmatprep.subr.mxu0 0.0
      %2949 = vmatpush1.msra.mxu0 0.0
      %2950 = vmatprep.subr.mxu0 0.0
      %2951 = vmatpush1.msra.mxu0 0.0
      %2952 = vmatprep.subr.mxu0 0.0
      %2953 = vmatpush1.msra.mxu0 0.0
      %2954 = vmatprep.subr.mxu0 0.0
      %2955 = vmatpush1.msra.mxu0 0.0
      %2956 = vmatprep.subr.mxu0 0.0
      %2957 = vmatpush1.msra.mxu0 0.0
      %2958 = vmatprep.subr.mxu0 0.0
      %2959 = vmatpush1.msra.mxu0 0.0
      %2960 = vmatprep.subr.mxu0 0.0
      %2961 = vmatpush1.msra.mxu0 0.0
      %2962 = vmatprep.subr.mxu0 0.0
      %2963 = vmatpush1.msra.mxu0 0.0
      %2964 = vmatprep.subr.mxu0 0.0
      %2965 = vmatpush1.msra.mxu0 0.0
      %2966 = vmatprep.subr.mxu0 0.0
      %2967 = vmatpush1.msra.mxu0 0.0
      %2968 = vmatprep.subr.mxu0 0.0
      %2969 = vmatpush1.msra.mxu0 0.0
      %2970 = vmatprep.subr.mxu0 0.0
      %2971 = vmatpush1.msra.mxu0 0.0
      %2972 = vmatprep.subr.mxu0 0.0
      %2973 = vmatpush1.msra.mxu0 0.0
      %2974 = vmatprep.subr.mxu0 0.0
      %2975 = vmatpush1.msra.mxu0 0.0
      %2976 = vmatprep.subr.mxu0 0.0
      %2977 = vmatpush1.msra.mxu0 0.0
      %2978 = vmatprep.subr.mxu0 0.0
      %2979 = vmatpush1.msra.mxu0 0.0
      %2980 = vmatprep.subr.mxu0 0.0
      %2981 = vmatpush1.msra.mxu0 0.0
      %2982 = vmatprep.subr.mxu0 0.0
      %2983 = vmatpush1.msra.mxu0 0.0
      %2984 = vmatprep.subr.mxu0 0.0
      %2985 = vmatpush1.msra.mxu0 0.0
      %2986 = vmatprep.subr.mxu0 0.0
      %2987 = vmatpush1.msra.mxu0 0.0
      %2988 = vmatprep.subr.mxu0 0.0
      %2989 = vmatpush1.msra.mxu0 0.0
      %2990 = vmatprep.subr.mxu0 0.0
      %2991 = vmatpush1.msra.mxu0 0.0
      %2992 = vmatprep.subr.mxu0 0.0
      %2993 = vmatpush1.msra.mxu0 0.0
      %2994 = vmatprep.subr.mxu0 0.0
      %2995 = vmatpush1.msra.mxu0 0.0
      %2996 = vmatprep.subr.mxu0 0.0
      %2997 = vmatpush1.msra.mxu0 0.0
      %2998 = vmatprep.subr.mxu0 0.0
      %2999 = vmatpush1.msra.mxu0 0.0
      %3000 = vmatprep.mubr.f32.mxu0 0.0
      %3001 = vmatmul.mubr.f32.gmra.mrb[0].mxu0 %v2838
      %v3002 = vpop.f32.mrb[0].mxu0
      %v3003 = vadd.f32 0.0, %v3002
      %v3004 = vpop.f32.mrb[0].mxu0
      %3005 = vmatprep.mubr.f32.mxu0 0.0
      %3006 = vmatmul.mubr.f32.gmra.mrb[0].mxu0 %v2841
      %v3007 = vpop.f32.mrb[0].mxu0
      %v3008 = vadd.f32 0.0, %v3007
      %v3009 = vpop.f32.mrb[0].mxu0
      %3010 = vmatprep.mubr.f32.mxu0 0.0
      %3011 = vmatmul.mubr.f32.gmra.mrb[0].mxu0 %v2844
      %v3012 = vpop.f32.mrb[0].mxu0
      %v3013 = vadd.f32 0.0, %v3012
      %v3014 = vpop.f32.mrb[0].mxu0
      %3015 = vmatprep.mubr.f32.mxu0 0.0
      %3016 = vmatmul.mubr.f32.gmra.mrb[0].mxu0 %v2847
      %v3017 = vpop.f32.mrb[0].mxu0
      %v3018 = vadd.f32 0.0, %v3017
      %v3019 = vpop.f32.mrb[0].mxu0
      %3020 = vmatprep.mubr.f32.mxu0 0.0
      %3021 = vmatmul.mubr.f32.gmra.mrb[0].mxu0 %v2850
      %v3022 = vpop.f32.mrb[0].mxu0
      %v3023 = vadd.f32 0.0, %v3022
      %v3024 = vpop.f32.mrb[0].mxu0
      %3025 = vmatprep.mubr.f32.mxu0 0.0
      %3026 = vmatmul.mubr.f32.gmra.mrb[0].mxu0 %v2853
      %v3027 = vpop.f32.mrb[0].mxu0
      %v3028 = vadd.f32 0.0, %v3027
      %v3029 = vpop.f32.mrb[0].mxu0
      %3030 = vmatprep.mubr.f32.mxu0 0.0
      %3031 = vmatmul.mubr.f32.gmra.mrb[0].mxu0 %v2856
      %v3032 = vpop.f32.mrb[0].mxu0
      %v3033 = vadd.f32 0.0, %v3032
      %v3034 = vpop.f32.mrb[0].mxu0
      %3035 = vmatprep.mubr.f32.mxu0 0.0
      %3036 = vmatmul.mubr.f32.gmra.mrb[0].mxu0 %v2859
      %v3037 = vpop.f32.mrb[0].mxu0
      %v3038 = vadd.f32 0.0, %v3037
      %v3039 = vpop.f32.mrb[0].mxu0
      %3040 = vmatprep.mubr.f32.mxu0 0.0
      %3041 = vmatmul.mubr.f32.gmra.mrb[0].mxu0 %v2862
      %v3042 = vpop.f32.mrb[0].mxu0
      %v3043 = vadd.f32 0.0, %v3042
      %v3044 = vpop.f32.mrb[0].mxu0
      %3045 = vmatprep.mubr.f32.mxu0 0.0
      %3046 = vmatmul.mubr.f32.gmra.mrb[0].mxu0 %v2865
      %v3047 = vpop.f32.mrb[0].mxu0
      %v3048 = vadd.f32 0.0, %v3047
      %v3049 = vpop.f32.mrb[0].mxu0
      %3050 = vmatprep.mubr.f32.mxu0 0.0
      %3051 = vmatmul.mubr.f32.gmra.mrb[0].mxu0 %v2868
      %v3052 = vpop.f32.mrb[0].mxu0
      %v3053 = vadd.f32 0.0, %v3052
      %v3054 = vpop.f32.mrb[0].mxu0
      %3055 = vmatprep.mubr.f32.mxu0 0.0
      %3056 = vmatmul.mubr.f32.gmra.mrb[0].mxu0 %v2871
      %v3057 = vpop.f32.mrb[0].mxu0
      %v3058 = vadd.f32 0.0, %v3057
      %v3059 = vpop.f32.mrb[0].mxu0
      %3060 = vmatprep.mubr.f32.mxu0 0.0
      %3061 = vmatmul.mubr.f32.gmra.mrb[0].mxu0 %v2874
      %v3062 = vpop.f32.mrb[0].mxu0
      %v3063 = vadd.f32 0.0, %v3062
      %v3064 = vpop.f32.mrb[0].mxu0
      %3065 = vmatprep.mubr.f32.mxu0 0.0
      %3066 = vmatmul.mubr.f32.gmra.mrb[0].mxu0 %v2877
      %v3067 = vpop.f32.mrb[0].mxu0
      %v3068 = vadd.f32 0.0, %v3067
      %v3069 = vpop.f32.mrb[0].mxu0
      %3070 = vmatprep.mubr.f32.mxu0 0.0
      %3071 = vmatmul.mubr.f32.gmra.mrb[0].mxu0 %v2880
      %v3072 = vpop.f32.mrb[0].mxu0
      %v3073 = vadd.f32 0.0, %v3072
      %v3074 = vpop.f32.mrb[0].mxu0
      %3075 = vmatprep.mubr.f32.mxu0 0.0
      %3076 = vmatmul.mubr.f32.gmra.mrb[0].mxu0 %v2883
      %v3077 = vpop.f32.mrb[0].mxu0
      %v3078 = vadd.f32 0.0, %v3077
      %v3079 = vpop.f32.mrb[0].mxu0
      %3080 = vmatprep.mubr.f32.mxu0 0.0
      %3081 = vmatmul.mubr.f32.gmra.mrb[0].mxu0 %v2886
      %v3082 = vpop.f32.mrb[0].mxu0
      %v3083 = vadd.f32 0.0, %v3082
      %v3084 = vpop.f32.mrb[0].mxu0
      %3085 = vmatprep.mubr.f32.mxu0 0.0
      %3086 = vmatmul.mubr.f32.gmra.mrb[0].mxu0 %v2889
      %v3087 = vpop.f32.mrb[0].mxu0
      %v3088 = vadd.f32 0.0, %v3087
      %v3089 = vpop.f32.mrb[0].mxu0
      %3090 = vmatprep.mubr.f32.mxu0 0.0
      %3091 = vmatmul.mubr.f32.gmra.mrb[0].mxu0 %v2892
      %v3092 = vpop.f32.mrb[0].mxu0
      %v3093 = vadd.f32 0.0, %v3092
      %v3094 = vpop.f32.mrb[0].mxu0
      %3095 = vmatprep.mubr.f32.mxu0 0.0
      %3096 = vmatmul.mubr.f32.gmra.mrb[0].mxu0 %v2895
      %v3097 = vpop.f32.mrb[0].mxu0
      %v3098 = vadd.f32 0.0, %v3097
      %v3099 = vpop.f32.mrb[0].mxu0
      %3100 = vmatprep.mubr.f32.mxu0 0.0
      %3101 = vmatmul.mubr.f32.gmra.mrb[0].mxu0 %v2898
      %v3102 = vpop.f32.mrb[0].mxu0
      %v3103 = vadd.f32 0.0, %v3102
      %v3104 = vpop.f32.mrb[0].mxu0
      %3105 = vmatprep.mubr.f32.mxu0 0.0
      %3106 = vmatmul.mubr.f32.gmra.mrb[0].mxu0 %v2901
      %v3107 = vpop.f32.mrb[0].mxu0
      %v3108 = vadd.f32 0.0, %v3107
      %v3109 = vpop.f32.mrb[0].mxu0
      %3110 = vmatprep.mubr.f32.mxu0 0.0
      %3111 = vmatmul.mubr.f32.gmra.mrb[0].mxu0 %v2904
      %v3112 = vpop.f32.mrb[0].mxu0
      %v3113 = vadd.f32 0.0, %v3112
      %v3114 = vpop.f32.mrb[0].mxu0
      %3115 = vmatprep.mubr.f32.mxu0 0.0
      %3116 = vmatmul.mubr.f32.gmra.mrb[0].mxu0 %v2907
      %v3117 = vpop.f32.mrb[0].mxu0
      %v3118 = vadd.f32 0.0, %v3117
      %v3119 = vpop.f32.mrb[0].mxu0
      %3120 = vmatprep.mubr.f32.mxu0 0.0
      %3121 = vmatmul.mubr.f32.gmra.mrb[0].mxu0 %v2910
      %v3122 = vpop.f32.mrb[0].mxu0
      %v3123 = vadd.f32 0.0, %v3122
      %v3124 = vpop.f32.mrb[0].mxu0
      %3125 = vmatprep.mubr.f32.mxu0 0.0
      %3126 = vmatmul.mubr.f32.gmra.mrb[0].mxu0 %v2913
      %v3127 = vpop.f32.mrb[0].mxu0
      %v3128 = vadd.f32 0.0, %v3127
      %v3129 = vpop.f32.mrb[0].mxu0
      %3130 = vmatprep.mubr.f32.mxu0 0.0
      %3131 = vmatmul.mubr.f32.gmra.mrb[0].mxu0 %v2916
      %v3132 = vpop.f32.mrb[0].mxu0
      %v3133 = vadd.f32 0.0, %v3132
      %v3134 = vpop.f32.mrb[0].mxu0
      %3135 = vmatprep.mubr.f32.mxu0 0.0
      %3136 = vmatmul.mubr.f32.gmra.mrb[0].mxu0 %v2919
      %v3137 = vpop.f32.mrb[0].mxu0
      %v3138 = vadd.f32 0.0, %v3137
      %v3139 = vpop.f32.mrb[0].mxu0
      %3140 = vmatprep.mubr.f32.mxu0 0.0
      %3141 = vmatmul.mubr.f32.gmra.mrb[0].mxu0 %v2922
      %v3142 = vpop.f32.mrb[0].mxu0
      %v3143 = vadd.f32 0.0, %v3142
      %v3144 = vpop.f32.mrb[0].mxu0
      %3145 = vmatprep.mubr.f32.mxu0 0.0
      %3146 = vmatmul.mubr.f32.gmra.mrb[0].mxu0 %v2925
      %v3147 = vpop.f32.mrb[0].mxu0
      %v3148 = vadd.f32 0.0, %v3147
      %v3149 = vpop.f32.mrb[0].mxu0
      %3150 = vmatprep.mubr.f32.mxu0 0.0
      %3151 = vmatmul.mubr.f32.gmra.mrb[0].mxu0 %v2928
      %v3152 = vpop.f32.mrb[0].mxu0
      %v3153 = vadd.f32 0.0, %v3152
      %v3154 = vpop.f32.mrb[0].mxu0
      %3155 = vmatprep.mubr.f32.mxu0 0.0
      %3156 = vmatmul.mubr.f32.gmra.mrb[0].mxu0 %v2931
      %v3157 = vpop.f32.mrb[0].mxu0
      %v3158 = vadd.f32 0.0, %v3157
      %v3159 = vpop.f32.mrb[0].mxu0
      %3160 = vdwg.mxu0
      %v3161 = vmul.f32 %v3003, %v1929
      %v3162 = vmul.f32 %v3008, %v1933
      %v3163 = vmul.f32 %v3013, %v1937
      %v3164 = vmul.f32 %v3018, %v1941
      %v3165 = vmul.f32 %v3023, %v1945
      %v3166 = vmul.f32 %v3028, %v1949
      %v3167 = vmul.f32 %v3033, %v1953
      %v3168 = vmul.f32 %v3038, %v1957
      %v3169 = vmul.f32 %v3043, %v1961
      %v3170 = vmul.f32 %v3048, %v1965
      %v3171 = vmul.f32 %v3053, %v1969
      %v3172 = vmul.f32 %v3058, %v1973
      %v3173 = vmul.f32 %v3063, %v1977
      %v3174 = vmul.f32 %v3068, %v1981
      %v3175 = vmul.f32 %v3073, %v1985
      %v3176 = vmul.f32 %v3078, %v1989
      %v3177 = vmul.f32 %v3083, %v1993
      %v3178 = vmul.f32 %v3088, %v1997
      %v3179 = vmul.f32 %v3093, %v2001
      %v3180 = vmul.f32 %v3098, %v2005
      %v3181 = vmul.f32 %v3103, %v2009
      %v3182 = vmul.f32 %v3108, %v2013
      %v3183 = vmul.f32 %v3113, %v2017
      %v3184 = vmul.f32 %v3118, %v2021
      %v3185 = vmul.f32 %v3123, %v2025
      %v3186 = vmul.f32 %v3128, %v2029
      %v3187 = vmul.f32 %v3133, %v2033
      %v3188 = vmul.f32 %v3138, %v2037
      %v3189 = vmul.f32 %v3143, %v2041
      %v3190 = vmul.f32 %v3148, %v2045
      %v3191 = vmul.f32 %v3153, %v2049
      %v3192 = vmul.f32 %v3158, %v2053
      %v3193 = vadd.f32 %v2771, %v3161
      %v3194 = vadd.f32 %v2772, %v3162
      %v3195 = vadd.f32 %v2773, %v3163
      %v3196 = vadd.f32 %v2774, %v3164
      %v3197 = vadd.f32 %v2775, %v3165
      %v3198 = vadd.f32 %v2776, %v3166
      %v3199 = vadd.f32 %v2777, %v3167
      %v3200 = vadd.f32 %v2778, %v3168
      %v3201 = vadd.f32 %v2779, %v3169
      %v3202 = vadd.f32 %v2780, %v3170
      %v3203 = vadd.f32 %v2781, %v3171
      %v3204 = vadd.f32 %v2782, %v3172
      %v3205 = vadd.f32 %v2783, %v3173
      %v3206 = vadd.f32 %v2784, %v3174
      %v3207 = vadd.f32 %v2785, %v3175
      %v3208 = vadd.f32 %v2786, %v3176
      %v3209 = vadd.f32 %v2787, %v3177
      %v3210 = vadd.f32 %v2788, %v3178
      %v3211 = vadd.f32 %v2789, %v3179
      %v3212 = vadd.f32 %v2790, %v3180
      %v3213 = vadd.f32 %v2791, %v3181
      %v3214 = vadd.f32 %v2792, %v3182
      %v3215 = vadd.f32 %v2793, %v3183
      %v3216 = vadd.f32 %v2794, %v3184
      %v3217 = vadd.f32 %v2795, %v3185
      %v3218 = vadd.f32 %v2796, %v3186
      %v3219 = vadd.f32 %v2797, %v3187
      %v3220 = vadd.f32 %v2798, %v3188
      %v3221 = vadd.f32 %v2799, %v3189
      %v3222 = vadd.f32 %v2800, %v3190
      %v3223 = vadd.f32 %v2801, %v3191
      %v3224 = vadd.f32 %v2802, %v3192
      %v3225 = vld [vmem:[%s227 + $0x18c] sm:$0xff]
      %v3226 = vld [vmem:[%s227 + $0x194] sm:$0xff]
      %v3227 = vld [vmem:[%s227 + $0x19c] sm:$0xff]
      %v3228 = vld [vmem:[%s227 + $0x1a4] sm:$0xff]
      %v3229 = vld [vmem:[%s227 + $0x1ac] sm:$0xff]
      %v3230 = vld [vmem:[%s227 + $0x1b4] sm:$0xff]
      %v3231 = vld [vmem:[%s227 + $0x1bc] sm:$0xff]
      %v3232 = vld [vmem:[%s227 + $0x1c4] sm:$0xff]
      %v3233 = vld [vmem:[%s227 + $0x1cc] sm:$0xff]
      %v3234 = vld [vmem:[%s227 + $0x1d4] sm:$0xff]
      %v3235 = vld [vmem:[%s227 + $0x1dc] sm:$0xff]
      %v3236 = vld [vmem:[%s227 + $0x1e4] sm:$0xff]
      %v3237 = vld [vmem:[%s227 + $0x1ec] sm:$0xff]
      %v3238 = vld [vmem:[%s227 + $0x1f4] sm:$0xff]
      %v3239 = vld [vmem:[%s227 + $0x1fc] sm:$0xff]
      %v3240 = vld [vmem:[%s227 + $0x204] sm:$0xff]
      %v3241 = vld [vmem:[%s227 + $0x20c] sm:$0xff]
      %v3242 = vld [vmem:[%s227 + $0x214] sm:$0xff]
      %v3243 = vld [vmem:[%s227 + $0x21c] sm:$0xff]
      %v3244 = vld [vmem:[%s227 + $0x224] sm:$0xff]
      %v3245 = vld [vmem:[%s227 + $0x22c] sm:$0xff]
      %v3246 = vld [vmem:[%s227 + $0x234] sm:$0xff]
      %v3247 = vld [vmem:[%s227 + $0x23c] sm:$0xff]
      %v3248 = vld [vmem:[%s227 + $0x244] sm:$0xff]
      %v3249 = vld [vmem:[%s227 + $0x24c] sm:$0xff]
      %v3250 = vld [vmem:[%s227 + $0x254] sm:$0xff]
      %v3251 = vld [vmem:[%s227 + $0x25c] sm:$0xff]
      %v3252 = vld [vmem:[%s227 + $0x264] sm:$0xff]
      %v3253 = vld [vmem:[%s227 + $0x26c] sm:$0xff]
      %v3254 = vld [vmem:[%s227 + $0x274] sm:$0xff]
      %v3255 = vld [vmem:[%s227 + $0x27c] sm:$0xff]
      %v3256 = vld [vmem:[%s227 + $0x284] sm:$0xff]
      %s3257 = scalar_lea.vmem %s3, 24
      %v3258 = vld [vmem:[%s3257] sm:$0xf]
      %v3260 = vsel %vm304, %v3225, 0
      %v3263 = vsel %vm304, %v3226, 0
      %v3266 = vsel %vm304, %v3227, 0
      %v3269 = vsel %vm304, %v3228, 0
      %v3272 = vsel %vm304, %v3229, 0
      %v3275 = vsel %vm304, %v3230, 0
      %v3278 = vsel %vm304, %v3231, 0
      %v3281 = vsel %vm304, %v3232, 0
      %v3284 = vsel %vm304, %v3233, 0
      %v3287 = vsel %vm304, %v3234, 0
      %v3290 = vsel %vm304, %v3235, 0
      %v3293 = vsel %vm304, %v3236, 0
      %v3296 = vsel %vm304, %v3237, 0
      %v3299 = vsel %vm304, %v3238, 0
      %v3302 = vsel %vm304, %v3239, 0
      %v3305 = vsel %vm304, %v3240, 0
      %v3308 = vsel %vm304, %v3241, 0
      %v3311 = vsel %vm304, %v3242, 0
      %v3314 = vsel %vm304, %v3243, 0
      %v3317 = vsel %vm304, %v3244, 0
      %v3320 = vsel %vm304, %v3245, 0
      %v3323 = vsel %vm304, %v3246, 0
      %v3326 = vsel %vm304, %v3247, 0
      %v3329 = vsel %vm304, %v3248, 0
      %v3332 = vsel %vm304, %v3249, 0
      %v3335 = vsel %vm304, %v3250, 0
      %v3338 = vsel %vm304, %v3251, 0
      %v3341 = vsel %vm304, %v3252, 0
      %v3344 = vsel %vm304, %v3253, 0
      %v3347 = vsel %vm304, %v3254, 0
      %v3350 = vsel %vm304, %v3255, 0
      %v3353 = vsel %vm304, %v3256, 0
      %v3356 = vsel %vm401, %v3258, 0
      %3358 = vmatprep.subr.mxu0 0.0
      %3359 = vmatpush1.msra.mxu0 %v3356
      %3360 = vmatprep.subr.mxu0 0.0
      %3361 = vmatpush1.msra.mxu0 0.0
      %3362 = vmatprep.subr.mxu0 0.0
      %3363 = vmatpush1.msra.mxu0 0.0
      %3364 = vmatprep.subr.mxu0 0.0
      %3365 = vmatpush1.msra.mxu0 0.0
      %3366 = vmatprep.subr.mxu0 0.0
      %3367 = vmatpush1.msra.mxu0 0.0
      %3368 = vmatprep.subr.mxu0 0.0
      %3369 = vmatpush1.msra.mxu0 0.0
      %3370 = vmatprep.subr.mxu0 0.0
      %3371 = vmatpush1.msra.mxu0 0.0
      %3372 = vmatprep.subr.mxu0 0.0
      %3373 = vmatpush1.msra.mxu0 0.0
      %3374 = vmatprep.subr.mxu0 0.0
      %3375 = vmatpush1.msra.mxu0 0.0
      %3376 = vmatprep.subr.mxu0 0.0
      %3377 = vmatpush1.msra.mxu0 0.0
      %3378 = vmatprep.subr.mxu0 0.0
      %3379 = vmatpush1.msra.mxu0 0.0
      %3380 = vmatprep.subr.mxu0 0.0
      %3381 = vmatpush1.msra.mxu0 0.0
      %3382 = vmatprep.subr.mxu0 0.0
      %3383 = vmatpush1.msra.mxu0 0.0
      %3384 = vmatprep.subr.mxu0 0.0
      %3385 = vmatpush1.msra.mxu0 0.0
      %3386 = vmatprep.subr.mxu0 0.0
      %3387 = vmatpush1.msra.mxu0 0.0
      %3388 = vmatprep.subr.mxu0 0.0
      %3389 = vmatpush1.msra.mxu0 0.0
      %3390 = vmatprep.subr.mxu0 0.0
      %3391 = vmatpush1.msra.mxu0 0.0
      %3392 = vmatprep.subr.mxu0 0.0
      %3393 = vmatpush1.msra.mxu0 0.0
      %3394 = vmatprep.subr.mxu0 0.0
      %3395 = vmatpush1.msra.mxu0 0.0
      %3396 = vmatprep.subr.mxu0 0.0
      %3397 = vmatpush1.msra.mxu0 0.0
      %3398 = vmatprep.subr.mxu0 0.0
      %3399 = vmatpush1.msra.mxu0 0.0
      %3400 = vmatprep.subr.mxu0 0.0
      %3401 = vmatpush1.msra.mxu0 0.0
      %3402 = vmatprep.subr.mxu0 0.0
      %3403 = vmatpush1.msra.mxu0 0.0
      %3404 = vmatprep.subr.mxu0 0.0
      %3405 = vmatpush1.msra.mxu0 0.0
      %3406 = vmatprep.subr.mxu0 0.0
      %3407 = vmatpush1.msra.mxu0 0.0
      %3408 = vmatprep.subr.mxu0 0.0
      %3409 = vmatpush1.msra.mxu0 0.0
      %3410 = vmatprep.subr.mxu0 0.0
      %3411 = vmatpush1.msra.mxu0 0.0
      %3412 = vmatprep.subr.mxu0 0.0
      %3413 = vmatpush1.msra.mxu0 0.0
      %3414 = vmatprep.subr.mxu0 0.0
      %3415 = vmatpush1.msra.mxu0 0.0
      %3416 = vmatprep.subr.mxu0 0.0
      %3417 = vmatpush1.msra.mxu0 0.0
      %3418 = vmatprep.subr.mxu0 0.0
      %3419 = vmatpush1.msra.mxu0 0.0
      %3420 = vmatprep.subr.mxu0 0.0
      %3421 = vmatpush1.msra.mxu0 0.0
      %3422 = vmatprep.mubr.f32.mxu0 0.0
      %3423 = vmatmul.mubr.f32.gmra.mrb[0].mxu0 %v3260
      %v3424 = vpop.f32.mrb[0].mxu0
      %v3425 = vadd.f32 0.0, %v3424
      %v3426 = vpop.f32.mrb[0].mxu0
      %3427 = vmatprep.mubr.f32.mxu0 0.0
      %3428 = vmatmul.mubr.f32.gmra.mrb[0].mxu0 %v3263
      %v3429 = vpop.f32.mrb[0].mxu0
      %v3430 = vadd.f32 0.0, %v3429
      %v3431 = vpop.f32.mrb[0].mxu0
      %3432 = vmatprep.mubr.f32.mxu0 0.0
      %3433 = vmatmul.mubr.f32.gmra.mrb[0].mxu0 %v3266
      %v3434 = vpop.f32.mrb[0].mxu0
      %v3435 = vadd.f32 0.0, %v3434
      %v3436 = vpop.f32.mrb[0].mxu0
      %3437 = vmatprep.mubr.f32.mxu0 0.0
      %3438 = vmatmul.mubr.f32.gmra.mrb[0].mxu0 %v3269
      %v3439 = vpop.f32.mrb[0].mxu0
      %v3440 = vadd.f32 0.0, %v3439
      %v3441 = vpop.f32.mrb[0].mxu0
      %3442 = vmatprep.mubr.f32.mxu0 0.0
      %3443 = vmatmul.mubr.f32.gmra.mrb[0].mxu0 %v3272
      %v3444 = vpop.f32.mrb[0].mxu0
      %v3445 = vadd.f32 0.0, %v3444
      %v3446 = vpop.f32.mrb[0].mxu0
      %3447 = vmatprep.mubr.f32.mxu0 0.0
      %3448 = vmatmul.mubr.f32.gmra.mrb[0].mxu0 %v3275
      %v3449 = vpop.f32.mrb[0].mxu0
      %v3450 = vadd.f32 0.0, %v3449
      %v3451 = vpop.f32.mrb[0].mxu0
      %3452 = vmatprep.mubr.f32.mxu0 0.0
      %3453 = vmatmul.mubr.f32.gmra.mrb[0].mxu0 %v3278
      %v3454 = vpop.f32.mrb[0].mxu0
      %v3455 = vadd.f32 0.0, %v3454
      %v3456 = vpop.f32.mrb[0].mxu0
      %3457 = vmatprep.mubr.f32.mxu0 0.0
      %3458 = vmatmul.mubr.f32.gmra.mrb[0].mxu0 %v3281
      %v3459 = vpop.f32.mrb[0].mxu0
      %v3460 = vadd.f32 0.0, %v3459
      %v3461 = vpop.f32.mrb[0].mxu0
      %3462 = vmatprep.mubr.f32.mxu0 0.0
      %3463 = vmatmul.mubr.f32.gmra.mrb[0].mxu0 %v3284
      %v3464 = vpop.f32.mrb[0].mxu0
      %v3465 = vadd.f32 0.0, %v3464
      %v3466 = vpop.f32.mrb[0].mxu0
      %3467 = vmatprep.mubr.f32.mxu0 0.0
      %3468 = vmatmul.mubr.f32.gmra.mrb[0].mxu0 %v3287
      %v3469 = vpop.f32.mrb[0].mxu0
      %v3470 = vadd.f32 0.0, %v3469
      %v3471 = vpop.f32.mrb[0].mxu0
      %3472 = vmatprep.mubr.f32.mxu0 0.0
      %3473 = vmatmul.mubr.f32.gmra.mrb[0].mxu0 %v3290
      %v3474 = vpop.f32.mrb[0].mxu0
      %v3475 = vadd.f32 0.0, %v3474
      %v3476 = vpop.f32.mrb[0].mxu0
      %3477 = vmatprep.mubr.f32.mxu0 0.0
      %3478 = vmatmul.mubr.f32.gmra.mrb[0].mxu0 %v3293
      %v3479 = vpop.f32.mrb[0].mxu0
      %v3480 = vadd.f32 0.0, %v3479
      %v3481 = vpop.f32.mrb[0].mxu0
      %3482 = vmatprep.mubr.f32.mxu0 0.0
      %3483 = vmatmul.mubr.f32.gmra.mrb[0].mxu0 %v3296
      %v3484 = vpop.f32.mrb[0].mxu0
      %v3485 = vadd.f32 0.0, %v3484
      %v3486 = vpop.f32.mrb[0].mxu0
      %3487 = vmatprep.mubr.f32.mxu0 0.0
      %3488 = vmatmul.mubr.f32.gmra.mrb[0].mxu0 %v3299
      %v3489 = vpop.f32.mrb[0].mxu0
      %v3490 = vadd.f32 0.0, %v3489
      %v3491 = vpop.f32.mrb[0].mxu0
      %3492 = vmatprep.mubr.f32.mxu0 0.0
      %3493 = vmatmul.mubr.f32.gmra.mrb[0].mxu0 %v3302
      %v3494 = vpop.f32.mrb[0].mxu0
      %v3495 = vadd.f32 0.0, %v3494
      %v3496 = vpop.f32.mrb[0].mxu0
      %3497 = vmatprep.mubr.f32.mxu0 0.0
      %3498 = vmatmul.mubr.f32.gmra.mrb[0].mxu0 %v3305
      %v3499 = vpop.f32.mrb[0].mxu0
      %v3500 = vadd.f32 0.0, %v3499
      %v3501 = vpop.f32.mrb[0].mxu0
      %3502 = vmatprep.mubr.f32.mxu0 0.0
      %3503 = vmatmul.mubr.f32.gmra.mrb[0].mxu0 %v3308
      %v3504 = vpop.f32.mrb[0].mxu0
      %v3505 = vadd.f32 0.0, %v3504
      %v3506 = vpop.f32.mrb[0].mxu0
      %3507 = vmatprep.mubr.f32.mxu0 0.0
      %3508 = vmatmul.mubr.f32.gmra.mrb[0].mxu0 %v3311
      %v3509 = vpop.f32.mrb[0].mxu0
      %v3510 = vadd.f32 0.0, %v3509
      %v3511 = vpop.f32.mrb[0].mxu0
      %3512 = vmatprep.mubr.f32.mxu0 0.0
      %3513 = vmatmul.mubr.f32.gmra.mrb[0].mxu0 %v3314
      %v3514 = vpop.f32.mrb[0].mxu0
      %v3515 = vadd.f32 0.0, %v3514
      %v3516 = vpop.f32.mrb[0].mxu0
      %3517 = vmatprep.mubr.f32.mxu0 0.0
      %3518 = vmatmul.mubr.f32.gmra.mrb[0].mxu0 %v3317
      %v3519 = vpop.f32.mrb[0].mxu0
      %v3520 = vadd.f32 0.0, %v3519
      %v3521 = vpop.f32.mrb[0].mxu0
      %3522 = vmatprep.mubr.f32.mxu0 0.0
      %3523 = vmatmul.mubr.f32.gmra.mrb[0].mxu0 %v3320
      %v3524 = vpop.f32.mrb[0].mxu0
      %v3525 = vadd.f32 0.0, %v3524
      %v3526 = vpop.f32.mrb[0].mxu0
      %3527 = vmatprep.mubr.f32.mxu0 0.0
      %3528 = vmatmul.mubr.f32.gmra.mrb[0].mxu0 %v3323
      %v3529 = vpop.f32.mrb[0].mxu0
      %v3530 = vadd.f32 0.0, %v3529
      %v3531 = vpop.f32.mrb[0].mxu0
      %3532 = vmatprep.mubr.f32.mxu0 0.0
      %3533 = vmatmul.mubr.f32.gmra.mrb[0].mxu0 %v3326
      %v3534 = vpop.f32.mrb[0].mxu0
      %v3535 = vadd.f32 0.0, %v3534
      %v3536 = vpop.f32.mrb[0].mxu0
      %3537 = vmatprep.mubr.f32.mxu0 0.0
      %3538 = vmatmul.mubr.f32.gmra.mrb[0].mxu0 %v3329
      %v3539 = vpop.f32.mrb[0].mxu0
      %v3540 = vadd.f32 0.0, %v3539
      %v3541 = vpop.f32.mrb[0].mxu0
      %3542 = vmatprep.mubr.f32.mxu0 0.0
      %3543 = vmatmul.mubr.f32.gmra.mrb[0].mxu0 %v3332
      %v3544 = vpop.f32.mrb[0].mxu0
      %v3545 = vadd.f32 0.0, %v3544
      %v3546 = vpop.f32.mrb[0].mxu0
      %3547 = vmatprep.mubr.f32.mxu0 0.0
      %3548 = vmatmul.mubr.f32.gmra.mrb[0].mxu0 %v3335
      %v3549 = vpop.f32.mrb[0].mxu0
      %v3550 = vadd.f32 0.0, %v3549
      %v3551 = vpop.f32.mrb[0].mxu0
      %3552 = vmatprep.mubr.f32.mxu0 0.0
      %3553 = vmatmul.mubr.f32.gmra.mrb[0].mxu0 %v3338
      %v3554 = vpop.f32.mrb[0].mxu0
      %v3555 = vadd.f32 0.0, %v3554
      %v3556 = vpop.f32.mrb[0].mxu0
      %3557 = vmatprep.mubr.f32.mxu0 0.0
      %3558 = vmatmul.mubr.f32.gmra.mrb[0].mxu0 %v3341
      %v3559 = vpop.f32.mrb[0].mxu0
      %v3560 = vadd.f32 0.0, %v3559
      %v3561 = vpop.f32.mrb[0].mxu0
      %3562 = vmatprep.mubr.f32.mxu0 0.0
      %3563 = vmatmul.mubr.f32.gmra.mrb[0].mxu0 %v3344
      %v3564 = vpop.f32.mrb[0].mxu0
      %v3565 = vadd.f32 0.0, %v3564
      %v3566 = vpop.f32.mrb[0].mxu0
      %3567 = vmatprep.mubr.f32.mxu0 0.0
      %3568 = vmatmul.mubr.f32.gmra.mrb[0].mxu0 %v3347
      %v3569 = vpop.f32.mrb[0].mxu0
      %v3570 = vadd.f32 0.0, %v3569
      %v3571 = vpop.f32.mrb[0].mxu0
      %3572 = vmatprep.mubr.f32.mxu0 0.0
      %3573 = vmatmul.mubr.f32.gmra.mrb[0].mxu0 %v3350
      %v3574 = vpop.f32.mrb[0].mxu0
      %v3575 = vadd.f32 0.0, %v3574
      %v3576 = vpop.f32.mrb[0].mxu0
      %3577 = vmatprep.mubr.f32.mxu0 0.0
      %3578 = vmatmul.mubr.f32.gmra.mrb[0].mxu0 %v3353
      %v3579 = vpop.f32.mrb[0].mxu0
      %v3580 = vadd.f32 0.0, %v3579
      %v3581 = vpop.f32.mrb[0].mxu0
      %3582 = vdwg.mxu0
      %v3583 = vmul.f32 %v3425, %v990
      %v3584 = vmul.f32 %v3430, %v995
      %v3585 = vmul.f32 %v3435, %v1000
      %v3586 = vmul.f32 %v3440, %v1005
      %v3587 = vmul.f32 %v3445, %v1010
      %v3588 = vmul.f32 %v3450, %v1015
      %v3589 = vmul.f32 %v3455, %v1020
      %v3590 = vmul.f32 %v3460, %v1025
      %v3591 = vmul.f32 %v3465, %v1030
      %v3592 = vmul.f32 %v3470, %v1035
      %v3593 = vmul.f32 %v3475, %v1040
      %v3594 = vmul.f32 %v3480, %v1045
      %v3595 = vmul.f32 %v3485, %v1050
      %v3596 = vmul.f32 %v3490, %v1055
      %v3597 = vmul.f32 %v3495, %v1060
      %v3598 = vmul.f32 %v3500, %v1065
      %v3599 = vmul.f32 %v3505, %v1070
      %v3600 = vmul.f32 %v3510, %v1075
      %v3601 = vmul.f32 %v3515, %v1080
      %v3602 = vmul.f32 %v3520, %v1085
      %v3603 = vmul.f32 %v3525, %v1090
      %v3604 = vmul.f32 %v3530, %v1095
      %v3605 = vmul.f32 %v3535, %v1100
      %v3606 = vmul.f32 %v3540, %v1105
      %v3607 = vmul.f32 %v3545, %v1110
      %v3608 = vmul.f32 %v3550, %v1115
      %v3609 = vmul.f32 %v3555, %v1120
      %v3610 = vmul.f32 %v3560, %v1125
      %v3611 = vmul.f32 %v3565, %v1130
      %v3612 = vmul.f32 %v3570, %v1135
      %v3613 = vmul.f32 %v3575, %v1140
      %v3614 = vmul.f32 %v3580, %v1145
      %v3615 = vadd.f32 %v3193, %v3583
      %v3616 = vadd.f32 %v3194, %v3584
      %v3617 = vadd.f32 %v3195, %v3585
      %v3618 = vadd.f32 %v3196, %v3586
      %v3619 = vadd.f32 %v3197, %v3587
      %v3620 = vadd.f32 %v3198, %v3588
      %v3621 = vadd.f32 %v3199, %v3589
      %v3622 = vadd.f32 %v3200, %v3590
      %v3623 = vadd.f32 %v3201, %v3591
      %v3624 = vadd.f32 %v3202, %v3592
      %v3625 = vadd.f32 %v3203, %v3593
      %v3626 = vadd.f32 %v3204, %v3594
      %v3627 = vadd.f32 %v3205, %v3595
      %v3628 = vadd.f32 %v3206, %v3596
      %v3629 = vadd.f32 %v3207, %v3597
      %v3630 = vadd.f32 %v3208, %v3598
      %v3631 = vadd.f32 %v3209, %v3599
      %v3632 = vadd.f32 %v3210, %v3600
      %v3633 = vadd.f32 %v3211, %v3601
      %v3634 = vadd.f32 %v3212, %v3602
      %v3635 = vadd.f32 %v3213, %v3603
      %v3636 = vadd.f32 %v3214, %v3604
      %v3637 = vadd.f32 %v3215, %v3605
      %v3638 = vadd.f32 %v3216, %v3606
      %v3639 = vadd.f32 %v3217, %v3607
      %v3640 = vadd.f32 %v3218, %v3608
      %v3641 = vadd.f32 %v3219, %v3609
      %v3642 = vadd.f32 %v3220, %v3610
      %v3643 = vadd.f32 %v3221, %v3611
      %v3644 = vadd.f32 %v3222, %v3612
      %v3645 = vadd.f32 %v3223, %v3613
      %v3646 = vadd.f32 %v3224, %v3614
      %v3647 = vld [vmem:[%s227 + $0x192] sm:$0xff]
      %v3648 = vld [vmem:[%s227 + $0x19a] sm:$0xff]
      %v3649 = vld [vmem:[%s227 + $0x1a2] sm:$0xff]
      %v3650 = vld [vmem:[%s227 + $0x1aa] sm:$0xff]
      %v3651 = vld [vmem:[%s227 + $0x1b2] sm:$0xff]
      %v3652 = vld [vmem:[%s227 + $0x1ba] sm:$0xff]
      %v3653 = vld [vmem:[%s227 + $0x1c2] sm:$0xff]
      %v3654 = vld [vmem:[%s227 + $0x1ca] sm:$0xff]
      %v3655 = vld [vmem:[%s227 + $0x1d2] sm:$0xff]
      %v3656 = vld [vmem:[%s227 + $0x1da] sm:$0xff]
      %v3657 = vld [vmem:[%s227 + $0x1e2] sm:$0xff]
      %v3658 = vld [vmem:[%s227 + $0x1ea] sm:$0xff]
      %v3659 = vld [vmem:[%s227 + $0x1f2] sm:$0xff]
      %v3660 = vld [vmem:[%s227 + $0x1fa] sm:$0xff]
      %v3661 = vld [vmem:[%s227 + $0x202] sm:$0xff]
      %v3662 = vld [vmem:[%s227 + $0x20a] sm:$0xff]
      %v3663 = vld [vmem:[%s227 + $0x212] sm:$0xff]
      %v3664 = vld [vmem:[%s227 + $0x21a] sm:$0xff]
      %v3665 = vld [vmem:[%s227 + $0x222] sm:$0xff]
      %v3666 = vld [vmem:[%s227 + $0x22a] sm:$0xff]
      %v3667 = vld [vmem:[%s227 + $0x232] sm:$0xff]
      %v3668 = vld [vmem:[%s227 + $0x23a] sm:$0xff]
      %v3669 = vld [vmem:[%s227 + $0x242] sm:$0xff]
      %v3670 = vld [vmem:[%s227 + $0x24a] sm:$0xff]
      %v3671 = vld [vmem:[%s227 + $0x252] sm:$0xff]
      %v3672 = vld [vmem:[%s227 + $0x25a] sm:$0xff]
      %v3673 = vld [vmem:[%s227 + $0x262] sm:$0xff]
      %v3674 = vld [vmem:[%s227 + $0x26a] sm:$0xff]
      %v3675 = vld [vmem:[%s227 + $0x272] sm:$0xff]
      %v3676 = vld [vmem:[%s227 + $0x27a] sm:$0xff]
      %v3677 = vld [vmem:[%s227 + $0x282] sm:$0xff]
      %v3678 = vld [vmem:[%s227 + $0x28a] sm:$0xff]
      %s3679 = scalar_lea.vmem %s3, 28
      %v3680 = vld [vmem:[%s3679] sm:$0xf]
      %v3682 = vsel %vm304, %v3647, 0
      %v3685 = vsel %vm304, %v3648, 0
      %v3688 = vsel %vm304, %v3649, 0
      %v3691 = vsel %vm304, %v3650, 0
      %v3694 = vsel %vm304, %v3651, 0
      %v3697 = vsel %vm304, %v3652, 0
      %v3700 = vsel %vm304, %v3653, 0
      %v3703 = vsel %vm304, %v3654, 0
      %v3706 = vsel %vm304, %v3655, 0
      %v3709 = vsel %vm304, %v3656, 0
      %v3712 = vsel %vm304, %v3657, 0
      %v3715 = vsel %vm304, %v3658, 0
      %v3718 = vsel %vm304, %v3659, 0
      %v3721 = vsel %vm304, %v3660, 0
      %v3724 = vsel %vm304, %v3661, 0
      %v3727 = vsel %vm304, %v3662, 0
      %v3730 = vsel %vm304, %v3663, 0
      %v3733 = vsel %vm304, %v3664, 0
      %v3736 = vsel %vm304, %v3665, 0
      %v3739 = vsel %vm304, %v3666, 0
      %v3742 = vsel %vm304, %v3667, 0
      %v3745 = vsel %vm304, %v3668, 0
      %v3748 = vsel %vm304, %v3669, 0
      %v3751 = vsel %vm304, %v3670, 0
      %v3754 = vsel %vm304, %v3671, 0
      %v3757 = vsel %vm304, %v3672, 0
      %v3760 = vsel %vm304, %v3673, 0
      %v3763 = vsel %vm304, %v3674, 0
      %v3766 = vsel %vm304, %v3675, 0
      %v3769 = vsel %vm304, %v3676, 0
      %v3772 = vsel %vm304, %v3677, 0
      %v3775 = vsel %vm304, %v3678, 0
      %v3778 = vsel %vm401, %v3680, 0
      %3780 = vmatprep.subr.mxu0 0.0
      %3781 = vmatpush1.msra.mxu0 %v3778
      %3782 = vmatprep.subr.mxu0 0.0
      %3783 = vmatpush1.msra.mxu0 0.0
      %3784 = vmatprep.subr.mxu0 0.0
      %3785 = vmatpush1.msra.mxu0 0.0
      %3786 = vmatprep.subr.mxu0 0.0
      %3787 = vmatpush1.msra.mxu0 0.0
      %3788 = vmatprep.subr.mxu0 0.0
      %3789 = vmatpush1.msra.mxu0 0.0
      %3790 = vmatprep.subr.mxu0 0.0
      %3791 = vmatpush1.msra.mxu0 0.0
      %3792 = vmatprep.subr.mxu0 0.0
      %3793 = vmatpush1.msra.mxu0 0.0
      %3794 = vmatprep.subr.mxu0 0.0
      %3795 = vmatpush1.msra.mxu0 0.0
      %3796 = vmatprep.subr.mxu0 0.0
      %3797 = vmatpush1.msra.mxu0 0.0
      %3798 = vmatprep.subr.mxu0 0.0
      %3799 = vmatpush1.msra.mxu0 0.0
      %3800 = vmatprep.subr.mxu0 0.0
      %3801 = vmatpush1.msra.mxu0 0.0
      %3802 = vmatprep.subr.mxu0 0.0
      %3803 = vmatpush1.msra.mxu0 0.0
      %3804 = vmatprep.subr.mxu0 0.0
      %3805 = vmatpush1.msra.mxu0 0.0
      %3806 = vmatprep.subr.mxu0 0.0
      %3807 = vmatpush1.msra.mxu0 0.0
      %3808 = vmatprep.subr.mxu0 0.0
      %3809 = vmatpush1.msra.mxu0 0.0
      %3810 = vmatprep.subr.mxu0 0.0
      %3811 = vmatpush1.msra.mxu0 0.0
      %3812 = vmatprep.subr.mxu0 0.0
      %3813 = vmatpush1.msra.mxu0 0.0
      %3814 = vmatprep.subr.mxu0 0.0
      %3815 = vmatpush1.msra.mxu0 0.0
      %3816 = vmatprep.subr.mxu0 0.0
      %3817 = vmatpush1.msra.mxu0 0.0
      %3818 = vmatprep.subr.mxu0 0.0
      %3819 = vmatpush1.msra.mxu0 0.0
      %3820 = vmatprep.subr.mxu0 0.0
      %3821 = vmatpush1.msra.mxu0 0.0
      %3822 = vmatprep.subr.mxu0 0.0
      %3823 = vmatpush1.msra.mxu0 0.0
      %3824 = vmatprep.subr.mxu0 0.0
      %3825 = vmatpush1.msra.mxu0 0.0
      %3826 = vmatprep.subr.mxu0 0.0
      %3827 = vmatpush1.msra.mxu0 0.0
      %3828 = vmatprep.subr.mxu0 0.0
      %3829 = vmatpush1.msra.mxu0 0.0
      %3830 = vmatprep.subr.mxu0 0.0
      %3831 = vmatpush1.msra.mxu0 0.0
      %3832 = vmatprep.subr.mxu0 0.0
      %3833 = vmatpush1.msra.mxu0 0.0
      %3834 = vmatprep.subr.mxu0 0.0
      %3835 = vmatpush1.msra.mxu0 0.0
      %3836 = vmatprep.subr.mxu0 0.0
      %3837 = vmatpush1.msra.mxu0 0.0
      %3838 = vmatprep.subr.mxu0 0.0
      %3839 = vmatpush1.msra.mxu0 0.0
      %3840 = vmatprep.subr.mxu0 0.0
      %3841 = vmatpush1.msra.mxu0 0.0
      %3842 = vmatprep.subr.mxu0 0.0
      %3843 = vmatpush1.msra.mxu0 0.0
      %3844 = vmatprep.mubr.f32.mxu0 0.0
      %3845 = vmatmul.mubr.f32.gmra.mrb[0].mxu0 %v3682
      %v3846 = vpop.f32.mrb[0].mxu0
      %v3847 = vadd.f32 0.0, %v3846
      %v3848 = vpop.f32.mrb[0].mxu0
      %3849 = vmatprep.mubr.f32.mxu0 0.0
      %3850 = vmatmul.mubr.f32.gmra.mrb[0].mxu0 %v3685
      %v3851 = vpop.f32.mrb[0].mxu0
      %v3852 = vadd.f32 0.0, %v3851
      %v3853 = vpop.f32.mrb[0].mxu0
      %3854 = vmatprep.mubr.f32.mxu0 0.0
      %3855 = vmatmul.mubr.f32.gmra.mrb[0].mxu0 %v3688
      %v3856 = vpop.f32.mrb[0].mxu0
      %v3857 = vadd.f32 0.0, %v3856
      %v3858 = vpop.f32.mrb[0].mxu0
      %3859 = vmatprep.mubr.f32.mxu0 0.0
      %3860 = vmatmul.mubr.f32.gmra.mrb[0].mxu0 %v3691
      %v3861 = vpop.f32.mrb[0].mxu0
      %v3862 = vadd.f32 0.0, %v3861
      %v3863 = vpop.f32.mrb[0].mxu0
      %3864 = vmatprep.mubr.f32.mxu0 0.0
      %3865 = vmatmul.mubr.f32.gmra.mrb[0].mxu0 %v3694
      %v3866 = vpop.f32.mrb[0].mxu0
      %v3867 = vadd.f32 0.0, %v3866
      %v3868 = vpop.f32.mrb[0].mxu0
      %3869 = vmatprep.mubr.f32.mxu0 0.0
      %3870 = vmatmul.mubr.f32.gmra.mrb[0].mxu0 %v3697
      %v3871 = vpop.f32.mrb[0].mxu0
      %v3872 = vadd.f32 0.0, %v3871
      %v3873 = vpop.f32.mrb[0].mxu0
      %3874 = vmatprep.mubr.f32.mxu0 0.0
      %3875 = vmatmul.mubr.f32.gmra.mrb[0].mxu0 %v3700
      %v3876 = vpop.f32.mrb[0].mxu0
      %v3877 = vadd.f32 0.0, %v3876
      %v3878 = vpop.f32.mrb[0].mxu0
      %3879 = vmatprep.mubr.f32.mxu0 0.0
      %3880 = vmatmul.mubr.f32.gmra.mrb[0].mxu0 %v3703
      %v3881 = vpop.f32.mrb[0].mxu0
      %v3882 = vadd.f32 0.0, %v3881
      %v3883 = vpop.f32.mrb[0].mxu0
      %3884 = vmatprep.mubr.f32.mxu0 0.0
      %3885 = vmatmul.mubr.f32.gmra.mrb[0].mxu0 %v3706
      %v3886 = vpop.f32.mrb[0].mxu0
      %v3887 = vadd.f32 0.0, %v3886
      %v3888 = vpop.f32.mrb[0].mxu0
      %3889 = vmatprep.mubr.f32.mxu0 0.0
      %3890 = vmatmul.mubr.f32.gmra.mrb[0].mxu0 %v3709
      %v3891 = vpop.f32.mrb[0].mxu0
      %v3892 = vadd.f32 0.0, %v3891
      %v3893 = vpop.f32.mrb[0].mxu0
      %3894 = vmatprep.mubr.f32.mxu0 0.0
      %3895 = vmatmul.mubr.f32.gmra.mrb[0].mxu0 %v3712
      %v3896 = vpop.f32.mrb[0].mxu0
      %v3897 = vadd.f32 0.0, %v3896
      %v3898 = vpop.f32.mrb[0].mxu0
      %3899 = vmatprep.mubr.f32.mxu0 0.0
      %3900 = vmatmul.mubr.f32.gmra.mrb[0].mxu0 %v3715
      %v3901 = vpop.f32.mrb[0].mxu0
      %v3902 = vadd.f32 0.0, %v3901
      %v3903 = vpop.f32.mrb[0].mxu0
      %3904 = vmatprep.mubr.f32.mxu0 0.0
      %3905 = vmatmul.mubr.f32.gmra.mrb[0].mxu0 %v3718
      %v3906 = vpop.f32.mrb[0].mxu0
      %v3907 = vadd.f32 0.0, %v3906
      %v3908 = vpop.f32.mrb[0].mxu0
      %3909 = vmatprep.mubr.f32.mxu0 0.0
      %3910 = vmatmul.mubr.f32.gmra.mrb[0].mxu0 %v3721
      %v3911 = vpop.f32.mrb[0].mxu0
      %v3912 = vadd.f32 0.0, %v3911
      %v3913 = vpop.f32.mrb[0].mxu0
      %3914 = vmatprep.mubr.f32.mxu0 0.0
      %3915 = vmatmul.mubr.f32.gmra.mrb[0].mxu0 %v3724
      %v3916 = vpop.f32.mrb[0].mxu0
      %v3917 = vadd.f32 0.0, %v3916
      %v3918 = vpop.f32.mrb[0].mxu0
      %3919 = vmatprep.mubr.f32.mxu0 0.0
      %3920 = vmatmul.mubr.f32.gmra.mrb[0].mxu0 %v3727
      %v3921 = vpop.f32.mrb[0].mxu0
      %v3922 = vadd.f32 0.0, %v3921
      %v3923 = vpop.f32.mrb[0].mxu0
      %3924 = vmatprep.mubr.f32.mxu0 0.0
      %3925 = vmatmul.mubr.f32.gmra.mrb[0].mxu0 %v3730
      %v3926 = vpop.f32.mrb[0].mxu0
      %v3927 = vadd.f32 0.0, %v3926
      %v3928 = vpop.f32.mrb[0].mxu0
      %3929 = vmatprep.mubr.f32.mxu0 0.0
      %3930 = vmatmul.mubr.f32.gmra.mrb[0].mxu0 %v3733
      %v3931 = vpop.f32.mrb[0].mxu0
      %v3932 = vadd.f32 0.0, %v3931
      %v3933 = vpop.f32.mrb[0].mxu0
      %3934 = vmatprep.mubr.f32.mxu0 0.0
      %3935 = vmatmul.mubr.f32.gmra.mrb[0].mxu0 %v3736
      %v3936 = vpop.f32.mrb[0].mxu0
      %v3937 = vadd.f32 0.0, %v3936
      %v3938 = vpop.f32.mrb[0].mxu0
      %3939 = vmatprep.mubr.f32.mxu0 0.0
      %3940 = vmatmul.mubr.f32.gmra.mrb[0].mxu0 %v3739
      %v3941 = vpop.f32.mrb[0].mxu0
      %v3942 = vadd.f32 0.0, %v3941
      %v3943 = vpop.f32.mrb[0].mxu0
      %3944 = vmatprep.mubr.f32.mxu0 0.0
      %3945 = vmatmul.mubr.f32.gmra.mrb[0].mxu0 %v3742
      %v3946 = vpop.f32.mrb[0].mxu0
      %v3947 = vadd.f32 0.0, %v3946
      %v3948 = vpop.f32.mrb[0].mxu0
      %3949 = vmatprep.mubr.f32.mxu0 0.0
      %3950 = vmatmul.mubr.f32.gmra.mrb[0].mxu0 %v3745
      %v3951 = vpop.f32.mrb[0].mxu0
      %v3952 = vadd.f32 0.0, %v3951
      %v3953 = vpop.f32.mrb[0].mxu0
      %3954 = vmatprep.mubr.f32.mxu0 0.0
      %3955 = vmatmul.mubr.f32.gmra.mrb[0].mxu0 %v3748
      %v3956 = vpop.f32.mrb[0].mxu0
      %v3957 = vadd.f32 0.0, %v3956
      %v3958 = vpop.f32.mrb[0].mxu0
      %3959 = vmatprep.mubr.f32.mxu0 0.0
      %3960 = vmatmul.mubr.f32.gmra.mrb[0].mxu0 %v3751
      %v3961 = vpop.f32.mrb[0].mxu0
      %v3962 = vadd.f32 0.0, %v3961
      %v3963 = vpop.f32.mrb[0].mxu0
      %3964 = vmatprep.mubr.f32.mxu0 0.0
      %3965 = vmatmul.mubr.f32.gmra.mrb[0].mxu0 %v3754
      %v3966 = vpop.f32.mrb[0].mxu0
      %v3967 = vadd.f32 0.0, %v3966
      %v3968 = vpop.f32.mrb[0].mxu0
      %3969 = vmatprep.mubr.f32.mxu0 0.0
      %3970 = vmatmul.mubr.f32.gmra.mrb[0].mxu0 %v3757
      %v3971 = vpop.f32.mrb[0].mxu0
      %v3972 = vadd.f32 0.0, %v3971
      %v3973 = vpop.f32.mrb[0].mxu0
      %3974 = vmatprep.mubr.f32.mxu0 0.0
      %3975 = vmatmul.mubr.f32.gmra.mrb[0].mxu0 %v3760
      %v3976 = vpop.f32.mrb[0].mxu0
      %v3977 = vadd.f32 0.0, %v3976
      %v3978 = vpop.f32.mrb[0].mxu0
      %3979 = vmatprep.mubr.f32.mxu0 0.0
      %3980 = vmatmul.mubr.f32.gmra.mrb[0].mxu0 %v3763
      %v3981 = vpop.f32.mrb[0].mxu0
      %v3982 = vadd.f32 0.0, %v3981
      %v3983 = vpop.f32.mrb[0].mxu0
      %3984 = vmatprep.mubr.f32.mxu0 0.0
      %3985 = vmatmul.mubr.f32.gmra.mrb[0].mxu0 %v3766
      %v3986 = vpop.f32.mrb[0].mxu0
      %v3987 = vadd.f32 0.0, %v3986
      %v3988 = vpop.f32.mrb[0].mxu0
      %3989 = vmatprep.mubr.f32.mxu0 0.0
      %3990 = vmatmul.mubr.f32.gmra.mrb[0].mxu0 %v3769
      %v3991 = vpop.f32.mrb[0].mxu0
      %v3992 = vadd.f32 0.0, %v3991
      %v3993 = vpop.f32.mrb[0].mxu0
      %3994 = vmatprep.mubr.f32.mxu0 0.0
      %3995 = vmatmul.mubr.f32.gmra.mrb[0].mxu0 %v3772
      %v3996 = vpop.f32.mrb[0].mxu0
      %v3997 = vadd.f32 0.0, %v3996
      %v3998 = vpop.f32.mrb[0].mxu0
      %3999 = vmatprep.mubr.f32.mxu0 0.0
      %4000 = vmatmul.mubr.f32.gmra.mrb[0].mxu0 %v3775
      %v4001 = vpop.f32.mrb[0].mxu0
      %v4002 = vadd.f32 0.0, %v4001
      %v4003 = vpop.f32.mrb[0].mxu0
      %4004 = vdwg.mxu0
      %v4005 = vadd.f32 %v3615, %v3847
      %v4006 = vadd.f32 %v3616, %v3852
      %v4007 = vadd.f32 %v3617, %v3857
      %v4008 = vadd.f32 %v3618, %v3862
      %v4009 = vadd.f32 %v3619, %v3867
      %v4010 = vadd.f32 %v3620, %v3872
      %v4011 = vadd.f32 %v3621, %v3877
      %v4012 = vadd.f32 %v3622, %v3882
      %v4013 = vadd.f32 %v3623, %v3887
      %v4014 = vadd.f32 %v3624, %v3892
      %v4015 = vadd.f32 %v3625, %v3897
      %v4016 = vadd.f32 %v3626, %v3902
      %v4017 = vadd.f32 %v3627, %v3907
      %v4018 = vadd.f32 %v3628, %v3912
      %v4019 = vadd.f32 %v3629, %v3917
      %v4020 = vadd.f32 %v3630, %v3922
      %v4021 = vadd.f32 %v3631, %v3927
      %v4022 = vadd.f32 %v3632, %v3932
      %v4023 = vadd.f32 %v3633, %v3937
      %v4024 = vadd.f32 %v3634, %v3942
      %v4025 = vadd.f32 %v3635, %v3947
      %v4026 = vadd.f32 %v3636, %v3952
      %v4027 = vadd.f32 %v3637, %v3957
      %v4028 = vadd.f32 %v3638, %v3962
      %v4029 = vadd.f32 %v3639, %v3967
      %v4030 = vadd.f32 %v3640, %v3972
      %v4031 = vadd.f32 %v3641, %v3977
      %v4032 = vadd.f32 %v3642, %v3982
      %v4033 = vadd.f32 %v3643, %v3987
      %v4034 = vadd.f32 %v3644, %v3992
      %v4035 = vadd.f32 %v3645, %v3997
      %v4036 = vadd.f32 %v3646, %v4002
      %v4037 = vld [vmem:[%s227 + $0x198] sm:$0xff]
      %v4038 = vld [vmem:[%s227 + $0x1a0] sm:$0xff]
      %v4039 = vld [vmem:[%s227 + $0x1a8] sm:$0xff]
      %v4040 = vld [vmem:[%s227 + $0x1b0] sm:$0xff]
      %v4041 = vld [vmem:[%s227 + $0x1b8] sm:$0xff]
      %v4042 = vld [vmem:[%s227 + $0x1c0] sm:$0xff]
      %v4043 = vld [vmem:[%s227 + $0x1c8] sm:$0xff]
      %v4044 = vld [vmem:[%s227 + $0x1d0] sm:$0xff]
      %v4045 = vld [vmem:[%s227 + $0x1d8] sm:$0xff]
      %v4046 = vld [vmem:[%s227 + $0x1e0] sm:$0xff]
      %v4047 = vld [vmem:[%s227 + $0x1e8] sm:$0xff]
      %v4048 = vld [vmem:[%s227 + $0x1f0] sm:$0xff]
      %v4049 = vld [vmem:[%s227 + $0x1f8] sm:$0xff]
      %v4050 = vld [vmem:[%s227 + $0x200] sm:$0xff]
      %v4051 = vld [vmem:[%s227 + $0x208] sm:$0xff]
      %v4052 = vld [vmem:[%s227 + $0x210] sm:$0xff]
      %v4053 = vld [vmem:[%s227 + $0x218] sm:$0xff]
      %v4054 = vld [vmem:[%s227 + $0x220] sm:$0xff]
      %v4055 = vld [vmem:[%s227 + $0x228] sm:$0xff]
      %v4056 = vld [vmem:[%s227 + $0x230] sm:$0xff]
      %v4057 = vld [vmem:[%s227 + $0x238] sm:$0xff]
      %v4058 = vld [vmem:[%s227 + $0x240] sm:$0xff]
      %v4059 = vld [vmem:[%s227 + $0x248] sm:$0xff]
      %v4060 = vld [vmem:[%s227 + $0x250] sm:$0xff]
      %v4061 = vld [vmem:[%s227 + $0x258] sm:$0xff]
      %v4062 = vld [vmem:[%s227 + $0x260] sm:$0xff]
      %v4063 = vld [vmem:[%s227 + $0x268] sm:$0xff]
      %v4064 = vld [vmem:[%s227 + $0x270] sm:$0xff]
      %v4065 = vld [vmem:[%s227 + $0x278] sm:$0xff]
      %v4066 = vld [vmem:[%s227 + $0x280] sm:$0xff]
      %v4067 = vld [vmem:[%s227 + $0x288] sm:$0xff]
      %v4068 = vld [vmem:[%s227 + $0x290] sm:$0xff]
      %s4069 = scalar_lea.vmem %s3, 32
      %v4070 = vld [vmem:[%s4069] sm:$0xf]
      %v4072 = vsel %vm304, %v4037, 0
      %v4075 = vsel %vm304, %v4038, 0
      %v4078 = vsel %vm304, %v4039, 0
      %v4081 = vsel %vm304, %v4040, 0
      %v4084 = vsel %vm304, %v4041, 0
      %v4087 = vsel %vm304, %v4042, 0
      %v4090 = vsel %vm304, %v4043, 0
      %v4093 = vsel %vm304, %v4044, 0
      %v4096 = vsel %vm304, %v4045, 0
      %v4099 = vsel %vm304, %v4046, 0
      %v4102 = vsel %vm304, %v4047, 0
      %v4105 = vsel %vm304, %v4048, 0
      %v4108 = vsel %vm304, %v4049, 0
      %v4111 = vsel %vm304, %v4050, 0
      %v4114 = vsel %vm304, %v4051, 0
      %v4117 = vsel %vm304, %v4052, 0
      %v4120 = vsel %vm304, %v4053, 0
      %v4123 = vsel %vm304, %v4054, 0
      %v4126 = vsel %vm304, %v4055, 0
      %v4129 = vsel %vm304, %v4056, 0
      %v4132 = vsel %vm304, %v4057, 0
      %v4135 = vsel %vm304, %v4058, 0
      %v4138 = vsel %vm304, %v4059, 0
      %v4141 = vsel %vm304, %v4060, 0
      %v4144 = vsel %vm304, %v4061, 0
      %v4147 = vsel %vm304, %v4062, 0
      %v4150 = vsel %vm304, %v4063, 0
      %v4153 = vsel %vm304, %v4064, 0
      %v4156 = vsel %vm304, %v4065, 0
      %v4159 = vsel %vm304, %v4066, 0
      %v4162 = vsel %vm304, %v4067, 0
      %v4165 = vsel %vm304, %v4068, 0
      %v4168 = vsel %vm401, %v4070, 0
      %4170 = vmatprep.subr.mxu0 0.0
      %4171 = vmatpush1.msra.mxu0 %v4168
      %4172 = vmatprep.subr.mxu0 0.0
      %4173 = vmatpush1.msra.mxu0 0.0
      %4174 = vmatprep.subr.mxu0 0.0
      %4175 = vmatpush1.msra.mxu0 0.0
      %4176 = vmatprep.subr.mxu0 0.0
      %4177 = vmatpush1.msra.mxu0 0.0
      %4178 = vmatprep.subr.mxu0 0.0
      %4179 = vmatpush1.msra.mxu0 0.0
      %4180 = vmatprep.subr.mxu0 0.0
      %4181 = vmatpush1.msra.mxu0 0.0
      %4182 = vmatprep.subr.mxu0 0.0
      %4183 = vmatpush1.msra.mxu0 0.0
      %4184 = vmatprep.subr.mxu0 0.0
      %4185 = vmatpush1.msra.mxu0 0.0
      %4186 = vmatprep.subr.mxu0 0.0
      %4187 = vmatpush1.msra.mxu0 0.0
      %4188 = vmatprep.subr.mxu0 0.0
      %4189 = vmatpush1.msra.mxu0 0.0
      %4190 = vmatprep.subr.mxu0 0.0
      %4191 = vmatpush1.msra.mxu0 0.0
      %4192 = vmatprep.subr.mxu0 0.0
      %4193 = vmatpush1.msra.mxu0 0.0
      %4194 = vmatprep.subr.mxu0 0.0
      %4195 = vmatpush1.msra.mxu0 0.0
      %4196 = vmatprep.subr.mxu0 0.0
      %4197 = vmatpush1.msra.mxu0 0.0
      %4198 = vmatprep.subr.mxu0 0.0
      %4199 = vmatpush1.msra.mxu0 0.0
      %4200 = vmatprep.subr.mxu0 0.0
      %4201 = vmatpush1.msra.mxu0 0.0
      %4202 = vmatprep.subr.mxu0 0.0
      %4203 = vmatpush1.msra.mxu0 0.0
      %4204 = vmatprep.subr.mxu0 0.0
      %4205 = vmatpush1.msra.mxu0 0.0
      %4206 = vmatprep.subr.mxu0 0.0
      %4207 = vmatpush1.msra.mxu0 0.0
      %4208 = vmatprep.subr.mxu0 0.0
      %4209 = vmatpush1.msra.mxu0 0.0
      %4210 = vmatprep.subr.mxu0 0.0
      %4211 = vmatpush1.msra.mxu0 0.0
      %4212 = vmatprep.subr.mxu0 0.0
      %4213 = vmatpush1.msra.mxu0 0.0
      %4214 = vmatprep.subr.mxu0 0.0
      %4215 = vmatpush1.msra.mxu0 0.0
      %4216 = vmatprep.subr.mxu0 0.0
      %4217 = vmatpush1.msra.mxu0 0.0
      %4218 = vmatprep.subr.mxu0 0.0
      %4219 = vmatpush1.msra.mxu0 0.0
      %4220 = vmatprep.subr.mxu0 0.0
      %4221 = vmatpush1.msra.mxu0 0.0
      %4222 = vmatprep.subr.mxu0 0.0
      %4223 = vmatpush1.msra.mxu0 0.0
      %4224 = vmatprep.subr.mxu0 0.0
      %4225 = vmatpush1.msra.mxu0 0.0
      %4226 = vmatprep.subr.mxu0 0.0
      %4227 = vmatpush1.msra.mxu0 0.0
      %4228 = vmatprep.subr.mxu0 0.0
      %4229 = vmatpush1.msra.mxu0 0.0
      %4230 = vmatprep.subr.mxu0 0.0
      %4231 = vmatpush1.msra.mxu0 0.0
      %4232 = vmatprep.subr.mxu0 0.0
      %4233 = vmatpush1.msra.mxu0 0.0
      %4234 = vmatprep.mubr.f32.mxu0 0.0
      %4235 = vmatmul.mubr.f32.gmra.mrb[0].mxu0 %v4072
      %v4236 = vpop.f32.mrb[0].mxu0
      %v4237 = vadd.f32 0.0, %v4236
      %v4238 = vpop.f32.mrb[0].mxu0
      %4239 = vmatprep.mubr.f32.mxu0 0.0
      %4240 = vmatmul.mubr.f32.gmra.mrb[0].mxu0 %v4075
      %v4241 = vpop.f32.mrb[0].mxu0
      %v4242 = vadd.f32 0.0, %v4241
      %v4243 = vpop.f32.mrb[0].mxu0
      %4244 = vmatprep.mubr.f32.mxu0 0.0
      %4245 = vmatmul.mubr.f32.gmra.mrb[0].mxu0 %v4078
      %v4246 = vpop.f32.mrb[0].mxu0
      %v4247 = vadd.f32 0.0, %v4246
      %v4248 = vpop.f32.mrb[0].mxu0
      %4249 = vmatprep.mubr.f32.mxu0 0.0
      %4250 = vmatmul.mubr.f32.gmra.mrb[0].mxu0 %v4081
      %v4251 = vpop.f32.mrb[0].mxu0
      %v4252 = vadd.f32 0.0, %v4251
      %v4253 = vpop.f32.mrb[0].mxu0
      %4254 = vmatprep.mubr.f32.mxu0 0.0
      %4255 = vmatmul.mubr.f32.gmra.mrb[0].mxu0 %v4084
      %v4256 = vpop.f32.mrb[0].mxu0
      %v4257 = vadd.f32 0.0, %v4256
      %v4258 = vpop.f32.mrb[0].mxu0
      %4259 = vmatprep.mubr.f32.mxu0 0.0
      %4260 = vmatmul.mubr.f32.gmra.mrb[0].mxu0 %v4087
      %v4261 = vpop.f32.mrb[0].mxu0
      %v4262 = vadd.f32 0.0, %v4261
      %v4263 = vpop.f32.mrb[0].mxu0
      %4264 = vmatprep.mubr.f32.mxu0 0.0
      %4265 = vmatmul.mubr.f32.gmra.mrb[0].mxu0 %v4090
      %v4266 = vpop.f32.mrb[0].mxu0
      %v4267 = vadd.f32 0.0, %v4266
      %v4268 = vpop.f32.mrb[0].mxu0
      %4269 = vmatprep.mubr.f32.mxu0 0.0
      %4270 = vmatmul.mubr.f32.gmra.mrb[0].mxu0 %v4093
      %v4271 = vpop.f32.mrb[0].mxu0
      %v4272 = vadd.f32 0.0, %v4271
      %v4273 = vpop.f32.mrb[0].mxu0
      %4274 = vmatprep.mubr.f32.mxu0 0.0
      %4275 = vmatmul.mubr.f32.gmra.mrb[0].mxu0 %v4096
      %v4276 = vpop.f32.mrb[0].mxu0
      %v4277 = vadd.f32 0.0, %v4276
      %v4278 = vpop.f32.mrb[0].mxu0
      %4279 = vmatprep.mubr.f32.mxu0 0.0
      %4280 = vmatmul.mubr.f32.gmra.mrb[0].mxu0 %v4099
      %v4281 = vpop.f32.mrb[0].mxu0
      %v4282 = vadd.f32 0.0, %v4281
      %v4283 = vpop.f32.mrb[0].mxu0
      %4284 = vmatprep.mubr.f32.mxu0 0.0
      %4285 = vmatmul.mubr.f32.gmra.mrb[0].mxu0 %v4102
      %v4286 = vpop.f32.mrb[0].mxu0
      %v4287 = vadd.f32 0.0, %v4286
      %v4288 = vpop.f32.mrb[0].mxu0
      %4289 = vmatprep.mubr.f32.mxu0 0.0
      %4290 = vmatmul.mubr.f32.gmra.mrb[0].mxu0 %v4105
      %v4291 = vpop.f32.mrb[0].mxu0
      %v4292 = vadd.f32 0.0, %v4291
      %v4293 = vpop.f32.mrb[0].mxu0
      %4294 = vmatprep.mubr.f32.mxu0 0.0
      %4295 = vmatmul.mubr.f32.gmra.mrb[0].mxu0 %v4108
      %v4296 = vpop.f32.mrb[0].mxu0
      %v4297 = vadd.f32 0.0, %v4296
      %v4298 = vpop.f32.mrb[0].mxu0
      %4299 = vmatprep.mubr.f32.mxu0 0.0
      %4300 = vmatmul.mubr.f32.gmra.mrb[0].mxu0 %v4111
      %v4301 = vpop.f32.mrb[0].mxu0
      %v4302 = vadd.f32 0.0, %v4301
      %v4303 = vpop.f32.mrb[0].mxu0
      %4304 = vmatprep.mubr.f32.mxu0 0.0
      %4305 = vmatmul.mubr.f32.gmra.mrb[0].mxu0 %v4114
      %v4306 = vpop.f32.mrb[0].mxu0
      %v4307 = vadd.f32 0.0, %v4306
      %v4308 = vpop.f32.mrb[0].mxu0
      %4309 = vmatprep.mubr.f32.mxu0 0.0
      %4310 = vmatmul.mubr.f32.gmra.mrb[0].mxu0 %v4117
      %v4311 = vpop.f32.mrb[0].mxu0
      %v4312 = vadd.f32 0.0, %v4311
      %v4313 = vpop.f32.mrb[0].mxu0
      %4314 = vmatprep.mubr.f32.mxu0 0.0
      %4315 = vmatmul.mubr.f32.gmra.mrb[0].mxu0 %v4120
      %v4316 = vpop.f32.mrb[0].mxu0
      %v4317 = vadd.f32 0.0, %v4316
      %v4318 = vpop.f32.mrb[0].mxu0
      %4319 = vmatprep.mubr.f32.mxu0 0.0
      %4320 = vmatmul.mubr.f32.gmra.mrb[0].mxu0 %v4123
      %v4321 = vpop.f32.mrb[0].mxu0
      %v4322 = vadd.f32 0.0, %v4321
      %v4323 = vpop.f32.mrb[0].mxu0
      %4324 = vmatprep.mubr.f32.mxu0 0.0
      %4325 = vmatmul.mubr.f32.gmra.mrb[0].mxu0 %v4126
      %v4326 = vpop.f32.mrb[0].mxu0
      %v4327 = vadd.f32 0.0, %v4326
      %v4328 = vpop.f32.mrb[0].mxu0
      %4329 = vmatprep.mubr.f32.mxu0 0.0
      %4330 = vmatmul.mubr.f32.gmra.mrb[0].mxu0 %v4129
      %v4331 = vpop.f32.mrb[0].mxu0
      %v4332 = vadd.f32 0.0, %v4331
      %v4333 = vpop.f32.mrb[0].mxu0
      %4334 = vmatprep.mubr.f32.mxu0 0.0
      %4335 = vmatmul.mubr.f32.gmra.mrb[0].mxu0 %v4132
      %v4336 = vpop.f32.mrb[0].mxu0
      %v4337 = vadd.f32 0.0, %v4336
      %v4338 = vpop.f32.mrb[0].mxu0
      %4339 = vmatprep.mubr.f32.mxu0 0.0
      %4340 = vmatmul.mubr.f32.gmra.mrb[0].mxu0 %v4135
      %v4341 = vpop.f32.mrb[0].mxu0
      %v4342 = vadd.f32 0.0, %v4341
      %v4343 = vpop.f32.mrb[0].mxu0
      %4344 = vmatprep.mubr.f32.mxu0 0.0
      %4345 = vmatmul.mubr.f32.gmra.mrb[0].mxu0 %v4138
      %v4346 = vpop.f32.mrb[0].mxu0
      %v4347 = vadd.f32 0.0, %v4346
      %v4348 = vpop.f32.mrb[0].mxu0
      %4349 = vmatprep.mubr.f32.mxu0 0.0
      %4350 = vmatmul.mubr.f32.gmra.mrb[0].mxu0 %v4141
      %v4351 = vpop.f32.mrb[0].mxu0
      %v4352 = vadd.f32 0.0, %v4351
      %v4353 = vpop.f32.mrb[0].mxu0
      %4354 = vmatprep.mubr.f32.mxu0 0.0
      %4355 = vmatmul.mubr.f32.gmra.mrb[0].mxu0 %v4144
      %v4356 = vpop.f32.mrb[0].mxu0
      %v4357 = vadd.f32 0.0, %v4356
      %v4358 = vpop.f32.mrb[0].mxu0
      %4359 = vmatprep.mubr.f32.mxu0 0.0
      %4360 = vmatmul.mubr.f32.gmra.mrb[0].mxu0 %v4147
      %v4361 = vpop.f32.mrb[0].mxu0
      %v4362 = vadd.f32 0.0, %v4361
      %v4363 = vpop.f32.mrb[0].mxu0
      %4364 = vmatprep.mubr.f32.mxu0 0.0
      %4365 = vmatmul.mubr.f32.gmra.mrb[0].mxu0 %v4150
      %v4366 = vpop.f32.mrb[0].mxu0
      %v4367 = vadd.f32 0.0, %v4366
      %v4368 = vpop.f32.mrb[0].mxu0
      %4369 = vmatprep.mubr.f32.mxu0 0.0
      %4370 = vmatmul.mubr.f32.gmra.mrb[0].mxu0 %v4153
      %v4371 = vpop.f32.mrb[0].mxu0
      %v4372 = vadd.f32 0.0, %v4371
      %v4373 = vpop.f32.mrb[0].mxu0
      %4374 = vmatprep.mubr.f32.mxu0 0.0
      %4375 = vmatmul.mubr.f32.gmra.mrb[0].mxu0 %v4156
      %v4376 = vpop.f32.mrb[0].mxu0
      %v4377 = vadd.f32 0.0, %v4376
      %v4378 = vpop.f32.mrb[0].mxu0
      %4379 = vmatprep.mubr.f32.mxu0 0.0
      %4380 = vmatmul.mubr.f32.gmra.mrb[0].mxu0 %v4159
      %v4381 = vpop.f32.mrb[0].mxu0
      %v4382 = vadd.f32 0.0, %v4381
      %v4383 = vpop.f32.mrb[0].mxu0
      %4384 = vmatprep.mubr.f32.mxu0 0.0
      %4385 = vmatmul.mubr.f32.gmra.mrb[0].mxu0 %v4162
      %v4386 = vpop.f32.mrb[0].mxu0
      %v4387 = vadd.f32 0.0, %v4386
      %v4388 = vpop.f32.mrb[0].mxu0
      %4389 = vmatprep.mubr.f32.mxu0 0.0
      %4390 = vmatmul.mubr.f32.gmra.mrb[0].mxu0 %v4165
      %v4391 = vpop.f32.mrb[0].mxu0
      %v4392 = vadd.f32 0.0, %v4391
      %v4393 = vpop.f32.mrb[0].mxu0
      %4394 = vdwg.mxu0
      %v4395 = vmul.f32 %v4237, %v1929
      %v4396 = vmul.f32 %v4242, %v1933
      %v4397 = vmul.f32 %v4247, %v1937
      %v4398 = vmul.f32 %v4252, %v1941
      %v4399 = vmul.f32 %v4257, %v1945
      %v4400 = vmul.f32 %v4262, %v1949
      %v4401 = vmul.f32 %v4267, %v1953
      %v4402 = vmul.f32 %v4272, %v1957
      %v4403 = vmul.f32 %v4277, %v1961
      %v4404 = vmul.f32 %v4282, %v1965
      %v4405 = vmul.f32 %v4287, %v1969
      %v4406 = vmul.f32 %v4292, %v1973
      %v4407 = vmul.f32 %v4297, %v1977
      %v4408 = vmul.f32 %v4302, %v1981
      %v4409 = vmul.f32 %v4307, %v1985
      %v4410 = vmul.f32 %v4312, %v1989
      %v4411 = vmul.f32 %v4317, %v1993
      %v4412 = vmul.f32 %v4322, %v1997
      %v4413 = vmul.f32 %v4327, %v2001
      %v4414 = vmul.f32 %v4332, %v2005
      %v4415 = vmul.f32 %v4337, %v2009
      %v4416 = vmul.f32 %v4342, %v2013
      %v4417 = vmul.f32 %v4347, %v2017
      %v4418 = vmul.f32 %v4352, %v2021
      %v4419 = vmul.f32 %v4357, %v2025
      %v4420 = vmul.f32 %v4362, %v2029
      %v4421 = vmul.f32 %v4367, %v2033
      %v4422 = vmul.f32 %v4372, %v2037
      %v4423 = vmul.f32 %v4377, %v2041
      %v4424 = vmul.f32 %v4382, %v2045
      %v4425 = vmul.f32 %v4387, %v2049
      %v4426 = vmul.f32 %v4392, %v2053
      %v4427 = vadd.f32 %v4005, %v4395
      %v4428 = vadd.f32 %v4006, %v4396
      %v4429 = vadd.f32 %v4007, %v4397
      %v4430 = vadd.f32 %v4008, %v4398
      %v4431 = vadd.f32 %v4009, %v4399
      %v4432 = vadd.f32 %v4010, %v4400
      %v4433 = vadd.f32 %v4011, %v4401
      %v4434 = vadd.f32 %v4012, %v4402
      %v4435 = vadd.f32 %v4013, %v4403
      %v4436 = vadd.f32 %v4014, %v4404
      %v4437 = vadd.f32 %v4015, %v4405
      %v4438 = vadd.f32 %v4016, %v4406
      %v4439 = vadd.f32 %v4017, %v4407
      %v4440 = vadd.f32 %v4018, %v4408
      %v4441 = vadd.f32 %v4019, %v4409
      %v4442 = vadd.f32 %v4020, %v4410
      %v4443 = vadd.f32 %v4021, %v4411
      %v4444 = vadd.f32 %v4022, %v4412
      %v4445 = vadd.f32 %v4023, %v4413
      %v4446 = vadd.f32 %v4024, %v4414
      %v4447 = vadd.f32 %v4025, %v4415
      %v4448 = vadd.f32 %v4026, %v4416
      %v4449 = vadd.f32 %v4027, %v4417
      %v4450 = vadd.f32 %v4028, %v4418
      %v4451 = vadd.f32 %v4029, %v4419
      %v4452 = vadd.f32 %v4030, %v4420
      %v4453 = vadd.f32 %v4031, %v4421
      %v4454 = vadd.f32 %v4032, %v4422
      %v4455 = vadd.f32 %v4033, %v4423
      %v4456 = vadd.f32 %v4034, %v4424
      %v4457 = vadd.f32 %v4035, %v4425
      %v4458 = vadd.f32 %v4036, %v4426
      %v4459 = vld [vmem:[%s227 + $0x66] sm:$0xff]
      %v4460 = vld [vmem:[%s227 + $0x6e] sm:$0xff]
      %v4461 = vld [vmem:[%s227 + $0x76] sm:$0xff]
      %v4462 = vld [vmem:[%s227 + $0x7e] sm:$0xff]
      %v4463 = vld [vmem:[%s227 + $0x86] sm:$0xff]
      %v4464 = vld [vmem:[%s227 + $0x8e] sm:$0xff]
      %v4465 = vld [vmem:[%s227 + $0x96] sm:$0xff]
      %v4466 = vld [vmem:[%s227 + $0x9e] sm:$0xff]
      %v4467 = vld [vmem:[%s227 + $0xa6] sm:$0xff]
      %v4468 = vld [vmem:[%s227 + $0xae] sm:$0xff]
      %v4469 = vld [vmem:[%s227 + $0xb6] sm:$0xff]
      %v4470 = vld [vmem:[%s227 + $0xbe] sm:$0xff]
      %v4471 = vld [vmem:[%s227 + $0xc6] sm:$0xff]
      %v4472 = vld [vmem:[%s227 + $0xce] sm:$0xff]
      %v4473 = vld [vmem:[%s227 + $0xd6] sm:$0xff]
      %v4474 = vld [vmem:[%s227 + $0xde] sm:$0xff]
      %v4475 = vld [vmem:[%s227 + $0xe6] sm:$0xff]
      %v4476 = vld [vmem:[%s227 + $0xee] sm:$0xff]
      %v4477 = vld [vmem:[%s227 + $0xf6] sm:$0xff]
      %v4478 = vld [vmem:[%s227 + $0xfe] sm:$0xff]
      %v4479 = vld [vmem:[%s227 + $0x106] sm:$0xff]
      %v4480 = vld [vmem:[%s227 + $0x10e] sm:$0xff]
      %v4481 = vld [vmem:[%s227 + $0x116] sm:$0xff]
      %v4482 = vld [vmem:[%s227 + $0x11e] sm:$0xff]
      %v4483 = vld [vmem:[%s227 + $0x126] sm:$0xff]
      %v4484 = vld [vmem:[%s227 + $0x12e] sm:$0xff]
      %v4485 = vld [vmem:[%s227 + $0x136] sm:$0xff]
      %v4486 = vld [vmem:[%s227 + $0x13e] sm:$0xff]
      %v4487 = vld [vmem:[%s227 + $0x146] sm:$0xff]
      %v4488 = vld [vmem:[%s227 + $0x14e] sm:$0xff]
      %v4489 = vld [vmem:[%s227 + $0x156] sm:$0xff]
      %v4490 = vld [vmem:[%s227 + $0x15e] sm:$0xff]
      %s4491 = scalar_lea.vmem %s3, 36
      %v4492 = vld [vmem:[%s4491] sm:$0xf]
      %v4494 = vsel %vm304, %v4459, 0
      %v4497 = vsel %vm304, %v4460, 0
      %v4500 = vsel %vm304, %v4461, 0
      %v4503 = vsel %vm304, %v4462, 0
      %v4506 = vsel %vm304, %v4463, 0
      %v4509 = vsel %vm304, %v4464, 0
      %v4512 = vsel %vm304, %v4465, 0
      %v4515 = vsel %vm304, %v4466, 0
      %v4518 = vsel %vm304, %v4467, 0
      %v4521 = vsel %vm304, %v4468, 0
      %v4524 = vsel %vm304, %v4469, 0
      %v4527 = vsel %vm304, %v4470, 0
      %v4530 = vsel %vm304, %v4471, 0
      %v4533 = vsel %vm304, %v4472, 0
      %v4536 = vsel %vm304, %v4473, 0
      %v4539 = vsel %vm304, %v4474, 0
      %v4542 = vsel %vm304, %v4475, 0
      %v4545 = vsel %vm304, %v4476, 0
      %v4548 = vsel %vm304, %v4477, 0
      %v4551 = vsel %vm304, %v4478, 0
      %v4554 = vsel %vm304, %v4479, 0
      %v4557 = vsel %vm304, %v4480, 0
      %v4560 = vsel %vm304, %v4481, 0
      %v4563 = vsel %vm304, %v4482, 0
      %v4566 = vsel %vm304, %v4483, 0
      %v4569 = vsel %vm304, %v4484, 0
      %v4572 = vsel %vm304, %v4485, 0
      %v4575 = vsel %vm304, %v4486, 0
      %v4578 = vsel %vm304, %v4487, 0
      %v4581 = vsel %vm304, %v4488, 0
      %v4584 = vsel %vm304, %v4489, 0
      %v4587 = vsel %vm304, %v4490, 0
      %v4590 = vsel %vm401, %v4492, 0
      %4592 = vmatprep.subr.mxu0 0.0
      %4593 = vmatpush1.msra.mxu0 %v4590
      %4594 = vmatprep.subr.mxu0 0.0
      %4595 = vmatpush1.msra.mxu0 0.0
      %4596 = vmatprep.subr.mxu0 0.0
      %4597 = vmatpush1.msra.mxu0 0.0
      %4598 = vmatprep.subr.mxu0 0.0
      %4599 = vmatpush1.msra.mxu0 0.0
      %4600 = vmatprep.subr.mxu0 0.0
      %4601 = vmatpush1.msra.mxu0 0.0
      %4602 = vmatprep.subr.mxu0 0.0
      %4603 = vmatpush1.msra.mxu0 0.0
      %4604 = vmatprep.subr.mxu0 0.0
      %4605 = vmatpush1.msra.mxu0 0.0
      %4606 = vmatprep.subr.mxu0 0.0
      %4607 = vmatpush1.msra.mxu0 0.0
      %4608 = vmatprep.subr.mxu0 0.0
      %4609 = vmatpush1.msra.mxu0 0.0
      %4610 = vmatprep.subr.mxu0 0.0
      %4611 = vmatpush1.msra.mxu0 0.0
      %4612 = vmatprep.subr.mxu0 0.0
      %4613 = vmatpush1.msra.mxu0 0.0
      %4614 = vmatprep.subr.mxu0 0.0
      %4615 = vmatpush1.msra.mxu0 0.0
      %4616 = vmatprep.subr.mxu0 0.0
      %4617 = vmatpush1.msra.mxu0 0.0
      %4618 = vmatprep.subr.mxu0 0.0
      %4619 = vmatpush1.msra.mxu0 0.0
      %4620 = vmatprep.subr.mxu0 0.0
      %4621 = vmatpush1.msra.mxu0 0.0
      %4622 = vmatprep.subr.mxu0 0.0
      %4623 = vmatpush1.msra.mxu0 0.0
      %4624 = vmatprep.subr.mxu0 0.0
      %4625 = vmatpush1.msra.mxu0 0.0
      %4626 = vmatprep.subr.mxu0 0.0
      %4627 = vmatpush1.msra.mxu0 0.0
      %4628 = vmatprep.subr.mxu0 0.0
      %4629 = vmatpush1.msra.mxu0 0.0
      %4630 = vmatprep.subr.mxu0 0.0
      %4631 = vmatpush1.msra.mxu0 0.0
      %4632 = vmatprep.subr.mxu0 0.0
      %4633 = vmatpush1.msra.mxu0 0.0
      %4634 = vmatprep.subr.mxu0 0.0
      %4635 = vmatpush1.msra.mxu0 0.0
      %4636 = vmatprep.subr.mxu0 0.0
      %4637 = vmatpush1.msra.mxu0 0.0
      %4638 = vmatprep.subr.mxu0 0.0
      %4639 = vmatpush1.msra.mxu0 0.0
      %4640 = vmatprep.subr.mxu0 0.0
      %4641 = vmatpush1.msra.mxu0 0.0
      %4642 = vmatprep.subr.mxu0 0.0
      %4643 = vmatpush1.msra.mxu0 0.0
      %4644 = vmatprep.subr.mxu0 0.0
      %4645 = vmatpush1.msra.mxu0 0.0
      %4646 = vmatprep.subr.mxu0 0.0
      %4647 = vmatpush1.msra.mxu0 0.0
      %4648 = vmatprep.subr.mxu0 0.0
      %4649 = vmatpush1.msra.mxu0 0.0
      %4650 = vmatprep.subr.mxu0 0.0
      %4651 = vmatpush1.msra.mxu0 0.0
      %4652 = vmatprep.subr.mxu0 0.0
      %4653 = vmatpush1.msra.mxu0 0.0
      %4654 = vmatprep.subr.mxu0 0.0
      %4655 = vmatpush1.msra.mxu0 0.0
      %4656 = vmatprep.mubr.f32.mxu0 0.0
      %4657 = vmatmul.mubr.f32.gmra.mrb[0].mxu0 %v4494
      %v4658 = vpop.f32.mrb[0].mxu0
      %v4659 = vadd.f32 0.0, %v4658
      %v4660 = vpop.f32.mrb[0].mxu0
      %4661 = vmatprep.mubr.f32.mxu0 0.0
      %4662 = vmatmul.mubr.f32.gmra.mrb[0].mxu0 %v4497
      %v4663 = vpop.f32.mrb[0].mxu0
      %v4664 = vadd.f32 0.0, %v4663
      %v4665 = vpop.f32.mrb[0].mxu0
      %4666 = vmatprep.mubr.f32.mxu0 0.0
      %4667 = vmatmul.mubr.f32.gmra.mrb[0].mxu0 %v4500
      %v4668 = vpop.f32.mrb[0].mxu0
      %v4669 = vadd.f32 0.0, %v4668
      %v4670 = vpop.f32.mrb[0].mxu0
      %4671 = vmatprep.mubr.f32.mxu0 0.0
      %4672 = vmatmul.mubr.f32.gmra.mrb[0].mxu0 %v4503
      %v4673 = vpop.f32.mrb[0].mxu0
      %v4674 = vadd.f32 0.0, %v4673
      %v4675 = vpop.f32.mrb[0].mxu0
      %4676 = vmatprep.mubr.f32.mxu0 0.0
      %4677 = vmatmul.mubr.f32.gmra.mrb[0].mxu0 %v4506
      %v4678 = vpop.f32.mrb[0].mxu0
      %v4679 = vadd.f32 0.0, %v4678
      %v4680 = vpop.f32.mrb[0].mxu0
      %4681 = vmatprep.mubr.f32.mxu0 0.0
      %4682 = vmatmul.mubr.f32.gmra.mrb[0].mxu0 %v4509
      %v4683 = vpop.f32.mrb[0].mxu0
      %v4684 = vadd.f32 0.0, %v4683
      %v4685 = vpop.f32.mrb[0].mxu0
      %4686 = vmatprep.mubr.f32.mxu0 0.0
      %4687 = vmatmul.mubr.f32.gmra.mrb[0].mxu0 %v4512
      %v4688 = vpop.f32.mrb[0].mxu0
      %v4689 = vadd.f32 0.0, %v4688
      %v4690 = vpop.f32.mrb[0].mxu0
      %4691 = vmatprep.mubr.f32.mxu0 0.0
      %4692 = vmatmul.mubr.f32.gmra.mrb[0].mxu0 %v4515
      %v4693 = vpop.f32.mrb[0].mxu0
      %v4694 = vadd.f32 0.0, %v4693
      %v4695 = vpop.f32.mrb[0].mxu0
      %4696 = vmatprep.mubr.f32.mxu0 0.0
      %4697 = vmatmul.mubr.f32.gmra.mrb[0].mxu0 %v4518
      %v4698 = vpop.f32.mrb[0].mxu0
      %v4699 = vadd.f32 0.0, %v4698
      %v4700 = vpop.f32.mrb[0].mxu0
      %4701 = vmatprep.mubr.f32.mxu0 0.0
      %4702 = vmatmul.mubr.f32.gmra.mrb[0].mxu0 %v4521
      %v4703 = vpop.f32.mrb[0].mxu0
      %v4704 = vadd.f32 0.0, %v4703
      %v4705 = vpop.f32.mrb[0].mxu0
      %4706 = vmatprep.mubr.f32.mxu0 0.0
      %4707 = vmatmul.mubr.f32.gmra.mrb[0].mxu0 %v4524
      %v4708 = vpop.f32.mrb[0].mxu0
      %v4709 = vadd.f32 0.0, %v4708
      %v4710 = vpop.f32.mrb[0].mxu0
      %4711 = vmatprep.mubr.f32.mxu0 0.0
      %4712 = vmatmul.mubr.f32.gmra.mrb[0].mxu0 %v4527
      %v4713 = vpop.f32.mrb[0].mxu0
      %v4714 = vadd.f32 0.0, %v4713
      %v4715 = vpop.f32.mrb[0].mxu0
      %4716 = vmatprep.mubr.f32.mxu0 0.0
      %4717 = vmatmul.mubr.f32.gmra.mrb[0].mxu0 %v4530
      %v4718 = vpop.f32.mrb[0].mxu0
      %v4719 = vadd.f32 0.0, %v4718
      %v4720 = vpop.f32.mrb[0].mxu0
      %4721 = vmatprep.mubr.f32.mxu0 0.0
      %4722 = vmatmul.mubr.f32.gmra.mrb[0].mxu0 %v4533
      %v4723 = vpop.f32.mrb[0].mxu0
      %v4724 = vadd.f32 0.0, %v4723
      %v4725 = vpop.f32.mrb[0].mxu0
      %4726 = vmatprep.mubr.f32.mxu0 0.0
      %4727 = vmatmul.mubr.f32.gmra.mrb[0].mxu0 %v4536
      %v4728 = vpop.f32.mrb[0].mxu0
      %v4729 = vadd.f32 0.0, %v4728
      %v4730 = vpop.f32.mrb[0].mxu0
      %4731 = vmatprep.mubr.f32.mxu0 0.0
      %4732 = vmatmul.mubr.f32.gmra.mrb[0].mxu0 %v4539
      %v4733 = vpop.f32.mrb[0].mxu0
      %v4734 = vadd.f32 0.0, %v4733
      %v4735 = vpop.f32.mrb[0].mxu0
      %4736 = vmatprep.mubr.f32.mxu0 0.0
      %4737 = vmatmul.mubr.f32.gmra.mrb[0].mxu0 %v4542
      %v4738 = vpop.f32.mrb[0].mxu0
      %v4739 = vadd.f32 0.0, %v4738
      %v4740 = vpop.f32.mrb[0].mxu0
      %4741 = vmatprep.mubr.f32.mxu0 0.0
      %4742 = vmatmul.mubr.f32.gmra.mrb[0].mxu0 %v4545
      %v4743 = vpop.f32.mrb[0].mxu0
      %v4744 = vadd.f32 0.0, %v4743
      %v4745 = vpop.f32.mrb[0].mxu0
      %4746 = vmatprep.mubr.f32.mxu0 0.0
      %4747 = vmatmul.mubr.f32.gmra.mrb[0].mxu0 %v4548
      %v4748 = vpop.f32.mrb[0].mxu0
      %v4749 = vadd.f32 0.0, %v4748
      %v4750 = vpop.f32.mrb[0].mxu0
      %4751 = vmatprep.mubr.f32.mxu0 0.0
      %4752 = vmatmul.mubr.f32.gmra.mrb[0].mxu0 %v4551
      %v4753 = vpop.f32.mrb[0].mxu0
      %v4754 = vadd.f32 0.0, %v4753
      %v4755 = vpop.f32.mrb[0].mxu0
      %4756 = vmatprep.mubr.f32.mxu0 0.0
      %4757 = vmatmul.mubr.f32.gmra.mrb[0].mxu0 %v4554
      %v4758 = vpop.f32.mrb[0].mxu0
      %v4759 = vadd.f32 0.0, %v4758
      %v4760 = vpop.f32.mrb[0].mxu0
      %4761 = vmatprep.mubr.f32.mxu0 0.0
      %4762 = vmatmul.mubr.f32.gmra.mrb[0].mxu0 %v4557
      %v4763 = vpop.f32.mrb[0].mxu0
      %v4764 = vadd.f32 0.0, %v4763
      %v4765 = vpop.f32.mrb[0].mxu0
      %4766 = vmatprep.mubr.f32.mxu0 0.0
      %4767 = vmatmul.mubr.f32.gmra.mrb[0].mxu0 %v4560
      %v4768 = vpop.f32.mrb[0].mxu0
      %v4769 = vadd.f32 0.0, %v4768
      %v4770 = vpop.f32.mrb[0].mxu0
      %4771 = vmatprep.mubr.f32.mxu0 0.0
      %4772 = vmatmul.mubr.f32.gmra.mrb[0].mxu0 %v4563
      %v4773 = vpop.f32.mrb[0].mxu0
      %v4774 = vadd.f32 0.0, %v4773
      %v4775 = vpop.f32.mrb[0].mxu0
      %4776 = vmatprep.mubr.f32.mxu0 0.0
      %4777 = vmatmul.mubr.f32.gmra.mrb[0].mxu0 %v4566
      %v4778 = vpop.f32.mrb[0].mxu0
      %v4779 = vadd.f32 0.0, %v4778
      %v4780 = vpop.f32.mrb[0].mxu0
      %4781 = vmatprep.mubr.f32.mxu0 0.0
      %4782 = vmatmul.mubr.f32.gmra.mrb[0].mxu0 %v4569
      %v4783 = vpop.f32.mrb[0].mxu0
      %v4784 = vadd.f32 0.0, %v4783
      %v4785 = vpop.f32.mrb[0].mxu0
      %4786 = vmatprep.mubr.f32.mxu0 0.0
      %4787 = vmatmul.mubr.f32.gmra.mrb[0].mxu0 %v4572
      %v4788 = vpop.f32.mrb[0].mxu0
      %v4789 = vadd.f32 0.0, %v4788
      %v4790 = vpop.f32.mrb[0].mxu0
      %4791 = vmatprep.mubr.f32.mxu0 0.0
      %4792 = vmatmul.mubr.f32.gmra.mrb[0].mxu0 %v4575
      %v4793 = vpop.f32.mrb[0].mxu0
      %v4794 = vadd.f32 0.0, %v4793
      %v4795 = vpop.f32.mrb[0].mxu0
      %4796 = vmatprep.mubr.f32.mxu0 0.0
      %4797 = vmatmul.mubr.f32.gmra.mrb[0].mxu0 %v4578
      %v4798 = vpop.f32.mrb[0].mxu0
      %v4799 = vadd.f32 0.0, %v4798
      %v4800 = vpop.f32.mrb[0].mxu0
      %4801 = vmatprep.mubr.f32.mxu0 0.0
      %4802 = vmatmul.mubr.f32.gmra.mrb[0].mxu0 %v4581
      %v4803 = vpop.f32.mrb[0].mxu0
      %v4804 = vadd.f32 0.0, %v4803
      %v4805 = vpop.f32.mrb[0].mxu0
      %4806 = vmatprep.mubr.f32.mxu0 0.0
      %4807 = vmatmul.mubr.f32.gmra.mrb[0].mxu0 %v4584
      %v4808 = vpop.f32.mrb[0].mxu0
      %v4809 = vadd.f32 0.0, %v4808
      %v4810 = vpop.f32.mrb[0].mxu0
      %4811 = vmatprep.mubr.f32.mxu0 0.0
      %4812 = vmatmul.mubr.f32.gmra.mrb[0].mxu0 %v4587
      %v4813 = vpop.f32.mrb[0].mxu0
      %v4814 = vadd.f32 0.0, %v4813
      %v4815 = vpop.f32.mrb[0].mxu0
      %4816 = vdwg.mxu0
      %4817 = vset.pattern.permute.xlu0 2
      %4818 = vperm.xlu0 %4817, %v239
      %v4819 = vpop.permute.xlu0 %4818
      %4821 = vset.pattern.permute.xlu0 2
      %4822 = vperm.xlu0 %4821, %v240
      %v4823 = vpop.permute.xlu0 %4822
      %4825 = vset.pattern.permute.xlu0 2
      %4826 = vperm.xlu0 %4825, %v241
      %v4827 = vpop.permute.xlu0 %4826
      %4829 = vset.pattern.permute.xlu0 2
      %4830 = vperm.xlu0 %4829, %v242
      %v4831 = vpop.permute.xlu0 %4830
      %4833 = vset.pattern.permute.xlu0 2
      %4834 = vperm.xlu0 %4833, %v243
      %v4835 = vpop.permute.xlu0 %4834
      %4837 = vset.pattern.permute.xlu0 2
      %4838 = vperm.xlu0 %4837, %v244
      %v4839 = vpop.permute.xlu0 %4838
      %4841 = vset.pattern.permute.xlu0 2
      %4842 = vperm.xlu0 %4841, %v245
      %v4843 = vpop.permute.xlu0 %4842
      %4845 = vset.pattern.permute.xlu0 2
      %4846 = vperm.xlu0 %4845, %v246
      %v4847 = vpop.permute.xlu0 %4846
      %4849 = vset.pattern.permute.xlu0 2
      %4850 = vperm.xlu0 %4849, %v247
      %v4851 = vpop.permute.xlu0 %4850
      %4853 = vset.pattern.permute.xlu0 2
      %4854 = vperm.xlu0 %4853, %v248
      %v4855 = vpop.permute.xlu0 %4854
      %4857 = vset.pattern.permute.xlu0 2
      %4858 = vperm.xlu0 %4857, %v249
      %v4859 = vpop.permute.xlu0 %4858
      %4861 = vset.pattern.permute.xlu0 2
      %4862 = vperm.xlu0 %4861, %v250
      %v4863 = vpop.permute.xlu0 %4862
      %4865 = vset.pattern.permute.xlu0 2
      %4866 = vperm.xlu0 %4865, %v251
      %v4867 = vpop.permute.xlu0 %4866
      %4869 = vset.pattern.permute.xlu0 2
      %4870 = vperm.xlu0 %4869, %v252
      %v4871 = vpop.permute.xlu0 %4870
      %4873 = vset.pattern.permute.xlu0 2
      %4874 = vperm.xlu0 %4873, %v253
      %v4875 = vpop.permute.xlu0 %4874
      %4877 = vset.pattern.permute.xlu0 2
      %4878 = vperm.xlu0 %4877, %v254
      %v4879 = vpop.permute.xlu0 %4878
      %4881 = vset.pattern.permute.xlu0 2
      %4882 = vperm.xlu0 %4881, %v255
      %v4883 = vpop.permute.xlu0 %4882
      %4885 = vset.pattern.permute.xlu0 2
      %4886 = vperm.xlu0 %4885, %v256
      %v4887 = vpop.permute.xlu0 %4886
      %4889 = vset.pattern.permute.xlu0 2
      %4890 = vperm.xlu0 %4889, %v257
      %v4891 = vpop.permute.xlu0 %4890
      %4893 = vset.pattern.permute.xlu0 2
      %4894 = vperm.xlu0 %4893, %v258
      %v4895 = vpop.permute.xlu0 %4894
      %4897 = vset.pattern.permute.xlu0 2
      %4898 = vperm.xlu0 %4897, %v259
      %v4899 = vpop.permute.xlu0 %4898
      %4901 = vset.pattern.permute.xlu0 2
      %4902 = vperm.xlu0 %4901, %v260
      %v4903 = vpop.permute.xlu0 %4902
      %4905 = vset.pattern.permute.xlu0 2
      %4906 = vperm.xlu0 %4905, %v261
      %v4907 = vpop.permute.xlu0 %4906
      %4909 = vset.pattern.permute.xlu0 2
      %4910 = vperm.xlu0 %4909, %v262
      %v4911 = vpop.permute.xlu0 %4910
      %4913 = vset.pattern.permute.xlu0 2
      %4914 = vperm.xlu0 %4913, %v263
      %v4915 = vpop.permute.xlu0 %4914
      %4917 = vset.pattern.permute.xlu0 2
      %4918 = vperm.xlu0 %4917, %v264
      %v4919 = vpop.permute.xlu0 %4918
      %4921 = vset.pattern.permute.xlu0 2
      %4922 = vperm.xlu0 %4921, %v265
      %v4923 = vpop.permute.xlu0 %4922
      %4925 = vset.pattern.permute.xlu0 2
      %4926 = vperm.xlu0 %4925, %v266
      %v4927 = vpop.permute.xlu0 %4926
      %4929 = vset.pattern.permute.xlu0 2
      %4930 = vperm.xlu0 %4929, %v267
      %v4931 = vpop.permute.xlu0 %4930
      %4933 = vset.pattern.permute.xlu0 2
      %4934 = vperm.xlu0 %4933, %v268
      %v4935 = vpop.permute.xlu0 %4934
      %4937 = vset.pattern.permute.xlu0 2
      %4938 = vperm.xlu0 %4937, %v269
      %v4939 = vpop.permute.xlu0 %4938
      %4941 = vset.pattern.permute.xlu0 2
      %4942 = vperm.xlu0 %4941, %v270
      %v4943 = vpop.permute.xlu0 %4942
      %v4945 = vmul.f32 %v4659, %v4819
      %v4946 = vmul.f32 %v4664, %v4823
      %v4947 = vmul.f32 %v4669, %v4827
      %v4948 = vmul.f32 %v4674, %v4831
      %v4949 = vmul.f32 %v4679, %v4835
      %v4950 = vmul.f32 %v4684, %v4839
      %v4951 = vmul.f32 %v4689, %v4843
      %v4952 = vmul.f32 %v4694, %v4847
      %v4953 = vmul.f32 %v4699, %v4851
      %v4954 = vmul.f32 %v4704, %v4855
      %v4955 = vmul.f32 %v4709, %v4859
      %v4956 = vmul.f32 %v4714, %v4863
      %v4957 = vmul.f32 %v4719, %v4867
      %v4958 = vmul.f32 %v4724, %v4871
      %v4959 = vmul.f32 %v4729, %v4875
      %v4960 = vmul.f32 %v4734, %v4879
      %v4961 = vmul.f32 %v4739, %v4883
      %v4962 = vmul.f32 %v4744, %v4887
      %v4963 = vmul.f32 %v4749, %v4891
      %v4964 = vmul.f32 %v4754, %v4895
      %v4965 = vmul.f32 %v4759, %v4899
      %v4966 = vmul.f32 %v4764, %v4903
      %v4967 = vmul.f32 %v4769, %v4907
      %v4968 = vmul.f32 %v4774, %v4911
      %v4969 = vmul.f32 %v4779, %v4915
      %v4970 = vmul.f32 %v4784, %v4919
      %v4971 = vmul.f32 %v4789, %v4923
      %v4972 = vmul.f32 %v4794, %v4927
      %v4973 = vmul.f32 %v4799, %v4931
      %v4974 = vmul.f32 %v4804, %v4935
      %v4975 = vmul.f32 %v4809, %v4939
      %v4976 = vmul.f32 %v4814, %v4943
      %v4977 = vld [vmem:[%s227 + $0x72] sm:$0xff]
      %v4978 = vld [vmem:[%s227 + $0x7a] sm:$0xff]
      %v4979 = vld [vmem:[%s227 + $0x82] sm:$0xff]
      %v4980 = vld [vmem:[%s227 + $0x8a] sm:$0xff]
      %v4981 = vld [vmem:[%s227 + $0x92] sm:$0xff]
      %v4982 = vld [vmem:[%s227 + $0x9a] sm:$0xff]
      %v4983 = vld [vmem:[%s227 + $0xa2] sm:$0xff]
      %v4984 = vld [vmem:[%s227 + $0xaa] sm:$0xff]
      %v4985 = vld [vmem:[%s227 + $0xb2] sm:$0xff]
      %v4986 = vld [vmem:[%s227 + $0xba] sm:$0xff]
      %v4987 = vld [vmem:[%s227 + $0xc2] sm:$0xff]
      %v4988 = vld [vmem:[%s227 + $0xca] sm:$0xff]
      %v4989 = vld [vmem:[%s227 + $0xd2] sm:$0xff]
      %v4990 = vld [vmem:[%s227 + $0xda] sm:$0xff]
      %v4991 = vld [vmem:[%s227 + $0xe2] sm:$0xff]
      %v4992 = vld [vmem:[%s227 + $0xea] sm:$0xff]
      %v4993 = vld [vmem:[%s227 + $0xf2] sm:$0xff]
      %v4994 = vld [vmem:[%s227 + $0xfa] sm:$0xff]
      %v4995 = vld [vmem:[%s227 + $0x102] sm:$0xff]
      %v4996 = vld [vmem:[%s227 + $0x10a] sm:$0xff]
      %v4997 = vld [vmem:[%s227 + $0x112] sm:$0xff]
      %v4998 = vld [vmem:[%s227 + $0x11a] sm:$0xff]
      %v4999 = vld [vmem:[%s227 + $0x122] sm:$0xff]
      %v5000 = vld [vmem:[%s227 + $0x12a] sm:$0xff]
      %v5001 = vld [vmem:[%s227 + $0x132] sm:$0xff]
      %v5002 = vld [vmem:[%s227 + $0x13a] sm:$0xff]
      %v5003 = vld [vmem:[%s227 + $0x142] sm:$0xff]
      %v5004 = vld [vmem:[%s227 + $0x14a] sm:$0xff]
      %v5005 = vld [vmem:[%s227 + $0x152] sm:$0xff]
      %v5006 = vld [vmem:[%s227 + $0x15a] sm:$0xff]
      %v5007 = vld [vmem:[%s227 + $0x162] sm:$0xff]
      %v5008 = vld [vmem:[%s227 + $0x16a] sm:$0xff]
      %s5009 = scalar_lea.vmem %s3, 40
      %v5010 = vld [vmem:[%s5009] sm:$0xf]
      %v5012 = vsel %vm304, %v4977, 0
      %v5015 = vsel %vm304, %v4978, 0
      %v5018 = vsel %vm304, %v4979, 0
      %v5021 = vsel %vm304, %v4980, 0
      %v5024 = vsel %vm304, %v4981, 0
      %v5027 = vsel %vm304, %v4982, 0
      %v5030 = vsel %vm304, %v4983, 0
      %v5033 = vsel %vm304, %v4984, 0
      %v5036 = vsel %vm304, %v4985, 0
      %v5039 = vsel %vm304, %v4986, 0
      %v5042 = vsel %vm304, %v4987, 0
      %v5045 = vsel %vm304, %v4988, 0
      %v5048 = vsel %vm304, %v4989, 0
      %v5051 = vsel %vm304, %v4990, 0
      %v5054 = vsel %vm304, %v4991, 0
      %v5057 = vsel %vm304, %v4992, 0
      %v5060 = vsel %vm304, %v4993, 0
      %v5063 = vsel %vm304, %v4994, 0
      %v5066 = vsel %vm304, %v4995, 0
      %v5069 = vsel %vm304, %v4996, 0
      %v5072 = vsel %vm304, %v4997, 0
      %v5075 = vsel %vm304, %v4998, 0
      %v5078 = vsel %vm304, %v4999, 0
      %v5081 = vsel %vm304, %v5000, 0
      %v5084 = vsel %vm304, %v5001, 0
      %v5087 = vsel %vm304, %v5002, 0
      %v5090 = vsel %vm304, %v5003, 0
      %v5093 = vsel %vm304, %v5004, 0
      %v5096 = vsel %vm304, %v5005, 0
      %v5099 = vsel %vm304, %v5006, 0
      %v5102 = vsel %vm304, %v5007, 0
      %v5105 = vsel %vm304, %v5008, 0
      %v5108 = vsel %vm401, %v5010, 0
      %5110 = vmatprep.subr.mxu0 0.0
      %5111 = vmatpush1.msra.mxu0 %v5108
      %5112 = vmatprep.subr.mxu0 0.0
      %5113 = vmatpush1.msra.mxu0 0.0
      %5114 = vmatprep.subr.mxu0 0.0
      %5115 = vmatpush1.msra.mxu0 0.0
      %5116 = vmatprep.subr.mxu0 0.0
      %5117 = vmatpush1.msra.mxu0 0.0
      %5118 = vmatprep.subr.mxu0 0.0
      %5119 = vmatpush1.msra.mxu0 0.0
      %5120 = vmatprep.subr.mxu0 0.0
      %5121 = vmatpush1.msra.mxu0 0.0
      %5122 = vmatprep.subr.mxu0 0.0
      %5123 = vmatpush1.msra.mxu0 0.0
      %5124 = vmatprep.subr.mxu0 0.0
      %5125 = vmatpush1.msra.mxu0 0.0
      %5126 = vmatprep.subr.mxu0 0.0
      %5127 = vmatpush1.msra.mxu0 0.0
      %5128 = vmatprep.subr.mxu0 0.0
      %5129 = vmatpush1.msra.mxu0 0.0
      %5130 = vmatprep.subr.mxu0 0.0
      %5131 = vmatpush1.msra.mxu0 0.0
      %5132 = vmatprep.subr.mxu0 0.0
      %5133 = vmatpush1.msra.mxu0 0.0
      %5134 = vmatprep.subr.mxu0 0.0
      %5135 = vmatpush1.msra.mxu0 0.0
      %5136 = vmatprep.subr.mxu0 0.0
      %5137 = vmatpush1.msra.mxu0 0.0
      %5138 = vmatprep.subr.mxu0 0.0
      %5139 = vmatpush1.msra.mxu0 0.0
      %5140 = vmatprep.subr.mxu0 0.0
      %5141 = vmatpush1.msra.mxu0 0.0
      %5142 = vmatprep.subr.mxu0 0.0
      %5143 = vmatpush1.msra.mxu0 0.0
      %5144 = vmatprep.subr.mxu0 0.0
      %5145 = vmatpush1.msra.mxu0 0.0
      %5146 = vmatprep.subr.mxu0 0.0
      %5147 = vmatpush1.msra.mxu0 0.0
      %5148 = vmatprep.subr.mxu0 0.0
      %5149 = vmatpush1.msra.mxu0 0.0
      %5150 = vmatprep.subr.mxu0 0.0
      %5151 = vmatpush1.msra.mxu0 0.0
      %5152 = vmatprep.subr.mxu0 0.0
      %5153 = vmatpush1.msra.mxu0 0.0
      %5154 = vmatprep.subr.mxu0 0.0
      %5155 = vmatpush1.msra.mxu0 0.0
      %5156 = vmatprep.subr.mxu0 0.0
      %5157 = vmatpush1.msra.mxu0 0.0
      %5158 = vmatprep.subr.mxu0 0.0
      %5159 = vmatpush1.msra.mxu0 0.0
      %5160 = vmatprep.subr.mxu0 0.0
      %5161 = vmatpush1.msra.mxu0 0.0
      %5162 = vmatprep.subr.mxu0 0.0
      %5163 = vmatpush1.msra.mxu0 0.0
      %5164 = vmatprep.subr.mxu0 0.0
      %5165 = vmatpush1.msra.mxu0 0.0
      %5166 = vmatprep.subr.mxu0 0.0
      %5167 = vmatpush1.msra.mxu0 0.0
      %5168 = vmatprep.subr.mxu0 0.0
      %5169 = vmatpush1.msra.mxu0 0.0
      %5170 = vmatprep.subr.mxu0 0.0
      %5171 = vmatpush1.msra.mxu0 0.0
      %5172 = vmatprep.subr.mxu0 0.0
      %5173 = vmatpush1.msra.mxu0 0.0
      %5174 = vmatprep.mubr.f32.mxu0 0.0
      %5175 = vmatmul.mubr.f32.gmra.mrb[0].mxu0 %v5012
      %v5176 = vpop.f32.mrb[0].mxu0
      %v5177 = vadd.f32 0.0, %v5176
      %v5178 = vpop.f32.mrb[0].mxu0
      %5179 = vmatprep.mubr.f32.mxu0 0.0
      %5180 = vmatmul.mubr.f32.gmra.mrb[0].mxu0 %v5015
      %v5181 = vpop.f32.mrb[0].mxu0
      %v5182 = vadd.f32 0.0, %v5181
      %v5183 = vpop.f32.mrb[0].mxu0
      %5184 = vmatprep.mubr.f32.mxu0 0.0
      %5185 = vmatmul.mubr.f32.gmra.mrb[0].mxu0 %v5018
      %v5186 = vpop.f32.mrb[0].mxu0
      %v5187 = vadd.f32 0.0, %v5186
      %v5188 = vpop.f32.mrb[0].mxu0
      %5189 = vmatprep.mubr.f32.mxu0 0.0
      %5190 = vmatmul.mubr.f32.gmra.mrb[0].mxu0 %v5021
      %v5191 = vpop.f32.mrb[0].mxu0
      %v5192 = vadd.f32 0.0, %v5191
      %v5193 = vpop.f32.mrb[0].mxu0
      %5194 = vmatprep.mubr.f32.mxu0 0.0
      %5195 = vmatmul.mubr.f32.gmra.mrb[0].mxu0 %v5024
      %v5196 = vpop.f32.mrb[0].mxu0
      %v5197 = vadd.f32 0.0, %v5196
      %v5198 = vpop.f32.mrb[0].mxu0
      %5199 = vmatprep.mubr.f32.mxu0 0.0
      %5200 = vmatmul.mubr.f32.gmra.mrb[0].mxu0 %v5027
      %v5201 = vpop.f32.mrb[0].mxu0
      %v5202 = vadd.f32 0.0, %v5201
      %v5203 = vpop.f32.mrb[0].mxu0
      %5204 = vmatprep.mubr.f32.mxu0 0.0
      %5205 = vmatmul.mubr.f32.gmra.mrb[0].mxu0 %v5030
      %v5206 = vpop.f32.mrb[0].mxu0
      %v5207 = vadd.f32 0.0, %v5206
      %v5208 = vpop.f32.mrb[0].mxu0
      %5209 = vmatprep.mubr.f32.mxu0 0.0
      %5210 = vmatmul.mubr.f32.gmra.mrb[0].mxu0 %v5033
      %v5211 = vpop.f32.mrb[0].mxu0
      %v5212 = vadd.f32 0.0, %v5211
      %v5213 = vpop.f32.mrb[0].mxu0
      %5214 = vmatprep.mubr.f32.mxu0 0.0
      %5215 = vmatmul.mubr.f32.gmra.mrb[0].mxu0 %v5036
      %v5216 = vpop.f32.mrb[0].mxu0
      %v5217 = vadd.f32 0.0, %v5216
      %v5218 = vpop.f32.mrb[0].mxu0
      %5219 = vmatprep.mubr.f32.mxu0 0.0
      %5220 = vmatmul.mubr.f32.gmra.mrb[0].mxu0 %v5039
      %v5221 = vpop.f32.mrb[0].mxu0
      %v5222 = vadd.f32 0.0, %v5221
      %v5223 = vpop.f32.mrb[0].mxu0
      %5224 = vmatprep.mubr.f32.mxu0 0.0
      %5225 = vmatmul.mubr.f32.gmra.mrb[0].mxu0 %v5042
      %v5226 = vpop.f32.mrb[0].mxu0
      %v5227 = vadd.f32 0.0, %v5226
      %v5228 = vpop.f32.mrb[0].mxu0
      %5229 = vmatprep.mubr.f32.mxu0 0.0
      %5230 = vmatmul.mubr.f32.gmra.mrb[0].mxu0 %v5045
      %v5231 = vpop.f32.mrb[0].mxu0
      %v5232 = vadd.f32 0.0, %v5231
      %v5233 = vpop.f32.mrb[0].mxu0
      %5234 = vmatprep.mubr.f32.mxu0 0.0
      %5235 = vmatmul.mubr.f32.gmra.mrb[0].mxu0 %v5048
      %v5236 = vpop.f32.mrb[0].mxu0
      %v5237 = vadd.f32 0.0, %v5236
      %v5238 = vpop.f32.mrb[0].mxu0
      %5239 = vmatprep.mubr.f32.mxu0 0.0
      %5240 = vmatmul.mubr.f32.gmra.mrb[0].mxu0 %v5051
      %v5241 = vpop.f32.mrb[0].mxu0
      %v5242 = vadd.f32 0.0, %v5241
      %v5243 = vpop.f32.mrb[0].mxu0
      %5244 = vmatprep.mubr.f32.mxu0 0.0
      %5245 = vmatmul.mubr.f32.gmra.mrb[0].mxu0 %v5054
      %v5246 = vpop.f32.mrb[0].mxu0
      %v5247 = vadd.f32 0.0, %v5246
      %v5248 = vpop.f32.mrb[0].mxu0
      %5249 = vmatprep.mubr.f32.mxu0 0.0
      %5250 = vmatmul.mubr.f32.gmra.mrb[0].mxu0 %v5057
      %v5251 = vpop.f32.mrb[0].mxu0
      %v5252 = vadd.f32 0.0, %v5251
      %v5253 = vpop.f32.mrb[0].mxu0
      %5254 = vmatprep.mubr.f32.mxu0 0.0
      %5255 = vmatmul.mubr.f32.gmra.mrb[0].mxu0 %v5060
      %v5256 = vpop.f32.mrb[0].mxu0
      %v5257 = vadd.f32 0.0, %v5256
      %v5258 = vpop.f32.mrb[0].mxu0
      %5259 = vmatprep.mubr.f32.mxu0 0.0
      %5260 = vmatmul.mubr.f32.gmra.mrb[0].mxu0 %v5063
      %v5261 = vpop.f32.mrb[0].mxu0
      %v5262 = vadd.f32 0.0, %v5261
      %v5263 = vpop.f32.mrb[0].mxu0
      %5264 = vmatprep.mubr.f32.mxu0 0.0
      %5265 = vmatmul.mubr.f32.gmra.mrb[0].mxu0 %v5066
      %v5266 = vpop.f32.mrb[0].mxu0
      %v5267 = vadd.f32 0.0, %v5266
      %v5268 = vpop.f32.mrb[0].mxu0
      %5269 = vmatprep.mubr.f32.mxu0 0.0
      %5270 = vmatmul.mubr.f32.gmra.mrb[0].mxu0 %v5069
      %v5271 = vpop.f32.mrb[0].mxu0
      %v5272 = vadd.f32 0.0, %v5271
      %v5273 = vpop.f32.mrb[0].mxu0
      %5274 = vmatprep.mubr.f32.mxu0 0.0
      %5275 = vmatmul.mubr.f32.gmra.mrb[0].mxu0 %v5072
      %v5276 = vpop.f32.mrb[0].mxu0
      %v5277 = vadd.f32 0.0, %v5276
      %v5278 = vpop.f32.mrb[0].mxu0
      %5279 = vmatprep.mubr.f32.mxu0 0.0
      %5280 = vmatmul.mubr.f32.gmra.mrb[0].mxu0 %v5075
      %v5281 = vpop.f32.mrb[0].mxu0
      %v5282 = vadd.f32 0.0, %v5281
      %v5283 = vpop.f32.mrb[0].mxu0
      %5284 = vmatprep.mubr.f32.mxu0 0.0
      %5285 = vmatmul.mubr.f32.gmra.mrb[0].mxu0 %v5078
      %v5286 = vpop.f32.mrb[0].mxu0
      %v5287 = vadd.f32 0.0, %v5286
      %v5288 = vpop.f32.mrb[0].mxu0
      %5289 = vmatprep.mubr.f32.mxu0 0.0
      %5290 = vmatmul.mubr.f32.gmra.mrb[0].mxu0 %v5081
      %v5291 = vpop.f32.mrb[0].mxu0
      %v5292 = vadd.f32 0.0, %v5291
      %v5293 = vpop.f32.mrb[0].mxu0
      %5294 = vmatprep.mubr.f32.mxu0 0.0
      %5295 = vmatmul.mubr.f32.gmra.mrb[0].mxu0 %v5084
      %v5296 = vpop.f32.mrb[0].mxu0
      %v5297 = vadd.f32 0.0, %v5296
      %v5298 = vpop.f32.mrb[0].mxu0
      %5299 = vmatprep.mubr.f32.mxu0 0.0
      %5300 = vmatmul.mubr.f32.gmra.mrb[0].mxu0 %v5087
      %v5301 = vpop.f32.mrb[0].mxu0
      %v5302 = vadd.f32 0.0, %v5301
      %v5303 = vpop.f32.mrb[0].mxu0
      %5304 = vmatprep.mubr.f32.mxu0 0.0
      %5305 = vmatmul.mubr.f32.gmra.mrb[0].mxu0 %v5090
      %v5306 = vpop.f32.mrb[0].mxu0
      %v5307 = vadd.f32 0.0, %v5306
      %v5308 = vpop.f32.mrb[0].mxu0
      %5309 = vmatprep.mubr.f32.mxu0 0.0
      %5310 = vmatmul.mubr.f32.gmra.mrb[0].mxu0 %v5093
      %v5311 = vpop.f32.mrb[0].mxu0
      %v5312 = vadd.f32 0.0, %v5311
      %v5313 = vpop.f32.mrb[0].mxu0
      %5314 = vmatprep.mubr.f32.mxu0 0.0
      %5315 = vmatmul.mubr.f32.gmra.mrb[0].mxu0 %v5096
      %v5316 = vpop.f32.mrb[0].mxu0
      %v5317 = vadd.f32 0.0, %v5316
      %v5318 = vpop.f32.mrb[0].mxu0
      %5319 = vmatprep.mubr.f32.mxu0 0.0
      %5320 = vmatmul.mubr.f32.gmra.mrb[0].mxu0 %v5099
      %v5321 = vpop.f32.mrb[0].mxu0
      %v5322 = vadd.f32 0.0, %v5321
      %v5323 = vpop.f32.mrb[0].mxu0
      %5324 = vmatprep.mubr.f32.mxu0 0.0
      %5325 = vmatmul.mubr.f32.gmra.mrb[0].mxu0 %v5102
      %v5326 = vpop.f32.mrb[0].mxu0
      %v5327 = vadd.f32 0.0, %v5326
      %v5328 = vpop.f32.mrb[0].mxu0
      %5329 = vmatprep.mubr.f32.mxu0 0.0
      %5330 = vmatmul.mubr.f32.gmra.mrb[0].mxu0 %v5105
      %v5331 = vpop.f32.mrb[0].mxu0
      %v5332 = vadd.f32 0.0, %v5331
      %v5333 = vpop.f32.mrb[0].mxu0
      %5334 = vdwg.mxu0
      %v5335 = vadd.f32 %v4945, %v5177
      %v5336 = vadd.f32 %v4946, %v5182
      %v5337 = vadd.f32 %v4947, %v5187
      %v5338 = vadd.f32 %v4948, %v5192
      %v5339 = vadd.f32 %v4949, %v5197
      %v5340 = vadd.f32 %v4950, %v5202
      %v5341 = vadd.f32 %v4951, %v5207
      %v5342 = vadd.f32 %v4952, %v5212
      %v5343 = vadd.f32 %v4953, %v5217
      %v5344 = vadd.f32 %v4954, %v5222
      %v5345 = vadd.f32 %v4955, %v5227
      %v5346 = vadd.f32 %v4956, %v5232
      %v5347 = vadd.f32 %v4957, %v5237
      %v5348 = vadd.f32 %v4958, %v5242
      %v5349 = vadd.f32 %v4959, %v5247
      %v5350 = vadd.f32 %v4960, %v5252
      %v5351 = vadd.f32 %v4961, %v5257
      %v5352 = vadd.f32 %v4962, %v5262
      %v5353 = vadd.f32 %v4963, %v5267
      %v5354 = vadd.f32 %v4964, %v5272
      %v5355 = vadd.f32 %v4965, %v5277
      %v5356 = vadd.f32 %v4966, %v5282
      %v5357 = vadd.f32 %v4967, %v5287
      %v5358 = vadd.f32 %v4968, %v5292
      %v5359 = vadd.f32 %v4969, %v5297
      %v5360 = vadd.f32 %v4970, %v5302
      %v5361 = vadd.f32 %v4971, %v5307
      %v5362 = vadd.f32 %v4972, %v5312
      %v5363 = vadd.f32 %v4973, %v5317
      %v5364 = vadd.f32 %v4974, %v5322
      %v5365 = vadd.f32 %v4975, %v5327
      %v5366 = vadd.f32 %v4976, %v5332
      %v5367 = vld [vmem:[%s227 + $0x7e] sm:$0xff]
      %v5368 = vld [vmem:[%s227 + $0x86] sm:$0xff]
      %v5369 = vld [vmem:[%s227 + $0x8e] sm:$0xff]
      %v5370 = vld [vmem:[%s227 + $0x96] sm:$0xff]
      %v5371 = vld [vmem:[%s227 + $0x9e] sm:$0xff]
      %v5372 = vld [vmem:[%s227 + $0xa6] sm:$0xff]
      %v5373 = vld [vmem:[%s227 + $0xae] sm:$0xff]
      %v5374 = vld [vmem:[%s227 + $0xb6] sm:$0xff]
      %v5375 = vld [vmem:[%s227 + $0xbe] sm:$0xff]
      %v5376 = vld [vmem:[%s227 + $0xc6] sm:$0xff]
      %v5377 = vld [vmem:[%s227 + $0xce] sm:$0xff]
      %v5378 = vld [vmem:[%s227 + $0xd6] sm:$0xff]
      %v5379 = vld [vmem:[%s227 + $0xde] sm:$0xff]
      %v5380 = vld [vmem:[%s227 + $0xe6] sm:$0xff]
      %v5381 = vld [vmem:[%s227 + $0xee] sm:$0xff]
      %v5382 = vld [vmem:[%s227 + $0xf6] sm:$0xff]
      %v5383 = vld [vmem:[%s227 + $0xfe] sm:$0xff]
      %v5384 = vld [vmem:[%s227 + $0x106] sm:$0xff]
      %v5385 = vld [vmem:[%s227 + $0x10e] sm:$0xff]
      %v5386 = vld [vmem:[%s227 + $0x116] sm:$0xff]
      %v5387 = vld [vmem:[%s227 + $0x11e] sm:$0xff]
      %v5388 = vld [vmem:[%s227 + $0x126] sm:$0xff]
      %v5389 = vld [vmem:[%s227 + $0x12e] sm:$0xff]
      %v5390 = vld [vmem:[%s227 + $0x136] sm:$0xff]
      %v5391 = vld [vmem:[%s227 + $0x13e] sm:$0xff]
      %v5392 = vld [vmem:[%s227 + $0x146] sm:$0xff]
      %v5393 = vld [vmem:[%s227 + $0x14e] sm:$0xff]
      %v5394 = vld [vmem:[%s227 + $0x156] sm:$0xff]
      %v5395 = vld [vmem:[%s227 + $0x15e] sm:$0xff]
      %v5396 = vld [vmem:[%s227 + $0x166] sm:$0xff]
      %v5397 = vld [vmem:[%s227 + $0x16e] sm:$0xff]
      %v5398 = vld [vmem:[%s227 + $0x176] sm:$0xff]
      %s5399 = scalar_lea.vmem %s3, 44
      %v5400 = vld [vmem:[%s5399] sm:$0xf]
      %v5402 = vsel %vm304, %v5367, 0
      %v5405 = vsel %vm304, %v5368, 0
      %v5408 = vsel %vm304, %v5369, 0
      %v5411 = vsel %vm304, %v5370, 0
      %v5414 = vsel %vm304, %v5371, 0
      %v5417 = vsel %vm304, %v5372, 0
      %v5420 = vsel %vm304, %v5373, 0
      %v5423 = vsel %vm304, %v5374, 0
      %v5426 = vsel %vm304, %v5375, 0
      %v5429 = vsel %vm304, %v5376, 0
      %v5432 = vsel %vm304, %v5377, 0
      %v5435 = vsel %vm304, %v5378, 0
      %v5438 = vsel %vm304, %v5379, 0
      %v5441 = vsel %vm304, %v5380, 0
      %v5444 = vsel %vm304, %v5381, 0
      %v5447 = vsel %vm304, %v5382, 0
      %v5450 = vsel %vm304, %v5383, 0
      %v5453 = vsel %vm304, %v5384, 0
      %v5456 = vsel %vm304, %v5385, 0
      %v5459 = vsel %vm304, %v5386, 0
      %v5462 = vsel %vm304, %v5387, 0
      %v5465 = vsel %vm304, %v5388, 0
      %v5468 = vsel %vm304, %v5389, 0
      %v5471 = vsel %vm304, %v5390, 0
      %v5474 = vsel %vm304, %v5391, 0
      %v5477 = vsel %vm304, %v5392, 0
      %v5480 = vsel %vm304, %v5393, 0
      %v5483 = vsel %vm304, %v5394, 0
      %v5486 = vsel %vm304, %v5395, 0
      %v5489 = vsel %vm304, %v5396, 0
      %v5492 = vsel %vm304, %v5397, 0
      %v5495 = vsel %vm304, %v5398, 0
      %v5498 = vsel %vm401, %v5400, 0
      %5500 = vmatprep.subr.mxu0 0.0
      %5501 = vmatpush1.msra.mxu0 %v5498
      %5502 = vmatprep.subr.mxu0 0.0
      %5503 = vmatpush1.msra.mxu0 0.0
      %5504 = vmatprep.subr.mxu0 0.0
      %5505 = vmatpush1.msra.mxu0 0.0
      %5506 = vmatprep.subr.mxu0 0.0
      %5507 = vmatpush1.msra.mxu0 0.0
      %5508 = vmatprep.subr.mxu0 0.0
      %5509 = vmatpush1.msra.mxu0 0.0
      %5510 = vmatprep.subr.mxu0 0.0
      %5511 = vmatpush1.msra.mxu0 0.0
      %5512 = vmatprep.subr.mxu0 0.0
      %5513 = vmatpush1.msra.mxu0 0.0
      %5514 = vmatprep.subr.mxu0 0.0
      %5515 = vmatpush1.msra.mxu0 0.0
      %5516 = vmatprep.subr.mxu0 0.0
      %5517 = vmatpush1.msra.mxu0 0.0
      %5518 = vmatprep.subr.mxu0 0.0
      %5519 = vmatpush1.msra.mxu0 0.0
      %5520 = vmatprep.subr.mxu0 0.0
      %5521 = vmatpush1.msra.mxu0 0.0
      %5522 = vmatprep.subr.mxu0 0.0
      %5523 = vmatpush1.msra.mxu0 0.0
      %5524 = vmatprep.subr.mxu0 0.0
      %5525 = vmatpush1.msra.mxu0 0.0
      %5526 = vmatprep.subr.mxu0 0.0
      %5527 = vmatpush1.msra.mxu0 0.0
      %5528 = vmatprep.subr.mxu0 0.0
      %5529 = vmatpush1.msra.mxu0 0.0
      %5530 = vmatprep.subr.mxu0 0.0
      %5531 = vmatpush1.msra.mxu0 0.0
      %5532 = vmatprep.subr.mxu0 0.0
      %5533 = vmatpush1.msra.mxu0 0.0
      %5534 = vmatprep.subr.mxu0 0.0
      %5535 = vmatpush1.msra.mxu0 0.0
      %5536 = vmatprep.subr.mxu0 0.0
      %5537 = vmatpush1.msra.mxu0 0.0
      %5538 = vmatprep.subr.mxu0 0.0
      %5539 = vmatpush1.msra.mxu0 0.0
      %5540 = vmatprep.subr.mxu0 0.0
      %5541 = vmatpush1.msra.mxu0 0.0
      %5542 = vmatprep.subr.mxu0 0.0
      %5543 = vmatpush1.msra.mxu0 0.0
      %5544 = vmatprep.subr.mxu0 0.0
      %5545 = vmatpush1.msra.mxu0 0.0
      %5546 = vmatprep.subr.mxu0 0.0
      %5547 = vmatpush1.msra.mxu0 0.0
      %5548 = vmatprep.subr.mxu0 0.0
      %5549 = vmatpush1.msra.mxu0 0.0
      %5550 = vmatprep.subr.mxu0 0.0
      %5551 = vmatpush1.msra.mxu0 0.0
      %5552 = vmatprep.subr.mxu0 0.0
      %5553 = vmatpush1.msra.mxu0 0.0
      %5554 = vmatprep.subr.mxu0 0.0
      %5555 = vmatpush1.msra.mxu0 0.0
      %5556 = vmatprep.subr.mxu0 0.0
      %5557 = vmatpush1.msra.mxu0 0.0
      %5558 = vmatprep.subr.mxu0 0.0
      %5559 = vmatpush1.msra.mxu0 0.0
      %5560 = vmatprep.subr.mxu0 0.0
      %5561 = vmatpush1.msra.mxu0 0.0
      %5562 = vmatprep.subr.mxu0 0.0
      %5563 = vmatpush1.msra.mxu0 0.0
      %5564 = vmatprep.mubr.f32.mxu0 0.0
      %5565 = vmatmul.mubr.f32.gmra.mrb[0].mxu0 %v5402
      %v5566 = vpop.f32.mrb[0].mxu0
      %v5567 = vadd.f32 0.0, %v5566
      %v5568 = vpop.f32.mrb[0].mxu0
      %5569 = vmatprep.mubr.f32.mxu0 0.0
      %5570 = vmatmul.mubr.f32.gmra.mrb[0].mxu0 %v5405
      %v5571 = vpop.f32.mrb[0].mxu0
      %v5572 = vadd.f32 0.0, %v5571
      %v5573 = vpop.f32.mrb[0].mxu0
      %5574 = vmatprep.mubr.f32.mxu0 0.0
      %5575 = vmatmul.mubr.f32.gmra.mrb[0].mxu0 %v5408
      %v5576 = vpop.f32.mrb[0].mxu0
      %v5577 = vadd.f32 0.0, %v5576
      %v5578 = vpop.f32.mrb[0].mxu0
      %5579 = vmatprep.mubr.f32.mxu0 0.0
      %5580 = vmatmul.mubr.f32.gmra.mrb[0].mxu0 %v5411
      %v5581 = vpop.f32.mrb[0].mxu0
      %v5582 = vadd.f32 0.0, %v5581
      %v5583 = vpop.f32.mrb[0].mxu0
      %5584 = vmatprep.mubr.f32.mxu0 0.0
      %5585 = vmatmul.mubr.f32.gmra.mrb[0].mxu0 %v5414
      %v5586 = vpop.f32.mrb[0].mxu0
      %v5587 = vadd.f32 0.0, %v5586
      %v5588 = vpop.f32.mrb[0].mxu0
      %5589 = vmatprep.mubr.f32.mxu0 0.0
      %5590 = vmatmul.mubr.f32.gmra.mrb[0].mxu0 %v5417
      %v5591 = vpop.f32.mrb[0].mxu0
      %v5592 = vadd.f32 0.0, %v5591
      %v5593 = vpop.f32.mrb[0].mxu0
      %5594 = vmatprep.mubr.f32.mxu0 0.0
      %5595 = vmatmul.mubr.f32.gmra.mrb[0].mxu0 %v5420
      %v5596 = vpop.f32.mrb[0].mxu0
      %v5597 = vadd.f32 0.0, %v5596
      %v5598 = vpop.f32.mrb[0].mxu0
      %5599 = vmatprep.mubr.f32.mxu0 0.0
      %5600 = vmatmul.mubr.f32.gmra.mrb[0].mxu0 %v5423
      %v5601 = vpop.f32.mrb[0].mxu0
      %v5602 = vadd.f32 0.0, %v5601
      %v5603 = vpop.f32.mrb[0].mxu0
      %5604 = vmatprep.mubr.f32.mxu0 0.0
      %5605 = vmatmul.mubr.f32.gmra.mrb[0].mxu0 %v5426
      %v5606 = vpop.f32.mrb[0].mxu0
      %v5607 = vadd.f32 0.0, %v5606
      %v5608 = vpop.f32.mrb[0].mxu0
      %5609 = vmatprep.mubr.f32.mxu0 0.0
      %5610 = vmatmul.mubr.f32.gmra.mrb[0].mxu0 %v5429
      %v5611 = vpop.f32.mrb[0].mxu0
      %v5612 = vadd.f32 0.0, %v5611
      %v5613 = vpop.f32.mrb[0].mxu0
      %5614 = vmatprep.mubr.f32.mxu0 0.0
      %5615 = vmatmul.mubr.f32.gmra.mrb[0].mxu0 %v5432
      %v5616 = vpop.f32.mrb[0].mxu0
      %v5617 = vadd.f32 0.0, %v5616
      %v5618 = vpop.f32.mrb[0].mxu0
      %5619 = vmatprep.mubr.f32.mxu0 0.0
      %5620 = vmatmul.mubr.f32.gmra.mrb[0].mxu0 %v5435
      %v5621 = vpop.f32.mrb[0].mxu0
      %v5622 = vadd.f32 0.0, %v5621
      %v5623 = vpop.f32.mrb[0].mxu0
      %5624 = vmatprep.mubr.f32.mxu0 0.0
      %5625 = vmatmul.mubr.f32.gmra.mrb[0].mxu0 %v5438
      %v5626 = vpop.f32.mrb[0].mxu0
      %v5627 = vadd.f32 0.0, %v5626
      %v5628 = vpop.f32.mrb[0].mxu0
      %5629 = vmatprep.mubr.f32.mxu0 0.0
      %5630 = vmatmul.mubr.f32.gmra.mrb[0].mxu0 %v5441
      %v5631 = vpop.f32.mrb[0].mxu0
      %v5632 = vadd.f32 0.0, %v5631
      %v5633 = vpop.f32.mrb[0].mxu0
      %5634 = vmatprep.mubr.f32.mxu0 0.0
      %5635 = vmatmul.mubr.f32.gmra.mrb[0].mxu0 %v5444
      %v5636 = vpop.f32.mrb[0].mxu0
      %v5637 = vadd.f32 0.0, %v5636
      %v5638 = vpop.f32.mrb[0].mxu0
      %5639 = vmatprep.mubr.f32.mxu0 0.0
      %5640 = vmatmul.mubr.f32.gmra.mrb[0].mxu0 %v5447
      %v5641 = vpop.f32.mrb[0].mxu0
      %v5642 = vadd.f32 0.0, %v5641
      %v5643 = vpop.f32.mrb[0].mxu0
      %5644 = vmatprep.mubr.f32.mxu0 0.0
      %5645 = vmatmul.mubr.f32.gmra.mrb[0].mxu0 %v5450
      %v5646 = vpop.f32.mrb[0].mxu0
      %v5647 = vadd.f32 0.0, %v5646
      %v5648 = vpop.f32.mrb[0].mxu0
      %5649 = vmatprep.mubr.f32.mxu0 0.0
      %5650 = vmatmul.mubr.f32.gmra.mrb[0].mxu0 %v5453
      %v5651 = vpop.f32.mrb[0].mxu0
      %v5652 = vadd.f32 0.0, %v5651
      %v5653 = vpop.f32.mrb[0].mxu0
      %5654 = vmatprep.mubr.f32.mxu0 0.0
      %5655 = vmatmul.mubr.f32.gmra.mrb[0].mxu0 %v5456
      %v5656 = vpop.f32.mrb[0].mxu0
      %v5657 = vadd.f32 0.0, %v5656
      %v5658 = vpop.f32.mrb[0].mxu0
      %5659 = vmatprep.mubr.f32.mxu0 0.0
      %5660 = vmatmul.mubr.f32.gmra.mrb[0].mxu0 %v5459
      %v5661 = vpop.f32.mrb[0].mxu0
      %v5662 = vadd.f32 0.0, %v5661
      %v5663 = vpop.f32.mrb[0].mxu0
      %5664 = vmatprep.mubr.f32.mxu0 0.0
      %5665 = vmatmul.mubr.f32.gmra.mrb[0].mxu0 %v5462
      %v5666 = vpop.f32.mrb[0].mxu0
      %v5667 = vadd.f32 0.0, %v5666
      %v5668 = vpop.f32.mrb[0].mxu0
      %5669 = vmatprep.mubr.f32.mxu0 0.0
      %5670 = vmatmul.mubr.f32.gmra.mrb[0].mxu0 %v5465
      %v5671 = vpop.f32.mrb[0].mxu0
      %v5672 = vadd.f32 0.0, %v5671
      %v5673 = vpop.f32.mrb[0].mxu0
      %5674 = vmatprep.mubr.f32.mxu0 0.0
      %5675 = vmatmul.mubr.f32.gmra.mrb[0].mxu0 %v5468
      %v5676 = vpop.f32.mrb[0].mxu0
      %v5677 = vadd.f32 0.0, %v5676
      %v5678 = vpop.f32.mrb[0].mxu0
      %5679 = vmatprep.mubr.f32.mxu0 0.0
      %5680 = vmatmul.mubr.f32.gmra.mrb[0].mxu0 %v5471
      %v5681 = vpop.f32.mrb[0].mxu0
      %v5682 = vadd.f32 0.0, %v5681
      %v5683 = vpop.f32.mrb[0].mxu0
      %5684 = vmatprep.mubr.f32.mxu0 0.0
      %5685 = vmatmul.mubr.f32.gmra.mrb[0].mxu0 %v5474
      %v5686 = vpop.f32.mrb[0].mxu0
      %v5687 = vadd.f32 0.0, %v5686
      %v5688 = vpop.f32.mrb[0].mxu0
      %5689 = vmatprep.mubr.f32.mxu0 0.0
      %5690 = vmatmul.mubr.f32.gmra.mrb[0].mxu0 %v5477
      %v5691 = vpop.f32.mrb[0].mxu0
      %v5692 = vadd.f32 0.0, %v5691
      %v5693 = vpop.f32.mrb[0].mxu0
      %5694 = vmatprep.mubr.f32.mxu0 0.0
      %5695 = vmatmul.mubr.f32.gmra.mrb[0].mxu0 %v5480
      %v5696 = vpop.f32.mrb[0].mxu0
      %v5697 = vadd.f32 0.0, %v5696
      %v5698 = vpop.f32.mrb[0].mxu0
      %5699 = vmatprep.mubr.f32.mxu0 0.0
      %5700 = vmatmul.mubr.f32.gmra.mrb[0].mxu0 %v5483
      %v5701 = vpop.f32.mrb[0].mxu0
      %v5702 = vadd.f32 0.0, %v5701
      %v5703 = vpop.f32.mrb[0].mxu0
      %5704 = vmatprep.mubr.f32.mxu0 0.0
      %5705 = vmatmul.mubr.f32.gmra.mrb[0].mxu0 %v5486
      %v5706 = vpop.f32.mrb[0].mxu0
      %v5707 = vadd.f32 0.0, %v5706
      %v5708 = vpop.f32.mrb[0].mxu0
      %5709 = vmatprep.mubr.f32.mxu0 0.0
      %5710 = vmatmul.mubr.f32.gmra.mrb[0].mxu0 %v5489
      %v5711 = vpop.f32.mrb[0].mxu0
      %v5712 = vadd.f32 0.0, %v5711
      %v5713 = vpop.f32.mrb[0].mxu0
      %5714 = vmatprep.mubr.f32.mxu0 0.0
      %5715 = vmatmul.mubr.f32.gmra.mrb[0].mxu0 %v5492
      %v5716 = vpop.f32.mrb[0].mxu0
      %v5717 = vadd.f32 0.0, %v5716
      %v5718 = vpop.f32.mrb[0].mxu0
      %5719 = vmatprep.mubr.f32.mxu0 0.0
      %5720 = vmatmul.mubr.f32.gmra.mrb[0].mxu0 %v5495
      %v5721 = vpop.f32.mrb[0].mxu0
      %v5722 = vadd.f32 0.0, %v5721
      %v5723 = vpop.f32.mrb[0].mxu0
      %5724 = vdwg.mxu0
      %5725 = vset.pattern.permute.xlu0 3
      %5726 = vperm.xlu0 %5725, %v239
      %v5727 = vpop.permute.xlu0 %5726
      %5729 = vset.pattern.permute.xlu0 3
      %5730 = vperm.xlu0 %5729, %v240
      %v5731 = vpop.permute.xlu0 %5730
      %5733 = vset.pattern.permute.xlu0 3
      %5734 = vperm.xlu0 %5733, %v241
      %v5735 = vpop.permute.xlu0 %5734
      %5737 = vset.pattern.permute.xlu0 3
      %5738 = vperm.xlu0 %5737, %v242
      %v5739 = vpop.permute.xlu0 %5738
      %5741 = vset.pattern.permute.xlu0 3
      %5742 = vperm.xlu0 %5741, %v243
      %v5743 = vpop.permute.xlu0 %5742
      %5745 = vset.pattern.permute.xlu0 3
      %5746 = vperm.xlu0 %5745, %v244
      %v5747 = vpop.permute.xlu0 %5746
      %5749 = vset.pattern.permute.xlu0 3
      %5750 = vperm.xlu0 %5749, %v245
      %v5751 = vpop.permute.xlu0 %5750
      %5753 = vset.pattern.permute.xlu0 3
      %5754 = vperm.xlu0 %5753, %v246
      %v5755 = vpop.permute.xlu0 %5754
      %5757 = vset.pattern.permute.xlu0 3
      %5758 = vperm.xlu0 %5757, %v247
      %v5759 = vpop.permute.xlu0 %5758
      %5761 = vset.pattern.permute.xlu0 3
      %5762 = vperm.xlu0 %5761, %v248
      %v5763 = vpop.permute.xlu0 %5762
      %5765 = vset.pattern.permute.xlu0 3
      %5766 = vperm.xlu0 %5765, %v249
      %v5767 = vpop.permute.xlu0 %5766
      %5769 = vset.pattern.permute.xlu0 3
      %5770 = vperm.xlu0 %5769, %v250
      %v5771 = vpop.permute.xlu0 %5770
      %5773 = vset.pattern.permute.xlu0 3
      %5774 = vperm.xlu0 %5773, %v251
      %v5775 = vpop.permute.xlu0 %5774
      %5777 = vset.pattern.permute.xlu0 3
      %5778 = vperm.xlu0 %5777, %v252
      %v5779 = vpop.permute.xlu0 %5778
      %5781 = vset.pattern.permute.xlu0 3
      %5782 = vperm.xlu0 %5781, %v253
      %v5783 = vpop.permute.xlu0 %5782
      %5785 = vset.pattern.permute.xlu0 3
      %5786 = vperm.xlu0 %5785, %v254
      %v5787 = vpop.permute.xlu0 %5786
      %5789 = vset.pattern.permute.xlu0 3
      %5790 = vperm.xlu0 %5789, %v255
      %v5791 = vpop.permute.xlu0 %5790
      %5793 = vset.pattern.permute.xlu0 3
      %5794 = vperm.xlu0 %5793, %v256
      %v5795 = vpop.permute.xlu0 %5794
      %5797 = vset.pattern.permute.xlu0 3
      %5798 = vperm.xlu0 %5797, %v257
      %v5799 = vpop.permute.xlu0 %5798
      %5801 = vset.pattern.permute.xlu0 3
      %5802 = vperm.xlu0 %5801, %v258
      %v5803 = vpop.permute.xlu0 %5802
      %5805 = vset.pattern.permute.xlu0 3
      %5806 = vperm.xlu0 %5805, %v259
      %v5807 = vpop.permute.xlu0 %5806
      %5809 = vset.pattern.permute.xlu0 3
      %5810 = vperm.xlu0 %5809, %v260
      %v5811 = vpop.permute.xlu0 %5810
      %5813 = vset.pattern.permute.xlu0 3
      %5814 = vperm.xlu0 %5813, %v261
      %v5815 = vpop.permute.xlu0 %5814
      %5817 = vset.pattern.permute.xlu0 3
      %5818 = vperm.xlu0 %5817, %v262
      %v5819 = vpop.permute.xlu0 %5818
      %5821 = vset.pattern.permute.xlu0 3
      %5822 = vperm.xlu0 %5821, %v263
      %v5823 = vpop.permute.xlu0 %5822
      %5825 = vset.pattern.permute.xlu0 3
      %5826 = vperm.xlu0 %5825, %v264
      %v5827 = vpop.permute.xlu0 %5826
      %5829 = vset.pattern.permute.xlu0 3
      %5830 = vperm.xlu0 %5829, %v265
      %v5831 = vpop.permute.xlu0 %5830
      %5833 = vset.pattern.permute.xlu0 3
      %5834 = vperm.xlu0 %5833, %v266
      %v5835 = vpop.permute.xlu0 %5834
      %5837 = vset.pattern.permute.xlu0 3
      %5838 = vperm.xlu0 %5837, %v267
      %v5839 = vpop.permute.xlu0 %5838
      %5841 = vset.pattern.permute.xlu0 3
      %5842 = vperm.xlu0 %5841, %v268
      %v5843 = vpop.permute.xlu0 %5842
      %5845 = vset.pattern.permute.xlu0 3
      %5846 = vperm.xlu0 %5845, %v269
      %v5847 = vpop.permute.xlu0 %5846
      %5849 = vset.pattern.permute.xlu0 3
      %5850 = vperm.xlu0 %5849, %v270
      %v5851 = vpop.permute.xlu0 %5850
      %v5853 = vmul.f32 %v5567, %v5727
      %v5854 = vmul.f32 %v5572, %v5731
      %v5855 = vmul.f32 %v5577, %v5735
      %v5856 = vmul.f32 %v5582, %v5739
      %v5857 = vmul.f32 %v5587, %v5743
      %v5858 = vmul.f32 %v5592, %v5747
      %v5859 = vmul.f32 %v5597, %v5751
      %v5860 = vmul.f32 %v5602, %v5755
      %v5861 = vmul.f32 %v5607, %v5759
      %v5862 = vmul.f32 %v5612, %v5763
      %v5863 = vmul.f32 %v5617, %v5767
      %v5864 = vmul.f32 %v5622, %v5771
      %v5865 = vmul.f32 %v5627, %v5775
      %v5866 = vmul.f32 %v5632, %v5779
      %v5867 = vmul.f32 %v5637, %v5783
      %v5868 = vmul.f32 %v5642, %v5787
      %v5869 = vmul.f32 %v5647, %v5791
      %v5870 = vmul.f32 %v5652, %v5795
      %v5871 = vmul.f32 %v5657, %v5799
      %v5872 = vmul.f32 %v5662, %v5803
      %v5873 = vmul.f32 %v5667, %v5807
      %v5874 = vmul.f32 %v5672, %v5811
      %v5875 = vmul.f32 %v5677, %v5815
      %v5876 = vmul.f32 %v5682, %v5819
      %v5877 = vmul.f32 %v5687, %v5823
      %v5878 = vmul.f32 %v5692, %v5827
      %v5879 = vmul.f32 %v5697, %v5831
      %v5880 = vmul.f32 %v5702, %v5835
      %v5881 = vmul.f32 %v5707, %v5839
      %v5882 = vmul.f32 %v5712, %v5843
      %v5883 = vmul.f32 %v5717, %v5847
      %v5884 = vmul.f32 %v5722, %v5851
      %v5885 = vadd.f32 %v5335, %v5853
      %v5886 = vadd.f32 %v5336, %v5854
      %v5887 = vadd.f32 %v5337, %v5855
      %v5888 = vadd.f32 %v5338, %v5856
      %v5889 = vadd.f32 %v5339, %v5857
      %v5890 = vadd.f32 %v5340, %v5858
      %v5891 = vadd.f32 %v5341, %v5859
      %v5892 = vadd.f32 %v5342, %v5860
      %v5893 = vadd.f32 %v5343, %v5861
      %v5894 = vadd.f32 %v5344, %v5862
      %v5895 = vadd.f32 %v5345, %v5863
      %v5896 = vadd.f32 %v5346, %v5864
      %v5897 = vadd.f32 %v5347, %v5865
      %v5898 = vadd.f32 %v5348, %v5866
      %v5899 = vadd.f32 %v5349, %v5867
      %v5900 = vadd.f32 %v5350, %v5868
      %v5901 = vadd.f32 %v5351, %v5869
      %v5902 = vadd.f32 %v5352, %v5870
      %v5903 = vadd.f32 %v5353, %v5871
      %v5904 = vadd.f32 %v5354, %v5872
      %v5905 = vadd.f32 %v5355, %v5873
      %v5906 = vadd.f32 %v5356, %v5874
      %v5907 = vadd.f32 %v5357, %v5875
      %v5908 = vadd.f32 %v5358, %v5876
      %v5909 = vadd.f32 %v5359, %v5877
      %v5910 = vadd.f32 %v5360, %v5878
      %v5911 = vadd.f32 %v5361, %v5879
      %v5912 = vadd.f32 %v5362, %v5880
      %v5913 = vadd.f32 %v5363, %v5881
      %v5914 = vadd.f32 %v5364, %v5882
      %v5915 = vadd.f32 %v5365, %v5883
      %v5916 = vadd.f32 %v5366, %v5884
      %v5917 = vld [vmem:[%s227 + $0x126] sm:$0xff]
      %v5918 = vld [vmem:[%s227 + $0x12e] sm:$0xff]
      %v5919 = vld [vmem:[%s227 + $0x136] sm:$0xff]
      %v5920 = vld [vmem:[%s227 + $0x13e] sm:$0xff]
      %v5921 = vld [vmem:[%s227 + $0x146] sm:$0xff]
      %v5922 = vld [vmem:[%s227 + $0x14e] sm:$0xff]
      %v5923 = vld [vmem:[%s227 + $0x156] sm:$0xff]
      %v5924 = vld [vmem:[%s227 + $0x15e] sm:$0xff]
      %v5925 = vld [vmem:[%s227 + $0x166] sm:$0xff]
      %v5926 = vld [vmem:[%s227 + $0x16e] sm:$0xff]
      %v5927 = vld [vmem:[%s227 + $0x176] sm:$0xff]
      %v5928 = vld [vmem:[%s227 + $0x17e] sm:$0xff]
      %v5929 = vld [vmem:[%s227 + $0x186] sm:$0xff]
      %v5930 = vld [vmem:[%s227 + $0x18e] sm:$0xff]
      %v5931 = vld [vmem:[%s227 + $0x196] sm:$0xff]
      %v5932 = vld [vmem:[%s227 + $0x19e] sm:$0xff]
      %v5933 = vld [vmem:[%s227 + $0x1a6] sm:$0xff]
      %v5934 = vld [vmem:[%s227 + $0x1ae] sm:$0xff]
      %v5935 = vld [vmem:[%s227 + $0x1b6] sm:$0xff]
      %v5936 = vld [vmem:[%s227 + $0x1be] sm:$0xff]
      %v5937 = vld [vmem:[%s227 + $0x1c6] sm:$0xff]
      %v5938 = vld [vmem:[%s227 + $0x1ce] sm:$0xff]
      %v5939 = vld [vmem:[%s227 + $0x1d6] sm:$0xff]
      %v5940 = vld [vmem:[%s227 + $0x1de] sm:$0xff]
      %v5941 = vld [vmem:[%s227 + $0x1e6] sm:$0xff]
      %v5942 = vld [vmem:[%s227 + $0x1ee] sm:$0xff]
      %v5943 = vld [vmem:[%s227 + $0x1f6] sm:$0xff]
      %v5944 = vld [vmem:[%s227 + $0x1fe] sm:$0xff]
      %v5945 = vld [vmem:[%s227 + $0x206] sm:$0xff]
      %v5946 = vld [vmem:[%s227 + $0x20e] sm:$0xff]
      %v5947 = vld [vmem:[%s227 + $0x216] sm:$0xff]
      %v5948 = vld [vmem:[%s227 + $0x21e] sm:$0xff]
      %s5949 = scalar_lea.vmem %s3, 48
      %v5950 = vld [vmem:[%s5949] sm:$0xf]
      %v5952 = vsel %vm304, %v5917, 0
      %v5955 = vsel %vm304, %v5918, 0
      %v5958 = vsel %vm304, %v5919, 0
      %v5961 = vsel %vm304, %v5920, 0
      %v5964 = vsel %vm304, %v5921, 0
      %v5967 = vsel %vm304, %v5922, 0
      %v5970 = vsel %vm304, %v5923, 0
      %v5973 = vsel %vm304, %v5924, 0
      %v5976 = vsel %vm304, %v5925, 0
      %v5979 = vsel %vm304, %v5926, 0
      %v5982 = vsel %vm304, %v5927, 0
      %v5985 = vsel %vm304, %v5928, 0
      %v5988 = vsel %vm304, %v5929, 0
      %v5991 = vsel %vm304, %v5930, 0
      %v5994 = vsel %vm304, %v5931, 0
      %v5997 = vsel %vm304, %v5932, 0
      %v6000 = vsel %vm304, %v5933, 0
      %v6003 = vsel %vm304, %v5934, 0
      %v6006 = vsel %vm304, %v5935, 0
      %v6009 = vsel %vm304, %v5936, 0
      %v6012 = vsel %vm304, %v5937, 0
      %v6015 = vsel %vm304, %v5938, 0
      %v6018 = vsel %vm304, %v5939, 0
      %v6021 = vsel %vm304, %v5940, 0
      %v6024 = vsel %vm304, %v5941, 0
      %v6027 = vsel %vm304, %v5942, 0
      %v6030 = vsel %vm304, %v5943, 0
      %v6033 = vsel %vm304, %v5944, 0
      %v6036 = vsel %vm304, %v5945, 0
      %v6039 = vsel %vm304, %v5946, 0
      %v6042 = vsel %vm304, %v5947, 0
      %v6045 = vsel %vm304, %v5948, 0
      %v6048 = vsel %vm401, %v5950, 0
      %6050 = vmatprep.subr.mxu0 0.0
      %6051 = vmatpush1.msra.mxu0 %v6048
      %6052 = vmatprep.subr.mxu0 0.0
      %6053 = vmatpush1.msra.mxu0 0.0
      %6054 = vmatprep.subr.mxu0 0.0
      %6055 = vmatpush1.msra.mxu0 0.0
      %6056 = vmatprep.subr.mxu0 0.0
      %6057 = vmatpush1.msra.mxu0 0.0
      %6058 = vmatprep.subr.mxu0 0.0
      %6059 = vmatpush1.msra.mxu0 0.0
      %6060 = vmatprep.subr.mxu0 0.0
      %6061 = vmatpush1.msra.mxu0 0.0
      %6062 = vmatprep.subr.mxu0 0.0
      %6063 = vmatpush1.msra.mxu0 0.0
      %6064 = vmatprep.subr.mxu0 0.0
      %6065 = vmatpush1.msra.mxu0 0.0
      %6066 = vmatprep.subr.mxu0 0.0
      %6067 = vmatpush1.msra.mxu0 0.0
      %6068 = vmatprep.subr.mxu0 0.0
      %6069 = vmatpush1.msra.mxu0 0.0
      %6070 = vmatprep.subr.mxu0 0.0
      %6071 = vmatpush1.msra.mxu0 0.0
      %6072 = vmatprep.subr.mxu0 0.0
      %6073 = vmatpush1.msra.mxu0 0.0
      %6074 = vmatprep.subr.mxu0 0.0
      %6075 = vmatpush1.msra.mxu0 0.0
      %6076 = vmatprep.subr.mxu0 0.0
      %6077 = vmatpush1.msra.mxu0 0.0
      %6078 = vmatprep.subr.mxu0 0.0
      %6079 = vmatpush1.msra.mxu0 0.0
      %6080 = vmatprep.subr.mxu0 0.0
      %6081 = vmatpush1.msra.mxu0 0.0
      %6082 = vmatprep.subr.mxu0 0.0
      %6083 = vmatpush1.msra.mxu0 0.0
      %6084 = vmatprep.subr.mxu0 0.0
      %6085 = vmatpush1.msra.mxu0 0.0
      %6086 = vmatprep.subr.mxu0 0.0
      %6087 = vmatpush1.msra.mxu0 0.0
      %6088 = vmatprep.subr.mxu0 0.0
      %6089 = vmatpush1.msra.mxu0 0.0
      %6090 = vmatprep.subr.mxu0 0.0
      %6091 = vmatpush1.msra.mxu0 0.0
      %6092 = vmatprep.subr.mxu0 0.0
      %6093 = vmatpush1.msra.mxu0 0.0
      %6094 = vmatprep.subr.mxu0 0.0
      %6095 = vmatpush1.msra.mxu0 0.0
      %6096 = vmatprep.subr.mxu0 0.0
      %6097 = vmatpush1.msra.mxu0 0.0
      %6098 = vmatprep.subr.mxu0 0.0
      %6099 = vmatpush1.msra.mxu0 0.0
      %6100 = vmatprep.subr.mxu0 0.0
      %6101 = vmatpush1.msra.mxu0 0.0
      %6102 = vmatprep.subr.mxu0 0.0
      %6103 = vmatpush1.msra.mxu0 0.0
      %6104 = vmatprep.subr.mxu0 0.0
      %6105 = vmatpush1.msra.mxu0 0.0
      %6106 = vmatprep.subr.mxu0 0.0
      %6107 = vmatpush1.msra.mxu0 0.0
      %6108 = vmatprep.subr.mxu0 0.0
      %6109 = vmatpush1.msra.mxu0 0.0
      %6110 = vmatprep.subr.mxu0 0.0
      %6111 = vmatpush1.msra.mxu0 0.0
      %6112 = vmatprep.subr.mxu0 0.0
      %6113 = vmatpush1.msra.mxu0 0.0
      %6114 = vmatprep.mubr.f32.mxu0 0.0
      %6115 = vmatmul.mubr.f32.gmra.mrb[0].mxu0 %v5952
      %v6116 = vpop.f32.mrb[0].mxu0
      %v6117 = vadd.f32 0.0, %v6116
      %v6118 = vpop.f32.mrb[0].mxu0
      %6119 = vmatprep.mubr.f32.mxu0 0.0
      %6120 = vmatmul.mubr.f32.gmra.mrb[0].mxu0 %v5955
      %v6121 = vpop.f32.mrb[0].mxu0
      %v6122 = vadd.f32 0.0, %v6121
      %v6123 = vpop.f32.mrb[0].mxu0
      %6124 = vmatprep.mubr.f32.mxu0 0.0
      %6125 = vmatmul.mubr.f32.gmra.mrb[0].mxu0 %v5958
      %v6126 = vpop.f32.mrb[0].mxu0
      %v6127 = vadd.f32 0.0, %v6126
      %v6128 = vpop.f32.mrb[0].mxu0
      %6129 = vmatprep.mubr.f32.mxu0 0.0
      %6130 = vmatmul.mubr.f32.gmra.mrb[0].mxu0 %v5961
      %v6131 = vpop.f32.mrb[0].mxu0
      %v6132 = vadd.f32 0.0, %v6131
      %v6133 = vpop.f32.mrb[0].mxu0
      %6134 = vmatprep.mubr.f32.mxu0 0.0
      %6135 = vmatmul.mubr.f32.gmra.mrb[0].mxu0 %v5964
      %v6136 = vpop.f32.mrb[0].mxu0
      %v6137 = vadd.f32 0.0, %v6136
      %v6138 = vpop.f32.mrb[0].mxu0
      %6139 = vmatprep.mubr.f32.mxu0 0.0
      %6140 = vmatmul.mubr.f32.gmra.mrb[0].mxu0 %v5967
      %v6141 = vpop.f32.mrb[0].mxu0
      %v6142 = vadd.f32 0.0, %v6141
      %v6143 = vpop.f32.mrb[0].mxu0
      %6144 = vmatprep.mubr.f32.mxu0 0.0
      %6145 = vmatmul.mubr.f32.gmra.mrb[0].mxu0 %v5970
      %v6146 = vpop.f32.mrb[0].mxu0
      %v6147 = vadd.f32 0.0, %v6146
      %v6148 = vpop.f32.mrb[0].mxu0
      %6149 = vmatprep.mubr.f32.mxu0 0.0
      %6150 = vmatmul.mubr.f32.gmra.mrb[0].mxu0 %v5973
      %v6151 = vpop.f32.mrb[0].mxu0
      %v6152 = vadd.f32 0.0, %v6151
      %v6153 = vpop.f32.mrb[0].mxu0
      %6154 = vmatprep.mubr.f32.mxu0 0.0
      %6155 = vmatmul.mubr.f32.gmra.mrb[0].mxu0 %v5976
      %v6156 = vpop.f32.mrb[0].mxu0
      %v6157 = vadd.f32 0.0, %v6156
      %v6158 = vpop.f32.mrb[0].mxu0
      %6159 = vmatprep.mubr.f32.mxu0 0.0
      %6160 = vmatmul.mubr.f32.gmra.mrb[0].mxu0 %v5979
      %v6161 = vpop.f32.mrb[0].mxu0
      %v6162 = vadd.f32 0.0, %v6161
      %v6163 = vpop.f32.mrb[0].mxu0
      %6164 = vmatprep.mubr.f32.mxu0 0.0
      %6165 = vmatmul.mubr.f32.gmra.mrb[0].mxu0 %v5982
      %v6166 = vpop.f32.mrb[0].mxu0
      %v6167 = vadd.f32 0.0, %v6166
      %v6168 = vpop.f32.mrb[0].mxu0
      %6169 = vmatprep.mubr.f32.mxu0 0.0
      %6170 = vmatmul.mubr.f32.gmra.mrb[0].mxu0 %v5985
      %v6171 = vpop.f32.mrb[0].mxu0
      %v6172 = vadd.f32 0.0, %v6171
      %v6173 = vpop.f32.mrb[0].mxu0
      %6174 = vmatprep.mubr.f32.mxu0 0.0
      %6175 = vmatmul.mubr.f32.gmra.mrb[0].mxu0 %v5988
      %v6176 = vpop.f32.mrb[0].mxu0
      %v6177 = vadd.f32 0.0, %v6176
      %v6178 = vpop.f32.mrb[0].mxu0
      %6179 = vmatprep.mubr.f32.mxu0 0.0
      %6180 = vmatmul.mubr.f32.gmra.mrb[0].mxu0 %v5991
      %v6181 = vpop.f32.mrb[0].mxu0
      %v6182 = vadd.f32 0.0, %v6181
      %v6183 = vpop.f32.mrb[0].mxu0
      %6184 = vmatprep.mubr.f32.mxu0 0.0
      %6185 = vmatmul.mubr.f32.gmra.mrb[0].mxu0 %v5994
      %v6186 = vpop.f32.mrb[0].mxu0
      %v6187 = vadd.f32 0.0, %v6186
      %v6188 = vpop.f32.mrb[0].mxu0
      %6189 = vmatprep.mubr.f32.mxu0 0.0
      %6190 = vmatmul.mubr.f32.gmra.mrb[0].mxu0 %v5997
      %v6191 = vpop.f32.mrb[0].mxu0
      %v6192 = vadd.f32 0.0, %v6191
      %v6193 = vpop.f32.mrb[0].mxu0
      %6194 = vmatprep.mubr.f32.mxu0 0.0
      %6195 = vmatmul.mubr.f32.gmra.mrb[0].mxu0 %v6000
      %v6196 = vpop.f32.mrb[0].mxu0
      %v6197 = vadd.f32 0.0, %v6196
      %v6198 = vpop.f32.mrb[0].mxu0
      %6199 = vmatprep.mubr.f32.mxu0 0.0
      %6200 = vmatmul.mubr.f32.gmra.mrb[0].mxu0 %v6003
      %v6201 = vpop.f32.mrb[0].mxu0
      %v6202 = vadd.f32 0.0, %v6201
      %v6203 = vpop.f32.mrb[0].mxu0
      %6204 = vmatprep.mubr.f32.mxu0 0.0
      %6205 = vmatmul.mubr.f32.gmra.mrb[0].mxu0 %v6006
      %v6206 = vpop.f32.mrb[0].mxu0
      %v6207 = vadd.f32 0.0, %v6206
      %v6208 = vpop.f32.mrb[0].mxu0
      %6209 = vmatprep.mubr.f32.mxu0 0.0
      %6210 = vmatmul.mubr.f32.gmra.mrb[0].mxu0 %v6009
      %v6211 = vpop.f32.mrb[0].mxu0
      %v6212 = vadd.f32 0.0, %v6211
      %v6213 = vpop.f32.mrb[0].mxu0
      %6214 = vmatprep.mubr.f32.mxu0 0.0
      %6215 = vmatmul.mubr.f32.gmra.mrb[0].mxu0 %v6012
      %v6216 = vpop.f32.mrb[0].mxu0
      %v6217 = vadd.f32 0.0, %v6216
      %v6218 = vpop.f32.mrb[0].mxu0
      %6219 = vmatprep.mubr.f32.mxu0 0.0
      %6220 = vmatmul.mubr.f32.gmra.mrb[0].mxu0 %v6015
      %v6221 = vpop.f32.mrb[0].mxu0
      %v6222 = vadd.f32 0.0, %v6221
      %v6223 = vpop.f32.mrb[0].mxu0
      %6224 = vmatprep.mubr.f32.mxu0 0.0
      %6225 = vmatmul.mubr.f32.gmra.mrb[0].mxu0 %v6018
      %v6226 = vpop.f32.mrb[0].mxu0
      %v6227 = vadd.f32 0.0, %v6226
      %v6228 = vpop.f32.mrb[0].mxu0
      %6229 = vmatprep.mubr.f32.mxu0 0.0
      %6230 = vmatmul.mubr.f32.gmra.mrb[0].mxu0 %v6021
      %v6231 = vpop.f32.mrb[0].mxu0
      %v6232 = vadd.f32 0.0, %v6231
      %v6233 = vpop.f32.mrb[0].mxu0
      %6234 = vmatprep.mubr.f32.mxu0 0.0
      %6235 = vmatmul.mubr.f32.gmra.mrb[0].mxu0 %v6024
      %v6236 = vpop.f32.mrb[0].mxu0
      %v6237 = vadd.f32 0.0, %v6236
      %v6238 = vpop.f32.mrb[0].mxu0
      %6239 = vmatprep.mubr.f32.mxu0 0.0
      %6240 = vmatmul.mubr.f32.gmra.mrb[0].mxu0 %v6027
      %v6241 = vpop.f32.mrb[0].mxu0
      %v6242 = vadd.f32 0.0, %v6241
      %v6243 = vpop.f32.mrb[0].mxu0
      %6244 = vmatprep.mubr.f32.mxu0 0.0
      %6245 = vmatmul.mubr.f32.gmra.mrb[0].mxu0 %v6030
      %v6246 = vpop.f32.mrb[0].mxu0
      %v6247 = vadd.f32 0.0, %v6246
      %v6248 = vpop.f32.mrb[0].mxu0
      %6249 = vmatprep.mubr.f32.mxu0 0.0
      %6250 = vmatmul.mubr.f32.gmra.mrb[0].mxu0 %v6033
      %v6251 = vpop.f32.mrb[0].mxu0
      %v6252 = vadd.f32 0.0, %v6251
      %v6253 = vpop.f32.mrb[0].mxu0
      %6254 = vmatprep.mubr.f32.mxu0 0.0
      %6255 = vmatmul.mubr.f32.gmra.mrb[0].mxu0 %v6036
      %v6256 = vpop.f32.mrb[0].mxu0
      %v6257 = vadd.f32 0.0, %v6256
      %v6258 = vpop.f32.mrb[0].mxu0
      %6259 = vmatprep.mubr.f32.mxu0 0.0
      %6260 = vmatmul.mubr.f32.gmra.mrb[0].mxu0 %v6039
      %v6261 = vpop.f32.mrb[0].mxu0
      %v6262 = vadd.f32 0.0, %v6261
      %v6263 = vpop.f32.mrb[0].mxu0
      %6264 = vmatprep.mubr.f32.mxu0 0.0
      %6265 = vmatmul.mubr.f32.gmra.mrb[0].mxu0 %v6042
      %v6266 = vpop.f32.mrb[0].mxu0
      %v6267 = vadd.f32 0.0, %v6266
      %v6268 = vpop.f32.mrb[0].mxu0
      %6269 = vmatprep.mubr.f32.mxu0 0.0
      %6270 = vmatmul.mubr.f32.gmra.mrb[0].mxu0 %v6045
      %v6271 = vpop.f32.mrb[0].mxu0
      %v6272 = vadd.f32 0.0, %v6271
      %v6273 = vpop.f32.mrb[0].mxu0
      %6274 = vdwg.mxu0
      %v6275 = vmul.f32 %v6117, %v4819
      %v6276 = vmul.f32 %v6122, %v4823
      %v6277 = vmul.f32 %v6127, %v4827
      %v6278 = vmul.f32 %v6132, %v4831
      %v6279 = vmul.f32 %v6137, %v4835
      %v6280 = vmul.f32 %v6142, %v4839
      %v6281 = vmul.f32 %v6147, %v4843
      %v6282 = vmul.f32 %v6152, %v4847
      %v6283 = vmul.f32 %v6157, %v4851
      %v6284 = vmul.f32 %v6162, %v4855
      %v6285 = vmul.f32 %v6167, %v4859
      %v6286 = vmul.f32 %v6172, %v4863
      %v6287 = vmul.f32 %v6177, %v4867
      %v6288 = vmul.f32 %v6182, %v4871
      %v6289 = vmul.f32 %v6187, %v4875
      %v6290 = vmul.f32 %v6192, %v4879
      %v6291 = vmul.f32 %v6197, %v4883
      %v6292 = vmul.f32 %v6202, %v4887
      %v6293 = vmul.f32 %v6207, %v4891
      %v6294 = vmul.f32 %v6212, %v4895
      %v6295 = vmul.f32 %v6217, %v4899
      %v6296 = vmul.f32 %v6222, %v4903
      %v6297 = vmul.f32 %v6227, %v4907
      %v6298 = vmul.f32 %v6232, %v4911
      %v6299 = vmul.f32 %v6237, %v4915
      %v6300 = vmul.f32 %v6242, %v4919
      %v6301 = vmul.f32 %v6247, %v4923
      %v6302 = vmul.f32 %v6252, %v4927
      %v6303 = vmul.f32 %v6257, %v4931
      %v6304 = vmul.f32 %v6262, %v4935
      %v6305 = vmul.f32 %v6267, %v4939
      %v6306 = vmul.f32 %v6272, %v4943
      %v6307 = vadd.f32 %v5885, %v6275
      %v6308 = vadd.f32 %v5886, %v6276
      %v6309 = vadd.f32 %v5887, %v6277
      %v6310 = vadd.f32 %v5888, %v6278
      %v6311 = vadd.f32 %v5889, %v6279
      %v6312 = vadd.f32 %v5890, %v6280
      %v6313 = vadd.f32 %v5891, %v6281
      %v6314 = vadd.f32 %v5892, %v6282
      %v6315 = vadd.f32 %v5893, %v6283
      %v6316 = vadd.f32 %v5894, %v6284
      %v6317 = vadd.f32 %v5895, %v6285
      %v6318 = vadd.f32 %v5896, %v6286
      %v6319 = vadd.f32 %v5897, %v6287
      %v6320 = vadd.f32 %v5898, %v6288
      %v6321 = vadd.f32 %v5899, %v6289
      %v6322 = vadd.f32 %v5900, %v6290
      %v6323 = vadd.f32 %v5901, %v6291
      %v6324 = vadd.f32 %v5902, %v6292
      %v6325 = vadd.f32 %v5903, %v6293
      %v6326 = vadd.f32 %v5904, %v6294
      %v6327 = vadd.f32 %v5905, %v6295
      %v6328 = vadd.f32 %v5906, %v6296
      %v6329 = vadd.f32 %v5907, %v6297
      %v6330 = vadd.f32 %v5908, %v6298
      %v6331 = vadd.f32 %v5909, %v6299
      %v6332 = vadd.f32 %v5910, %v6300
      %v6333 = vadd.f32 %v5911, %v6301
      %v6334 = vadd.f32 %v5912, %v6302
      %v6335 = vadd.f32 %v5913, %v6303
      %v6336 = vadd.f32 %v5914, %v6304
      %v6337 = vadd.f32 %v5915, %v6305
      %v6338 = vadd.f32 %v5916, %v6306
      %s6339 = scalar_lea.vmem %s3, 52
      %v6340 = vld [vmem:[%s6339] sm:$0xf]
      %v6342 = vsel %vm401, %v6340, 0
      %6344 = vmatprep.subr.mxu0 0.0
      %6345 = vmatpush1.msra.mxu0 %v6342
      %6346 = vmatprep.subr.mxu0 0.0
      %6347 = vmatpush1.msra.mxu0 0.0
      %6348 = vmatprep.subr.mxu0 0.0
      %6349 = vmatpush1.msra.mxu0 0.0
      %6350 = vmatprep.subr.mxu0 0.0
      %6351 = vmatpush1.msra.mxu0 0.0
      %6352 = vmatprep.subr.mxu0 0.0
      %6353 = vmatpush1.msra.mxu0 0.0
      %6354 = vmatprep.subr.mxu0 0.0
      %6355 = vmatpush1.msra.mxu0 0.0
      %6356 = vmatprep.subr.mxu0 0.0
      %6357 = vmatpush1.msra.mxu0 0.0
      %6358 = vmatprep.subr.mxu0 0.0
      %6359 = vmatpush1.msra.mxu0 0.0
      %6360 = vmatprep.subr.mxu0 0.0
      %6361 = vmatpush1.msra.mxu0 0.0
      %6362 = vmatprep.subr.mxu0 0.0
      %6363 = vmatpush1.msra.mxu0 0.0
      %6364 = vmatprep.subr.mxu0 0.0
      %6365 = vmatpush1.msra.mxu0 0.0
      %6366 = vmatprep.subr.mxu0 0.0
      %6367 = vmatpush1.msra.mxu0 0.0
      %6368 = vmatprep.subr.mxu0 0.0
      %6369 = vmatpush1.msra.mxu0 0.0
      %6370 = vmatprep.subr.mxu0 0.0
      %6371 = vmatpush1.msra.mxu0 0.0
      %6372 = vmatprep.subr.mxu0 0.0
      %6373 = vmatpush1.msra.mxu0 0.0
      %6374 = vmatprep.subr.mxu0 0.0
      %6375 = vmatpush1.msra.mxu0 0.0
      %6376 = vmatprep.subr.mxu0 0.0
      %6377 = vmatpush1.msra.mxu0 0.0
      %6378 = vmatprep.subr.mxu0 0.0
      %6379 = vmatpush1.msra.mxu0 0.0
      %6380 = vmatprep.subr.mxu0 0.0
      %6381 = vmatpush1.msra.mxu0 0.0
      %6382 = vmatprep.subr.mxu0 0.0
      %6383 = vmatpush1.msra.mxu0 0.0
      %6384 = vmatprep.subr.mxu0 0.0
      %6385 = vmatpush1.msra.mxu0 0.0
      %6386 = vmatprep.subr.mxu0 0.0
      %6387 = vmatpush1.msra.mxu0 0.0
      %6388 = vmatprep.subr.mxu0 0.0
      %6389 = vmatpush1.msra.mxu0 0.0
      %6390 = vmatprep.subr.mxu0 0.0
      %6391 = vmatpush1.msra.mxu0 0.0
      %6392 = vmatprep.subr.mxu0 0.0
      %6393 = vmatpush1.msra.mxu0 0.0
      %6394 = vmatprep.subr.mxu0 0.0
      %6395 = vmatpush1.msra.mxu0 0.0
      %6396 = vmatprep.subr.mxu0 0.0
      %6397 = vmatpush1.msra.mxu0 0.0
      %6398 = vmatprep.subr.mxu0 0.0
      %6399 = vmatpush1.msra.mxu0 0.0
      %6400 = vmatprep.subr.mxu0 0.0
      %6401 = vmatpush1.msra.mxu0 0.0
      %6402 = vmatprep.subr.mxu0 0.0
      %6403 = vmatpush1.msra.mxu0 0.0
      %6404 = vmatprep.subr.mxu0 0.0
      %6405 = vmatpush1.msra.mxu0 0.0
      %6406 = vmatprep.subr.mxu0 0.0
      %6407 = vmatpush1.msra.mxu0 0.0
      %6408 = vmatprep.mubr.f32.mxu0 0.0
      %6409 = vmatmul.mubr.f32.gmra.mrb[0].mxu0 %v306
      %v6410 = vpop.f32.mrb[0].mxu0
      %v6411 = vadd.f32 0.0, %v6410
      %v6412 = vpop.f32.mrb[0].mxu0
      %6413 = vmatprep.mubr.f32.mxu0 0.0
      %6414 = vmatmul.mubr.f32.gmra.mrb[0].mxu0 %v309
      %v6415 = vpop.f32.mrb[0].mxu0
      %v6416 = vadd.f32 0.0, %v6415
      %v6417 = vpop.f32.mrb[0].mxu0
      %6418 = vmatprep.mubr.f32.mxu0 0.0
      %6419 = vmatmul.mubr.f32.gmra.mrb[0].mxu0 %v312
      %v6420 = vpop.f32.mrb[0].mxu0
      %v6421 = vadd.f32 0.0, %v6420
      %v6422 = vpop.f32.mrb[0].mxu0
      %6423 = vmatprep.mubr.f32.mxu0 0.0
      %6424 = vmatmul.mubr.f32.gmra.mrb[0].mxu0 %v315
      %v6425 = vpop.f32.mrb[0].mxu0
      %v6426 = vadd.f32 0.0, %v6425
      %v6427 = vpop.f32.mrb[0].mxu0
      %6428 = vmatprep.mubr.f32.mxu0 0.0
      %6429 = vmatmul.mubr.f32.gmra.mrb[0].mxu0 %v318
      %v6430 = vpop.f32.mrb[0].mxu0
      %v6431 = vadd.f32 0.0, %v6430
      %v6432 = vpop.f32.mrb[0].mxu0
      %6433 = vmatprep.mubr.f32.mxu0 0.0
      %6434 = vmatmul.mubr.f32.gmra.mrb[0].mxu0 %v321
      %v6435 = vpop.f32.mrb[0].mxu0
      %v6436 = vadd.f32 0.0, %v6435
      %v6437 = vpop.f32.mrb[0].mxu0
      %6438 = vmatprep.mubr.f32.mxu0 0.0
      %6439 = vmatmul.mubr.f32.gmra.mrb[0].mxu0 %v324
      %v6440 = vpop.f32.mrb[0].mxu0
      %v6441 = vadd.f32 0.0, %v6440
      %v6442 = vpop.f32.mrb[0].mxu0
      %6443 = vmatprep.mubr.f32.mxu0 0.0
      %6444 = vmatmul.mubr.f32.gmra.mrb[0].mxu0 %v327
      %v6445 = vpop.f32.mrb[0].mxu0
      %v6446 = vadd.f32 0.0, %v6445
      %v6447 = vpop.f32.mrb[0].mxu0
      %6448 = vmatprep.mubr.f32.mxu0 0.0
      %6449 = vmatmul.mubr.f32.gmra.mrb[0].mxu0 %v330
      %v6450 = vpop.f32.mrb[0].mxu0
      %v6451 = vadd.f32 0.0, %v6450
      %v6452 = vpop.f32.mrb[0].mxu0
      %6453 = vmatprep.mubr.f32.mxu0 0.0
      %6454 = vmatmul.mubr.f32.gmra.mrb[0].mxu0 %v333
      %v6455 = vpop.f32.mrb[0].mxu0
      %v6456 = vadd.f32 0.0, %v6455
      %v6457 = vpop.f32.mrb[0].mxu0
      %6458 = vmatprep.mubr.f32.mxu0 0.0
      %6459 = vmatmul.mubr.f32.gmra.mrb[0].mxu0 %v336
      %v6460 = vpop.f32.mrb[0].mxu0
      %v6461 = vadd.f32 0.0, %v6460
      %v6462 = vpop.f32.mrb[0].mxu0
      %6463 = vmatprep.mubr.f32.mxu0 0.0
      %6464 = vmatmul.mubr.f32.gmra.mrb[0].mxu0 %v339
      %v6465 = vpop.f32.mrb[0].mxu0
      %v6466 = vadd.f32 0.0, %v6465
      %v6467 = vpop.f32.mrb[0].mxu0
      %6468 = vmatprep.mubr.f32.mxu0 0.0
      %6469 = vmatmul.mubr.f32.gmra.mrb[0].mxu0 %v342
      %v6470 = vpop.f32.mrb[0].mxu0
      %v6471 = vadd.f32 0.0, %v6470
      %v6472 = vpop.f32.mrb[0].mxu0
      %6473 = vmatprep.mubr.f32.mxu0 0.0
      %6474 = vmatmul.mubr.f32.gmra.mrb[0].mxu0 %v345
      %v6475 = vpop.f32.mrb[0].mxu0
      %v6476 = vadd.f32 0.0, %v6475
      %v6477 = vpop.f32.mrb[0].mxu0
      %6478 = vmatprep.mubr.f32.mxu0 0.0
      %6479 = vmatmul.mubr.f32.gmra.mrb[0].mxu0 %v348
      %v6480 = vpop.f32.mrb[0].mxu0
      %v6481 = vadd.f32 0.0, %v6480
      %v6482 = vpop.f32.mrb[0].mxu0
      %6483 = vmatprep.mubr.f32.mxu0 0.0
      %6484 = vmatmul.mubr.f32.gmra.mrb[0].mxu0 %v351
      %v6485 = vpop.f32.mrb[0].mxu0
      %v6486 = vadd.f32 0.0, %v6485
      %v6487 = vpop.f32.mrb[0].mxu0
      %6488 = vmatprep.mubr.f32.mxu0 0.0
      %6489 = vmatmul.mubr.f32.gmra.mrb[0].mxu0 %v354
      %v6490 = vpop.f32.mrb[0].mxu0
      %v6491 = vadd.f32 0.0, %v6490
      %v6492 = vpop.f32.mrb[0].mxu0
      %6493 = vmatprep.mubr.f32.mxu0 0.0
      %6494 = vmatmul.mubr.f32.gmra.mrb[0].mxu0 %v357
      %v6495 = vpop.f32.mrb[0].mxu0
      %v6496 = vadd.f32 0.0, %v6495
      %v6497 = vpop.f32.mrb[0].mxu0
      %6498 = vmatprep.mubr.f32.mxu0 0.0
      %6499 = vmatmul.mubr.f32.gmra.mrb[0].mxu0 %v360
      %v6500 = vpop.f32.mrb[0].mxu0
      %v6501 = vadd.f32 0.0, %v6500
      %v6502 = vpop.f32.mrb[0].mxu0
      %6503 = vmatprep.mubr.f32.mxu0 0.0
      %6504 = vmatmul.mubr.f32.gmra.mrb[0].mxu0 %v363
      %v6505 = vpop.f32.mrb[0].mxu0
      %v6506 = vadd.f32 0.0, %v6505
      %v6507 = vpop.f32.mrb[0].mxu0
      %6508 = vmatprep.mubr.f32.mxu0 0.0
      %6509 = vmatmul.mubr.f32.gmra.mrb[0].mxu0 %v366
      %v6510 = vpop.f32.mrb[0].mxu0
      %v6511 = vadd.f32 0.0, %v6510
      %v6512 = vpop.f32.mrb[0].mxu0
      %6513 = vmatprep.mubr.f32.mxu0 0.0
      %6514 = vmatmul.mubr.f32.gmra.mrb[0].mxu0 %v369
      %v6515 = vpop.f32.mrb[0].mxu0
      %v6516 = vadd.f32 0.0, %v6515
      %v6517 = vpop.f32.mrb[0].mxu0
      %6518 = vmatprep.mubr.f32.mxu0 0.0
      %6519 = vmatmul.mubr.f32.gmra.mrb[0].mxu0 %v372
      %v6520 = vpop.f32.mrb[0].mxu0
      %v6521 = vadd.f32 0.0, %v6520
      %v6522 = vpop.f32.mrb[0].mxu0
      %6523 = vmatprep.mubr.f32.mxu0 0.0
      %6524 = vmatmul.mubr.f32.gmra.mrb[0].mxu0 %v375
      %v6525 = vpop.f32.mrb[0].mxu0
      %v6526 = vadd.f32 0.0, %v6525
      %v6527 = vpop.f32.mrb[0].mxu0
      %6528 = vmatprep.mubr.f32.mxu0 0.0
      %6529 = vmatmul.mubr.f32.gmra.mrb[0].mxu0 %v378
      %v6530 = vpop.f32.mrb[0].mxu0
      %v6531 = vadd.f32 0.0, %v6530
      %v6532 = vpop.f32.mrb[0].mxu0
      %6533 = vmatprep.mubr.f32.mxu0 0.0
      %6534 = vmatmul.mubr.f32.gmra.mrb[0].mxu0 %v381
      %v6535 = vpop.f32.mrb[0].mxu0
      %v6536 = vadd.f32 0.0, %v6535
      %v6537 = vpop.f32.mrb[0].mxu0
      %6538 = vmatprep.mubr.f32.mxu0 0.0
      %6539 = vmatmul.mubr.f32.gmra.mrb[0].mxu0 %v384
      %v6540 = vpop.f32.mrb[0].mxu0
      %v6541 = vadd.f32 0.0, %v6540
      %v6542 = vpop.f32.mrb[0].mxu0
      %6543 = vmatprep.mubr.f32.mxu0 0.0
      %6544 = vmatmul.mubr.f32.gmra.mrb[0].mxu0 %v387
      %v6545 = vpop.f32.mrb[0].mxu0
      %v6546 = vadd.f32 0.0, %v6545
      %v6547 = vpop.f32.mrb[0].mxu0
      %6548 = vmatprep.mubr.f32.mxu0 0.0
      %6549 = vmatmul.mubr.f32.gmra.mrb[0].mxu0 %v390
      %v6550 = vpop.f32.mrb[0].mxu0
      %v6551 = vadd.f32 0.0, %v6550
      %v6552 = vpop.f32.mrb[0].mxu0
      %6553 = vmatprep.mubr.f32.mxu0 0.0
      %6554 = vmatmul.mubr.f32.gmra.mrb[0].mxu0 %v393
      %v6555 = vpop.f32.mrb[0].mxu0
      %v6556 = vadd.f32 0.0, %v6555
      %v6557 = vpop.f32.mrb[0].mxu0
      %6558 = vmatprep.mubr.f32.mxu0 0.0
      %6559 = vmatmul.mubr.f32.gmra.mrb[0].mxu0 %v396
      %v6560 = vpop.f32.mrb[0].mxu0
      %v6561 = vadd.f32 0.0, %v6560
      %v6562 = vpop.f32.mrb[0].mxu0
      %6563 = vmatprep.mubr.f32.mxu0 0.0
      %6564 = vmatmul.mubr.f32.gmra.mrb[0].mxu0 %v399
      %v6565 = vpop.f32.mrb[0].mxu0
      %v6566 = vadd.f32 0.0, %v6565
      %v6567 = vpop.f32.mrb[0].mxu0
      %6568 = vdwg.mxu0
      %v6569 = vadd.f32 %v6307, %v6411
      %v6570 = vadd.f32 %v6308, %v6416
      %v6571 = vadd.f32 %v6309, %v6421
      %v6572 = vadd.f32 %v6310, %v6426
      %v6573 = vadd.f32 %v6311, %v6431
      %v6574 = vadd.f32 %v6312, %v6436
      %v6575 = vadd.f32 %v6313, %v6441
      %v6576 = vadd.f32 %v6314, %v6446
      %v6577 = vadd.f32 %v6315, %v6451
      %v6578 = vadd.f32 %v6316, %v6456
      %v6579 = vadd.f32 %v6317, %v6461
      %v6580 = vadd.f32 %v6318, %v6466
      %v6581 = vadd.f32 %v6319, %v6471
      %v6582 = vadd.f32 %v6320, %v6476
      %v6583 = vadd.f32 %v6321, %v6481
      %v6584 = vadd.f32 %v6322, %v6486
      %v6585 = vadd.f32 %v6323, %v6491
      %v6586 = vadd.f32 %v6324, %v6496
      %v6587 = vadd.f32 %v6325, %v6501
      %v6588 = vadd.f32 %v6326, %v6506
      %v6589 = vadd.f32 %v6327, %v6511
      %v6590 = vadd.f32 %v6328, %v6516
      %v6591 = vadd.f32 %v6329, %v6521
      %v6592 = vadd.f32 %v6330, %v6526
      %v6593 = vadd.f32 %v6331, %v6531
      %v6594 = vadd.f32 %v6332, %v6536
      %v6595 = vadd.f32 %v6333, %v6541
      %v6596 = vadd.f32 %v6334, %v6546
      %v6597 = vadd.f32 %v6335, %v6551
      %v6598 = vadd.f32 %v6336, %v6556
      %v6599 = vadd.f32 %v6337, %v6561
      %v6600 = vadd.f32 %v6338, %v6566
      %v6601 = vld [vmem:[%s227 + $0x13e] sm:$0xff]
      %v6602 = vld [vmem:[%s227 + $0x146] sm:$0xff]
      %v6603 = vld [vmem:[%s227 + $0x14e] sm:$0xff]
      %v6604 = vld [vmem:[%s227 + $0x156] sm:$0xff]
      %v6605 = vld [vmem:[%s227 + $0x15e] sm:$0xff]
      %v6606 = vld [vmem:[%s227 + $0x166] sm:$0xff]
      %v6607 = vld [vmem:[%s227 + $0x16e] sm:$0xff]
      %v6608 = vld [vmem:[%s227 + $0x176] sm:$0xff]
      %v6609 = vld [vmem:[%s227 + $0x17e] sm:$0xff]
      %v6610 = vld [vmem:[%s227 + $0x186] sm:$0xff]
      %v6611 = vld [vmem:[%s227 + $0x18e] sm:$0xff]
      %v6612 = vld [vmem:[%s227 + $0x196] sm:$0xff]
      %v6613 = vld [vmem:[%s227 + $0x19e] sm:$0xff]
      %v6614 = vld [vmem:[%s227 + $0x1a6] sm:$0xff]
      %v6615 = vld [vmem:[%s227 + $0x1ae] sm:$0xff]
      %v6616 = vld [vmem:[%s227 + $0x1b6] sm:$0xff]
      %v6617 = vld [vmem:[%s227 + $0x1be] sm:$0xff]
      %v6618 = vld [vmem:[%s227 + $0x1c6] sm:$0xff]
      %v6619 = vld [vmem:[%s227 + $0x1ce] sm:$0xff]
      %v6620 = vld [vmem:[%s227 + $0x1d6] sm:$0xff]
      %v6621 = vld [vmem:[%s227 + $0x1de] sm:$0xff]
      %v6622 = vld [vmem:[%s227 + $0x1e6] sm:$0xff]
      %v6623 = vld [vmem:[%s227 + $0x1ee] sm:$0xff]
      %v6624 = vld [vmem:[%s227 + $0x1f6] sm:$0xff]
      %v6625 = vld [vmem:[%s227 + $0x1fe] sm:$0xff]
      %v6626 = vld [vmem:[%s227 + $0x206] sm:$0xff]
      %v6627 = vld [vmem:[%s227 + $0x20e] sm:$0xff]
      %v6628 = vld [vmem:[%s227 + $0x216] sm:$0xff]
      %v6629 = vld [vmem:[%s227 + $0x21e] sm:$0xff]
      %v6630 = vld [vmem:[%s227 + $0x226] sm:$0xff]
      %v6631 = vld [vmem:[%s227 + $0x22e] sm:$0xff]
      %v6632 = vld [vmem:[%s227 + $0x236] sm:$0xff]
      %s6633 = scalar_lea.vmem %s3, 56
      %v6634 = vld [vmem:[%s6633] sm:$0xf]
      %v6636 = vsel %vm304, %v6601, 0
      %v6639 = vsel %vm304, %v6602, 0
      %v6642 = vsel %vm304, %v6603, 0
      %v6645 = vsel %vm304, %v6604, 0
      %v6648 = vsel %vm304, %v6605, 0
      %v6651 = vsel %vm304, %v6606, 0
      %v6654 = vsel %vm304, %v6607, 0
      %v6657 = vsel %vm304, %v6608, 0
      %v6660 = vsel %vm304, %v6609, 0
      %v6663 = vsel %vm304, %v6610, 0
      %v6666 = vsel %vm304, %v6611, 0
      %v6669 = vsel %vm304, %v6612, 0
      %v6672 = vsel %vm304, %v6613, 0
      %v6675 = vsel %vm304, %v6614, 0
      %v6678 = vsel %vm304, %v6615, 0
      %v6681 = vsel %vm304, %v6616, 0
      %v6684 = vsel %vm304, %v6617, 0
      %v6687 = vsel %vm304, %v6618, 0
      %v6690 = vsel %vm304, %v6619, 0
      %v6693 = vsel %vm304, %v6620, 0
      %v6696 = vsel %vm304, %v6621, 0
      %v6699 = vsel %vm304, %v6622, 0
      %v6702 = vsel %vm304, %v6623, 0
      %v6705 = vsel %vm304, %v6624, 0
      %v6708 = vsel %vm304, %v6625, 0
      %v6711 = vsel %vm304, %v6626, 0
      %v6714 = vsel %vm304, %v6627, 0
      %v6717 = vsel %vm304, %v6628, 0
      %v6720 = vsel %vm304, %v6629, 0
      %v6723 = vsel %vm304, %v6630, 0
      %v6726 = vsel %vm304, %v6631, 0
      %v6729 = vsel %vm304, %v6632, 0
      %v6732 = vsel %vm401, %v6634, 0
      %6734 = vmatprep.subr.mxu0 0.0
      %6735 = vmatpush1.msra.mxu0 %v6732
      %6736 = vmatprep.subr.mxu0 0.0
      %6737 = vmatpush1.msra.mxu0 0.0
      %6738 = vmatprep.subr.mxu0 0.0
      %6739 = vmatpush1.msra.mxu0 0.0
      %6740 = vmatprep.subr.mxu0 0.0
      %6741 = vmatpush1.msra.mxu0 0.0
      %6742 = vmatprep.subr.mxu0 0.0
      %6743 = vmatpush1.msra.mxu0 0.0
      %6744 = vmatprep.subr.mxu0 0.0
      %6745 = vmatpush1.msra.mxu0 0.0
      %6746 = vmatprep.subr.mxu0 0.0
      %6747 = vmatpush1.msra.mxu0 0.0
      %6748 = vmatprep.subr.mxu0 0.0
      %6749 = vmatpush1.msra.mxu0 0.0
      %6750 = vmatprep.subr.mxu0 0.0
      %6751 = vmatpush1.msra.mxu0 0.0
      %6752 = vmatprep.subr.mxu0 0.0
      %6753 = vmatpush1.msra.mxu0 0.0
      %6754 = vmatprep.subr.mxu0 0.0
      %6755 = vmatpush1.msra.mxu0 0.0
      %6756 = vmatprep.subr.mxu0 0.0
      %6757 = vmatpush1.msra.mxu0 0.0
      %6758 = vmatprep.subr.mxu0 0.0
      %6759 = vmatpush1.msra.mxu0 0.0
      %6760 = vmatprep.subr.mxu0 0.0
      %6761 = vmatpush1.msra.mxu0 0.0
      %6762 = vmatprep.subr.mxu0 0.0
      %6763 = vmatpush1.msra.mxu0 0.0
      %6764 = vmatprep.subr.mxu0 0.0
      %6765 = vmatpush1.msra.mxu0 0.0
      %6766 = vmatprep.subr.mxu0 0.0
      %6767 = vmatpush1.msra.mxu0 0.0
      %6768 = vmatprep.subr.mxu0 0.0
      %6769 = vmatpush1.msra.mxu0 0.0
      %6770 = vmatprep.subr.mxu0 0.0
      %6771 = vmatpush1.msra.mxu0 0.0
      %6772 = vmatprep.subr.mxu0 0.0
      %6773 = vmatpush1.msra.mxu0 0.0
      %6774 = vmatprep.subr.mxu0 0.0
      %6775 = vmatpush1.msra.mxu0 0.0
      %6776 = vmatprep.subr.mxu0 0.0
      %6777 = vmatpush1.msra.mxu0 0.0
      %6778 = vmatprep.subr.mxu0 0.0
      %6779 = vmatpush1.msra.mxu0 0.0
      %6780 = vmatprep.subr.mxu0 0.0
      %6781 = vmatpush1.msra.mxu0 0.0
      %6782 = vmatprep.subr.mxu0 0.0
      %6783 = vmatpush1.msra.mxu0 0.0
      %6784 = vmatprep.subr.mxu0 0.0
      %6785 = vmatpush1.msra.mxu0 0.0
      %6786 = vmatprep.subr.mxu0 0.0
      %6787 = vmatpush1.msra.mxu0 0.0
      %6788 = vmatprep.subr.mxu0 0.0
      %6789 = vmatpush1.msra.mxu0 0.0
      %6790 = vmatprep.subr.mxu0 0.0
      %6791 = vmatpush1.msra.mxu0 0.0
      %6792 = vmatprep.subr.mxu0 0.0
      %6793 = vmatpush1.msra.mxu0 0.0
      %6794 = vmatprep.subr.mxu0 0.0
      %6795 = vmatpush1.msra.mxu0 0.0
      %6796 = vmatprep.subr.mxu0 0.0
      %6797 = vmatpush1.msra.mxu0 0.0
      %6798 = vmatprep.mubr.f32.mxu0 0.0
      %6799 = vmatmul.mubr.f32.gmra.mrb[0].mxu0 %v6636
      %v6800 = vpop.f32.mrb[0].mxu0
      %v6801 = vadd.f32 0.0, %v6800
      %v6802 = vpop.f32.mrb[0].mxu0
      %6803 = vmatprep.mubr.f32.mxu0 0.0
      %6804 = vmatmul.mubr.f32.gmra.mrb[0].mxu0 %v6639
      %v6805 = vpop.f32.mrb[0].mxu0
      %v6806 = vadd.f32 0.0, %v6805
      %v6807 = vpop.f32.mrb[0].mxu0
      %6808 = vmatprep.mubr.f32.mxu0 0.0
      %6809 = vmatmul.mubr.f32.gmra.mrb[0].mxu0 %v6642
      %v6810 = vpop.f32.mrb[0].mxu0
      %v6811 = vadd.f32 0.0, %v6810
      %v6812 = vpop.f32.mrb[0].mxu0
      %6813 = vmatprep.mubr.f32.mxu0 0.0
      %6814 = vmatmul.mubr.f32.gmra.mrb[0].mxu0 %v6645
      %v6815 = vpop.f32.mrb[0].mxu0
      %v6816 = vadd.f32 0.0, %v6815
      %v6817 = vpop.f32.mrb[0].mxu0
      %6818 = vmatprep.mubr.f32.mxu0 0.0
      %6819 = vmatmul.mubr.f32.gmra.mrb[0].mxu0 %v6648
      %v6820 = vpop.f32.mrb[0].mxu0
      %v6821 = vadd.f32 0.0, %v6820
      %v6822 = vpop.f32.mrb[0].mxu0
      %6823 = vmatprep.mubr.f32.mxu0 0.0
      %6824 = vmatmul.mubr.f32.gmra.mrb[0].mxu0 %v6651
      %v6825 = vpop.f32.mrb[0].mxu0
      %v6826 = vadd.f32 0.0, %v6825
      %v6827 = vpop.f32.mrb[0].mxu0
      %6828 = vmatprep.mubr.f32.mxu0 0.0
      %6829 = vmatmul.mubr.f32.gmra.mrb[0].mxu0 %v6654
      %v6830 = vpop.f32.mrb[0].mxu0
      %v6831 = vadd.f32 0.0, %v6830
      %v6832 = vpop.f32.mrb[0].mxu0
      %6833 = vmatprep.mubr.f32.mxu0 0.0
      %6834 = vmatmul.mubr.f32.gmra.mrb[0].mxu0 %v6657
      %v6835 = vpop.f32.mrb[0].mxu0
      %v6836 = vadd.f32 0.0, %v6835
      %v6837 = vpop.f32.mrb[0].mxu0
      %6838 = vmatprep.mubr.f32.mxu0 0.0
      %6839 = vmatmul.mubr.f32.gmra.mrb[0].mxu0 %v6660
      %v6840 = vpop.f32.mrb[0].mxu0
      %v6841 = vadd.f32 0.0, %v6840
      %v6842 = vpop.f32.mrb[0].mxu0
      %6843 = vmatprep.mubr.f32.mxu0 0.0
      %6844 = vmatmul.mubr.f32.gmra.mrb[0].mxu0 %v6663
      %v6845 = vpop.f32.mrb[0].mxu0
      %v6846 = vadd.f32 0.0, %v6845
      %v6847 = vpop.f32.mrb[0].mxu0
      %6848 = vmatprep.mubr.f32.mxu0 0.0
      %6849 = vmatmul.mubr.f32.gmra.mrb[0].mxu0 %v6666
      %v6850 = vpop.f32.mrb[0].mxu0
      %v6851 = vadd.f32 0.0, %v6850
      %v6852 = vpop.f32.mrb[0].mxu0
      %6853 = vmatprep.mubr.f32.mxu0 0.0
      %6854 = vmatmul.mubr.f32.gmra.mrb[0].mxu0 %v6669
      %v6855 = vpop.f32.mrb[0].mxu0
      %v6856 = vadd.f32 0.0, %v6855
      %v6857 = vpop.f32.mrb[0].mxu0
      %6858 = vmatprep.mubr.f32.mxu0 0.0
      %6859 = vmatmul.mubr.f32.gmra.mrb[0].mxu0 %v6672
      %v6860 = vpop.f32.mrb[0].mxu0
      %v6861 = vadd.f32 0.0, %v6860
      %v6862 = vpop.f32.mrb[0].mxu0
      %6863 = vmatprep.mubr.f32.mxu0 0.0
      %6864 = vmatmul.mubr.f32.gmra.mrb[0].mxu0 %v6675
      %v6865 = vpop.f32.mrb[0].mxu0
      %v6866 = vadd.f32 0.0, %v6865
      %v6867 = vpop.f32.mrb[0].mxu0
      %6868 = vmatprep.mubr.f32.mxu0 0.0
      %6869 = vmatmul.mubr.f32.gmra.mrb[0].mxu0 %v6678
      %v6870 = vpop.f32.mrb[0].mxu0
      %v6871 = vadd.f32 0.0, %v6870
      %v6872 = vpop.f32.mrb[0].mxu0
      %6873 = vmatprep.mubr.f32.mxu0 0.0
      %6874 = vmatmul.mubr.f32.gmra.mrb[0].mxu0 %v6681
      %v6875 = vpop.f32.mrb[0].mxu0
      %v6876 = vadd.f32 0.0, %v6875
      %v6877 = vpop.f32.mrb[0].mxu0
      %6878 = vmatprep.mubr.f32.mxu0 0.0
      %6879 = vmatmul.mubr.f32.gmra.mrb[0].mxu0 %v6684
      %v6880 = vpop.f32.mrb[0].mxu0
      %v6881 = vadd.f32 0.0, %v6880
      %v6882 = vpop.f32.mrb[0].mxu0
      %6883 = vmatprep.mubr.f32.mxu0 0.0
      %6884 = vmatmul.mubr.f32.gmra.mrb[0].mxu0 %v6687
      %v6885 = vpop.f32.mrb[0].mxu0
      %v6886 = vadd.f32 0.0, %v6885
      %v6887 = vpop.f32.mrb[0].mxu0
      %6888 = vmatprep.mubr.f32.mxu0 0.0
      %6889 = vmatmul.mubr.f32.gmra.mrb[0].mxu0 %v6690
      %v6890 = vpop.f32.mrb[0].mxu0
      %v6891 = vadd.f32 0.0, %v6890
      %v6892 = vpop.f32.mrb[0].mxu0
      %6893 = vmatprep.mubr.f32.mxu0 0.0
      %6894 = vmatmul.mubr.f32.gmra.mrb[0].mxu0 %v6693
      %v6895 = vpop.f32.mrb[0].mxu0
      %v6896 = vadd.f32 0.0, %v6895
      %v6897 = vpop.f32.mrb[0].mxu0
      %6898 = vmatprep.mubr.f32.mxu0 0.0
      %6899 = vmatmul.mubr.f32.gmra.mrb[0].mxu0 %v6696
      %v6900 = vpop.f32.mrb[0].mxu0
      %v6901 = vadd.f32 0.0, %v6900
      %v6902 = vpop.f32.mrb[0].mxu0
      %6903 = vmatprep.mubr.f32.mxu0 0.0
      %6904 = vmatmul.mubr.f32.gmra.mrb[0].mxu0 %v6699
      %v6905 = vpop.f32.mrb[0].mxu0
      %v6906 = vadd.f32 0.0, %v6905
      %v6907 = vpop.f32.mrb[0].mxu0
      %6908 = vmatprep.mubr.f32.mxu0 0.0
      %6909 = vmatmul.mubr.f32.gmra.mrb[0].mxu0 %v6702
      %v6910 = vpop.f32.mrb[0].mxu0
      %v6911 = vadd.f32 0.0, %v6910
      %v6912 = vpop.f32.mrb[0].mxu0
      %6913 = vmatprep.mubr.f32.mxu0 0.0
      %6914 = vmatmul.mubr.f32.gmra.mrb[0].mxu0 %v6705
      %v6915 = vpop.f32.mrb[0].mxu0
      %v6916 = vadd.f32 0.0, %v6915
      %v6917 = vpop.f32.mrb[0].mxu0
      %6918 = vmatprep.mubr.f32.mxu0 0.0
      %6919 = vmatmul.mubr.f32.gmra.mrb[0].mxu0 %v6708
      %v6920 = vpop.f32.mrb[0].mxu0
      %v6921 = vadd.f32 0.0, %v6920
      %v6922 = vpop.f32.mrb[0].mxu0
      %6923 = vmatprep.mubr.f32.mxu0 0.0
      %6924 = vmatmul.mubr.f32.gmra.mrb[0].mxu0 %v6711
      %v6925 = vpop.f32.mrb[0].mxu0
      %v6926 = vadd.f32 0.0, %v6925
      %v6927 = vpop.f32.mrb[0].mxu0
      %6928 = vmatprep.mubr.f32.mxu0 0.0
      %6929 = vmatmul.mubr.f32.gmra.mrb[0].mxu0 %v6714
      %v6930 = vpop.f32.mrb[0].mxu0
      %v6931 = vadd.f32 0.0, %v6930
      %v6932 = vpop.f32.mrb[0].mxu0
      %6933 = vmatprep.mubr.f32.mxu0 0.0
      %6934 = vmatmul.mubr.f32.gmra.mrb[0].mxu0 %v6717
      %v6935 = vpop.f32.mrb[0].mxu0
      %v6936 = vadd.f32 0.0, %v6935
      %v6937 = vpop.f32.mrb[0].mxu0
      %6938 = vmatprep.mubr.f32.mxu0 0.0
      %6939 = vmatmul.mubr.f32.gmra.mrb[0].mxu0 %v6720
      %v6940 = vpop.f32.mrb[0].mxu0
      %v6941 = vadd.f32 0.0, %v6940
      %v6942 = vpop.f32.mrb[0].mxu0
      %6943 = vmatprep.mubr.f32.mxu0 0.0
      %6944 = vmatmul.mubr.f32.gmra.mrb[0].mxu0 %v6723
      %v6945 = vpop.f32.mrb[0].mxu0
      %v6946 = vadd.f32 0.0, %v6945
      %v6947 = vpop.f32.mrb[0].mxu0
      %6948 = vmatprep.mubr.f32.mxu0 0.0
      %6949 = vmatmul.mubr.f32.gmra.mrb[0].mxu0 %v6726
      %v6950 = vpop.f32.mrb[0].mxu0
      %v6951 = vadd.f32 0.0, %v6950
      %v6952 = vpop.f32.mrb[0].mxu0
      %6953 = vmatprep.mubr.f32.mxu0 0.0
      %6954 = vmatmul.mubr.f32.gmra.mrb[0].mxu0 %v6729
      %v6955 = vpop.f32.mrb[0].mxu0
      %v6956 = vadd.f32 0.0, %v6955
      %v6957 = vpop.f32.mrb[0].mxu0
      %6958 = vdwg.mxu0
      %v6959 = vmul.f32 %v6801, %v5727
      %v6960 = vmul.f32 %v6806, %v5731
      %v6961 = vmul.f32 %v6811, %v5735
      %v6962 = vmul.f32 %v6816, %v5739
      %v6963 = vmul.f32 %v6821, %v5743
      %v6964 = vmul.f32 %v6826, %v5747
      %v6965 = vmul.f32 %v6831, %v5751
      %v6966 = vmul.f32 %v6836, %v5755
      %v6967 = vmul.f32 %v6841, %v5759
      %v6968 = vmul.f32 %v6846, %v5763
      %v6969 = vmul.f32 %v6851, %v5767
      %v6970 = vmul.f32 %v6856, %v5771
      %v6971 = vmul.f32 %v6861, %v5775
      %v6972 = vmul.f32 %v6866, %v5779
      %v6973 = vmul.f32 %v6871, %v5783
      %v6974 = vmul.f32 %v6876, %v5787
      %v6975 = vmul.f32 %v6881, %v5791
      %v6976 = vmul.f32 %v6886, %v5795
      %v6977 = vmul.f32 %v6891, %v5799
      %v6978 = vmul.f32 %v6896, %v5803
      %v6979 = vmul.f32 %v6901, %v5807
      %v6980 = vmul.f32 %v6906, %v5811
      %v6981 = vmul.f32 %v6911, %v5815
      %v6982 = vmul.f32 %v6916, %v5819
      %v6983 = vmul.f32 %v6921, %v5823
      %v6984 = vmul.f32 %v6926, %v5827
      %v6985 = vmul.f32 %v6931, %v5831
      %v6986 = vmul.f32 %v6936, %v5835
      %v6987 = vmul.f32 %v6941, %v5839
      %v6988 = vmul.f32 %v6946, %v5843
      %v6989 = vmul.f32 %v6951, %v5847
      %v6990 = vmul.f32 %v6956, %v5851
      %v6991 = vadd.f32 %v6569, %v6959
      %v6992 = vadd.f32 %v6570, %v6960
      %v6993 = vadd.f32 %v6571, %v6961
      %v6994 = vadd.f32 %v6572, %v6962
      %v6995 = vadd.f32 %v6573, %v6963
      %v6996 = vadd.f32 %v6574, %v6964
      %v6997 = vadd.f32 %v6575, %v6965
      %v6998 = vadd.f32 %v6576, %v6966
      %v6999 = vadd.f32 %v6577, %v6967
      %v7000 = vadd.f32 %v6578, %v6968
      %v7001 = vadd.f32 %v6579, %v6969
      %v7002 = vadd.f32 %v6580, %v6970
      %v7003 = vadd.f32 %v6581, %v6971
      %v7004 = vadd.f32 %v6582, %v6972
      %v7005 = vadd.f32 %v6583, %v6973
      %v7006 = vadd.f32 %v6584, %v6974
      %v7007 = vadd.f32 %v6585, %v6975
      %v7008 = vadd.f32 %v6586, %v6976
      %v7009 = vadd.f32 %v6587, %v6977
      %v7010 = vadd.f32 %v6588, %v6978
      %v7011 = vadd.f32 %v6589, %v6979
      %v7012 = vadd.f32 %v6590, %v6980
      %v7013 = vadd.f32 %v6591, %v6981
      %v7014 = vadd.f32 %v6592, %v6982
      %v7015 = vadd.f32 %v6593, %v6983
      %v7016 = vadd.f32 %v6594, %v6984
      %v7017 = vadd.f32 %v6595, %v6985
      %v7018 = vadd.f32 %v6596, %v6986
      %v7019 = vadd.f32 %v6597, %v6987
      %v7020 = vadd.f32 %v6598, %v6988
      %v7021 = vadd.f32 %v6599, %v6989
      %v7022 = vadd.f32 %v6600, %v6990
      %v7023 = vld [vmem:[%s227 + $0x1e6] sm:$0xff]
      %v7024 = vld [vmem:[%s227 + $0x1ee] sm:$0xff]
      %v7025 = vld [vmem:[%s227 + $0x1f6] sm:$0xff]
      %v7026 = vld [vmem:[%s227 + $0x1fe] sm:$0xff]
      %v7027 = vld [vmem:[%s227 + $0x206] sm:$0xff]
      %v7028 = vld [vmem:[%s227 + $0x20e] sm:$0xff]
      %v7029 = vld [vmem:[%s227 + $0x216] sm:$0xff]
      %v7030 = vld [vmem:[%s227 + $0x21e] sm:$0xff]
      %v7031 = vld [vmem:[%s227 + $0x226] sm:$0xff]
      %v7032 = vld [vmem:[%s227 + $0x22e] sm:$0xff]
      %v7033 = vld [vmem:[%s227 + $0x236] sm:$0xff]
      %v7034 = vld [vmem:[%s227 + $0x23e] sm:$0xff]
      %v7035 = vld [vmem:[%s227 + $0x246] sm:$0xff]
      %v7036 = vld [vmem:[%s227 + $0x24e] sm:$0xff]
      %v7037 = vld [vmem:[%s227 + $0x256] sm:$0xff]
      %v7038 = vld [vmem:[%s227 + $0x25e] sm:$0xff]
      %v7039 = vld [vmem:[%s227 + $0x266] sm:$0xff]
      %v7040 = vld [vmem:[%s227 + $0x26e] sm:$0xff]
      %v7041 = vld [vmem:[%s227 + $0x276] sm:$0xff]
      %v7042 = vld [vmem:[%s227 + $0x27e] sm:$0xff]
      %v7043 = vld [vmem:[%s227 + $0x286] sm:$0xff]
      %v7044 = vld [vmem:[%s227 + $0x28e] sm:$0xff]
      %v7045 = vld [vmem:[%s227 + $0x296] sm:$0xff]
      %v7046 = vld [vmem:[%s227 + $0x29e] sm:$0xff]
      %v7047 = vld [vmem:[%s227 + $0x2a6] sm:$0xff]
      %v7048 = vld [vmem:[%s227 + $0x2ae] sm:$0xff]
      %v7049 = vld [vmem:[%s227 + $0x2b6] sm:$0xff]
      %v7050 = vld [vmem:[%s227 + $0x2be] sm:$0xff]
      %v7051 = vld [vmem:[%s227 + $0x2c6] sm:$0xff]
      %v7052 = vld [vmem:[%s227 + $0x2ce] sm:$0xff]
      %v7053 = vld [vmem:[%s227 + $0x2d6] sm:$0xff]
      %v7054 = vld [vmem:[%s227 + $0x2de] sm:$0xff]
      %s7055 = scalar_lea.vmem %s3, 60
      %v7056 = vld [vmem:[%s7055] sm:$0xf]
      %v7058 = vsel %vm304, %v7023, 0
      %v7061 = vsel %vm304, %v7024, 0
      %v7064 = vsel %vm304, %v7025, 0
      %v7067 = vsel %vm304, %v7026, 0
      %v7070 = vsel %vm304, %v7027, 0
      %v7073 = vsel %vm304, %v7028, 0
      %v7076 = vsel %vm304, %v7029, 0
      %v7079 = vsel %vm304, %v7030, 0
      %v7082 = vsel %vm304, %v7031, 0
      %v7085 = vsel %vm304, %v7032, 0
      %v7088 = vsel %vm304, %v7033, 0
      %v7091 = vsel %vm304, %v7034, 0
      %v7094 = vsel %vm304, %v7035, 0
      %v7097 = vsel %vm304, %v7036, 0
      %v7100 = vsel %vm304, %v7037, 0
      %v7103 = vsel %vm304, %v7038, 0
      %v7106 = vsel %vm304, %v7039, 0
      %v7109 = vsel %vm304, %v7040, 0
      %v7112 = vsel %vm304, %v7041, 0
      %v7115 = vsel %vm304, %v7042, 0
      %v7118 = vsel %vm304, %v7043, 0
      %v7121 = vsel %vm304, %v7044, 0
      %v7124 = vsel %vm304, %v7045, 0
      %v7127 = vsel %vm304, %v7046, 0
      %v7130 = vsel %vm304, %v7047, 0
      %v7133 = vsel %vm304, %v7048, 0
      %v7136 = vsel %vm304, %v7049, 0
      %v7139 = vsel %vm304, %v7050, 0
      %v7142 = vsel %vm304, %v7051, 0
      %v7145 = vsel %vm304, %v7052, 0
      %v7148 = vsel %vm304, %v7053, 0
      %v7151 = vsel %vm304, %v7054, 0
      %v7154 = vsel %vm401, %v7056, 0
      %7156 = vmatprep.subr.mxu0 0.0
      %7157 = vmatpush1.msra.mxu0 %v7154
      %7158 = vmatprep.subr.mxu0 0.0
      %7159 = vmatpush1.msra.mxu0 0.0
      %7160 = vmatprep.subr.mxu0 0.0
      %7161 = vmatpush1.msra.mxu0 0.0
      %7162 = vmatprep.subr.mxu0 0.0
      %7163 = vmatpush1.msra.mxu0 0.0
      %7164 = vmatprep.subr.mxu0 0.0
      %7165 = vmatpush1.msra.mxu0 0.0
      %7166 = vmatprep.subr.mxu0 0.0
      %7167 = vmatpush1.msra.mxu0 0.0
      %7168 = vmatprep.subr.mxu0 0.0
      %7169 = vmatpush1.msra.mxu0 0.0
      %7170 = vmatprep.subr.mxu0 0.0
      %7171 = vmatpush1.msra.mxu0 0.0
      %7172 = vmatprep.subr.mxu0 0.0
      %7173 = vmatpush1.msra.mxu0 0.0
      %7174 = vmatprep.subr.mxu0 0.0
      %7175 = vmatpush1.msra.mxu0 0.0
      %7176 = vmatprep.subr.mxu0 0.0
      %7177 = vmatpush1.msra.mxu0 0.0
      %7178 = vmatprep.subr.mxu0 0.0
      %7179 = vmatpush1.msra.mxu0 0.0
      %7180 = vmatprep.subr.mxu0 0.0
      %7181 = vmatpush1.msra.mxu0 0.0
      %7182 = vmatprep.subr.mxu0 0.0
      %7183 = vmatpush1.msra.mxu0 0.0
      %7184 = vmatprep.subr.mxu0 0.0
      %7185 = vmatpush1.msra.mxu0 0.0
      %7186 = vmatprep.subr.mxu0 0.0
      %7187 = vmatpush1.msra.mxu0 0.0
      %7188 = vmatprep.subr.mxu0 0.0
      %7189 = vmatpush1.msra.mxu0 0.0
      %7190 = vmatprep.subr.mxu0 0.0
      %7191 = vmatpush1.msra.mxu0 0.0
      %7192 = vmatprep.subr.mxu0 0.0
      %7193 = vmatpush1.msra.mxu0 0.0
      %7194 = vmatprep.subr.mxu0 0.0
      %7195 = vmatpush1.msra.mxu0 0.0
      %7196 = vmatprep.subr.mxu0 0.0
      %7197 = vmatpush1.msra.mxu0 0.0
      %7198 = vmatprep.subr.mxu0 0.0
      %7199 = vmatpush1.msra.mxu0 0.0
      %7200 = vmatprep.subr.mxu0 0.0
      %7201 = vmatpush1.msra.mxu0 0.0
      %7202 = vmatprep.subr.mxu0 0.0
      %7203 = vmatpush1.msra.mxu0 0.0
      %7204 = vmatprep.subr.mxu0 0.0
      %7205 = vmatpush1.msra.mxu0 0.0
      %7206 = vmatprep.subr.mxu0 0.0
      %7207 = vmatpush1.msra.mxu0 0.0
      %7208 = vmatprep.subr.mxu0 0.0
      %7209 = vmatpush1.msra.mxu0 0.0
      %7210 = vmatprep.subr.mxu0 0.0
      %7211 = vmatpush1.msra.mxu0 0.0
      %7212 = vmatprep.subr.mxu0 0.0
      %7213 = vmatpush1.msra.mxu0 0.0
      %7214 = vmatprep.subr.mxu0 0.0
      %7215 = vmatpush1.msra.mxu0 0.0
      %7216 = vmatprep.subr.mxu0 0.0
      %7217 = vmatpush1.msra.mxu0 0.0
      %7218 = vmatprep.subr.mxu0 0.0
      %7219 = vmatpush1.msra.mxu0 0.0
      %7220 = vmatprep.mubr.f32.mxu0 0.0
      %7221 = vmatmul.mubr.f32.gmra.mrb[0].mxu0 %v7058
      %v7222 = vpop.f32.mrb[0].mxu0
      %v7223 = vadd.f32 0.0, %v7222
      %v7224 = vpop.f32.mrb[0].mxu0
      %7225 = vmatprep.mubr.f32.mxu0 0.0
      %7226 = vmatmul.mubr.f32.gmra.mrb[0].mxu0 %v7061
      %v7227 = vpop.f32.mrb[0].mxu0
      %v7228 = vadd.f32 0.0, %v7227
      %v7229 = vpop.f32.mrb[0].mxu0
      %7230 = vmatprep.mubr.f32.mxu0 0.0
      %7231 = vmatmul.mubr.f32.gmra.mrb[0].mxu0 %v7064
      %v7232 = vpop.f32.mrb[0].mxu0
      %v7233 = vadd.f32 0.0, %v7232
      %v7234 = vpop.f32.mrb[0].mxu0
      %7235 = vmatprep.mubr.f32.mxu0 0.0
      %7236 = vmatmul.mubr.f32.gmra.mrb[0].mxu0 %v7067
      %v7237 = vpop.f32.mrb[0].mxu0
      %v7238 = vadd.f32 0.0, %v7237
      %v7239 = vpop.f32.mrb[0].mxu0
      %7240 = vmatprep.mubr.f32.mxu0 0.0
      %7241 = vmatmul.mubr.f32.gmra.mrb[0].mxu0 %v7070
      %v7242 = vpop.f32.mrb[0].mxu0
      %v7243 = vadd.f32 0.0, %v7242
      %v7244 = vpop.f32.mrb[0].mxu0
      %7245 = vmatprep.mubr.f32.mxu0 0.0
      %7246 = vmatmul.mubr.f32.gmra.mrb[0].mxu0 %v7073
      %v7247 = vpop.f32.mrb[0].mxu0
      %v7248 = vadd.f32 0.0, %v7247
      %v7249 = vpop.f32.mrb[0].mxu0
      %7250 = vmatprep.mubr.f32.mxu0 0.0
      %7251 = vmatmul.mubr.f32.gmra.mrb[0].mxu0 %v7076
      %v7252 = vpop.f32.mrb[0].mxu0
      %v7253 = vadd.f32 0.0, %v7252
      %v7254 = vpop.f32.mrb[0].mxu0
      %7255 = vmatprep.mubr.f32.mxu0 0.0
      %7256 = vmatmul.mubr.f32.gmra.mrb[0].mxu0 %v7079
      %v7257 = vpop.f32.mrb[0].mxu0
      %v7258 = vadd.f32 0.0, %v7257
      %v7259 = vpop.f32.mrb[0].mxu0
      %7260 = vmatprep.mubr.f32.mxu0 0.0
      %7261 = vmatmul.mubr.f32.gmra.mrb[0].mxu0 %v7082
      %v7262 = vpop.f32.mrb[0].mxu0
      %v7263 = vadd.f32 0.0, %v7262
      %v7264 = vpop.f32.mrb[0].mxu0
      %7265 = vmatprep.mubr.f32.mxu0 0.0
      %7266 = vmatmul.mubr.f32.gmra.mrb[0].mxu0 %v7085
      %v7267 = vpop.f32.mrb[0].mxu0
      %v7268 = vadd.f32 0.0, %v7267
      %v7269 = vpop.f32.mrb[0].mxu0
      %7270 = vmatprep.mubr.f32.mxu0 0.0
      %7271 = vmatmul.mubr.f32.gmra.mrb[0].mxu0 %v7088
      %v7272 = vpop.f32.mrb[0].mxu0
      %v7273 = vadd.f32 0.0, %v7272
      %v7274 = vpop.f32.mrb[0].mxu0
      %7275 = vmatprep.mubr.f32.mxu0 0.0
      %7276 = vmatmul.mubr.f32.gmra.mrb[0].mxu0 %v7091
      %v7277 = vpop.f32.mrb[0].mxu0
      %v7278 = vadd.f32 0.0, %v7277
      %v7279 = vpop.f32.mrb[0].mxu0
      %7280 = vmatprep.mubr.f32.mxu0 0.0
      %7281 = vmatmul.mubr.f32.gmra.mrb[0].mxu0 %v7094
      %v7282 = vpop.f32.mrb[0].mxu0
      %v7283 = vadd.f32 0.0, %v7282
      %v7284 = vpop.f32.mrb[0].mxu0
      %7285 = vmatprep.mubr.f32.mxu0 0.0
      %7286 = vmatmul.mubr.f32.gmra.mrb[0].mxu0 %v7097
      %v7287 = vpop.f32.mrb[0].mxu0
      %v7288 = vadd.f32 0.0, %v7287
      %v7289 = vpop.f32.mrb[0].mxu0
      %7290 = vmatprep.mubr.f32.mxu0 0.0
      %7291 = vmatmul.mubr.f32.gmra.mrb[0].mxu0 %v7100
      %v7292 = vpop.f32.mrb[0].mxu0
      %v7293 = vadd.f32 0.0, %v7292
      %v7294 = vpop.f32.mrb[0].mxu0
      %7295 = vmatprep.mubr.f32.mxu0 0.0
      %7296 = vmatmul.mubr.f32.gmra.mrb[0].mxu0 %v7103
      %v7297 = vpop.f32.mrb[0].mxu0
      %v7298 = vadd.f32 0.0, %v7297
      %v7299 = vpop.f32.mrb[0].mxu0
      %7300 = vmatprep.mubr.f32.mxu0 0.0
      %7301 = vmatmul.mubr.f32.gmra.mrb[0].mxu0 %v7106
      %v7302 = vpop.f32.mrb[0].mxu0
      %v7303 = vadd.f32 0.0, %v7302
      %v7304 = vpop.f32.mrb[0].mxu0
      %7305 = vmatprep.mubr.f32.mxu0 0.0
      %7306 = vmatmul.mubr.f32.gmra.mrb[0].mxu0 %v7109
      %v7307 = vpop.f32.mrb[0].mxu0
      %v7308 = vadd.f32 0.0, %v7307
      %v7309 = vpop.f32.mrb[0].mxu0
      %7310 = vmatprep.mubr.f32.mxu0 0.0
      %7311 = vmatmul.mubr.f32.gmra.mrb[0].mxu0 %v7112
      %v7312 = vpop.f32.mrb[0].mxu0
      %v7313 = vadd.f32 0.0, %v7312
      %v7314 = vpop.f32.mrb[0].mxu0
      %7315 = vmatprep.mubr.f32.mxu0 0.0
      %7316 = vmatmul.mubr.f32.gmra.mrb[0].mxu0 %v7115
      %v7317 = vpop.f32.mrb[0].mxu0
      %v7318 = vadd.f32 0.0, %v7317
      %v7319 = vpop.f32.mrb[0].mxu0
      %7320 = vmatprep.mubr.f32.mxu0 0.0
      %7321 = vmatmul.mubr.f32.gmra.mrb[0].mxu0 %v7118
      %v7322 = vpop.f32.mrb[0].mxu0
      %v7323 = vadd.f32 0.0, %v7322
      %v7324 = vpop.f32.mrb[0].mxu0
      %7325 = vmatprep.mubr.f32.mxu0 0.0
      %7326 = vmatmul.mubr.f32.gmra.mrb[0].mxu0 %v7121
      %v7327 = vpop.f32.mrb[0].mxu0
      %v7328 = vadd.f32 0.0, %v7327
      %v7329 = vpop.f32.mrb[0].mxu0
      %7330 = vmatprep.mubr.f32.mxu0 0.0
      %7331 = vmatmul.mubr.f32.gmra.mrb[0].mxu0 %v7124
      %v7332 = vpop.f32.mrb[0].mxu0
      %v7333 = vadd.f32 0.0, %v7332
      %v7334 = vpop.f32.mrb[0].mxu0
      %7335 = vmatprep.mubr.f32.mxu0 0.0
      %7336 = vmatmul.mubr.f32.gmra.mrb[0].mxu0 %v7127
      %v7337 = vpop.f32.mrb[0].mxu0
      %v7338 = vadd.f32 0.0, %v7337
      %v7339 = vpop.f32.mrb[0].mxu0
      %7340 = vmatprep.mubr.f32.mxu0 0.0
      %7341 = vmatmul.mubr.f32.gmra.mrb[0].mxu0 %v7130
      %v7342 = vpop.f32.mrb[0].mxu0
      %v7343 = vadd.f32 0.0, %v7342
      %v7344 = vpop.f32.mrb[0].mxu0
      %7345 = vmatprep.mubr.f32.mxu0 0.0
      %7346 = vmatmul.mubr.f32.gmra.mrb[0].mxu0 %v7133
      %v7347 = vpop.f32.mrb[0].mxu0
      %v7348 = vadd.f32 0.0, %v7347
      %v7349 = vpop.f32.mrb[0].mxu0
      %7350 = vmatprep.mubr.f32.mxu0 0.0
      %7351 = vmatmul.mubr.f32.gmra.mrb[0].mxu0 %v7136
      %v7352 = vpop.f32.mrb[0].mxu0
      %v7353 = vadd.f32 0.0, %v7352
      %v7354 = vpop.f32.mrb[0].mxu0
      %7355 = vmatprep.mubr.f32.mxu0 0.0
      %7356 = vmatmul.mubr.f32.gmra.mrb[0].mxu0 %v7139
      %v7357 = vpop.f32.mrb[0].mxu0
      %v7358 = vadd.f32 0.0, %v7357
      %v7359 = vpop.f32.mrb[0].mxu0
      %7360 = vmatprep.mubr.f32.mxu0 0.0
      %7361 = vmatmul.mubr.f32.gmra.mrb[0].mxu0 %v7142
      %v7362 = vpop.f32.mrb[0].mxu0
      %v7363 = vadd.f32 0.0, %v7362
      %v7364 = vpop.f32.mrb[0].mxu0
      %7365 = vmatprep.mubr.f32.mxu0 0.0
      %7366 = vmatmul.mubr.f32.gmra.mrb[0].mxu0 %v7145
      %v7367 = vpop.f32.mrb[0].mxu0
      %v7368 = vadd.f32 0.0, %v7367
      %v7369 = vpop.f32.mrb[0].mxu0
      %7370 = vmatprep.mubr.f32.mxu0 0.0
      %7371 = vmatmul.mubr.f32.gmra.mrb[0].mxu0 %v7148
      %v7372 = vpop.f32.mrb[0].mxu0
      %v7373 = vadd.f32 0.0, %v7372
      %v7374 = vpop.f32.mrb[0].mxu0
      %7375 = vmatprep.mubr.f32.mxu0 0.0
      %7376 = vmatmul.mubr.f32.gmra.mrb[0].mxu0 %v7151
      %v7377 = vpop.f32.mrb[0].mxu0
      %v7378 = vadd.f32 0.0, %v7377
      %v7379 = vpop.f32.mrb[0].mxu0
      %7380 = vdwg.mxu0
      %v7381 = vmul.f32 %v7223, %v4819
      %v7382 = vmul.f32 %v7228, %v4823
      %v7383 = vmul.f32 %v7233, %v4827
      %v7384 = vmul.f32 %v7238, %v4831
      %v7385 = vmul.f32 %v7243, %v4835
      %v7386 = vmul.f32 %v7248, %v4839
      %v7387 = vmul.f32 %v7253, %v4843
      %v7388 = vmul.f32 %v7258, %v4847
      %v7389 = vmul.f32 %v7263, %v4851
      %v7390 = vmul.f32 %v7268, %v4855
      %v7391 = vmul.f32 %v7273, %v4859
      %v7392 = vmul.f32 %v7278, %v4863
      %v7393 = vmul.f32 %v7283, %v4867
      %v7394 = vmul.f32 %v7288, %v4871
      %v7395 = vmul.f32 %v7293, %v4875
      %v7396 = vmul.f32 %v7298, %v4879
      %v7397 = vmul.f32 %v7303, %v4883
      %v7398 = vmul.f32 %v7308, %v4887
      %v7399 = vmul.f32 %v7313, %v4891
      %v7400 = vmul.f32 %v7318, %v4895
      %v7401 = vmul.f32 %v7323, %v4899
      %v7402 = vmul.f32 %v7328, %v4903
      %v7403 = vmul.f32 %v7333, %v4907
      %v7404 = vmul.f32 %v7338, %v4911
      %v7405 = vmul.f32 %v7343, %v4915
      %v7406 = vmul.f32 %v7348, %v4919
      %v7407 = vmul.f32 %v7353, %v4923
      %v7408 = vmul.f32 %v7358, %v4927
      %v7409 = vmul.f32 %v7363, %v4931
      %v7410 = vmul.f32 %v7368, %v4935
      %v7411 = vmul.f32 %v7373, %v4939
      %v7412 = vmul.f32 %v7378, %v4943
      %v7413 = vadd.f32 %v6991, %v7381
      %v7414 = vadd.f32 %v6992, %v7382
      %v7415 = vadd.f32 %v6993, %v7383
      %v7416 = vadd.f32 %v6994, %v7384
      %v7417 = vadd.f32 %v6995, %v7385
      %v7418 = vadd.f32 %v6996, %v7386
      %v7419 = vadd.f32 %v6997, %v7387
      %v7420 = vadd.f32 %v6998, %v7388
      %v7421 = vadd.f32 %v6999, %v7389
      %v7422 = vadd.f32 %v7000, %v7390
      %v7423 = vadd.f32 %v7001, %v7391
      %v7424 = vadd.f32 %v7002, %v7392
      %v7425 = vadd.f32 %v7003, %v7393
      %v7426 = vadd.f32 %v7004, %v7394
      %v7427 = vadd.f32 %v7005, %v7395
      %v7428 = vadd.f32 %v7006, %v7396
      %v7429 = vadd.f32 %v7007, %v7397
      %v7430 = vadd.f32 %v7008, %v7398
      %v7431 = vadd.f32 %v7009, %v7399
      %v7432 = vadd.f32 %v7010, %v7400
      %v7433 = vadd.f32 %v7011, %v7401
      %v7434 = vadd.f32 %v7012, %v7402
      %v7435 = vadd.f32 %v7013, %v7403
      %v7436 = vadd.f32 %v7014, %v7404
      %v7437 = vadd.f32 %v7015, %v7405
      %v7438 = vadd.f32 %v7016, %v7406
      %v7439 = vadd.f32 %v7017, %v7407
      %v7440 = vadd.f32 %v7018, %v7408
      %v7441 = vadd.f32 %v7019, %v7409
      %v7442 = vadd.f32 %v7020, %v7410
      %v7443 = vadd.f32 %v7021, %v7411
      %v7444 = vadd.f32 %v7022, %v7412
      %v7445 = vld [vmem:[%s227 + $0x1f2] sm:$0xff]
      %v7446 = vld [vmem:[%s227 + $0x1fa] sm:$0xff]
      %v7447 = vld [vmem:[%s227 + $0x202] sm:$0xff]
      %v7448 = vld [vmem:[%s227 + $0x20a] sm:$0xff]
      %v7449 = vld [vmem:[%s227 + $0x212] sm:$0xff]
      %v7450 = vld [vmem:[%s227 + $0x21a] sm:$0xff]
      %v7451 = vld [vmem:[%s227 + $0x222] sm:$0xff]
      %v7452 = vld [vmem:[%s227 + $0x22a] sm:$0xff]
      %v7453 = vld [vmem:[%s227 + $0x232] sm:$0xff]
      %v7454 = vld [vmem:[%s227 + $0x23a] sm:$0xff]
      %v7455 = vld [vmem:[%s227 + $0x242] sm:$0xff]
      %v7456 = vld [vmem:[%s227 + $0x24a] sm:$0xff]
      %v7457 = vld [vmem:[%s227 + $0x252] sm:$0xff]
      %v7458 = vld [vmem:[%s227 + $0x25a] sm:$0xff]
      %v7459 = vld [vmem:[%s227 + $0x262] sm:$0xff]
      %v7460 = vld [vmem:[%s227 + $0x26a] sm:$0xff]
      %v7461 = vld [vmem:[%s227 + $0x272] sm:$0xff]
      %v7462 = vld [vmem:[%s227 + $0x27a] sm:$0xff]
      %v7463 = vld [vmem:[%s227 + $0x282] sm:$0xff]
      %v7464 = vld [vmem:[%s227 + $0x28a] sm:$0xff]
      %v7465 = vld [vmem:[%s227 + $0x292] sm:$0xff]
      %v7466 = vld [vmem:[%s227 + $0x29a] sm:$0xff]
      %v7467 = vld [vmem:[%s227 + $0x2a2] sm:$0xff]
      %v7468 = vld [vmem:[%s227 + $0x2aa] sm:$0xff]
      %v7469 = vld [vmem:[%s227 + $0x2b2] sm:$0xff]
      %v7470 = vld [vmem:[%s227 + $0x2ba] sm:$0xff]
      %v7471 = vld [vmem:[%s227 + $0x2c2] sm:$0xff]
      %v7472 = vld [vmem:[%s227 + $0x2ca] sm:$0xff]
      %v7473 = vld [vmem:[%s227 + $0x2d2] sm:$0xff]
      %v7474 = vld [vmem:[%s227 + $0x2da] sm:$0xff]
      %v7475 = vld [vmem:[%s227 + $0x2e2] sm:$0xff]
      %v7476 = vld [vmem:[%s227 + $0x2ea] sm:$0xff]
      %s7477 = scalar_lea.vmem %s3, 64
      %v7478 = vld [vmem:[%s7477] sm:$0xf]
      %v7480 = vsel %vm304, %v7445, 0
      %v7483 = vsel %vm304, %v7446, 0
      %v7486 = vsel %vm304, %v7447, 0
      %v7489 = vsel %vm304, %v7448, 0
      %v7492 = vsel %vm304, %v7449, 0
      %v7495 = vsel %vm304, %v7450, 0
      %v7498 = vsel %vm304, %v7451, 0
      %v7501 = vsel %vm304, %v7452, 0
      %v7504 = vsel %vm304, %v7453, 0
      %v7507 = vsel %vm304, %v7454, 0
      %v7510 = vsel %vm304, %v7455, 0
      %v7513 = vsel %vm304, %v7456, 0
      %v7516 = vsel %vm304, %v7457, 0
      %v7519 = vsel %vm304, %v7458, 0
      %v7522 = vsel %vm304, %v7459, 0
      %v7525 = vsel %vm304, %v7460, 0
      %v7528 = vsel %vm304, %v7461, 0
      %v7531 = vsel %vm304, %v7462, 0
      %v7534 = vsel %vm304, %v7463, 0
      %v7537 = vsel %vm304, %v7464, 0
      %v7540 = vsel %vm304, %v7465, 0
      %v7543 = vsel %vm304, %v7466, 0
      %v7546 = vsel %vm304, %v7467, 0
      %v7549 = vsel %vm304, %v7468, 0
      %v7552 = vsel %vm304, %v7469, 0
      %v7555 = vsel %vm304, %v7470, 0
      %v7558 = vsel %vm304, %v7471, 0
      %v7561 = vsel %vm304, %v7472, 0
      %v7564 = vsel %vm304, %v7473, 0
      %v7567 = vsel %vm304, %v7474, 0
      %v7570 = vsel %vm304, %v7475, 0
      %v7573 = vsel %vm304, %v7476, 0
      %v7576 = vsel %vm401, %v7478, 0
      %7578 = vmatprep.subr.mxu0 0.0
      %7579 = vmatpush1.msra.mxu0 %v7576
      %7580 = vmatprep.subr.mxu0 0.0
      %7581 = vmatpush1.msra.mxu0 0.0
      %7582 = vmatprep.subr.mxu0 0.0
      %7583 = vmatpush1.msra.mxu0 0.0
      %7584 = vmatprep.subr.mxu0 0.0
      %7585 = vmatpush1.msra.mxu0 0.0
      %7586 = vmatprep.subr.mxu0 0.0
      %7587 = vmatpush1.msra.mxu0 0.0
      %7588 = vmatprep.subr.mxu0 0.0
      %7589 = vmatpush1.msra.mxu0 0.0
      %7590 = vmatprep.subr.mxu0 0.0
      %7591 = vmatpush1.msra.mxu0 0.0
      %7592 = vmatprep.subr.mxu0 0.0
      %7593 = vmatpush1.msra.mxu0 0.0
      %7594 = vmatprep.subr.mxu0 0.0
      %7595 = vmatpush1.msra.mxu0 0.0
      %7596 = vmatprep.subr.mxu0 0.0
      %7597 = vmatpush1.msra.mxu0 0.0
      %7598 = vmatprep.subr.mxu0 0.0
      %7599 = vmatpush1.msra.mxu0 0.0
      %7600 = vmatprep.subr.mxu0 0.0
      %7601 = vmatpush1.msra.mxu0 0.0
      %7602 = vmatprep.subr.mxu0 0.0
      %7603 = vmatpush1.msra.mxu0 0.0
      %7604 = vmatprep.subr.mxu0 0.0
      %7605 = vmatpush1.msra.mxu0 0.0
      %7606 = vmatprep.subr.mxu0 0.0
      %7607 = vmatpush1.msra.mxu0 0.0
      %7608 = vmatprep.subr.mxu0 0.0
      %7609 = vmatpush1.msra.mxu0 0.0
      %7610 = vmatprep.subr.mxu0 0.0
      %7611 = vmatpush1.msra.mxu0 0.0
      %7612 = vmatprep.subr.mxu0 0.0
      %7613 = vmatpush1.msra.mxu0 0.0
      %7614 = vmatprep.subr.mxu0 0.0
      %7615 = vmatpush1.msra.mxu0 0.0
      %7616 = vmatprep.subr.mxu0 0.0
      %7617 = vmatpush1.msra.mxu0 0.0
      %7618 = vmatprep.subr.mxu0 0.0
      %7619 = vmatpush1.msra.mxu0 0.0
      %7620 = vmatprep.subr.mxu0 0.0
      %7621 = vmatpush1.msra.mxu0 0.0
      %7622 = vmatprep.subr.mxu0 0.0
      %7623 = vmatpush1.msra.mxu0 0.0
      %7624 = vmatprep.subr.mxu0 0.0
      %7625 = vmatpush1.msra.mxu0 0.0
      %7626 = vmatprep.subr.mxu0 0.0
      %7627 = vmatpush1.msra.mxu0 0.0
      %7628 = vmatprep.subr.mxu0 0.0
      %7629 = vmatpush1.msra.mxu0 0.0
      %7630 = vmatprep.subr.mxu0 0.0
      %7631 = vmatpush1.msra.mxu0 0.0
      %7632 = vmatprep.subr.mxu0 0.0
      %7633 = vmatpush1.msra.mxu0 0.0
      %7634 = vmatprep.subr.mxu0 0.0
      %7635 = vmatpush1.msra.mxu0 0.0
      %7636 = vmatprep.subr.mxu0 0.0
      %7637 = vmatpush1.msra.mxu0 0.0
      %7638 = vmatprep.subr.mxu0 0.0
      %7639 = vmatpush1.msra.mxu0 0.0
      %7640 = vmatprep.subr.mxu0 0.0
      %7641 = vmatpush1.msra.mxu0 0.0
      %7642 = vmatprep.mubr.f32.mxu0 0.0
      %7643 = vmatmul.mubr.f32.gmra.mrb[0].mxu0 %v7480
      %v7644 = vpop.f32.mrb[0].mxu0
      %v7645 = vadd.f32 0.0, %v7644
      %v7646 = vpop.f32.mrb[0].mxu0
      %7647 = vmatprep.mubr.f32.mxu0 0.0
      %7648 = vmatmul.mubr.f32.gmra.mrb[0].mxu0 %v7483
      %v7649 = vpop.f32.mrb[0].mxu0
      %v7650 = vadd.f32 0.0, %v7649
      %v7651 = vpop.f32.mrb[0].mxu0
      %7652 = vmatprep.mubr.f32.mxu0 0.0
      %7653 = vmatmul.mubr.f32.gmra.mrb[0].mxu0 %v7486
      %v7654 = vpop.f32.mrb[0].mxu0
      %v7655 = vadd.f32 0.0, %v7654
      %v7656 = vpop.f32.mrb[0].mxu0
      %7657 = vmatprep.mubr.f32.mxu0 0.0
      %7658 = vmatmul.mubr.f32.gmra.mrb[0].mxu0 %v7489
      %v7659 = vpop.f32.mrb[0].mxu0
      %v7660 = vadd.f32 0.0, %v7659
      %v7661 = vpop.f32.mrb[0].mxu0
      %7662 = vmatprep.mubr.f32.mxu0 0.0
      %7663 = vmatmul.mubr.f32.gmra.mrb[0].mxu0 %v7492
      %v7664 = vpop.f32.mrb[0].mxu0
      %v7665 = vadd.f32 0.0, %v7664
      %v7666 = vpop.f32.mrb[0].mxu0
      %7667 = vmatprep.mubr.f32.mxu0 0.0
      %7668 = vmatmul.mubr.f32.gmra.mrb[0].mxu0 %v7495
      %v7669 = vpop.f32.mrb[0].mxu0
      %v7670 = vadd.f32 0.0, %v7669
      %v7671 = vpop.f32.mrb[0].mxu0
      %7672 = vmatprep.mubr.f32.mxu0 0.0
      %7673 = vmatmul.mubr.f32.gmra.mrb[0].mxu0 %v7498
      %v7674 = vpop.f32.mrb[0].mxu0
      %v7675 = vadd.f32 0.0, %v7674
      %v7676 = vpop.f32.mrb[0].mxu0
      %7677 = vmatprep.mubr.f32.mxu0 0.0
      %7678 = vmatmul.mubr.f32.gmra.mrb[0].mxu0 %v7501
      %v7679 = vpop.f32.mrb[0].mxu0
      %v7680 = vadd.f32 0.0, %v7679
      %v7681 = vpop.f32.mrb[0].mxu0
      %7682 = vmatprep.mubr.f32.mxu0 0.0
      %7683 = vmatmul.mubr.f32.gmra.mrb[0].mxu0 %v7504
      %v7684 = vpop.f32.mrb[0].mxu0
      %v7685 = vadd.f32 0.0, %v7684
      %v7686 = vpop.f32.mrb[0].mxu0
      %7687 = vmatprep.mubr.f32.mxu0 0.0
      %7688 = vmatmul.mubr.f32.gmra.mrb[0].mxu0 %v7507
      %v7689 = vpop.f32.mrb[0].mxu0
      %v7690 = vadd.f32 0.0, %v7689
      %v7691 = vpop.f32.mrb[0].mxu0
      %7692 = vmatprep.mubr.f32.mxu0 0.0
      %7693 = vmatmul.mubr.f32.gmra.mrb[0].mxu0 %v7510
      %v7694 = vpop.f32.mrb[0].mxu0
      %v7695 = vadd.f32 0.0, %v7694
      %v7696 = vpop.f32.mrb[0].mxu0
      %7697 = vmatprep.mubr.f32.mxu0 0.0
      %7698 = vmatmul.mubr.f32.gmra.mrb[0].mxu0 %v7513
      %v7699 = vpop.f32.mrb[0].mxu0
      %v7700 = vadd.f32 0.0, %v7699
      %v7701 = vpop.f32.mrb[0].mxu0
      %7702 = vmatprep.mubr.f32.mxu0 0.0
      %7703 = vmatmul.mubr.f32.gmra.mrb[0].mxu0 %v7516
      %v7704 = vpop.f32.mrb[0].mxu0
      %v7705 = vadd.f32 0.0, %v7704
      %v7706 = vpop.f32.mrb[0].mxu0
      %7707 = vmatprep.mubr.f32.mxu0 0.0
      %7708 = vmatmul.mubr.f32.gmra.mrb[0].mxu0 %v7519
      %v7709 = vpop.f32.mrb[0].mxu0
      %v7710 = vadd.f32 0.0, %v7709
      %v7711 = vpop.f32.mrb[0].mxu0
      %7712 = vmatprep.mubr.f32.mxu0 0.0
      %7713 = vmatmul.mubr.f32.gmra.mrb[0].mxu0 %v7522
      %v7714 = vpop.f32.mrb[0].mxu0
      %v7715 = vadd.f32 0.0, %v7714
      %v7716 = vpop.f32.mrb[0].mxu0
      %7717 = vmatprep.mubr.f32.mxu0 0.0
      %7718 = vmatmul.mubr.f32.gmra.mrb[0].mxu0 %v7525
      %v7719 = vpop.f32.mrb[0].mxu0
      %v7720 = vadd.f32 0.0, %v7719
      %v7721 = vpop.f32.mrb[0].mxu0
      %7722 = vmatprep.mubr.f32.mxu0 0.0
      %7723 = vmatmul.mubr.f32.gmra.mrb[0].mxu0 %v7528
      %v7724 = vpop.f32.mrb[0].mxu0
      %v7725 = vadd.f32 0.0, %v7724
      %v7726 = vpop.f32.mrb[0].mxu0
      %7727 = vmatprep.mubr.f32.mxu0 0.0
      %7728 = vmatmul.mubr.f32.gmra.mrb[0].mxu0 %v7531
      %v7729 = vpop.f32.mrb[0].mxu0
      %v7730 = vadd.f32 0.0, %v7729
      %v7731 = vpop.f32.mrb[0].mxu0
      %7732 = vmatprep.mubr.f32.mxu0 0.0
      %7733 = vmatmul.mubr.f32.gmra.mrb[0].mxu0 %v7534
      %v7734 = vpop.f32.mrb[0].mxu0
      %v7735 = vadd.f32 0.0, %v7734
      %v7736 = vpop.f32.mrb[0].mxu0
      %7737 = vmatprep.mubr.f32.mxu0 0.0
      %7738 = vmatmul.mubr.f32.gmra.mrb[0].mxu0 %v7537
      %v7739 = vpop.f32.mrb[0].mxu0
      %v7740 = vadd.f32 0.0, %v7739
      %v7741 = vpop.f32.mrb[0].mxu0
      %7742 = vmatprep.mubr.f32.mxu0 0.0
      %7743 = vmatmul.mubr.f32.gmra.mrb[0].mxu0 %v7540
      %v7744 = vpop.f32.mrb[0].mxu0
      %v7745 = vadd.f32 0.0, %v7744
      %v7746 = vpop.f32.mrb[0].mxu0
      %7747 = vmatprep.mubr.f32.mxu0 0.0
      %7748 = vmatmul.mubr.f32.gmra.mrb[0].mxu0 %v7543
      %v7749 = vpop.f32.mrb[0].mxu0
      %v7750 = vadd.f32 0.0, %v7749
      %v7751 = vpop.f32.mrb[0].mxu0
      %7752 = vmatprep.mubr.f32.mxu0 0.0
      %7753 = vmatmul.mubr.f32.gmra.mrb[0].mxu0 %v7546
      %v7754 = vpop.f32.mrb[0].mxu0
      %v7755 = vadd.f32 0.0, %v7754
      %v7756 = vpop.f32.mrb[0].mxu0
      %7757 = vmatprep.mubr.f32.mxu0 0.0
      %7758 = vmatmul.mubr.f32.gmra.mrb[0].mxu0 %v7549
      %v7759 = vpop.f32.mrb[0].mxu0
      %v7760 = vadd.f32 0.0, %v7759
      %v7761 = vpop.f32.mrb[0].mxu0
      %7762 = vmatprep.mubr.f32.mxu0 0.0
      %7763 = vmatmul.mubr.f32.gmra.mrb[0].mxu0 %v7552
      %v7764 = vpop.f32.mrb[0].mxu0
      %v7765 = vadd.f32 0.0, %v7764
      %v7766 = vpop.f32.mrb[0].mxu0
      %7767 = vmatprep.mubr.f32.mxu0 0.0
      %7768 = vmatmul.mubr.f32.gmra.mrb[0].mxu0 %v7555
      %v7769 = vpop.f32.mrb[0].mxu0
      %v7770 = vadd.f32 0.0, %v7769
      %v7771 = vpop.f32.mrb[0].mxu0
      %7772 = vmatprep.mubr.f32.mxu0 0.0
      %7773 = vmatmul.mubr.f32.gmra.mrb[0].mxu0 %v7558
      %v7774 = vpop.f32.mrb[0].mxu0
      %v7775 = vadd.f32 0.0, %v7774
      %v7776 = vpop.f32.mrb[0].mxu0
      %7777 = vmatprep.mubr.f32.mxu0 0.0
      %7778 = vmatmul.mubr.f32.gmra.mrb[0].mxu0 %v7561
      %v7779 = vpop.f32.mrb[0].mxu0
      %v7780 = vadd.f32 0.0, %v7779
      %v7781 = vpop.f32.mrb[0].mxu0
      %7782 = vmatprep.mubr.f32.mxu0 0.0
      %7783 = vmatmul.mubr.f32.gmra.mrb[0].mxu0 %v7564
      %v7784 = vpop.f32.mrb[0].mxu0
      %v7785 = vadd.f32 0.0, %v7784
      %v7786 = vpop.f32.mrb[0].mxu0
      %7787 = vmatprep.mubr.f32.mxu0 0.0
      %7788 = vmatmul.mubr.f32.gmra.mrb[0].mxu0 %v7567
      %v7789 = vpop.f32.mrb[0].mxu0
      %v7790 = vadd.f32 0.0, %v7789
      %v7791 = vpop.f32.mrb[0].mxu0
      %7792 = vmatprep.mubr.f32.mxu0 0.0
      %7793 = vmatmul.mubr.f32.gmra.mrb[0].mxu0 %v7570
      %v7794 = vpop.f32.mrb[0].mxu0
      %v7795 = vadd.f32 0.0, %v7794
      %v7796 = vpop.f32.mrb[0].mxu0
      %7797 = vmatprep.mubr.f32.mxu0 0.0
      %7798 = vmatmul.mubr.f32.gmra.mrb[0].mxu0 %v7573
      %v7799 = vpop.f32.mrb[0].mxu0
      %v7800 = vadd.f32 0.0, %v7799
      %v7801 = vpop.f32.mrb[0].mxu0
      %7802 = vdwg.mxu0
      %v7803 = vadd.f32 %v7413, %v7645
      %v7804 = vadd.f32 %v7414, %v7650
      %v7805 = vadd.f32 %v7415, %v7655
      %v7806 = vadd.f32 %v7416, %v7660
      %v7807 = vadd.f32 %v7417, %v7665
      %v7808 = vadd.f32 %v7418, %v7670
      %v7809 = vadd.f32 %v7419, %v7675
      %v7810 = vadd.f32 %v7420, %v7680
      %v7811 = vadd.f32 %v7421, %v7685
      %v7812 = vadd.f32 %v7422, %v7690
      %v7813 = vadd.f32 %v7423, %v7695
      %v7814 = vadd.f32 %v7424, %v7700
      %v7815 = vadd.f32 %v7425, %v7705
      %v7816 = vadd.f32 %v7426, %v7710
      %v7817 = vadd.f32 %v7427, %v7715
      %v7818 = vadd.f32 %v7428, %v7720
      %v7819 = vadd.f32 %v7429, %v7725
      %v7820 = vadd.f32 %v7430, %v7730
      %v7821 = vadd.f32 %v7431, %v7735
      %v7822 = vadd.f32 %v7432, %v7740
      %v7823 = vadd.f32 %v7433, %v7745
      %v7824 = vadd.f32 %v7434, %v7750
      %v7825 = vadd.f32 %v7435, %v7755
      %v7826 = vadd.f32 %v7436, %v7760
      %v7827 = vadd.f32 %v7437, %v7765
      %v7828 = vadd.f32 %v7438, %v7770
      %v7829 = vadd.f32 %v7439, %v7775
      %v7830 = vadd.f32 %v7440, %v7780
      %v7831 = vadd.f32 %v7441, %v7785
      %v7832 = vadd.f32 %v7442, %v7790
      %v7833 = vadd.f32 %v7443, %v7795
      %v7834 = vadd.f32 %v7444, %v7800
      %v7835 = vld [vmem:[%s227 + $0x1fe] sm:$0xff]
      %v7836 = vld [vmem:[%s227 + $0x206] sm:$0xff]
      %v7837 = vld [vmem:[%s227 + $0x20e] sm:$0xff]
      %v7838 = vld [vmem:[%s227 + $0x216] sm:$0xff]
      %v7839 = vld [vmem:[%s227 + $0x21e] sm:$0xff]
      %v7840 = vld [vmem:[%s227 + $0x226] sm:$0xff]
      %v7841 = vld [vmem:[%s227 + $0x22e] sm:$0xff]
      %v7842 = vld [vmem:[%s227 + $0x236] sm:$0xff]
      %v7843 = vld [vmem:[%s227 + $0x23e] sm:$0xff]
      %v7844 = vld [vmem:[%s227 + $0x246] sm:$0xff]
      %v7845 = vld [vmem:[%s227 + $0x24e] sm:$0xff]
      %v7846 = vld [vmem:[%s227 + $0x256] sm:$0xff]
      %v7847 = vld [vmem:[%s227 + $0x25e] sm:$0xff]
      %v7848 = vld [vmem:[%s227 + $0x266] sm:$0xff]
      %v7849 = vld [vmem:[%s227 + $0x26e] sm:$0xff]
      %v7850 = vld [vmem:[%s227 + $0x276] sm:$0xff]
      %v7851 = vld [vmem:[%s227 + $0x27e] sm:$0xff]
      %v7852 = vld [vmem:[%s227 + $0x286] sm:$0xff]
      %v7853 = vld [vmem:[%s227 + $0x28e] sm:$0xff]
      %v7854 = vld [vmem:[%s227 + $0x296] sm:$0xff]
      %v7855 = vld [vmem:[%s227 + $0x29e] sm:$0xff]
      %v7856 = vld [vmem:[%s227 + $0x2a6] sm:$0xff]
      %v7857 = vld [vmem:[%s227 + $0x2ae] sm:$0xff]
      %v7858 = vld [vmem:[%s227 + $0x2b6] sm:$0xff]
      %v7859 = vld [vmem:[%s227 + $0x2be] sm:$0xff]
      %v7860 = vld [vmem:[%s227 + $0x2c6] sm:$0xff]
      %v7861 = vld [vmem:[%s227 + $0x2ce] sm:$0xff]
      %v7862 = vld [vmem:[%s227 + $0x2d6] sm:$0xff]
      %v7863 = vld [vmem:[%s227 + $0x2de] sm:$0xff]
      %v7864 = vld [vmem:[%s227 + $0x2e6] sm:$0xff]
      %v7865 = vld [vmem:[%s227 + $0x2ee] sm:$0xff]
      %v7866 = vld [vmem:[%s227 + $0x2f6] sm:$0xff]
      %s7867 = scalar_lea.vmem %s3, 68
      %v7868 = vld [vmem:[%s7867] sm:$0xf]
      %v7870 = vsel %vm304, %v7835, 0
      %v7873 = vsel %vm304, %v7836, 0
      %v7876 = vsel %vm304, %v7837, 0
      %v7879 = vsel %vm304, %v7838, 0
      %v7882 = vsel %vm304, %v7839, 0
      %v7885 = vsel %vm304, %v7840, 0
      %v7888 = vsel %vm304, %v7841, 0
      %v7891 = vsel %vm304, %v7842, 0
      %v7894 = vsel %vm304, %v7843, 0
      %v7897 = vsel %vm304, %v7844, 0
      %v7900 = vsel %vm304, %v7845, 0
      %v7903 = vsel %vm304, %v7846, 0
      %v7906 = vsel %vm304, %v7847, 0
      %v7909 = vsel %vm304, %v7848, 0
      %v7912 = vsel %vm304, %v7849, 0
      %v7915 = vsel %vm304, %v7850, 0
      %v7918 = vsel %vm304, %v7851, 0
      %v7921 = vsel %vm304, %v7852, 0
      %v7924 = vsel %vm304, %v7853, 0
      %v7927 = vsel %vm304, %v7854, 0
      %v7930 = vsel %vm304, %v7855, 0
      %v7933 = vsel %vm304, %v7856, 0
      %v7936 = vsel %vm304, %v7857, 0
      %v7939 = vsel %vm304, %v7858, 0
      %v7942 = vsel %vm304, %v7859, 0
      %v7945 = vsel %vm304, %v7860, 0
      %v7948 = vsel %vm304, %v7861, 0
      %v7951 = vsel %vm304, %v7862, 0
      %v7954 = vsel %vm304, %v7863, 0
      %v7957 = vsel %vm304, %v7864, 0
      %v7960 = vsel %vm304, %v7865, 0
      %v7963 = vsel %vm304, %v7866, 0
      %v7966 = vsel %vm401, %v7868, 0
      %7968 = vmatprep.subr.mxu0 0.0
      %7969 = vmatpush1.msra.mxu0 %v7966
      %7970 = vmatprep.subr.mxu0 0.0
      %7971 = vmatpush1.msra.mxu0 0.0
      %7972 = vmatprep.subr.mxu0 0.0
      %7973 = vmatpush1.msra.mxu0 0.0
      %7974 = vmatprep.subr.mxu0 0.0
      %7975 = vmatpush1.msra.mxu0 0.0
      %7976 = vmatprep.subr.mxu0 0.0
      %7977 = vmatpush1.msra.mxu0 0.0
      %7978 = vmatprep.subr.mxu0 0.0
      %7979 = vmatpush1.msra.mxu0 0.0
      %7980 = vmatprep.subr.mxu0 0.0
      %7981 = vmatpush1.msra.mxu0 0.0
      %7982 = vmatprep.subr.mxu0 0.0
      %7983 = vmatpush1.msra.mxu0 0.0
      %7984 = vmatprep.subr.mxu0 0.0
      %7985 = vmatpush1.msra.mxu0 0.0
      %7986 = vmatprep.subr.mxu0 0.0
      %7987 = vmatpush1.msra.mxu0 0.0
      %7988 = vmatprep.subr.mxu0 0.0
      %7989 = vmatpush1.msra.mxu0 0.0
      %7990 = vmatprep.subr.mxu0 0.0
      %7991 = vmatpush1.msra.mxu0 0.0
      %7992 = vmatprep.subr.mxu0 0.0
      %7993 = vmatpush1.msra.mxu0 0.0
      %7994 = vmatprep.subr.mxu0 0.0
      %7995 = vmatpush1.msra.mxu0 0.0
      %7996 = vmatprep.subr.mxu0 0.0
      %7997 = vmatpush1.msra.mxu0 0.0
      %7998 = vmatprep.subr.mxu0 0.0
      %7999 = vmatpush1.msra.mxu0 0.0
      %8000 = vmatprep.subr.mxu0 0.0
      %8001 = vmatpush1.msra.mxu0 0.0
      %8002 = vmatprep.subr.mxu0 0.0
      %8003 = vmatpush1.msra.mxu0 0.0
      %8004 = vmatprep.subr.mxu0 0.0
      %8005 = vmatpush1.msra.mxu0 0.0
      %8006 = vmatprep.subr.mxu0 0.0
      %8007 = vmatpush1.msra.mxu0 0.0
      %8008 = vmatprep.subr.mxu0 0.0
      %8009 = vmatpush1.msra.mxu0 0.0
      %8010 = vmatprep.subr.mxu0 0.0
      %8011 = vmatpush1.msra.mxu0 0.0
      %8012 = vmatprep.subr.mxu0 0.0
      %8013 = vmatpush1.msra.mxu0 0.0
      %8014 = vmatprep.subr.mxu0 0.0
      %8015 = vmatpush1.msra.mxu0 0.0
      %8016 = vmatprep.subr.mxu0 0.0
      %8017 = vmatpush1.msra.mxu0 0.0
      %8018 = vmatprep.subr.mxu0 0.0
      %8019 = vmatpush1.msra.mxu0 0.0
      %8020 = vmatprep.subr.mxu0 0.0
      %8021 = vmatpush1.msra.mxu0 0.0
      %8022 = vmatprep.subr.mxu0 0.0
      %8023 = vmatpush1.msra.mxu0 0.0
      %8024 = vmatprep.subr.mxu0 0.0
      %8025 = vmatpush1.msra.mxu0 0.0
      %8026 = vmatprep.subr.mxu0 0.0
      %8027 = vmatpush1.msra.mxu0 0.0
      %8028 = vmatprep.subr.mxu0 0.0
      %8029 = vmatpush1.msra.mxu0 0.0
      %8030 = vmatprep.subr.mxu0 0.0
      %8031 = vmatpush1.msra.mxu0 0.0
      %8032 = vmatprep.mubr.f32.mxu0 0.0
      %8033 = vmatmul.mubr.f32.gmra.mrb[0].mxu0 %v7870
      %v8034 = vpop.f32.mrb[0].mxu0
      %v8035 = vadd.f32 0.0, %v8034
      %v8036 = vpop.f32.mrb[0].mxu0
      %8037 = vmatprep.mubr.f32.mxu0 0.0
      %8038 = vmatmul.mubr.f32.gmra.mrb[0].mxu0 %v7873
      %v8039 = vpop.f32.mrb[0].mxu0
      %v8040 = vadd.f32 0.0, %v8039
      %v8041 = vpop.f32.mrb[0].mxu0
      %8042 = vmatprep.mubr.f32.mxu0 0.0
      %8043 = vmatmul.mubr.f32.gmra.mrb[0].mxu0 %v7876
      %v8044 = vpop.f32.mrb[0].mxu0
      %v8045 = vadd.f32 0.0, %v8044
      %v8046 = vpop.f32.mrb[0].mxu0
      %8047 = vmatprep.mubr.f32.mxu0 0.0
      %8048 = vmatmul.mubr.f32.gmra.mrb[0].mxu0 %v7879
      %v8049 = vpop.f32.mrb[0].mxu0
      %v8050 = vadd.f32 0.0, %v8049
      %v8051 = vpop.f32.mrb[0].mxu0
      %8052 = vmatprep.mubr.f32.mxu0 0.0
      %8053 = vmatmul.mubr.f32.gmra.mrb[0].mxu0 %v7882
      %v8054 = vpop.f32.mrb[0].mxu0
      %v8055 = vadd.f32 0.0, %v8054
      %v8056 = vpop.f32.mrb[0].mxu0
      %8057 = vmatprep.mubr.f32.mxu0 0.0
      %8058 = vmatmul.mubr.f32.gmra.mrb[0].mxu0 %v7885
      %v8059 = vpop.f32.mrb[0].mxu0
      %v8060 = vadd.f32 0.0, %v8059
      %v8061 = vpop.f32.mrb[0].mxu0
      %8062 = vmatprep.mubr.f32.mxu0 0.0
      %8063 = vmatmul.mubr.f32.gmra.mrb[0].mxu0 %v7888
      %v8064 = vpop.f32.mrb[0].mxu0
      %v8065 = vadd.f32 0.0, %v8064
      %v8066 = vpop.f32.mrb[0].mxu0
      %8067 = vmatprep.mubr.f32.mxu0 0.0
      %8068 = vmatmul.mubr.f32.gmra.mrb[0].mxu0 %v7891
      %v8069 = vpop.f32.mrb[0].mxu0
      %v8070 = vadd.f32 0.0, %v8069
      %v8071 = vpop.f32.mrb[0].mxu0
      %8072 = vmatprep.mubr.f32.mxu0 0.0
      %8073 = vmatmul.mubr.f32.gmra.mrb[0].mxu0 %v7894
      %v8074 = vpop.f32.mrb[0].mxu0
      %v8075 = vadd.f32 0.0, %v8074
      %v8076 = vpop.f32.mrb[0].mxu0
      %8077 = vmatprep.mubr.f32.mxu0 0.0
      %8078 = vmatmul.mubr.f32.gmra.mrb[0].mxu0 %v7897
      %v8079 = vpop.f32.mrb[0].mxu0
      %v8080 = vadd.f32 0.0, %v8079
      %v8081 = vpop.f32.mrb[0].mxu0
      %8082 = vmatprep.mubr.f32.mxu0 0.0
      %8083 = vmatmul.mubr.f32.gmra.mrb[0].mxu0 %v7900
      %v8084 = vpop.f32.mrb[0].mxu0
      %v8085 = vadd.f32 0.0, %v8084
      %v8086 = vpop.f32.mrb[0].mxu0
      %8087 = vmatprep.mubr.f32.mxu0 0.0
      %8088 = vmatmul.mubr.f32.gmra.mrb[0].mxu0 %v7903
      %v8089 = vpop.f32.mrb[0].mxu0
      %v8090 = vadd.f32 0.0, %v8089
      %v8091 = vpop.f32.mrb[0].mxu0
      %8092 = vmatprep.mubr.f32.mxu0 0.0
      %8093 = vmatmul.mubr.f32.gmra.mrb[0].mxu0 %v7906
      %v8094 = vpop.f32.mrb[0].mxu0
      %v8095 = vadd.f32 0.0, %v8094
      %v8096 = vpop.f32.mrb[0].mxu0
      %8097 = vmatprep.mubr.f32.mxu0 0.0
      %8098 = vmatmul.mubr.f32.gmra.mrb[0].mxu0 %v7909
      %v8099 = vpop.f32.mrb[0].mxu0
      %v8100 = vadd.f32 0.0, %v8099
      %v8101 = vpop.f32.mrb[0].mxu0
      %8102 = vmatprep.mubr.f32.mxu0 0.0
      %8103 = vmatmul.mubr.f32.gmra.mrb[0].mxu0 %v7912
      %v8104 = vpop.f32.mrb[0].mxu0
      %v8105 = vadd.f32 0.0, %v8104
      %v8106 = vpop.f32.mrb[0].mxu0
      %8107 = vmatprep.mubr.f32.mxu0 0.0
      %8108 = vmatmul.mubr.f32.gmra.mrb[0].mxu0 %v7915
      %v8109 = vpop.f32.mrb[0].mxu0
      %v8110 = vadd.f32 0.0, %v8109
      %v8111 = vpop.f32.mrb[0].mxu0
      %8112 = vmatprep.mubr.f32.mxu0 0.0
      %8113 = vmatmul.mubr.f32.gmra.mrb[0].mxu0 %v7918
      %v8114 = vpop.f32.mrb[0].mxu0
      %v8115 = vadd.f32 0.0, %v8114
      %v8116 = vpop.f32.mrb[0].mxu0
      %8117 = vmatprep.mubr.f32.mxu0 0.0
      %8118 = vmatmul.mubr.f32.gmra.mrb[0].mxu0 %v7921
      %v8119 = vpop.f32.mrb[0].mxu0
      %v8120 = vadd.f32 0.0, %v8119
      %v8121 = vpop.f32.mrb[0].mxu0
      %8122 = vmatprep.mubr.f32.mxu0 0.0
      %8123 = vmatmul.mubr.f32.gmra.mrb[0].mxu0 %v7924
      %v8124 = vpop.f32.mrb[0].mxu0
      %v8125 = vadd.f32 0.0, %v8124
      %v8126 = vpop.f32.mrb[0].mxu0
      %8127 = vmatprep.mubr.f32.mxu0 0.0
      %8128 = vmatmul.mubr.f32.gmra.mrb[0].mxu0 %v7927
      %v8129 = vpop.f32.mrb[0].mxu0
      %v8130 = vadd.f32 0.0, %v8129
      %v8131 = vpop.f32.mrb[0].mxu0
      %8132 = vmatprep.mubr.f32.mxu0 0.0
      %8133 = vmatmul.mubr.f32.gmra.mrb[0].mxu0 %v7930
      %v8134 = vpop.f32.mrb[0].mxu0
      %v8135 = vadd.f32 0.0, %v8134
      %v8136 = vpop.f32.mrb[0].mxu0
      %8137 = vmatprep.mubr.f32.mxu0 0.0
      %8138 = vmatmul.mubr.f32.gmra.mrb[0].mxu0 %v7933
      %v8139 = vpop.f32.mrb[0].mxu0
      %v8140 = vadd.f32 0.0, %v8139
      %v8141 = vpop.f32.mrb[0].mxu0
      %8142 = vmatprep.mubr.f32.mxu0 0.0
      %8143 = vmatmul.mubr.f32.gmra.mrb[0].mxu0 %v7936
      %v8144 = vpop.f32.mrb[0].mxu0
      %v8145 = vadd.f32 0.0, %v8144
      %v8146 = vpop.f32.mrb[0].mxu0
      %8147 = vmatprep.mubr.f32.mxu0 0.0
      %8148 = vmatmul.mubr.f32.gmra.mrb[0].mxu0 %v7939
      %v8149 = vpop.f32.mrb[0].mxu0
      %v8150 = vadd.f32 0.0, %v8149
      %v8151 = vpop.f32.mrb[0].mxu0
      %8152 = vmatprep.mubr.f32.mxu0 0.0
      %8153 = vmatmul.mubr.f32.gmra.mrb[0].mxu0 %v7942
      %v8154 = vpop.f32.mrb[0].mxu0
      %v8155 = vadd.f32 0.0, %v8154
      %v8156 = vpop.f32.mrb[0].mxu0
      %8157 = vmatprep.mubr.f32.mxu0 0.0
      %8158 = vmatmul.mubr.f32.gmra.mrb[0].mxu0 %v7945
      %v8159 = vpop.f32.mrb[0].mxu0
      %v8160 = vadd.f32 0.0, %v8159
      %v8161 = vpop.f32.mrb[0].mxu0
      %8162 = vmatprep.mubr.f32.mxu0 0.0
      %8163 = vmatmul.mubr.f32.gmra.mrb[0].mxu0 %v7948
      %v8164 = vpop.f32.mrb[0].mxu0
      %v8165 = vadd.f32 0.0, %v8164
      %v8166 = vpop.f32.mrb[0].mxu0
      %8167 = vmatprep.mubr.f32.mxu0 0.0
      %8168 = vmatmul.mubr.f32.gmra.mrb[0].mxu0 %v7951
      %v8169 = vpop.f32.mrb[0].mxu0
      %v8170 = vadd.f32 0.0, %v8169
      %v8171 = vpop.f32.mrb[0].mxu0
      %8172 = vmatprep.mubr.f32.mxu0 0.0
      %8173 = vmatmul.mubr.f32.gmra.mrb[0].mxu0 %v7954
      %v8174 = vpop.f32.mrb[0].mxu0
      %v8175 = vadd.f32 0.0, %v8174
      %v8176 = vpop.f32.mrb[0].mxu0
      %8177 = vmatprep.mubr.f32.mxu0 0.0
      %8178 = vmatmul.mubr.f32.gmra.mrb[0].mxu0 %v7957
      %v8179 = vpop.f32.mrb[0].mxu0
      %v8180 = vadd.f32 0.0, %v8179
      %v8181 = vpop.f32.mrb[0].mxu0
      %8182 = vmatprep.mubr.f32.mxu0 0.0
      %8183 = vmatmul.mubr.f32.gmra.mrb[0].mxu0 %v7960
      %v8184 = vpop.f32.mrb[0].mxu0
      %v8185 = vadd.f32 0.0, %v8184
      %v8186 = vpop.f32.mrb[0].mxu0
      %8187 = vmatprep.mubr.f32.mxu0 0.0
      %8188 = vmatmul.mubr.f32.gmra.mrb[0].mxu0 %v7963
      %v8189 = vpop.f32.mrb[0].mxu0
      %v8190 = vadd.f32 0.0, %v8189
      %v8191 = vpop.f32.mrb[0].mxu0
      %8192 = vdwg.mxu0
      %v8193 = vmul.f32 %v8035, %v5727
      %v8194 = vmul.f32 %v8040, %v5731
      %v8195 = vmul.f32 %v8045, %v5735
      %v8196 = vmul.f32 %v8050, %v5739
      %v8197 = vmul.f32 %v8055, %v5743
      %v8198 = vmul.f32 %v8060, %v5747
      %v8199 = vmul.f32 %v8065, %v5751
      %v8200 = vmul.f32 %v8070, %v5755
      %v8201 = vmul.f32 %v8075, %v5759
      %v8202 = vmul.f32 %v8080, %v5763
      %v8203 = vmul.f32 %v8085, %v5767
      %v8204 = vmul.f32 %v8090, %v5771
      %v8205 = vmul.f32 %v8095, %v5775
      %v8206 = vmul.f32 %v8100, %v5779
      %v8207 = vmul.f32 %v8105, %v5783
      %v8208 = vmul.f32 %v8110, %v5787
      %v8209 = vmul.f32 %v8115, %v5791
      %v8210 = vmul.f32 %v8120, %v5795
      %v8211 = vmul.f32 %v8125, %v5799
      %v8212 = vmul.f32 %v8130, %v5803
      %v8213 = vmul.f32 %v8135, %v5807
      %v8214 = vmul.f32 %v8140, %v5811
      %v8215 = vmul.f32 %v8145, %v5815
      %v8216 = vmul.f32 %v8150, %v5819
      %v8217 = vmul.f32 %v8155, %v5823
      %v8218 = vmul.f32 %v8160, %v5827
      %v8219 = vmul.f32 %v8165, %v5831
      %v8220 = vmul.f32 %v8170, %v5835
      %v8221 = vmul.f32 %v8175, %v5839
      %v8222 = vmul.f32 %v8180, %v5843
      %v8223 = vmul.f32 %v8185, %v5847
      %v8224 = vmul.f32 %v8190, %v5851
      %v8225 = vadd.f32 %v7803, %v8193
      %v8226 = vadd.f32 %v7804, %v8194
      %v8227 = vadd.f32 %v7805, %v8195
      %v8228 = vadd.f32 %v7806, %v8196
      %v8229 = vadd.f32 %v7807, %v8197
      %v8230 = vadd.f32 %v7808, %v8198
      %v8231 = vadd.f32 %v7809, %v8199
      %v8232 = vadd.f32 %v7810, %v8200
      %v8233 = vadd.f32 %v7811, %v8201
      %v8234 = vadd.f32 %v7812, %v8202
      %v8235 = vadd.f32 %v7813, %v8203
      %v8236 = vadd.f32 %v7814, %v8204
      %v8237 = vadd.f32 %v7815, %v8205
      %v8238 = vadd.f32 %v7816, %v8206
      %v8239 = vadd.f32 %v7817, %v8207
      %v8240 = vadd.f32 %v7818, %v8208
      %v8241 = vadd.f32 %v7819, %v8209
      %v8242 = vadd.f32 %v7820, %v8210
      %v8243 = vadd.f32 %v7821, %v8211
      %v8244 = vadd.f32 %v7822, %v8212
      %v8245 = vadd.f32 %v7823, %v8213
      %v8246 = vadd.f32 %v7824, %v8214
      %v8247 = vadd.f32 %v7825, %v8215
      %v8248 = vadd.f32 %v7826, %v8216
      %v8249 = vadd.f32 %v7827, %v8217
      %v8250 = vadd.f32 %v7828, %v8218
      %v8251 = vadd.f32 %v7829, %v8219
      %v8252 = vadd.f32 %v7830, %v8220
      %v8253 = vadd.f32 %v7831, %v8221
      %v8254 = vadd.f32 %v7832, %v8222
      %v8255 = vadd.f32 %v7833, %v8223
      %v8256 = vadd.f32 %v7834, %v8224
      %s8257 = scalar_lea.vmem %s3, 88
      %v8258 = vld [vmem:[%s8257] sm:$0xf]
      %v8260 = vsel %vm401, %v8258, 0
      %8262 = vmatprep.subr.mxu0 0.0
      %8263 = vmatpush1.msra.mxu0 %v8260
      %8264 = vmatprep.subr.mxu0 0.0
      %8265 = vmatpush1.msra.mxu0 0.0
      %8266 = vmatprep.subr.mxu0 0.0
      %8267 = vmatpush1.msra.mxu0 0.0
      %8268 = vmatprep.subr.mxu0 0.0
      %8269 = vmatpush1.msra.mxu0 0.0
      %8270 = vmatprep.subr.mxu0 0.0
      %8271 = vmatpush1.msra.mxu0 0.0
      %8272 = vmatprep.subr.mxu0 0.0
      %8273 = vmatpush1.msra.mxu0 0.0
      %8274 = vmatprep.subr.mxu0 0.0
      %8275 = vmatpush1.msra.mxu0 0.0
      %8276 = vmatprep.subr.mxu0 0.0
      %8277 = vmatpush1.msra.mxu0 0.0
      %8278 = vmatprep.subr.mxu0 0.0
      %8279 = vmatpush1.msra.mxu0 0.0
      %8280 = vmatprep.subr.mxu0 0.0
      %8281 = vmatpush1.msra.mxu0 0.0
      %8282 = vmatprep.subr.mxu0 0.0
      %8283 = vmatpush1.msra.mxu0 0.0
      %8284 = vmatprep.subr.mxu0 0.0
      %8285 = vmatpush1.msra.mxu0 0.0
      %8286 = vmatprep.subr.mxu0 0.0
      %8287 = vmatpush1.msra.mxu0 0.0
      %8288 = vmatprep.subr.mxu0 0.0
      %8289 = vmatpush1.msra.mxu0 0.0
      %8290 = vmatprep.subr.mxu0 0.0
      %8291 = vmatpush1.msra.mxu0 0.0
      %8292 = vmatprep.subr.mxu0 0.0
      %8293 = vmatpush1.msra.mxu0 0.0
      %8294 = vmatprep.subr.mxu0 0.0
      %8295 = vmatpush1.msra.mxu0 0.0
      %8296 = vmatprep.subr.mxu0 0.0
      %8297 = vmatpush1.msra.mxu0 0.0
      %8298 = vmatprep.subr.mxu0 0.0
      %8299 = vmatpush1.msra.mxu0 0.0
      %8300 = vmatprep.subr.mxu0 0.0
      %8301 = vmatpush1.msra.mxu0 0.0
      %8302 = vmatprep.subr.mxu0 0.0
      %8303 = vmatpush1.msra.mxu0 0.0
      %8304 = vmatprep.subr.mxu0 0.0
      %8305 = vmatpush1.msra.mxu0 0.0
      %8306 = vmatprep.subr.mxu0 0.0
      %8307 = vmatpush1.msra.mxu0 0.0
      %8308 = vmatprep.subr.mxu0 0.0
      %8309 = vmatpush1.msra.mxu0 0.0
      %8310 = vmatprep.subr.mxu0 0.0
      %8311 = vmatpush1.msra.mxu0 0.0
      %8312 = vmatprep.subr.mxu0 0.0
      %8313 = vmatpush1.msra.mxu0 0.0
      %8314 = vmatprep.subr.mxu0 0.0
      %8315 = vmatpush1.msra.mxu0 0.0
      %8316 = vmatprep.subr.mxu0 0.0
      %8317 = vmatpush1.msra.mxu0 0.0
      %8318 = vmatprep.subr.mxu0 0.0
      %8319 = vmatpush1.msra.mxu0 0.0
      %8320 = vmatprep.subr.mxu0 0.0
      %8321 = vmatpush1.msra.mxu0 0.0
      %8322 = vmatprep.subr.mxu0 0.0
      %8323 = vmatpush1.msra.mxu0 0.0
      %8324 = vmatprep.subr.mxu0 0.0
      %8325 = vmatpush1.msra.mxu0 0.0
      %8326 = vmatprep.mubr.f32.mxu0 0.0
      %8327 = vmatmul.mubr.f32.gmra.mrb[0].mxu0 %v306
      %v8328 = vpop.f32.mrb[0].mxu0
      %v8329 = vadd.f32 0.0, %v8328
      %v8330 = vpop.f32.mrb[0].mxu0
      %8331 = vmatprep.mubr.f32.mxu0 0.0
      %8332 = vmatmul.mubr.f32.gmra.mrb[0].mxu0 %v309
      %v8333 = vpop.f32.mrb[0].mxu0
      %v8334 = vadd.f32 0.0, %v8333
      %v8335 = vpop.f32.mrb[0].mxu0
      %8336 = vmatprep.mubr.f32.mxu0 0.0
      %8337 = vmatmul.mubr.f32.gmra.mrb[0].mxu0 %v312
      %v8338 = vpop.f32.mrb[0].mxu0
      %v8339 = vadd.f32 0.0, %v8338
      %v8340 = vpop.f32.mrb[0].mxu0
      %8341 = vmatprep.mubr.f32.mxu0 0.0
      %8342 = vmatmul.mubr.f32.gmra.mrb[0].mxu0 %v315
      %v8343 = vpop.f32.mrb[0].mxu0
      %v8344 = vadd.f32 0.0, %v8343
      %v8345 = vpop.f32.mrb[0].mxu0
      %8346 = vmatprep.mubr.f32.mxu0 0.0
      %8347 = vmatmul.mubr.f32.gmra.mrb[0].mxu0 %v318
      %v8348 = vpop.f32.mrb[0].mxu0
      %v8349 = vadd.f32 0.0, %v8348
      %v8350 = vpop.f32.mrb[0].mxu0
      %8351 = vmatprep.mubr.f32.mxu0 0.0
      %8352 = vmatmul.mubr.f32.gmra.mrb[0].mxu0 %v321
      %v8353 = vpop.f32.mrb[0].mxu0
      %v8354 = vadd.f32 0.0, %v8353
      %v8355 = vpop.f32.mrb[0].mxu0
      %8356 = vmatprep.mubr.f32.mxu0 0.0
      %8357 = vmatmul.mubr.f32.gmra.mrb[0].mxu0 %v324
      %v8358 = vpop.f32.mrb[0].mxu0
      %v8359 = vadd.f32 0.0, %v8358
      %v8360 = vpop.f32.mrb[0].mxu0
      %8361 = vmatprep.mubr.f32.mxu0 0.0
      %8362 = vmatmul.mubr.f32.gmra.mrb[0].mxu0 %v327
      %v8363 = vpop.f32.mrb[0].mxu0
      %v8364 = vadd.f32 0.0, %v8363
      %v8365 = vpop.f32.mrb[0].mxu0
      %8366 = vmatprep.mubr.f32.mxu0 0.0
      %8367 = vmatmul.mubr.f32.gmra.mrb[0].mxu0 %v330
      %v8368 = vpop.f32.mrb[0].mxu0
      %v8369 = vadd.f32 0.0, %v8368
      %v8370 = vpop.f32.mrb[0].mxu0
      %8371 = vmatprep.mubr.f32.mxu0 0.0
      %8372 = vmatmul.mubr.f32.gmra.mrb[0].mxu0 %v333
      %v8373 = vpop.f32.mrb[0].mxu0
      %v8374 = vadd.f32 0.0, %v8373
      %v8375 = vpop.f32.mrb[0].mxu0
      %8376 = vmatprep.mubr.f32.mxu0 0.0
      %8377 = vmatmul.mubr.f32.gmra.mrb[0].mxu0 %v336
      %v8378 = vpop.f32.mrb[0].mxu0
      %v8379 = vadd.f32 0.0, %v8378
      %v8380 = vpop.f32.mrb[0].mxu0
      %8381 = vmatprep.mubr.f32.mxu0 0.0
      %8382 = vmatmul.mubr.f32.gmra.mrb[0].mxu0 %v339
      %v8383 = vpop.f32.mrb[0].mxu0
      %v8384 = vadd.f32 0.0, %v8383
      %v8385 = vpop.f32.mrb[0].mxu0
      %8386 = vmatprep.mubr.f32.mxu0 0.0
      %8387 = vmatmul.mubr.f32.gmra.mrb[0].mxu0 %v342
      %v8388 = vpop.f32.mrb[0].mxu0
      %v8389 = vadd.f32 0.0, %v8388
      %v8390 = vpop.f32.mrb[0].mxu0
      %8391 = vmatprep.mubr.f32.mxu0 0.0
      %8392 = vmatmul.mubr.f32.gmra.mrb[0].mxu0 %v345
      %v8393 = vpop.f32.mrb[0].mxu0
      %v8394 = vadd.f32 0.0, %v8393
      %v8395 = vpop.f32.mrb[0].mxu0
      %8396 = vmatprep.mubr.f32.mxu0 0.0
      %8397 = vmatmul.mubr.f32.gmra.mrb[0].mxu0 %v348
      %v8398 = vpop.f32.mrb[0].mxu0
      %v8399 = vadd.f32 0.0, %v8398
      %v8400 = vpop.f32.mrb[0].mxu0
      %8401 = vmatprep.mubr.f32.mxu0 0.0
      %8402 = vmatmul.mubr.f32.gmra.mrb[0].mxu0 %v351
      %v8403 = vpop.f32.mrb[0].mxu0
      %v8404 = vadd.f32 0.0, %v8403
      %v8405 = vpop.f32.mrb[0].mxu0
      %8406 = vmatprep.mubr.f32.mxu0 0.0
      %8407 = vmatmul.mubr.f32.gmra.mrb[0].mxu0 %v354
      %v8408 = vpop.f32.mrb[0].mxu0
      %v8409 = vadd.f32 0.0, %v8408
      %v8410 = vpop.f32.mrb[0].mxu0
      %8411 = vmatprep.mubr.f32.mxu0 0.0
      %8412 = vmatmul.mubr.f32.gmra.mrb[0].mxu0 %v357
      %v8413 = vpop.f32.mrb[0].mxu0
      %v8414 = vadd.f32 0.0, %v8413
      %v8415 = vpop.f32.mrb[0].mxu0
      %8416 = vmatprep.mubr.f32.mxu0 0.0
      %8417 = vmatmul.mubr.f32.gmra.mrb[0].mxu0 %v360
      %v8418 = vpop.f32.mrb[0].mxu0
      %v8419 = vadd.f32 0.0, %v8418
      %v8420 = vpop.f32.mrb[0].mxu0
      %8421 = vmatprep.mubr.f32.mxu0 0.0
      %8422 = vmatmul.mubr.f32.gmra.mrb[0].mxu0 %v363
      %v8423 = vpop.f32.mrb[0].mxu0
      %v8424 = vadd.f32 0.0, %v8423
      %v8425 = vpop.f32.mrb[0].mxu0
      %8426 = vmatprep.mubr.f32.mxu0 0.0
      %8427 = vmatmul.mubr.f32.gmra.mrb[0].mxu0 %v366
      %v8428 = vpop.f32.mrb[0].mxu0
      %v8429 = vadd.f32 0.0, %v8428
      %v8430 = vpop.f32.mrb[0].mxu0
      %8431 = vmatprep.mubr.f32.mxu0 0.0
      %8432 = vmatmul.mubr.f32.gmra.mrb[0].mxu0 %v369
      %v8433 = vpop.f32.mrb[0].mxu0
      %v8434 = vadd.f32 0.0, %v8433
      %v8435 = vpop.f32.mrb[0].mxu0
      %8436 = vmatprep.mubr.f32.mxu0 0.0
      %8437 = vmatmul.mubr.f32.gmra.mrb[0].mxu0 %v372
      %v8438 = vpop.f32.mrb[0].mxu0
      %v8439 = vadd.f32 0.0, %v8438
      %v8440 = vpop.f32.mrb[0].mxu0
      %8441 = vmatprep.mubr.f32.mxu0 0.0
      %8442 = vmatmul.mubr.f32.gmra.mrb[0].mxu0 %v375
      %v8443 = vpop.f32.mrb[0].mxu0
      %v8444 = vadd.f32 0.0, %v8443
      %v8445 = vpop.f32.mrb[0].mxu0
      %8446 = vmatprep.mubr.f32.mxu0 0.0
      %8447 = vmatmul.mubr.f32.gmra.mrb[0].mxu0 %v378
      %v8448 = vpop.f32.mrb[0].mxu0
      %v8449 = vadd.f32 0.0, %v8448
      %v8450 = vpop.f32.mrb[0].mxu0
      %8451 = vmatprep.mubr.f32.mxu0 0.0
      %8452 = vmatmul.mubr.f32.gmra.mrb[0].mxu0 %v381
      %v8453 = vpop.f32.mrb[0].mxu0
      %v8454 = vadd.f32 0.0, %v8453
      %v8455 = vpop.f32.mrb[0].mxu0
      %8456 = vmatprep.mubr.f32.mxu0 0.0
      %8457 = vmatmul.mubr.f32.gmra.mrb[0].mxu0 %v384
      %v8458 = vpop.f32.mrb[0].mxu0
      %v8459 = vadd.f32 0.0, %v8458
      %v8460 = vpop.f32.mrb[0].mxu0
      %8461 = vmatprep.mubr.f32.mxu0 0.0
      %8462 = vmatmul.mubr.f32.gmra.mrb[0].mxu0 %v387
      %v8463 = vpop.f32.mrb[0].mxu0
      %v8464 = vadd.f32 0.0, %v8463
      %v8465 = vpop.f32.mrb[0].mxu0
      %8466 = vmatprep.mubr.f32.mxu0 0.0
      %8467 = vmatmul.mubr.f32.gmra.mrb[0].mxu0 %v390
      %v8468 = vpop.f32.mrb[0].mxu0
      %v8469 = vadd.f32 0.0, %v8468
      %v8470 = vpop.f32.mrb[0].mxu0
      %8471 = vmatprep.mubr.f32.mxu0 0.0
      %8472 = vmatmul.mubr.f32.gmra.mrb[0].mxu0 %v393
      %v8473 = vpop.f32.mrb[0].mxu0
      %v8474 = vadd.f32 0.0, %v8473
      %v8475 = vpop.f32.mrb[0].mxu0
      %8476 = vmatprep.mubr.f32.mxu0 0.0
      %8477 = vmatmul.mubr.f32.gmra.mrb[0].mxu0 %v396
      %v8478 = vpop.f32.mrb[0].mxu0
      %v8479 = vadd.f32 0.0, %v8478
      %v8480 = vpop.f32.mrb[0].mxu0
      %8481 = vmatprep.mubr.f32.mxu0 0.0
      %8482 = vmatmul.mubr.f32.gmra.mrb[0].mxu0 %v399
      %v8483 = vpop.f32.mrb[0].mxu0
      %v8484 = vadd.f32 0.0, %v8483
      %v8485 = vpop.f32.mrb[0].mxu0
      %8486 = vdwg.mxu0
      %8519 = vrot.lane.b32.xlu0 %v4427, 8
      %v8520 = vpop.permute.xlu0 %8519
      %8521 = vrot.lane.b32.xlu0 %v4428, 8
      %v8522 = vpop.permute.xlu0 %8521
      %8523 = vrot.lane.b32.xlu0 %v4429, 8
      %v8524 = vpop.permute.xlu0 %8523
      %8525 = vrot.lane.b32.xlu0 %v4430, 8
      %v8526 = vpop.permute.xlu0 %8525
      %8527 = vrot.lane.b32.xlu0 %v4431, 8
      %v8528 = vpop.permute.xlu0 %8527
      %8529 = vrot.lane.b32.xlu0 %v4432, 8
      %v8530 = vpop.permute.xlu0 %8529
      %8531 = vrot.lane.b32.xlu0 %v4433, 8
      %v8532 = vpop.permute.xlu0 %8531
      %8533 = vrot.lane.b32.xlu0 %v4434, 8
      %v8534 = vpop.permute.xlu0 %8533
      %8535 = vrot.lane.b32.xlu0 %v4435, 8
      %v8536 = vpop.permute.xlu0 %8535
      %8537 = vrot.lane.b32.xlu0 %v4436, 8
      %v8538 = vpop.permute.xlu0 %8537
      %8539 = vrot.lane.b32.xlu0 %v4437, 8
      %v8540 = vpop.permute.xlu0 %8539
      %8541 = vrot.lane.b32.xlu0 %v4438, 8
      %v8542 = vpop.permute.xlu0 %8541
      %8543 = vrot.lane.b32.xlu0 %v4439, 8
      %v8544 = vpop.permute.xlu0 %8543
      %8545 = vrot.lane.b32.xlu0 %v4440, 8
      %v8546 = vpop.permute.xlu0 %8545
      %8547 = vrot.lane.b32.xlu0 %v4441, 8
      %v8548 = vpop.permute.xlu0 %8547
      %8549 = vrot.lane.b32.xlu0 %v4442, 8
      %v8550 = vpop.permute.xlu0 %8549
      %8551 = vrot.lane.b32.xlu0 %v4443, 8
      %v8552 = vpop.permute.xlu0 %8551
      %8553 = vrot.lane.b32.xlu0 %v4444, 8
      %v8554 = vpop.permute.xlu0 %8553
      %8555 = vrot.lane.b32.xlu0 %v4445, 8
      %v8556 = vpop.permute.xlu0 %8555
      %8557 = vrot.lane.b32.xlu0 %v4446, 8
      %v8558 = vpop.permute.xlu0 %8557
      %8559 = vrot.lane.b32.xlu0 %v4447, 8
      %v8560 = vpop.permute.xlu0 %8559
      %8561 = vrot.lane.b32.xlu0 %v4448, 8
      %v8562 = vpop.permute.xlu0 %8561
      %8563 = vrot.lane.b32.xlu0 %v4449, 8
      %v8564 = vpop.permute.xlu0 %8563
      %8565 = vrot.lane.b32.xlu0 %v4450, 8
      %v8566 = vpop.permute.xlu0 %8565
      %8567 = vrot.lane.b32.xlu0 %v4451, 8
      %v8568 = vpop.permute.xlu0 %8567
      %8569 = vrot.lane.b32.xlu0 %v4452, 8
      %v8570 = vpop.permute.xlu0 %8569
      %8571 = vrot.lane.b32.xlu0 %v4453, 8
      %v8572 = vpop.permute.xlu0 %8571
      %8573 = vrot.lane.b32.xlu0 %v4454, 8
      %v8574 = vpop.permute.xlu0 %8573
      %8575 = vrot.lane.b32.xlu0 %v4455, 8
      %v8576 = vpop.permute.xlu0 %8575
      %8577 = vrot.lane.b32.xlu0 %v4456, 8
      %v8578 = vpop.permute.xlu0 %8577
      %8579 = vrot.lane.b32.xlu0 %v4457, 8
      %v8580 = vpop.permute.xlu0 %8579
      %8581 = vrot.lane.b32.xlu0 %v4458, 8
      %v8582 = vpop.permute.xlu0 %8581
      %8647 = vrot.lane.b32.xlu0 %v8225, 16
      %v8648 = vpop.permute.xlu0 %8647
      %8649 = vrot.lane.b32.xlu0 %v8226, 16
      %v8650 = vpop.permute.xlu0 %8649
      %8651 = vrot.lane.b32.xlu0 %v8227, 16
      %v8652 = vpop.permute.xlu0 %8651
      %8653 = vrot.lane.b32.xlu0 %v8228, 16
      %v8654 = vpop.permute.xlu0 %8653
      %8655 = vrot.lane.b32.xlu0 %v8229, 16
      %v8656 = vpop.permute.xlu0 %8655
      %8657 = vrot.lane.b32.xlu0 %v8230, 16
      %v8658 = vpop.permute.xlu0 %8657
      %8659 = vrot.lane.b32.xlu0 %v8231, 16
      %v8660 = vpop.permute.xlu0 %8659
      %8661 = vrot.lane.b32.xlu0 %v8232, 16
      %v8662 = vpop.permute.xlu0 %8661
      %8663 = vrot.lane.b32.xlu0 %v8233, 16
      %v8664 = vpop.permute.xlu0 %8663
      %8665 = vrot.lane.b32.xlu0 %v8234, 16
      %v8666 = vpop.permute.xlu0 %8665
      %8667 = vrot.lane.b32.xlu0 %v8235, 16
      %v8668 = vpop.permute.xlu0 %8667
      %8669 = vrot.lane.b32.xlu0 %v8236, 16
      %v8670 = vpop.permute.xlu0 %8669
      %8671 = vrot.lane.b32.xlu0 %v8237, 16
      %v8672 = vpop.permute.xlu0 %8671
      %8673 = vrot.lane.b32.xlu0 %v8238, 16
      %v8674 = vpop.permute.xlu0 %8673
      %8675 = vrot.lane.b32.xlu0 %v8239, 16
      %v8676 = vpop.permute.xlu0 %8675
      %8677 = vrot.lane.b32.xlu0 %v8240, 16
      %v8678 = vpop.permute.xlu0 %8677
      %8679 = vrot.lane.b32.xlu0 %v8241, 16
      %v8680 = vpop.permute.xlu0 %8679
      %8681 = vrot.lane.b32.xlu0 %v8242, 16
      %v8682 = vpop.permute.xlu0 %8681
      %8683 = vrot.lane.b32.xlu0 %v8243, 16
      %v8684 = vpop.permute.xlu0 %8683
      %8685 = vrot.lane.b32.xlu0 %v8244, 16
      %v8686 = vpop.permute.xlu0 %8685
      %8687 = vrot.lane.b32.xlu0 %v8245, 16
      %v8688 = vpop.permute.xlu0 %8687
      %8689 = vrot.lane.b32.xlu0 %v8246, 16
      %v8690 = vpop.permute.xlu0 %8689
      %8691 = vrot.lane.b32.xlu0 %v8247, 16
      %v8692 = vpop.permute.xlu0 %8691
      %8693 = vrot.lane.b32.xlu0 %v8248, 16
      %v8694 = vpop.permute.xlu0 %8693
      %8695 = vrot.lane.b32.xlu0 %v8249, 16
      %v8696 = vpop.permute.xlu0 %8695
      %8697 = vrot.lane.b32.xlu0 %v8250, 16
      %v8698 = vpop.permute.xlu0 %8697
      %8699 = vrot.lane.b32.xlu0 %v8251, 16
      %v8700 = vpop.permute.xlu0 %8699
      %8701 = vrot.lane.b32.xlu0 %v8252, 16
      %v8702 = vpop.permute.xlu0 %8701
      %8703 = vrot.lane.b32.xlu0 %v8253, 16
      %v8704 = vpop.permute.xlu0 %8703
      %8705 = vrot.lane.b32.xlu0 %v8254, 16
      %v8706 = vpop.permute.xlu0 %8705
      %8707 = vrot.lane.b32.xlu0 %v8255, 16
      %v8708 = vpop.permute.xlu0 %8707
      %8709 = vrot.lane.b32.xlu0 %v8256, 16
      %v8710 = vpop.permute.xlu0 %8709
      %8775 = vrot.lane.b32.xlu0 %v8329, 24
      %v8776 = vpop.permute.xlu0 %8775
      %8777 = vrot.lane.b32.xlu0 %v8334, 24
      %v8778 = vpop.permute.xlu0 %8777
      %8779 = vrot.lane.b32.xlu0 %v8339, 24
      %v8780 = vpop.permute.xlu0 %8779
      %8781 = vrot.lane.b32.xlu0 %v8344, 24
      %v8782 = vpop.permute.xlu0 %8781
      %8783 = vrot.lane.b32.xlu0 %v8349, 24
      %v8784 = vpop.permute.xlu0 %8783
      %8785 = vrot.lane.b32.xlu0 %v8354, 24
      %v8786 = vpop.permute.xlu0 %8785
      %8787 = vrot.lane.b32.xlu0 %v8359, 24
      %v8788 = vpop.permute.xlu0 %8787
      %8789 = vrot.lane.b32.xlu0 %v8364, 24
      %v8790 = vpop.permute.xlu0 %8789
      %8791 = vrot.lane.b32.xlu0 %v8369, 24
      %v8792 = vpop.permute.xlu0 %8791
      %8793 = vrot.lane.b32.xlu0 %v8374, 24
      %v8794 = vpop.permute.xlu0 %8793
      %8795 = vrot.lane.b32.xlu0 %v8379, 24
      %v8796 = vpop.permute.xlu0 %8795
      %8797 = vrot.lane.b32.xlu0 %v8384, 24
      %v8798 = vpop.permute.xlu0 %8797
      %8799 = vrot.lane.b32.xlu0 %v8389, 24
      %v8800 = vpop.permute.xlu0 %8799
      %8801 = vrot.lane.b32.xlu0 %v8394, 24
      %v8802 = vpop.permute.xlu0 %8801
      %8803 = vrot.lane.b32.xlu0 %v8399, 24
      %v8804 = vpop.permute.xlu0 %8803
      %8805 = vrot.lane.b32.xlu0 %v8404, 24
      %v8806 = vpop.permute.xlu0 %8805
      %8807 = vrot.lane.b32.xlu0 %v8409, 24
      %v8808 = vpop.permute.xlu0 %8807
      %8809 = vrot.lane.b32.xlu0 %v8414, 24
      %v8810 = vpop.permute.xlu0 %8809
      %8811 = vrot.lane.b32.xlu0 %v8419, 24
      %v8812 = vpop.permute.xlu0 %8811
      %8813 = vrot.lane.b32.xlu0 %v8424, 24
      %v8814 = vpop.permute.xlu0 %8813
      %8815 = vrot.lane.b32.xlu0 %v8429, 24
      %v8816 = vpop.permute.xlu0 %8815
      %8817 = vrot.lane.b32.xlu0 %v8434, 24
      %v8818 = vpop.permute.xlu0 %8817
      %8819 = vrot.lane.b32.xlu0 %v8439, 24
      %v8820 = vpop.permute.xlu0 %8819
      %8821 = vrot.lane.b32.xlu0 %v8444, 24
      %v8822 = vpop.permute.xlu0 %8821
      %8823 = vrot.lane.b32.xlu0 %v8449, 24
      %v8824 = vpop.permute.xlu0 %8823
      %8825 = vrot.lane.b32.xlu0 %v8454, 24
      %v8826 = vpop.permute.xlu0 %8825
      %8827 = vrot.lane.b32.xlu0 %v8459, 24
      %v8828 = vpop.permute.xlu0 %8827
      %8829 = vrot.lane.b32.xlu0 %v8464, 24
      %v8830 = vpop.permute.xlu0 %8829
      %8831 = vrot.lane.b32.xlu0 %v8469, 24
      %v8832 = vpop.permute.xlu0 %8831
      %8833 = vrot.lane.b32.xlu0 %v8474, 24
      %v8834 = vpop.permute.xlu0 %8833
      %8835 = vrot.lane.b32.xlu0 %v8479, 24
      %v8836 = vpop.permute.xlu0 %8835
      %8837 = vrot.lane.b32.xlu0 %v8484, 24
      %v8838 = vpop.permute.xlu0 %8837
      %vm8871 = vcmask 64512
      %v8872 = vsel %vm8871, %v472, %v8520
      %v8873 = vsel %vm8871, %v477, %v8522
      %v8874 = vsel %vm8871, %v482, %v8524
      %v8875 = vsel %vm8871, %v487, %v8526
      %v8876 = vsel %vm8871, %v492, %v8528
      %v8877 = vsel %vm8871, %v497, %v8530
      %v8878 = vsel %vm8871, %v502, %v8532
      %v8879 = vsel %vm8871, %v507, %v8534
      %v8880 = vsel %vm8871, %v512, %v8536
      %v8881 = vsel %vm8871, %v517, %v8538
      %v8882 = vsel %vm8871, %v522, %v8540
      %v8883 = vsel %vm8871, %v527, %v8542
      %v8884 = vsel %vm8871, %v532, %v8544
      %v8885 = vsel %vm8871, %v537, %v8546
      %v8886 = vsel %vm8871, %v542, %v8548
      %v8887 = vsel %vm8871, %v547, %v8550
      %v8888 = vsel %vm8871, %v552, %v8552
      %v8889 = vsel %vm8871, %v557, %v8554
      %v8890 = vsel %vm8871, %v562, %v8556
      %v8891 = vsel %vm8871, %v567, %v8558
      %v8892 = vsel %vm8871, %v572, %v8560
      %v8893 = vsel %vm8871, %v577, %v8562
      %v8894 = vsel %vm8871, %v582, %v8564
      %v8895 = vsel %vm8871, %v587, %v8566
      %v8896 = vsel %vm8871, %v592, %v8568
      %v8897 = vsel %vm8871, %v597, %v8570
      %v8898 = vsel %vm8871, %v602, %v8572
      %v8899 = vsel %vm8871, %v607, %v8574
      %v8900 = vsel %vm8871, %v612, %v8576
      %v8901 = vsel %vm8871, %v617, %v8578
      %v8902 = vsel %vm8871, %v622, %v8580
      %v8903 = vsel %vm8871, %v627, %v8582
      %vm8904 = vcmask 130048
      %v8905 = vsel %vm8904, %v8872, %v8648
      %v8906 = vsel %vm8904, %v8873, %v8650
      %v8907 = vsel %vm8904, %v8874, %v8652
      %v8908 = vsel %vm8904, %v8875, %v8654
      %v8909 = vsel %vm8904, %v8876, %v8656
      %v8910 = vsel %vm8904, %v8877, %v8658
      %v8911 = vsel %vm8904, %v8878, %v8660
      %v8912 = vsel %vm8904, %v8879, %v8662
      %v8913 = vsel %vm8904, %v8880, %v8664
      %v8914 = vsel %vm8904, %v8881, %v8666
      %v8915 = vsel %vm8904, %v8882, %v8668
      %v8916 = vsel %vm8904, %v8883, %v8670
      %v8917 = vsel %vm8904, %v8884, %v8672
      %v8918 = vsel %vm8904, %v8885, %v8674
      %v8919 = vsel %vm8904, %v8886, %v8676
      %v8920 = vsel %vm8904, %v8887, %v8678
      %v8921 = vsel %vm8904, %v8888, %v8680
      %v8922 = vsel %vm8904, %v8889, %v8682
      %v8923 = vsel %vm8904, %v8890, %v8684
      %v8924 = vsel %vm8904, %v8891, %v8686
      %v8925 = vsel %vm8904, %v8892, %v8688
      %v8926 = vsel %vm8904, %v8893, %v8690
      %v8927 = vsel %vm8904, %v8894, %v8692
      %v8928 = vsel %vm8904, %v8895, %v8694
      %v8929 = vsel %vm8904, %v8896, %v8696
      %v8930 = vsel %vm8904, %v8897, %v8698
      %v8931 = vsel %vm8904, %v8898, %v8700
      %v8932 = vsel %vm8904, %v8899, %v8702
      %v8933 = vsel %vm8904, %v8900, %v8704
      %v8934 = vsel %vm8904, %v8901, %v8706
      %v8935 = vsel %vm8904, %v8902, %v8708
      %v8936 = vsel %vm8904, %v8903, %v8710
      %vm8937 = vcmask 195584
      %v8938 = vsel %vm8937, %v8905, %v8776
      %v8939 = vsel %vm8937, %v8906, %v8778
      %v8940 = vsel %vm8937, %v8907, %v8780
      %v8941 = vsel %vm8937, %v8908, %v8782
      %v8942 = vsel %vm8937, %v8909, %v8784
      %v8943 = vsel %vm8937, %v8910, %v8786
      %v8944 = vsel %vm8937, %v8911, %v8788
      %v8945 = vsel %vm8937, %v8912, %v8790
      %v8946 = vsel %vm8937, %v8913, %v8792
      %v8947 = vsel %vm8937, %v8914, %v8794
      %v8948 = vsel %vm8937, %v8915, %v8796
      %v8949 = vsel %vm8937, %v8916, %v8798
      %v8950 = vsel %vm8937, %v8917, %v8800
      %v8951 = vsel %vm8937, %v8918, %v8802
      %v8952 = vsel %vm8937, %v8919, %v8804
      %v8953 = vsel %vm8937, %v8920, %v8806
      %v8954 = vsel %vm8937, %v8921, %v8808
      %v8955 = vsel %vm8937, %v8922, %v8810
      %v8956 = vsel %vm8937, %v8923, %v8812
      %v8957 = vsel %vm8937, %v8924, %v8814
      %v8958 = vsel %vm8937, %v8925, %v8816
      %v8959 = vsel %vm8937, %v8926, %v8818
      %v8960 = vsel %vm8937, %v8927, %v8820
      %v8961 = vsel %vm8937, %v8928, %v8822
      %v8962 = vsel %vm8937, %v8929, %v8824
      %v8963 = vsel %vm8937, %v8930, %v8826
      %v8964 = vsel %vm8937, %v8931, %v8828
      %v8965 = vsel %vm8937, %v8932, %v8830
      %v8966 = vsel %vm8937, %v8933, %v8832
      %v8967 = vsel %vm8937, %v8934, %v8834
      %v8968 = vsel %vm8937, %v8935, %v8836
      %v8969 = vsel %vm8937, %v8936, %v8838
      %vm8970 = vcmask 261120
      %8971 = vst.msk [vmem:[%s232] sm:$0xff] %vm8970, %v8938
      %8972 = vst.msk [vmem:[%s232 + $0x8] sm:$0xff] %vm8970, %v8939
      %8973 = vst.msk [vmem:[%s232 + $0x10] sm:$0xff] %vm8970, %v8940
      %8974 = vst.msk [vmem:[%s232 + $0x18] sm:$0xff] %vm8970, %v8941
      %8975 = vst.msk [vmem:[%s232 + $0x20] sm:$0xff] %vm8970, %v8942
      %8976 = vst.msk [vmem:[%s232 + $0x28] sm:$0xff] %vm8970, %v8943
      %8977 = vst.msk [vmem:[%s232 + $0x30] sm:$0xff] %vm8970, %v8944
      %8978 = vst.msk [vmem:[%s232 + $0x38] sm:$0xff] %vm8970, %v8945
      %8979 = vst.msk [vmem:[%s232 + $0x40] sm:$0xff] %vm8970, %v8946
      %8980 = vst.msk [vmem:[%s232 + $0x48] sm:$0xff] %vm8970, %v8947
      %8981 = vst.msk [vmem:[%s232 + $0x50] sm:$0xff] %vm8970, %v8948
      %8982 = vst.msk [vmem:[%s232 + $0x58] sm:$0xff] %vm8970, %v8949
      %8983 = vst.msk [vmem:[%s232 + $0x60] sm:$0xff] %vm8970, %v8950
      %8984 = vst.msk [vmem:[%s232 + $0x68] sm:$0xff] %vm8970, %v8951
      %8985 = vst.msk [vmem:[%s232 + $0x70] sm:$0xff] %vm8970, %v8952
      %8986 = vst.msk [vmem:[%s232 + $0x78] sm:$0xff] %vm8970, %v8953
      %8987 = vst.msk [vmem:[%s232 + $0x80] sm:$0xff] %vm8970, %v8954
      %8988 = vst.msk [vmem:[%s232 + $0x88] sm:$0xff] %vm8970, %v8955
      %8989 = vst.msk [vmem:[%s232 + $0x90] sm:$0xff] %vm8970, %v8956
      %8990 = vst.msk [vmem:[%s232 + $0x98] sm:$0xff] %vm8970, %v8957
      %8991 = vst.msk [vmem:[%s232 + $0xa0] sm:$0xff] %vm8970, %v8958
      %8992 = vst.msk [vmem:[%s232 + $0xa8] sm:$0xff] %vm8970, %v8959
      %8993 = vst.msk [vmem:[%s232 + $0xb0] sm:$0xff] %vm8970, %v8960
      %8994 = vst.msk [vmem:[%s232 + $0xb8] sm:$0xff] %vm8970, %v8961
      %8995 = vst.msk [vmem:[%s232 + $0xc0] sm:$0xff] %vm8970, %v8962
      %8996 = vst.msk [vmem:[%s232 + $0xc8] sm:$0xff] %vm8970, %v8963
      %8997 = vst.msk [vmem:[%s232 + $0xd0] sm:$0xff] %vm8970, %v8964
      %8998 = vst.msk [vmem:[%s232 + $0xd8] sm:$0xff] %vm8970, %v8965
      %8999 = vst.msk [vmem:[%s232 + $0xe0] sm:$0xff] %vm8970, %v8966
      %9000 = vst.msk [vmem:[%s232 + $0xe8] sm:$0xff] %vm8970, %v8967
      %9001 = vst.msk [vmem:[%s232 + $0xf0] sm:$0xff] %vm8970, %v8968
      %9002 = vst.msk [vmem:[%s232 + $0xf8] sm:$0xff] %vm8970, %v8969
      %v9003 = vsel %vm304, %v271, 0.0
      %v9004 = vsel %vm304, %v272, 0.0
      %v9005 = vadd.f32 %v9003, %v9004
      %v9006 = vsel %vm304, %v273, 0.0
      %v9007 = vadd.f32 %v9005, %v9006
      %v9008 = vsel %vm304, %v274, 0.0
      %v9009 = vadd.f32 %v9007, %v9008
      %v9010 = vsel %vm304, %v275, 0.0
      %v9011 = vadd.f32 %v9009, %v9010
      %v9012 = vsel %vm304, %v276, 0.0
      %v9013 = vadd.f32 %v9011, %v9012
      %v9014 = vsel %vm304, %v277, 0.0
      %v9015 = vadd.f32 %v9013, %v9014
      %v9016 = vsel %vm304, %v278, 0.0
      %v9017 = vadd.f32 %v9015, %v9016
      %v9018 = vsel %vm304, %v279, 0.0
      %v9019 = vadd.f32 %v9017, %v9018
      %v9020 = vsel %vm304, %v280, 0.0
      %v9021 = vadd.f32 %v9019, %v9020
      %v9022 = vsel %vm304, %v281, 0.0
      %v9023 = vadd.f32 %v9021, %v9022
      %v9024 = vsel %vm304, %v282, 0.0
      %v9025 = vadd.f32 %v9023, %v9024
      %v9026 = vsel %vm304, %v283, 0.0
      %v9027 = vadd.f32 %v9025, %v9026
      %v9028 = vsel %vm304, %v284, 0.0
      %v9029 = vadd.f32 %v9027, %v9028
      %v9030 = vsel %vm304, %v285, 0.0
      %v9031 = vadd.f32 %v9029, %v9030
      %v9032 = vsel %vm304, %v286, 0.0
      %v9033 = vadd.f32 %v9031, %v9032
      %v9034 = vsel %vm304, %v287, 0.0
      %v9035 = vadd.f32 %v9033, %v9034
      %v9036 = vsel %vm304, %v288, 0.0
      %v9037 = vadd.f32 %v9035, %v9036
      %v9038 = vsel %vm304, %v289, 0.0
      %v9039 = vadd.f32 %v9037, %v9038
      %v9040 = vsel %vm304, %v290, 0.0
      %v9041 = vadd.f32 %v9039, %v9040
      %v9042 = vsel %vm304, %v291, 0.0
      %v9043 = vadd.f32 %v9041, %v9042
      %v9044 = vsel %vm304, %v292, 0.0
      %v9045 = vadd.f32 %v9043, %v9044
      %v9046 = vsel %vm304, %v293, 0.0
      %v9047 = vadd.f32 %v9045, %v9046
      %v9048 = vsel %vm304, %v294, 0.0
      %v9049 = vadd.f32 %v9047, %v9048
      %v9050 = vsel %vm304, %v295, 0.0
      %v9051 = vadd.f32 %v9049, %v9050
      %v9052 = vsel %vm304, %v296, 0.0
      %v9053 = vadd.f32 %v9051, %v9052
      %v9054 = vsel %vm304, %v297, 0.0
      %v9055 = vadd.f32 %v9053, %v9054
      %v9056 = vsel %vm304, %v298, 0.0
      %v9057 = vadd.f32 %v9055, %v9056
      %v9058 = vsel %vm304, %v299, 0.0
      %v9059 = vadd.f32 %v9057, %v9058
      %v9060 = vsel %vm304, %v300, 0.0
      %v9061 = vadd.f32 %v9059, %v9060
      %v9062 = vsel %vm304, %v301, 0.0
      %v9063 = vadd.f32 %v9061, %v9062
      %v9064 = vsel %vm304, %v302, 0.0
      %v9065 = vadd.f32 %v9063, %v9064
      %v9066 = vrot.slane %v9065, 4
      %v9067 = vadd.f32 %v9065, %v9066
      %v9068 = vrot.slane %v9067, 2
      %v9069 = vadd.f32 %v9067, %v9068
      %v9070 = vrot.slane %v9069, 1
      %v9071 = vadd.f32 %v9069, %v9070
      %v9072 = vrcp.pop 256.0
      %v9073 = vmul.f32 %v9071, %v9072
      %s9074 = scalar_lea.vmem %s2, 4
      %v9075 = vld [vmem:[%s9074] sm:$0xf]
      %v9077 = vsel %vm304, %v9073, 0
      %v9080 = vsel %vm401, %v9075, 0
      %9082 = vmatprep.subr.mxu0 0.0
      %9083 = vmatpush1.msra.mxu0 %v9080
      %9084 = vmatprep.subr.mxu0 0.0
      %9085 = vmatpush1.msra.mxu0 0.0
      %9086 = vmatprep.subr.mxu0 0.0
      %9087 = vmatpush1.msra.mxu0 0.0
      %9088 = vmatprep.subr.mxu0 0.0
      %9089 = vmatpush1.msra.mxu0 0.0
      %9090 = vmatprep.subr.mxu0 0.0
      %9091 = vmatpush1.msra.mxu0 0.0
      %9092 = vmatprep.subr.mxu0 0.0
      %9093 = vmatpush1.msra.mxu0 0.0
      %9094 = vmatprep.subr.mxu0 0.0
      %9095 = vmatpush1.msra.mxu0 0.0
      %9096 = vmatprep.subr.mxu0 0.0
      %9097 = vmatpush1.msra.mxu0 0.0
      %9098 = vmatprep.subr.mxu0 0.0
      %9099 = vmatpush1.msra.mxu0 0.0
      %9100 = vmatprep.subr.mxu0 0.0
      %9101 = vmatpush1.msra.mxu0 0.0
      %9102 = vmatprep.subr.mxu0 0.0
      %9103 = vmatpush1.msra.mxu0 0.0
      %9104 = vmatprep.subr.mxu0 0.0
      %9105 = vmatpush1.msra.mxu0 0.0
      %9106 = vmatprep.subr.mxu0 0.0
      %9107 = vmatpush1.msra.mxu0 0.0
      %9108 = vmatprep.subr.mxu0 0.0
      %9109 = vmatpush1.msra.mxu0 0.0
      %9110 = vmatprep.subr.mxu0 0.0
      %9111 = vmatpush1.msra.mxu0 0.0
      %9112 = vmatprep.subr.mxu0 0.0
      %9113 = vmatpush1.msra.mxu0 0.0
      %9114 = vmatprep.subr.mxu0 0.0
      %9115 = vmatpush1.msra.mxu0 0.0
      %9116 = vmatprep.subr.mxu0 0.0
      %9117 = vmatpush1.msra.mxu0 0.0
      %9118 = vmatprep.subr.mxu0 0.0
      %9119 = vmatpush1.msra.mxu0 0.0
      %9120 = vmatprep.subr.mxu0 0.0
      %9121 = vmatpush1.msra.mxu0 0.0
      %9122 = vmatprep.subr.mxu0 0.0
      %9123 = vmatpush1.msra.mxu0 0.0
      %9124 = vmatprep.subr.mxu0 0.0
      %9125 = vmatpush1.msra.mxu0 0.0
      %9126 = vmatprep.subr.mxu0 0.0
      %9127 = vmatpush1.msra.mxu0 0.0
      %9128 = vmatprep.subr.mxu0 0.0
      %9129 = vmatpush1.msra.mxu0 0.0
      %9130 = vmatprep.subr.mxu0 0.0
      %9131 = vmatpush1.msra.mxu0 0.0
      %9132 = vmatprep.subr.mxu0 0.0
      %9133 = vmatpush1.msra.mxu0 0.0
      %9134 = vmatprep.subr.mxu0 0.0
      %9135 = vmatpush1.msra.mxu0 0.0
      %9136 = vmatprep.subr.mxu0 0.0
      %9137 = vmatpush1.msra.mxu0 0.0
      %9138 = vmatprep.subr.mxu0 0.0
      %9139 = vmatpush1.msra.mxu0 0.0
      %9140 = vmatprep.subr.mxu0 0.0
      %9141 = vmatpush1.msra.mxu0 0.0
      %9142 = vmatprep.subr.mxu0 0.0
      %9143 = vmatpush1.msra.mxu0 0.0
      %9144 = vmatprep.subr.mxu0 0.0
      %9145 = vmatpush1.msra.mxu0 0.0
      %9146 = vmatprep.mubr.f32.mxu0 0.0
      %9147 = vmatmul.mubr.f32.gmra.mrb[0].mxu0 %v9077
      %v9148 = vpop.f32.mrb[0].mxu0
      %v9149 = vadd.f32 0.0, %v9148
      %v9150 = vpop.f32.mrb[0].mxu0
      %9151 = vdwg.mxu0
      %v9152 = vsel %vm8871, %v472, 0.0
      %v9153 = vsel %vm8871, %v477, 0.0
      %v9154 = vadd.f32 %v9152, %v9153
      %v9155 = vsel %vm8871, %v482, 0.0
      %v9156 = vadd.f32 %v9154, %v9155
      %v9157 = vsel %vm8871, %v487, 0.0
      %v9158 = vadd.f32 %v9156, %v9157
      %v9159 = vsel %vm8871, %v492, 0.0
      %v9160 = vadd.f32 %v9158, %v9159
      %v9161 = vsel %vm8871, %v497, 0.0
      %v9162 = vadd.f32 %v9160, %v9161
      %v9163 = vsel %vm8871, %v502, 0.0
      %v9164 = vadd.f32 %v9162, %v9163
      %v9165 = vsel %vm8871, %v507, 0.0
      %v9166 = vadd.f32 %v9164, %v9165
      %v9167 = vsel %vm8871, %v512, 0.0
      %v9168 = vadd.f32 %v9166, %v9167
      %v9169 = vsel %vm8871, %v517, 0.0
      %v9170 = vadd.f32 %v9168, %v9169
      %v9171 = vsel %vm8871, %v522, 0.0
      %v9172 = vadd.f32 %v9170, %v9171
      %v9173 = vsel %vm8871, %v527, 0.0
      %v9174 = vadd.f32 %v9172, %v9173
      %v9175 = vsel %vm8871, %v532, 0.0
      %v9176 = vadd.f32 %v9174, %v9175
      %v9177 = vsel %vm8871, %v537, 0.0
      %v9178 = vadd.f32 %v9176, %v9177
      %v9179 = vsel %vm8871, %v542, 0.0
      %v9180 = vadd.f32 %v9178, %v9179
      %v9181 = vsel %vm8871, %v547, 0.0
      %v9182 = vadd.f32 %v9180, %v9181
      %v9183 = vsel %vm8871, %v552, 0.0
      %v9184 = vadd.f32 %v9182, %v9183
      %v9185 = vsel %vm8871, %v557, 0.0
      %v9186 = vadd.f32 %v9184, %v9185
      %v9187 = vsel %vm8871, %v562, 0.0
      %v9188 = vadd.f32 %v9186, %v9187
      %v9189 = vsel %vm8871, %v567, 0.0
      %v9190 = vadd.f32 %v9188, %v9189
      %v9191 = vsel %vm8871, %v572, 0.0
      %v9192 = vadd.f32 %v9190, %v9191
      %v9193 = vsel %vm8871, %v577, 0.0
      %v9194 = vadd.f32 %v9192, %v9193
      %v9195 = vsel %vm8871, %v582, 0.0
      %v9196 = vadd.f32 %v9194, %v9195
      %v9197 = vsel %vm8871, %v587, 0.0
      %v9198 = vadd.f32 %v9196, %v9197
      %v9199 = vsel %vm8871, %v592, 0.0
      %v9200 = vadd.f32 %v9198, %v9199
      %v9201 = vsel %vm8871, %v597, 0.0
      %v9202 = vadd.f32 %v9200, %v9201
      %v9203 = vsel %vm8871, %v602, 0.0
      %v9204 = vadd.f32 %v9202, %v9203
      %v9205 = vsel %vm8871, %v607, 0.0
      %v9206 = vadd.f32 %v9204, %v9205
      %v9207 = vsel %vm8871, %v612, 0.0
      %v9208 = vadd.f32 %v9206, %v9207
      %v9209 = vsel %vm8871, %v617, 0.0
      %v9210 = vadd.f32 %v9208, %v9209
      %v9211 = vsel %vm8871, %v622, 0.0
      %v9212 = vadd.f32 %v9210, %v9211
      %v9213 = vsel %vm8871, %v627, 0.0
      %v9214 = vadd.f32 %v9212, %v9213
      %v9215 = vrot.slane %v9214, 4
      %v9216 = vadd.f32 %v9214, %v9215
      %v9217 = vrot.slane %v9216, 2
      %v9218 = vadd.f32 %v9216, %v9217
      %v9219 = vrot.slane %v9218, 1
      %v9220 = vadd.f32 %v9218, %v9219
      %v9221 = vsel %vm8871, %v4427, 0.0
      %v9222 = vsel %vm8871, %v4428, 0.0
      %v9223 = vadd.f32 %v9221, %v9222
      %v9224 = vsel %vm8871, %v4429, 0.0
      %v9225 = vadd.f32 %v9223, %v9224
      %v9226 = vsel %vm8871, %v4430, 0.0
      %v9227 = vadd.f32 %v9225, %v9226
      %v9228 = vsel %vm8871, %v4431, 0.0
      %v9229 = vadd.f32 %v9227, %v9228
      %v9230 = vsel %vm8871, %v4432, 0.0
      %v9231 = vadd.f32 %v9229, %v9230
      %v9232 = vsel %vm8871, %v4433, 0.0
      %v9233 = vadd.f32 %v9231, %v9232
      %v9234 = vsel %vm8871, %v4434, 0.0
      %v9235 = vadd.f32 %v9233, %v9234
      %v9236 = vsel %vm8871, %v4435, 0.0
      %v9237 = vadd.f32 %v9235, %v9236
      %v9238 = vsel %vm8871, %v4436, 0.0
      %v9239 = vadd.f32 %v9237, %v9238
      %v9240 = vsel %vm8871, %v4437, 0.0
      %v9241 = vadd.f32 %v9239, %v9240
      %v9242 = vsel %vm8871, %v4438, 0.0
      %v9243 = vadd.f32 %v9241, %v9242
      %v9244 = vsel %vm8871, %v4439, 0.0
      %v9245 = vadd.f32 %v9243, %v9244
      %v9246 = vsel %vm8871, %v4440, 0.0
      %v9247 = vadd.f32 %v9245, %v9246
      %v9248 = vsel %vm8871, %v4441, 0.0
      %v9249 = vadd.f32 %v9247, %v9248
      %v9250 = vsel %vm8871, %v4442, 0.0
      %v9251 = vadd.f32 %v9249, %v9250
      %v9252 = vsel %vm8871, %v4443, 0.0
      %v9253 = vadd.f32 %v9251, %v9252
      %v9254 = vsel %vm8871, %v4444, 0.0
      %v9255 = vadd.f32 %v9253, %v9254
      %v9256 = vsel %vm8871, %v4445, 0.0
      %v9257 = vadd.f32 %v9255, %v9256
      %v9258 = vsel %vm8871, %v4446, 0.0
      %v9259 = vadd.f32 %v9257, %v9258
      %v9260 = vsel %vm8871, %v4447, 0.0
      %v9261 = vadd.f32 %v9259, %v9260
      %v9262 = vsel %vm8871, %v4448, 0.0
      %v9263 = vadd.f32 %v9261, %v9262
      %v9264 = vsel %vm8871, %v4449, 0.0
      %v9265 = vadd.f32 %v9263, %v9264
      %v9266 = vsel %vm8871, %v4450, 0.0
      %v9267 = vadd.f32 %v9265, %v9266
      %v9268 = vsel %vm8871, %v4451, 0.0
      %v9269 = vadd.f32 %v9267, %v9268
      %v9270 = vsel %vm8871, %v4452, 0.0
      %v9271 = vadd.f32 %v9269, %v9270
      %v9272 = vsel %vm8871, %v4453, 0.0
      %v9273 = vadd.f32 %v9271, %v9272
      %v9274 = vsel %vm8871, %v4454, 0.0
      %v9275 = vadd.f32 %v9273, %v9274
      %v9276 = vsel %vm8871, %v4455, 0.0
      %v9277 = vadd.f32 %v9275, %v9276
      %v9278 = vsel %vm8871, %v4456, 0.0
      %v9279 = vadd.f32 %v9277, %v9278
      %v9280 = vsel %vm8871, %v4457, 0.0
      %v9281 = vadd.f32 %v9279, %v9280
      %v9282 = vsel %vm8871, %v4458, 0.0
      %v9283 = vadd.f32 %v9281, %v9282
      %v9284 = vrot.slane %v9283, 4
      %v9285 = vadd.f32 %v9283, %v9284
      %v9286 = vrot.slane %v9285, 2
      %v9287 = vadd.f32 %v9285, %v9286
      %v9288 = vrot.slane %v9287, 1
      %v9289 = vadd.f32 %v9287, %v9288
      %v9290 = vsel %vm8871, %v8225, 0.0
      %v9291 = vsel %vm8871, %v8226, 0.0
      %v9292 = vadd.f32 %v9290, %v9291
      %v9293 = vsel %vm8871, %v8227, 0.0
      %v9294 = vadd.f32 %v9292, %v9293
      %v9295 = vsel %vm8871, %v8228, 0.0
      %v9296 = vadd.f32 %v9294, %v9295
      %v9297 = vsel %vm8871, %v8229, 0.0
      %v9298 = vadd.f32 %v9296, %v9297
      %v9299 = vsel %vm8871, %v8230, 0.0
      %v9300 = vadd.f32 %v9298, %v9299
      %v9301 = vsel %vm8871, %v8231, 0.0
      %v9302 = vadd.f32 %v9300, %v9301
      %v9303 = vsel %vm8871, %v8232, 0.0
      %v9304 = vadd.f32 %v9302, %v9303
      %v9305 = vsel %vm8871, %v8233, 0.0
      %v9306 = vadd.f32 %v9304, %v9305
      %v9307 = vsel %vm8871, %v8234, 0.0
      %v9308 = vadd.f32 %v9306, %v9307
      %v9309 = vsel %vm8871, %v8235, 0.0
      %v9310 = vadd.f32 %v9308, %v9309
      %v9311 = vsel %vm8871, %v8236, 0.0
      %v9312 = vadd.f32 %v9310, %v9311
      %v9313 = vsel %vm8871, %v8237, 0.0
      %v9314 = vadd.f32 %v9312, %v9313
      %v9315 = vsel %vm8871, %v8238, 0.0
      %v9316 = vadd.f32 %v9314, %v9315
      %v9317 = vsel %vm8871, %v8239, 0.0
      %v9318 = vadd.f32 %v9316, %v9317
      %v9319 = vsel %vm8871, %v8240, 0.0
      %v9320 = vadd.f32 %v9318, %v9319
      %v9321 = vsel %vm8871, %v8241, 0.0
      %v9322 = vadd.f32 %v9320, %v9321
      %v9323 = vsel %vm8871, %v8242, 0.0
      %v9324 = vadd.f32 %v9322, %v9323
      %v9325 = vsel %vm8871, %v8243, 0.0
      %v9326 = vadd.f32 %v9324, %v9325
      %v9327 = vsel %vm8871, %v8244, 0.0
      %v9328 = vadd.f32 %v9326, %v9327
      %v9329 = vsel %vm8871, %v8245, 0.0
      %v9330 = vadd.f32 %v9328, %v9329
      %v9331 = vsel %vm8871, %v8246, 0.0
      %v9332 = vadd.f32 %v9330, %v9331
      %v9333 = vsel %vm8871, %v8247, 0.0
      %v9334 = vadd.f32 %v9332, %v9333
      %v9335 = vsel %vm8871, %v8248, 0.0
      %v9336 = vadd.f32 %v9334, %v9335
      %v9337 = vsel %vm8871, %v8249, 0.0
      %v9338 = vadd.f32 %v9336, %v9337
      %v9339 = vsel %vm8871, %v8250, 0.0
      %v9340 = vadd.f32 %v9338, %v9339
      %v9341 = vsel %vm8871, %v8251, 0.0
      %v9342 = vadd.f32 %v9340, %v9341
      %v9343 = vsel %vm8871, %v8252, 0.0
      %v9344 = vadd.f32 %v9342, %v9343
      %v9345 = vsel %vm8871, %v8253, 0.0
      %v9346 = vadd.f32 %v9344, %v9345
      %v9347 = vsel %vm8871, %v8254, 0.0
      %v9348 = vadd.f32 %v9346, %v9347
      %v9349 = vsel %vm8871, %v8255, 0.0
      %v9350 = vadd.f32 %v9348, %v9349
      %v9351 = vsel %vm8871, %v8256, 0.0
      %v9352 = vadd.f32 %v9350, %v9351
      %v9353 = vrot.slane %v9352, 4
      %v9354 = vadd.f32 %v9352, %v9353
      %v9355 = vrot.slane %v9354, 2
      %v9356 = vadd.f32 %v9354, %v9355
      %v9357 = vrot.slane %v9356, 1
      %v9358 = vadd.f32 %v9356, %v9357
      %v9359 = vsel %vm8871, %v8329, 0.0
      %v9360 = vsel %vm8871, %v8334, 0.0
      %v9361 = vadd.f32 %v9359, %v9360
      %v9362 = vsel %vm8871, %v8339, 0.0
      %v9363 = vadd.f32 %v9361, %v9362
      %v9364 = vsel %vm8871, %v8344, 0.0
      %v9365 = vadd.f32 %v9363, %v9364
      %v9366 = vsel %vm8871, %v8349, 0.0
      %v9367 = vadd.f32 %v9365, %v9366
      %v9368 = vsel %vm8871, %v8354, 0.0
      %v9369 = vadd.f32 %v9367, %v9368
      %v9370 = vsel %vm8871, %v8359, 0.0
      %v9371 = vadd.f32 %v9369, %v9370
      %v9372 = vsel %vm8871, %v8364, 0.0
      %v9373 = vadd.f32 %v9371, %v9372
      %v9374 = vsel %vm8871, %v8369, 0.0
      %v9375 = vadd.f32 %v9373, %v9374
      %v9376 = vsel %vm8871, %v8374, 0.0
      %v9377 = vadd.f32 %v9375, %v9376
      %v9378 = vsel %vm8871, %v8379, 0.0
      %v9379 = vadd.f32 %v9377, %v9378
      %v9380 = vsel %vm8871, %v8384, 0.0
      %v9381 = vadd.f32 %v9379, %v9380
      %v9382 = vsel %vm8871, %v8389, 0.0
      %v9383 = vadd.f32 %v9381, %v9382
      %v9384 = vsel %vm8871, %v8394, 0.0
      %v9385 = vadd.f32 %v9383, %v9384
      %v9386 = vsel %vm8871, %v8399, 0.0
      %v9387 = vadd.f32 %v9385, %v9386
      %v9388 = vsel %vm8871, %v8404, 0.0
      %v9389 = vadd.f32 %v9387, %v9388
      %v9390 = vsel %vm8871, %v8409, 0.0
      %v9391 = vadd.f32 %v9389, %v9390
      %v9392 = vsel %vm8871, %v8414, 0.0
      %v9393 = vadd.f32 %v9391, %v9392
      %v9394 = vsel %vm8871, %v8419, 0.0
      %v9395 = vadd.f32 %v9393, %v9394
      %v9396 = vsel %vm8871, %v8424, 0.0
      %v9397 = vadd.f32 %v9395, %v9396
      %v9398 = vsel %vm8871, %v8429, 0.0
      %v9399 = vadd.f32 %v9397, %v9398
      %v9400 = vsel %vm8871, %v8434, 0.0
      %v9401 = vadd.f32 %v9399, %v9400
      %v9402 = vsel %vm8871, %v8439, 0.0
      %v9403 = vadd.f32 %v9401, %v9402
      %v9404 = vsel %vm8871, %v8444, 0.0
      %v9405 = vadd.f32 %v9403, %v9404
      %v9406 = vsel %vm8871, %v8449, 0.0
      %v9407 = vadd.f32 %v9405, %v9406
      %v9408 = vsel %vm8871, %v8454, 0.0
      %v9409 = vadd.f32 %v9407, %v9408
      %v9410 = vsel %vm8871, %v8459, 0.0
      %v9411 = vadd.f32 %v9409, %v9410
      %v9412 = vsel %vm8871, %v8464, 0.0
      %v9413 = vadd.f32 %v9411, %v9412
      %v9414 = vsel %vm8871, %v8469, 0.0
      %v9415 = vadd.f32 %v9413, %v9414
      %v9416 = vsel %vm8871, %v8474, 0.0
      %v9417 = vadd.f32 %v9415, %v9416
      %v9418 = vsel %vm8871, %v8479, 0.0
      %v9419 = vadd.f32 %v9417, %v9418
      %v9420 = vsel %vm8871, %v8484, 0.0
      %v9421 = vadd.f32 %v9419, %v9420
      %v9422 = vrot.slane %v9421, 4
      %v9423 = vadd.f32 %v9421, %v9422
      %v9424 = vrot.slane %v9423, 2
      %v9425 = vadd.f32 %v9423, %v9424
      %v9426 = vrot.slane %v9425, 1
      %v9427 = vadd.f32 %v9425, %v9426
      %v9428 = vmul.f32 %v472, %v472
      %v9429 = vmul.f32 %v477, %v477
      %v9430 = vmul.f32 %v482, %v482
      %v9431 = vmul.f32 %v487, %v487
      %v9432 = vmul.f32 %v492, %v492
      %v9433 = vmul.f32 %v497, %v497
      %v9434 = vmul.f32 %v502, %v502
      %v9435 = vmul.f32 %v507, %v507
      %v9436 = vmul.f32 %v512, %v512
      %v9437 = vmul.f32 %v517, %v517
      %v9438 = vmul.f32 %v522, %v522
      %v9439 = vmul.f32 %v527, %v527
      %v9440 = vmul.f32 %v532, %v532
      %v9441 = vmul.f32 %v537, %v537
      %v9442 = vmul.f32 %v542, %v542
      %v9443 = vmul.f32 %v547, %v547
      %v9444 = vmul.f32 %v552, %v552
      %v9445 = vmul.f32 %v557, %v557
      %v9446 = vmul.f32 %v562, %v562
      %v9447 = vmul.f32 %v567, %v567
      %v9448 = vmul.f32 %v572, %v572
      %v9449 = vmul.f32 %v577, %v577
      %v9450 = vmul.f32 %v582, %v582
      %v9451 = vmul.f32 %v587, %v587
      %v9452 = vmul.f32 %v592, %v592
      %v9453 = vmul.f32 %v597, %v597
      %v9454 = vmul.f32 %v602, %v602
      %v9455 = vmul.f32 %v607, %v607
      %v9456 = vmul.f32 %v612, %v612
      %v9457 = vmul.f32 %v617, %v617
      %v9458 = vmul.f32 %v622, %v622
      %v9459 = vmul.f32 %v627, %v627
      %v9460 = vsel %vm8871, %v9428, 0.0
      %v9461 = vsel %vm8871, %v9429, 0.0
      %v9462 = vadd.f32 %v9460, %v9461
      %v9463 = vsel %vm8871, %v9430, 0.0
      %v9464 = vadd.f32 %v9462, %v9463
      %v9465 = vsel %vm8871, %v9431, 0.0
      %v9466 = vadd.f32 %v9464, %v9465
      %v9467 = vsel %vm8871, %v9432, 0.0
      %v9468 = vadd.f32 %v9466, %v9467
      %v9469 = vsel %vm8871, %v9433, 0.0
      %v9470 = vadd.f32 %v9468, %v9469
      %v9471 = vsel %vm8871, %v9434, 0.0
      %v9472 = vadd.f32 %v9470, %v9471
      %v9473 = vsel %vm8871, %v9435, 0.0
      %v9474 = vadd.f32 %v9472, %v9473
      %v9475 = vsel %vm8871, %v9436, 0.0
      %v9476 = vadd.f32 %v9474, %v9475
      %v9477 = vsel %vm8871, %v9437, 0.0
      %v9478 = vadd.f32 %v9476, %v9477
      %v9479 = vsel %vm8871, %v9438, 0.0
      %v9480 = vadd.f32 %v9478, %v9479
      %v9481 = vsel %vm8871, %v9439, 0.0
      %v9482 = vadd.f32 %v9480, %v9481
      %v9483 = vsel %vm8871, %v9440, 0.0
      %v9484 = vadd.f32 %v9482, %v9483
      %v9485 = vsel %vm8871, %v9441, 0.0
      %v9486 = vadd.f32 %v9484, %v9485
      %v9487 = vsel %vm8871, %v9442, 0.0
      %v9488 = vadd.f32 %v9486, %v9487
      %v9489 = vsel %vm8871, %v9443, 0.0
      %v9490 = vadd.f32 %v9488, %v9489
      %v9491 = vsel %vm8871, %v9444, 0.0
      %v9492 = vadd.f32 %v9490, %v9491
      %v9493 = vsel %vm8871, %v9445, 0.0
      %v9494 = vadd.f32 %v9492, %v9493
      %v9495 = vsel %vm8871, %v9446, 0.0
      %v9496 = vadd.f32 %v9494, %v9495
      %v9497 = vsel %vm8871, %v9447, 0.0
      %v9498 = vadd.f32 %v9496, %v9497
      %v9499 = vsel %vm8871, %v9448, 0.0
      %v9500 = vadd.f32 %v9498, %v9499
      %v9501 = vsel %vm8871, %v9449, 0.0
      %v9502 = vadd.f32 %v9500, %v9501
      %v9503 = vsel %vm8871, %v9450, 0.0
      %v9504 = vadd.f32 %v9502, %v9503
      %v9505 = vsel %vm8871, %v9451, 0.0
      %v9506 = vadd.f32 %v9504, %v9505
      %v9507 = vsel %vm8871, %v9452, 0.0
      %v9508 = vadd.f32 %v9506, %v9507
      %v9509 = vsel %vm8871, %v9453, 0.0
      %v9510 = vadd.f32 %v9508, %v9509
      %v9511 = vsel %vm8871, %v9454, 0.0
      %v9512 = vadd.f32 %v9510, %v9511
      %v9513 = vsel %vm8871, %v9455, 0.0
      %v9514 = vadd.f32 %v9512, %v9513
      %v9515 = vsel %vm8871, %v9456, 0.0
      %v9516 = vadd.f32 %v9514, %v9515
      %v9517 = vsel %vm8871, %v9457, 0.0
      %v9518 = vadd.f32 %v9516, %v9517
      %v9519 = vsel %vm8871, %v9458, 0.0
      %v9520 = vadd.f32 %v9518, %v9519
      %v9521 = vsel %vm8871, %v9459, 0.0
      %v9522 = vadd.f32 %v9520, %v9521
      %v9523 = vrot.slane %v9522, 4
      %v9524 = vadd.f32 %v9522, %v9523
      %v9525 = vrot.slane %v9524, 2
      %v9526 = vadd.f32 %v9524, %v9525
      %v9527 = vrot.slane %v9526, 1
      %v9528 = vadd.f32 %v9526, %v9527
      %v9529 = vmul.f32 %v4427, %v4427
      %v9530 = vmul.f32 %v4428, %v4428
      %v9531 = vmul.f32 %v4429, %v4429
      %v9532 = vmul.f32 %v4430, %v4430
      %v9533 = vmul.f32 %v4431, %v4431
      %v9534 = vmul.f32 %v4432, %v4432
      %v9535 = vmul.f32 %v4433, %v4433
      %v9536 = vmul.f32 %v4434, %v4434
      %v9537 = vmul.f32 %v4435, %v4435
      %v9538 = vmul.f32 %v4436, %v4436
      %v9539 = vmul.f32 %v4437, %v4437
      %v9540 = vmul.f32 %v4438, %v4438
      %v9541 = vmul.f32 %v4439, %v4439
      %v9542 = vmul.f32 %v4440, %v4440
      %v9543 = vmul.f32 %v4441, %v4441
      %v9544 = vmul.f32 %v4442, %v4442
      %v9545 = vmul.f32 %v4443, %v4443
      %v9546 = vmul.f32 %v4444, %v4444
      %v9547 = vmul.f32 %v4445, %v4445
      %v9548 = vmul.f32 %v4446, %v4446
      %v9549 = vmul.f32 %v4447, %v4447
      %v9550 = vmul.f32 %v4448, %v4448
      %v9551 = vmul.f32 %v4449, %v4449
      %v9552 = vmul.f32 %v4450, %v4450
      %v9553 = vmul.f32 %v4451, %v4451
      %v9554 = vmul.f32 %v4452, %v4452
      %v9555 = vmul.f32 %v4453, %v4453
      %v9556 = vmul.f32 %v4454, %v4454
      %v9557 = vmul.f32 %v4455, %v4455
      %v9558 = vmul.f32 %v4456, %v4456
      %v9559 = vmul.f32 %v4457, %v4457
      %v9560 = vmul.f32 %v4458, %v4458
      %v9561 = vsel %vm8871, %v9529, 0.0
      %v9562 = vsel %vm8871, %v9530, 0.0
      %v9563 = vadd.f32 %v9561, %v9562
      %v9564 = vsel %vm8871, %v9531, 0.0
      %v9565 = vadd.f32 %v9563, %v9564
      %v9566 = vsel %vm8871, %v9532, 0.0
      %v9567 = vadd.f32 %v9565, %v9566
      %v9568 = vsel %vm8871, %v9533, 0.0
      %v9569 = vadd.f32 %v9567, %v9568
      %v9570 = vsel %vm8871, %v9534, 0.0
      %v9571 = vadd.f32 %v9569, %v9570
      %v9572 = vsel %vm8871, %v9535, 0.0
      %v9573 = vadd.f32 %v9571, %v9572
      %v9574 = vsel %vm8871, %v9536, 0.0
      %v9575 = vadd.f32 %v9573, %v9574
      %v9576 = vsel %vm8871, %v9537, 0.0
      %v9577 = vadd.f32 %v9575, %v9576
      %v9578 = vsel %vm8871, %v9538, 0.0
      %v9579 = vadd.f32 %v9577, %v9578
      %v9580 = vsel %vm8871, %v9539, 0.0
      %v9581 = vadd.f32 %v9579, %v9580
      %v9582 = vsel %vm8871, %v9540, 0.0
      %v9583 = vadd.f32 %v9581, %v9582
      %v9584 = vsel %vm8871, %v9541, 0.0
      %v9585 = vadd.f32 %v9583, %v9584
      %v9586 = vsel %vm8871, %v9542, 0.0
      %v9587 = vadd.f32 %v9585, %v9586
      %v9588 = vsel %vm8871, %v9543, 0.0
      %v9589 = vadd.f32 %v9587, %v9588
      %v9590 = vsel %vm8871, %v9544, 0.0
      %v9591 = vadd.f32 %v9589, %v9590
      %v9592 = vsel %vm8871, %v9545, 0.0
      %v9593 = vadd.f32 %v9591, %v9592
      %v9594 = vsel %vm8871, %v9546, 0.0
      %v9595 = vadd.f32 %v9593, %v9594
      %v9596 = vsel %vm8871, %v9547, 0.0
      %v9597 = vadd.f32 %v9595, %v9596
      %v9598 = vsel %vm8871, %v9548, 0.0
      %v9599 = vadd.f32 %v9597, %v9598
      %v9600 = vsel %vm8871, %v9549, 0.0
      %v9601 = vadd.f32 %v9599, %v9600
      %v9602 = vsel %vm8871, %v9550, 0.0
      %v9603 = vadd.f32 %v9601, %v9602
      %v9604 = vsel %vm8871, %v9551, 0.0
      %v9605 = vadd.f32 %v9603, %v9604
      %v9606 = vsel %vm8871, %v9552, 0.0
      %v9607 = vadd.f32 %v9605, %v9606
      %v9608 = vsel %vm8871, %v9553, 0.0
      %v9609 = vadd.f32 %v9607, %v9608
      %v9610 = vsel %vm8871, %v9554, 0.0
      %v9611 = vadd.f32 %v9609, %v9610
      %v9612 = vsel %vm8871, %v9555, 0.0
      %v9613 = vadd.f32 %v9611, %v9612
      %v9614 = vsel %vm8871, %v9556, 0.0
      %v9615 = vadd.f32 %v9613, %v9614
      %v9616 = vsel %vm8871, %v9557, 0.0
      %v9617 = vadd.f32 %v9615, %v9616
      %v9618 = vsel %vm8871, %v9558, 0.0
      %v9619 = vadd.f32 %v9617, %v9618
      %v9620 = vsel %vm8871, %v9559, 0.0
      %v9621 = vadd.f32 %v9619, %v9620
      %v9622 = vsel %vm8871, %v9560, 0.0
      %v9623 = vadd.f32 %v9621, %v9622
      %v9624 = vrot.slane %v9623, 4
      %v9625 = vadd.f32 %v9623, %v9624
      %v9626 = vrot.slane %v9625, 2
      %v9627 = vadd.f32 %v9625, %v9626
      %v9628 = vrot.slane %v9627, 1
      %v9629 = vadd.f32 %v9627, %v9628
      %v9630 = vmul.f32 %v8225, %v8225
      %v9631 = vmul.f32 %v8226, %v8226
      %v9632 = vmul.f32 %v8227, %v8227
      %v9633 = vmul.f32 %v8228, %v8228
      %v9634 = vmul.f32 %v8229, %v8229
      %v9635 = vmul.f32 %v8230, %v8230
      %v9636 = vmul.f32 %v8231, %v8231
      %v9637 = vmul.f32 %v8232, %v8232
      %v9638 = vmul.f32 %v8233, %v8233
      %v9639 = vmul.f32 %v8234, %v8234
      %v9640 = vmul.f32 %v8235, %v8235
      %v9641 = vmul.f32 %v8236, %v8236
      %v9642 = vmul.f32 %v8237, %v8237
      %v9643 = vmul.f32 %v8238, %v8238
      %v9644 = vmul.f32 %v8239, %v8239
      %v9645 = vmul.f32 %v8240, %v8240
      %v9646 = vmul.f32 %v8241, %v8241
      %v9647 = vmul.f32 %v8242, %v8242
      %v9648 = vmul.f32 %v8243, %v8243
      %v9649 = vmul.f32 %v8244, %v8244
      %v9650 = vmul.f32 %v8245, %v8245
      %v9651 = vmul.f32 %v8246, %v8246
      %v9652 = vmul.f32 %v8247, %v8247
      %v9653 = vmul.f32 %v8248, %v8248
      %v9654 = vmul.f32 %v8249, %v8249
      %v9655 = vmul.f32 %v8250, %v8250
      %v9656 = vmul.f32 %v8251, %v8251
      %v9657 = vmul.f32 %v8252, %v8252
      %v9658 = vmul.f32 %v8253, %v8253
      %v9659 = vmul.f32 %v8254, %v8254
      %v9660 = vmul.f32 %v8255, %v8255
      %v9661 = vmul.f32 %v8256, %v8256
      %v9662 = vsel %vm8871, %v9630, 0.0
      %v9663 = vsel %vm8871, %v9631, 0.0
      %v9664 = vadd.f32 %v9662, %v9663
      %v9665 = vsel %vm8871, %v9632, 0.0
      %v9666 = vadd.f32 %v9664, %v9665
      %v9667 = vsel %vm8871, %v9633, 0.0
      %v9668 = vadd.f32 %v9666, %v9667
      %v9669 = vsel %vm8871, %v9634, 0.0
      %v9670 = vadd.f32 %v9668, %v9669
      %v9671 = vsel %vm8871, %v9635, 0.0
      %v9672 = vadd.f32 %v9670, %v9671
      %v9673 = vsel %vm8871, %v9636, 0.0
      %v9674 = vadd.f32 %v9672, %v9673
      %v9675 = vsel %vm8871, %v9637, 0.0
      %v9676 = vadd.f32 %v9674, %v9675
      %v9677 = vsel %vm8871, %v9638, 0.0
      %v9678 = vadd.f32 %v9676, %v9677
      %v9679 = vsel %vm8871, %v9639, 0.0
      %v9680 = vadd.f32 %v9678, %v9679
      %v9681 = vsel %vm8871, %v9640, 0.0
      %v9682 = vadd.f32 %v9680, %v9681
      %v9683 = vsel %vm8871, %v9641, 0.0
      %v9684 = vadd.f32 %v9682, %v9683
      %v9685 = vsel %vm8871, %v9642, 0.0
      %v9686 = vadd.f32 %v9684, %v9685
      %v9687 = vsel %vm8871, %v9643, 0.0
      %v9688 = vadd.f32 %v9686, %v9687
      %v9689 = vsel %vm8871, %v9644, 0.0
      %v9690 = vadd.f32 %v9688, %v9689
      %v9691 = vsel %vm8871, %v9645, 0.0
      %v9692 = vadd.f32 %v9690, %v9691
      %v9693 = vsel %vm8871, %v9646, 0.0
      %v9694 = vadd.f32 %v9692, %v9693
      %v9695 = vsel %vm8871, %v9647, 0.0
      %v9696 = vadd.f32 %v9694, %v9695
      %v9697 = vsel %vm8871, %v9648, 0.0
      %v9698 = vadd.f32 %v9696, %v9697
      %v9699 = vsel %vm8871, %v9649, 0.0
      %v9700 = vadd.f32 %v9698, %v9699
      %v9701 = vsel %vm8871, %v9650, 0.0
      %v9702 = vadd.f32 %v9700, %v9701
      %v9703 = vsel %vm8871, %v9651, 0.0
      %v9704 = vadd.f32 %v9702, %v9703
      %v9705 = vsel %vm8871, %v9652, 0.0
      %v9706 = vadd.f32 %v9704, %v9705
      %v9707 = vsel %vm8871, %v9653, 0.0
      %v9708 = vadd.f32 %v9706, %v9707
      %v9709 = vsel %vm8871, %v9654, 0.0
      %v9710 = vadd.f32 %v9708, %v9709
      %v9711 = vsel %vm8871, %v9655, 0.0
      %v9712 = vadd.f32 %v9710, %v9711
      %v9713 = vsel %vm8871, %v9656, 0.0
      %v9714 = vadd.f32 %v9712, %v9713
      %v9715 = vsel %vm8871, %v9657, 0.0
      %v9716 = vadd.f32 %v9714, %v9715
      %v9717 = vsel %vm8871, %v9658, 0.0
      %v9718 = vadd.f32 %v9716, %v9717
      %v9719 = vsel %vm8871, %v9659, 0.0
      %v9720 = vadd.f32 %v9718, %v9719
      %v9721 = vsel %vm8871, %v9660, 0.0
      %v9722 = vadd.f32 %v9720, %v9721
      %v9723 = vsel %vm8871, %v9661, 0.0
      %v9724 = vadd.f32 %v9722, %v9723
      %v9725 = vrot.slane %v9724, 4
      %v9726 = vadd.f32 %v9724, %v9725
      %v9727 = vrot.slane %v9726, 2
      %v9728 = vadd.f32 %v9726, %v9727
      %v9729 = vrot.slane %v9728, 1
      %v9730 = vadd.f32 %v9728, %v9729
      %v9731 = vmul.f32 %v8329, %v8329
      %v9732 = vmul.f32 %v8334, %v8334
      %v9733 = vmul.f32 %v8339, %v8339
      %v9734 = vmul.f32 %v8344, %v8344
      %v9735 = vmul.f32 %v8349, %v8349
      %v9736 = vmul.f32 %v8354, %v8354
      %v9737 = vmul.f32 %v8359, %v8359
      %v9738 = vmul.f32 %v8364, %v8364
      %v9739 = vmul.f32 %v8369, %v8369
      %v9740 = vmul.f32 %v8374, %v8374
      %v9741 = vmul.f32 %v8379, %v8379
      %v9742 = vmul.f32 %v8384, %v8384
      %v9743 = vmul.f32 %v8389, %v8389
      %v9744 = vmul.f32 %v8394, %v8394
      %v9745 = vmul.f32 %v8399, %v8399
      %v9746 = vmul.f32 %v8404, %v8404
      %v9747 = vmul.f32 %v8409, %v8409
      %v9748 = vmul.f32 %v8414, %v8414
      %v9749 = vmul.f32 %v8419, %v8419
      %v9750 = vmul.f32 %v8424, %v8424
      %v9751 = vmul.f32 %v8429, %v8429
      %v9752 = vmul.f32 %v8434, %v8434
      %v9753 = vmul.f32 %v8439, %v8439
      %v9754 = vmul.f32 %v8444, %v8444
      %v9755 = vmul.f32 %v8449, %v8449
      %v9756 = vmul.f32 %v8454, %v8454
      %v9757 = vmul.f32 %v8459, %v8459
      %v9758 = vmul.f32 %v8464, %v8464
      %v9759 = vmul.f32 %v8469, %v8469
      %v9760 = vmul.f32 %v8474, %v8474
      %v9761 = vmul.f32 %v8479, %v8479
      %v9762 = vmul.f32 %v8484, %v8484
      %v9763 = vsel %vm8871, %v9731, 0.0
      %v9764 = vsel %vm8871, %v9732, 0.0
      %v9765 = vadd.f32 %v9763, %v9764
      %v9766 = vsel %vm8871, %v9733, 0.0
      %v9767 = vadd.f32 %v9765, %v9766
      %v9768 = vsel %vm8871, %v9734, 0.0
      %v9769 = vadd.f32 %v9767, %v9768
      %v9770 = vsel %vm8871, %v9735, 0.0
      %v9771 = vadd.f32 %v9769, %v9770
      %v9772 = vsel %vm8871, %v9736, 0.0
      %v9773 = vadd.f32 %v9771, %v9772
      %v9774 = vsel %vm8871, %v9737, 0.0
      %v9775 = vadd.f32 %v9773, %v9774
      %v9776 = vsel %vm8871, %v9738, 0.0
      %v9777 = vadd.f32 %v9775, %v9776
      %v9778 = vsel %vm8871, %v9739, 0.0
      %v9779 = vadd.f32 %v9777, %v9778
      %v9780 = vsel %vm8871, %v9740, 0.0
      %v9781 = vadd.f32 %v9779, %v9780
      %v9782 = vsel %vm8871, %v9741, 0.0
      %v9783 = vadd.f32 %v9781, %v9782
      %v9784 = vsel %vm8871, %v9742, 0.0
      %v9785 = vadd.f32 %v9783, %v9784
      %v9786 = vsel %vm8871, %v9743, 0.0
      %v9787 = vadd.f32 %v9785, %v9786
      %v9788 = vsel %vm8871, %v9744, 0.0
      %v9789 = vadd.f32 %v9787, %v9788
      %v9790 = vsel %vm8871, %v9745, 0.0
      %v9791 = vadd.f32 %v9789, %v9790
      %v9792 = vsel %vm8871, %v9746, 0.0
      %v9793 = vadd.f32 %v9791, %v9792
      %v9794 = vsel %vm8871, %v9747, 0.0
      %v9795 = vadd.f32 %v9793, %v9794
      %v9796 = vsel %vm8871, %v9748, 0.0
      %v9797 = vadd.f32 %v9795, %v9796
      %v9798 = vsel %vm8871, %v9749, 0.0
      %v9799 = vadd.f32 %v9797, %v9798
      %v9800 = vsel %vm8871, %v9750, 0.0
      %v9801 = vadd.f32 %v9799, %v9800
      %v9802 = vsel %vm8871, %v9751, 0.0
      %v9803 = vadd.f32 %v9801, %v9802
      %v9804 = vsel %vm8871, %v9752, 0.0
      %v9805 = vadd.f32 %v9803, %v9804
      %v9806 = vsel %vm8871, %v9753, 0.0
      %v9807 = vadd.f32 %v9805, %v9806
      %v9808 = vsel %vm8871, %v9754, 0.0
      %v9809 = vadd.f32 %v9807, %v9808
      %v9810 = vsel %vm8871, %v9755, 0.0
      %v9811 = vadd.f32 %v9809, %v9810
      %v9812 = vsel %vm8871, %v9756, 0.0
      %v9813 = vadd.f32 %v9811, %v9812
      %v9814 = vsel %vm8871, %v9757, 0.0
      %v9815 = vadd.f32 %v9813, %v9814
      %v9816 = vsel %vm8871, %v9758, 0.0
      %v9817 = vadd.f32 %v9815, %v9816
      %v9818 = vsel %vm8871, %v9759, 0.0
      %v9819 = vadd.f32 %v9817, %v9818
      %v9820 = vsel %vm8871, %v9760, 0.0
      %v9821 = vadd.f32 %v9819, %v9820
      %v9822 = vsel %vm8871, %v9761, 0.0
      %v9823 = vadd.f32 %v9821, %v9822
      %v9824 = vsel %vm8871, %v9762, 0.0
      %v9825 = vadd.f32 %v9823, %v9824
      %v9826 = vrot.slane %v9825, 4
      %v9827 = vadd.f32 %v9825, %v9826
      %v9828 = vrot.slane %v9827, 2
      %v9829 = vadd.f32 %v9827, %v9828
      %v9830 = vrot.slane %v9829, 1
      %v9831 = vadd.f32 %v9829, %v9830
      %vm9832 = vcmask 1040384
      %v9833 = vsel %vm9832, %v9220, %v9289
      %vm9834 = vcmask 1041408
      %v9835 = vsel %vm9834, %v9833, %v9358
      %vm9836 = vcmask 1042432
      %v9837 = vsel %vm9836, %v9835, %v9427
      %v9838 = vsel %vm401, %v9837, %v9528
      %vm9839 = vcmask 1044480
      %v9840 = vsel %vm9839, %v9838, %v9629
      %vm9841 = vcmask 1045504
      %v9842 = vsel %vm9841, %v9840, %v9730
      %vm9843 = vcmask 1046528
      %v9844 = vsel %vm9843, %v9842, %v9831
      %9845 = vst.msk [vmem:[%s238] sm:$0xff] %vm8871, %v9844
      %vm9846 = vcmask 57344
      %9847 = vst.msk [vmem:[%s238 + $0x8] sm:$0x1] %vm9846, %v9149
      %s9848 = smul.u32 32, %s17
      %p9849 = scmp.lt.s32.totalorder %s9848, 63
      %s9850 = scalar_select %p9849, %s9848, 63
      %s9851 = smul.addr %s9850, 8
      %s9852 = scalar_lea.vmem %s4, %s9851
      %p9853 = scmp.lt.s32.totalorder %s17, 1
      %s9854 = scalar_select %p9853, %s17, 1
      %s9855 = smul.addr %s9854, 2
      %s9856 = smul.addr %s9855, 8
      %s9857 = scalar_lea.vmem %s5, %s9856
      // Predicated region
      $region37: #{tpu_custom_call.1} parent=35 // pred_check
        %p9858 = pneg %p124
      $region38: #{tpu_custom_call.1} parent=35 // pred_check_branch
        %9860 = sbr.rel (%p9858) target = $region40
      $region39: #{tpu_custom_call.1} parent=35 // pred_region
        %s9861 = smul.u32 32, %s17
      $region40: #{tpu_custom_call.1} parent=35 // pred_fallthru
        _
      // Predicated region
      $region41: #{tpu_custom_call.1} parent=35 // pred_check
        %p9862 = pneg %p150
      $region42: #{tpu_custom_call.1} parent=35 // pred_check_branch
        %9864 = sbr.rel (%p9862) target = $region44
      $region43: #{tpu_custom_call.1} parent=35 // pred_region
        _
      $region44: #{tpu_custom_call.1} parent=35 // pred_fallthru
        _
    $region36: #{tpu_custom_call.1} parent=5 // pred_fallthru
      _
    %p9865 = scmp.le.s32.totalorder 2, %s12
    // Predicated region
    $region45: #{tpu_custom_call.1} parent=5 // pred_check
      %p9866 = pneg %p9865
    $region46: #{tpu_custom_call.1} parent=5 // pred_check_branch
      %9868 = sbr.rel (%p9866) target = $region48
    $region47: #{tpu_custom_call.1} parent=5 // pred_region
      %s9869 = ssub.s32 %s12, 2
      // Predicated region
      $region49: #{tpu_custom_call.1} parent=47 // pred_check
        %p9870 = pneg %p130
      $region50: #{tpu_custom_call.1} parent=47 // pred_check_branch
        %9872 = sbr.rel (%p9870) target = $region52
      $region51: #{tpu_custom_call.1} parent=47 // pred_region
        %s9873 = smul.u32 32, %s18
        %p9874 = scmp.lt.s32.totalorder %s9873, 63
        %s9875 = scalar_select %p9874, %s9873, 63
        %s9876 = smul.addr %s9875, 8
        %s9877 = scalar_lea.vmem %s4, %s9876
      $region52: #{tpu_custom_call.1} parent=47 // pred_fallthru
        _
      // Predicated region
      $region53: #{tpu_custom_call.1} parent=47 // pred_check
        %p9878 = pneg %p156
      $region54: #{tpu_custom_call.1} parent=47 // pred_check_branch
        %9880 = sbr.rel (%p9878) target = $region56
      $region55: #{tpu_custom_call.1} parent=47 // pred_region
        %p9881 = scmp.lt.s32.totalorder %s18, 1
        %s9882 = scalar_select %p9881, %s18, 1
        %s9883 = smul.addr %s9882, 2
        %s9884 = smul.addr %s9883, 8
        %s9885 = scalar_lea.vmem %s5, %s9884
      $region56: #{tpu_custom_call.1} parent=47 // pred_fallthru
        _
    $region48: #{tpu_custom_call.1} parent=5 // pred_fallthru
      _
  $region6: #{tpu_custom_call.1} parent=0 // loop_footer
    %s16 = sadd.s32 1, %s12
  $region7: #{tpu_custom_call.1} parent=0 // loop_footer_branch
    %11 = sbr.rel target = $region3
  $region8: #{tpu_custom_call.1} parent=0 // loop_exit
    _

</llo_original>
